<compile_context>
chip_gen: v7x
topology: tpu7x:2x2x1
jax: 0.10.0
libtpu: 0.0.40
codegen_flags: <defaults>
</compile_context>

<pallas_src>
import jax
import jax.numpy as jnp
from jax.experimental import pallas as pl
from jax.experimental.pallas import tpu as pltpu

POOLING_SIZE = 7
SPATIAL_SCALE = 1.0 / 16.0


# --------------------------------------------------------------------------- #
# BatchNorm3d: tiled stats kernel + tiled normalize/relayout kernel
# --------------------------------------------------------------------------- #
def bn_stats(x, eps=1e-5):
    """Per-channel mean / rstd over (B, T, H, W) of x: (B, C, T, H, W)."""
    B, C, T, H, W = x.shape
    inv_count = 1.0 / float(B * T * H * W)

    def kernel(x_ref, mean_ref, rstd_ref):
        b = pl.program_id(0)
        t = pl.program_id(1)

        @pl.when((b == 0) & (t == 0))
        def _init():
            mean_ref[...] = jnp.zeros_like(mean_ref)   # running sum
            rstd_ref[...] = jnp.zeros_like(rstd_ref)   # running sum of squares

        xx = x_ref[...]                                # (C, H, W)
        mean_ref[...] += jnp.sum(jnp.sum(xx, axis=2), axis=1, keepdims=True)
        rstd_ref[...] += jnp.sum(jnp.sum(xx * xx, axis=2), axis=1, keepdims=True)

        @pl.when((b == B - 1) & (t == T - 1))
        def _finalize():
            m = mean_ref[...] * inv_count
            v = rstd_ref[...] * inv_count - m * m
            mean_ref[...] = m
            rstd_ref[...] = jax.lax.rsqrt(v + eps)

    mean, rstd = pl.pallas_call(
        kernel,
        out_shape=(jax.ShapeDtypeStruct((C, 1), jnp.float32),
                   jax.ShapeDtypeStruct((C, 1), jnp.float32)),
        grid=(B, T),
        in_specs=[pl.BlockSpec((None, C, None, H, W), lambda b, t: (b, 0, t, 0, 0))],
        out_specs=(pl.BlockSpec((C, 1), lambda b, t: (0, 0)),
                   pl.BlockSpec((C, 1), lambda b, t: (0, 0))),
        compiler_params=pltpu.CompilerParams(
            dimension_semantics=("arbitrary", "arbitrary")),
    )(x)
    return mean, rstd


def _bn_apply_kernel(x_ref, mean_ref, rstd_ref, g_ref, b_ref, o_ref):
    x = x_ref[...]                                     # (C, H, W)
    scale = (rstd_ref[...] * g_ref[...])[:, :, None]   # (C, 1, 1)
    shift = (b_ref[...] - mean_ref[...] * rstd_ref[...] * g_ref[...])[:, :, None]
    o_ref[...] = x * scale + shift


def bn_apply(x, mean, rstd, gamma_k, beta_k):
    """Normalize x: (B, C, T, H, W) and emit it in (B, T, C, H, W) layout.

    The layout change is done by the output BlockSpec (DMA), not a separate
    materialized transpose in HBM.
    """
    B, C, T, H, W = x.shape
    return pl.pallas_call(
        _bn_apply_kernel,
        out_shape=jax.ShapeDtypeStruct((B, T, C, H, W), x.dtype),
        grid=(B, T),
        in_specs=[
            pl.BlockSpec((None, C, None, H, W), lambda b, t: (b, 0, t, 0, 0)),
            pl.BlockSpec((C, 1), lambda b, t: (0, 0)),
            pl.BlockSpec((C, 1), lambda b, t: (0, 0)),
            pl.BlockSpec((C, 1), lambda b, t: (0, 0)),
            pl.BlockSpec((C, 1), lambda b, t: (0, 0)),
        ],
        out_specs=pl.BlockSpec((None, None, C, H, W), lambda b, t: (b, t, 0, 0, 0)),
        compiler_params=pltpu.CompilerParams(
            dimension_semantics=("parallel", "parallel")),
    )(x, mean, rstd, gamma_k, beta_k)


# --------------------------------------------------------------------------- #
# Regression head: (conv folded into fc1) -> relu -> fc2 -> relu -> bbox
# --------------------------------------------------------------------------- #
def _head_kernel(x_ref, w1_ref, b1_ref, w2_ref, b2_ref, wb_ref, bb_ref, o_ref):
    # x: (M, D1) with M = B*R*T (T collapsed into the matmul M dimension).
    x = x_ref[...].astype(jnp.bfloat16)
    h1 = jnp.maximum(
        jnp.dot(x, w1_ref[...], preferred_element_type=jnp.float32) + b1_ref[...],
        0.0)
    # TODO(synk): nn.Dropout(p=0.8) is treated as inference-mode identity.
    h2 = jnp.maximum(
        jnp.dot(h1.astype(jnp.bfloat16), w2_ref[...],
                preferred_element_type=jnp.float32) + b2_ref[...],
        0.0)
    out = jnp.dot(h2.astype(jnp.bfloat16), wb_ref[...],
                  preferred_element_type=jnp.float32) + bb_ref[...]
    o_ref[...] = out.astype(o_ref.dtype)


def regression_head(feat_flat, p):
    """feat_flat: (M, D1) = (B*R*T, C*49) channel-major.  Returns (M, 4)."""
    M, D1 = feat_flat.shape
    # At demo sizes everything fits in VMEM in one step.
    # TODO(synk): at production din (D1=25088) w1 needs a K-reduction grid axis
    #             with a VMEM accumulator to fit v7x's 64 MiB VMEM.
    out = pl.pallas_call(
        _head_kernel,
        out_shape=jax.ShapeDtypeStruct((M, 128), jnp.float32),
        grid=(1,),
        in_specs=[
            pl.BlockSpec((M, D1), lambda i: (0, 0)),
            pl.BlockSpec((D1, 2048), lambda i: (0, 0)),
            pl.BlockSpec((1, 2048), lambda i: (0, 0)),
            pl.BlockSpec((2048, 512), lambda i: (0, 0)),
            pl.BlockSpec((1, 512), lambda i: (0, 0)),
            pl.BlockSpec((512, 128), lambda i: (0, 0)),
            pl.BlockSpec((1, 128), lambda i: (0, 0)),
        ],
        out_specs=pl.BlockSpec((M, 128), lambda i: (0, 0)),
    )(feat_flat, p["w1_k"], p["b1_k"], p["w2_k"], p["b2_k"], p["wb_k"], p["bb_k"])
    return out[:, :4]   # lane-dense (unmasked) store inside; slice to 4 outside


# --------------------------------------------------------------------------- #
# Plain-JAX glue
# --------------------------------------------------------------------------- #
def roi_align_avg(feats, rois, pooled_size, spatial_scale):
    """RoIAlignAvg: (P+1)x(P+1) bilinear crop + 2x2 stride-1 average pool.

    feats: (NB, C, H, W), rois: (K, 5) = [batch_idx, x1, y1, x2, y2].
    """
    # TODO(synk): RoIAlignAvg is an external CUDA op in the source repo; this is
    # a plain-JAX reimplementation (data-dependent bilinear gather).
    NB, C, H, W = feats.shape
    A = pooled_size + 1
    dt = feats.dtype
    b_idx = rois[:, 0].astype(jnp.int32)
    x1 = rois[:, 1] * spatial_scale
    y1 = rois[:, 2] * spatial_scale
    x2 = rois[:, 3] * spatial_scale
    y2 = rois[:, 4] * spatial_scale
    roi_w = jnp.maximum(x2 - x1 + 1.0, 0.0)
    roi_h = jnp.maximum(y2 - y1 + 1.0, 0.0)
    bin_w = roi_w / (A - 1.0)
    bin_h = roi_h / (A - 1.0)
    grid = jnp.arange(A, dtype=dt)
    ys = y1[:, None] + grid[None, :] * bin_h[:, None]   # (K, A)
    xs = x1[:, None] + grid[None, :] * bin_w[:, None]   # (K, A)

    def sample_one(b, ys_k, xs_k):
        img = feats[b]                                   # (C, H, W)
        vy = (ys_k >= 0) & (ys_k < H)
        vx = (xs_k >= 0) & (xs_k < W)
        y0 = jnp.clip(jnp.floor(ys_k), 0, H - 2).astype(jnp.int32)
        x0 = jnp.clip(jnp.floor(xs_k), 0, W - 2).astype(jnp.int32)
        ly = ys_k - y0.astype(dt)
        lx = xs_k - x0.astype(dt)
        g00 = img[:, y0, :][:, :, x0]
        g01 = img[:, y0, :][:, :, x0 + 1]
        g10 = img[:, y0 + 1, :][:, :, x0]
        g11 = img[:, y0 + 1, :][:, :, x0 + 1]
        wy = ly[None, :, None]
        wx = lx[None, None, :]
        crop = (g00 * (1 - wy) * (1 - wx) + g01 * (1 - wy) * wx +
                g10 * wy * (1 - wx) + g11 * wy * wx)
        mask = (vy[:, None] & vx[None, :]).astype(dt)
        return crop * mask[None]

    crops = jax.vmap(sample_one)(b_idx, ys, xs)          # (K, C, A, A)
    pooled = 0.25 * (crops[:, :, :-1, :-1] + crops[:, :, 1:, :-1] +
                     crops[:, :, :-1, 1:] + crops[:, :, 1:, 1:])
    return pooled                                        # (K, C, P, P)


def regression_layer_forward(base_feat, rois, gt_rois, params):
    """Mirror of `_Regression_Layer.forward`.

    base_feat: (B, din, T, H, W);  rois: (B, R, T, 4);  gt_rois unused.
    Returns (bbox_pred (B*R, T*4), pooled base_feat (B*R, din, T, 7, 7)).
    """
    del gt_rois
    B, C, T, H, W = base_feat.shape
    R = rois.shape[1]
    P = POOLING_SIZE

    # 1) BatchNorm3d (training-mode batch statistics) — two tiled Pallas kernels.
    # TODO(synk): eval-mode parity would need running_mean / running_var plumbed in.
    mean, rstd = bn_stats(base_feat)
    bf_btchw = bn_apply(base_feat, mean, rstd,
                        params["bn_gamma_k"], params["bn_beta_k"])   # (B, T, C, H, W)

    # 2) rois + (b*T + t) batch-index column, permuted to (B, T, R, 5)
    offset = (jnp.arange(T, dtype=rois.dtype)[None, :] +
              (jnp.arange(B, dtype=rois.dtype) * T)[:, None])            # (B, T)
    offset = jnp.broadcast_to(offset[:, None, :, None], (B, R, T, 1))
    rois5 = jnp.concatenate([offset, rois.reshape(B, R, T, 4)], axis=3)  # (B, R, T, 5)
    rois5 = jnp.transpose(rois5, (0, 2, 1, 3)).reshape(-1, 5)            # (B*T*R, 5)

    # 3) RoI align on (B*T, C, H, W) — layout already produced by bn_apply.
    feat2d = bf_btchw.reshape(B * T, C, H, W)
    pooled = roi_align_avg(feat2d, rois5, P, SPATIAL_SCALE)              # (B*T*R, C, P, P)
    pooled = pooled.reshape(B, T, R, C, P, P)
    pooled_out = jnp.transpose(pooled, (0, 2, 3, 1, 4, 5)).reshape(B * R, C, T, P, P)

    # 4) regression head: T collapsed into the matmul M dimension.
    feat_flat = jnp.transpose(pooled, (0, 2, 1, 3, 4, 5)).reshape(B * R * T, C * P * P)
    bbox = regression_head(feat_flat, params)                            # (B*R*T, 4)
    bbox_pred = bbox.reshape(B * R, T * 4)
    return bbox_pred, pooled_out


# --------------------------------------------------------------------------- #
# Parameters (deterministic, synthetic)
# --------------------------------------------------------------------------- #
def init_params(key, din, pool):
    d1 = din * pool * pool
    s = pool * pool
    ks = jax.random.split(key, 8)
    p = {
        "bn_gamma": jnp.ones((din,), jnp.float32),
        "bn_beta": jnp.zeros((din,), jnp.float32),
        "conv_w": 0.1 * jax.random.normal(ks[0], (din, din), jnp.float32),  # (out, in)
        "conv_b": 0.1 * jax.random.normal(ks[1], (din,), jnp.float32),
        "w1": 0.05 * jax.random.normal(ks[2], (2048, d1), jnp.float32),
        "b1": 0.05 * jax.random.normal(ks[3], (2048,), jnp.float32),
        "w2": 0.05 * jax.random.normal(ks[4], (512, 2048), jnp.float32),
        "b2": 0.05 * jax.random.normal(ks[5], (512,), jnp.float32),
        "wb": 0.05 * jax.random.normal(ks[6], (4, 512), jnp.float32),
        "bb": 0.05 * jax.random.normal(ks[7], (4,), jnp.float32),
    }
    # --- fold the 1x1 conv into fc1 (exact: no nonlinearity in between) ------
    w1_rs = p["w1"].reshape(2048, din, s)                               # [j, o, hw]
    w1_eff = jnp.einsum("jos,oc->jcs", w1_rs, p["conv_w"]).reshape(2048, d1)
    b1_eff = p["b1"] + jnp.einsum("jos,o->j", w1_rs, p["conv_b"])
    # --- kernel-friendly layouts: bf16 weights (head is weight-DMA bound),
    #     f32 biases, final layer lane-padded to 128 for an unmasked store ----
    p["w1_k"] = w1_eff.T.astype(jnp.bfloat16)                           # (d1, 2048)
    p["b1_k"] = b1_eff[None, :].astype(jnp.float32)
    p["w2_k"] = p["w2"].T.astype(jnp.bfloat16)                          # (2048, 512)
    p["b2_k"] = p["b2"][None, :].astype(jnp.float32)
    wb_pad = jnp.zeros((512, 128), jnp.float32).at[:, :4].set(p["wb"].T)
    bb_pad = jnp.zeros((1, 128), jnp.float32).at[0, :4].set(p["bb"])
    p["wb_k"] = wb_pad.astype(jnp.bfloat16)                             # (512, 128)
    p["bb_k"] = bb_pad
    p["bn_gamma_k"] = p["bn_gamma"].reshape(din, 1)
    p["bn_beta_k"] = p["bn_beta"].reshape(din, 1)
    return p


# --------------------------------------------------------------------------- #
# Plain-JAX references (sanity check for the kernelized pieces)
# --------------------------------------------------------------------------- #
def _bn_reference(x, gamma, beta, eps=1e-5):
    mean = x.mean(axis=(0, 2, 3, 4), keepdims=True)
    var = ((x - mean) ** 2).mean(axis=(0, 2, 3, 4), keepdims=True)
    g = gamma[None, :, None, None, None]
    b = beta[None, :, None, None, None]
    return (x - mean) / jnp.sqrt(var + eps) * g + b


def _head_reference(pooled, p):
    # pooled: (N, C, T, P, P) — torch-style layout, full f32 path with the conv.
    N, C, T, P, _ = pooled.shape
    outs = []
    for t in range(T):
        feat = pooled[:, :, t]
        conv = (jnp.einsum("oc,nchw->nohw", p["conv_w"], feat) +
                p["conv_b"][None, :, None, None])
        flat = conv.reshape(N, -1)
        h1 = jax.nn.relu(flat @ p["w1"].T + p["b1"])
        h2 = jax.nn.relu(h1 @ p["w2"].T + p["b2"])
        outs.append(h2 @ p["wb"].T + p["bb"])
    return jnp.stack(outs, axis=1).reshape(N, T * 4)


# --------------------------------------------------------------------------- #
if __name__ == "__main__":
    B, DIN, T, H, W, R = 2, 8, 4, 16, 16, 3   # batch, channels, sample_duration, feat HxW, rois/img

    key = jax.random.PRNGKey(0)
    k_feat, k_xy, k_wh, k_gt, k_par = jax.random.split(key, 5)

    base_feat = jax.random.normal(k_feat, (B, DIN, T, H, W), jnp.float32)
    xy = jax.random.uniform(k_xy, (B, R, T, 2), minval=0.0, maxval=200.0)
    wh = jax.random.uniform(k_wh, (B, R, T, 2), minval=16.0, maxval=64.0)
    rois = jnp.concatenate([xy, xy + wh], axis=-1)                 # (B, R, T, 4)
    gt_rois = jax.random.uniform(k_gt, (B, R, T, 4), minval=0.0, maxval=256.0)  # unused

    params = init_params(k_par, DIN, POOLING_SIZE)

    fwd = jax.jit(regression_layer_forward)
    bbox_pred, pooled_feat = fwd(base_feat, rois, gt_rois, params)
    bbox_pred = jax.block_until_ready(bbox_pred)
    pooled_feat = jax.block_until_ready(pooled_feat)

    assert bbox_pred.shape == (B * R, T * 4)
    assert pooled_feat.shape == (B * R, DIN, T, POOLING_SIZE, POOLING_SIZE)

    # sanity: compare kernelized path against a pure-JAX f32 reference
    bf_ref = _bn_reference(base_feat, params["bn_gamma"], params["bn_beta"])
    offset = (jnp.arange(T, dtype=rois.dtype)[None, :] +
              (jnp.arange(B, dtype=rois.dtype) * T)[:, None])
    offset = jnp.broadcast_to(offset[:, None, :, None], (B, R, T, 1))
    rois5 = jnp.concatenate([offset, rois.reshape(B, R, T, 4)], axis=3)
    rois5 = jnp.transpose(rois5, (0, 2, 1, 3)).reshape(-1, 5)
    feat2d = jnp.transpose(bf_ref, (0, 2, 1, 3, 4)).reshape(B * T, DIN, H, W)
    pooled_ref = roi_align_avg(feat2d, rois5, POOLING_SIZE, SPATIAL_SCALE)
    pooled_ref = pooled_ref.reshape(B, T, R, DIN, POOLING_SIZE, POOLING_SIZE)
    pooled_ref = jnp.transpose(pooled_ref, (0, 2, 3, 1, 4, 5)).reshape(
        B * R, DIN, T, POOLING_SIZE, POOLING_SIZE)
    bbox_ref = _head_reference(pooled_ref, params)

    assert jnp.allclose(pooled_feat, pooled_ref, rtol=5e-2, atol=5e-2)
    assert jnp.allclose(bbox_pred, bbox_ref, rtol=5e-2, atol=5e-2)

    print("KERNEL_OK")
</pallas_src>

<mosaic_0001>
module attributes {stable_mosaic.version = 11 : i64} {
  func.func @kernel(%arg0: i32, %arg1: i32, %arg2: memref<1x8x1x16x16xf32, #tpu.memory_space<vmem>>, %arg3: memref<8x1xf32, #tpu.memory_space<vmem>>, %arg4: memref<8x1xf32, #tpu.memory_space<vmem>>) attributes {dimension_semantics = [#tpu.dimension_semantics<arbitrary>, #tpu.dimension_semantics<arbitrary>], iteration_bounds = array<i64: 2, 4>, scalar_prefetch = 0 : i64, scratch_operands = 0 : i64, tpu.core_type = #tpu.core_type<tc>, window_params = [{transform_indices = @transform_0, window_bounds = array<i64: 1, 8, 1, 16, 16>}, {pipeline_mode = #tpu.pipeline_mode<synchronous>, transform_indices = @transform_1, window_bounds = array<i64: 8, 1>}, {pipeline_mode = #tpu.pipeline_mode<synchronous>, transform_indices = @transform_2, window_bounds = array<i64: 8, 1>}]} {
    %c0_i32 = arith.constant 0 : i32
    %0 = arith.cmpi eq, %arg0, %c0_i32 : i32
    %c0_i32_0 = arith.constant 0 : i32
    %1 = arith.cmpi eq, %arg1, %c0_i32_0 : i32
    %2 = arith.andi %0, %1 : i1
    %3 = arith.extui %2 : i1 to i32
    %c0_i32_1 = arith.constant 0 : i32
    %4 = arith.cmpi ne, %3, %c0_i32_1 : i32
    scf.if %4 {
      %cst_18 = arith.constant 0.000000e+00 : f32
      %25 = vector.broadcast %cst_18 : f32 to vector<8x1xf32>
      %c0_19 = arith.constant 0 : index
      %c0_20 = arith.constant 0 : index
      %26 = vector.load %arg3[%c0_19, %c0_20] : memref<8x1xf32, #tpu.memory_space<vmem>>, vector<8x1xf32>
      tpu.vector_store %arg3[%c0_19, %c0_20], %25 {strides = array<i32>} : memref<8x1xf32, #tpu.memory_space<vmem>>, vector<8x1xf32>,
      %cst_21 = arith.constant 0.000000e+00 : f32
      %27 = vector.broadcast %cst_21 : f32 to vector<8x1xf32>
      %c0_22 = arith.constant 0 : index
      %c0_23 = arith.constant 0 : index
      %28 = vector.load %arg4[%c0_22, %c0_23] : memref<8x1xf32, #tpu.memory_space<vmem>>, vector<8x1xf32>
      tpu.vector_store %arg4[%c0_22, %c0_23], %27 {strides = array<i32>} : memref<8x1xf32, #tpu.memory_space<vmem>>, vector<8x1xf32>,
    } else {
    }
    %c0 = arith.constant 0 : index
    %c0_2 = arith.constant 0 : index
    %c0_3 = arith.constant 0 : index
    %c0_4 = arith.constant 0 : index
    %c0_5 = arith.constant 0 : index
    %5 = vector.load %arg2[%c0, %c0_2, %c0_3, %c0_4, %c0_5] : memref<1x8x1x16x16xf32, #tpu.memory_space<vmem>>, vector<1x8x1x16x16xf32>
    %6 = vector.shape_cast %5 : vector<1x8x1x16x16xf32> to vector<8x16x16xf32>
    %c0_6 = arith.constant 0 : index
    %c0_7 = arith.constant 0 : index
    %7 = vector.load %arg3[%c0_6, %c0_7] : memref<8x1xf32, #tpu.memory_space<vmem>>, vector<8x1xf32>
    %cst = arith.constant dense<0.000000e+00> : vector<8x16xf32>
    %8 = vector.multi_reduction <add>, %6, %cst [2] : vector<8x16x16xf32> to vector<8x16xf32>
    %cst_8 = arith.constant dense<0.000000e+00> : vector<8xf32>
    %9 = vector.multi_reduction <add>, %8, %cst_8 [1] : vector<8x16xf32> to vector<8xf32>
    %10 = vector.shape_cast %9 : vector<8xf32> to vector<8x1xf32>
    %11 = arith.addf %7, %10 : vector<8x1xf32>
    %c0_9 = arith.constant 0 : index
    %c0_10 = arith.constant 0 : index
    %12 = vector.load %arg3[%c0_9, %c0_10] : memref<8x1xf32, #tpu.memory_space<vmem>>, vector<8x1xf32>
    tpu.vector_store %arg3[%c0_9, %c0_10], %11 {strides = array<i32>} : memref<8x1xf32, #tpu.memory_space<vmem>>, vector<8x1xf32>,
    %c0_11 = arith.constant 0 : index
    %c0_12 = arith.constant 0 : index
    %13 = vector.load %arg4[%c0_11, %c0_12] : memref<8x1xf32, #tpu.memory_space<vmem>>, vector<8x1xf32>
    %14 = arith.mulf %6, %6 : vector<8x16x16xf32>
    %cst_13 = arith.constant dense<0.000000e+00> : vector<8x16xf32>
    %15 = vector.multi_reduction <add>, %14, %cst_13 [2] : vector<8x16x16xf32> to vector<8x16xf32>
    %cst_14 = arith.constant dense<0.000000e+00> : vector<8xf32>
    %16 = vector.multi_reduction <add>, %15, %cst_14 [1] : vector<8x16xf32> to vector<8xf32>
    %17 = vector.shape_cast %16 : vector<8xf32> to vector<8x1xf32>
    %18 = arith.addf %13, %17 : vector<8x1xf32>
    %c0_15 = arith.constant 0 : index
    %c0_16 = arith.constant 0 : index
    %19 = vector.load %arg4[%c0_15, %c0_16] : memref<8x1xf32, #tpu.memory_space<vmem>>, vector<8x1xf32>
    tpu.vector_store %arg4[%c0_15, %c0_16], %18 {strides = array<i32>} : memref<8x1xf32, #tpu.memory_space<vmem>>, vector<8x1xf32>,
    %c1_i32 = arith.constant 1 : i32
    %20 = arith.cmpi eq, %arg0, %c1_i32 : i32
    %c3_i32 = arith.constant 3 : i32
    %21 = arith.cmpi eq, %arg1, %c3_i32 : i32
    %22 = arith.andi %20, %21 : i1
    %23 = arith.extui %22 : i1 to i32
    %c0_i32_17 = arith.constant 0 : i32
    %24 = arith.cmpi ne, %23, %c0_i32_17 : i32
    scf.if %24 {
      %c0_18 = arith.constant 0 : index
      %c0_19 = arith.constant 0 : index
      %25 = vector.load %arg3[%c0_18, %c0_19] : memref<8x1xf32, #tpu.memory_space<vmem>>, vector<8x1xf32>
      %cst_20 = arith.constant 4.8828125E-4 : f32
      %26 = vector.broadcast %cst_20 : f32 to vector<8x1xf32>
      %27 = arith.mulf %25, %26 : vector<8x1xf32>
      %c0_21 = arith.constant 0 : index
      %c0_22 = arith.constant 0 : index
      %28 = vector.load %arg4[%c0_21, %c0_22] : memref<8x1xf32, #tpu.memory_space<vmem>>, vector<8x1xf32>
      %cst_23 = arith.constant 4.8828125E-4 : f32
      %29 = vector.broadcast %cst_23 : f32 to vector<8x1xf32>
      %30 = arith.mulf %28, %29 : vector<8x1xf32>
      %31 = arith.mulf %27, %27 : vector<8x1xf32>
      %32 = arith.subf %30, %31 : vector<8x1xf32>
      %c0_24 = arith.constant 0 : index
      %c0_25 = arith.constant 0 : index
      %33 = vector.load %arg3[%c0_24, %c0_25] : memref<8x1xf32, #tpu.memory_space<vmem>>, vector<8x1xf32>
      tpu.vector_store %arg3[%c0_24, %c0_25], %27 {strides = array<i32>} : memref<8x1xf32, #tpu.memory_space<vmem>>, vector<8x1xf32>,
      %cst_26 = arith.constant 9.99999974E-6 : f32
      %34 = vector.broadcast %cst_26 : f32 to vector<8x1xf32>
      %35 = arith.addf %32, %34 : vector<8x1xf32>
      %36 = math.rsqrt %35 : vector<8x1xf32>
      %c0_27 = arith.constant 0 : index
      %c0_28 = arith.constant 0 : index
      %37 = vector.load %arg4[%c0_27, %c0_28] : memref<8x1xf32, #tpu.memory_space<vmem>>, vector<8x1xf32>
      tpu.vector_store %arg4[%c0_27, %c0_28], %36 {strides = array<i32>} : memref<8x1xf32, #tpu.memory_space<vmem>>, vector<8x1xf32>,
    } else {
    }
    return
  }
  func.func @transform_0(%arg0: i32, %arg1: i32) -> (i32, i32, i32, i32, i32) {
    %c0_i32 = arith.constant 0 : i32
    %c0_i32_0 = arith.constant 0 : i32
    %c0_i32_1 = arith.constant 0 : i32
    %c0_i32_2 = arith.constant 0 : i32
    return %arg0, %c0_i32, %arg1, %c0_i32_0, %c0_i32_1 : i32, i32, i32, i32, i32
  }
  func.func @transform_1(%arg0: i32, %arg1: i32) -> (i32, i32) {
    %c0_i32 = arith.constant 0 : i32
    %c0_i32_0 = arith.constant 0 : i32
    %c0_i32_1 = arith.constant 0 : i32
    return %c0_i32, %c0_i32_0 : i32, i32
  }
  func.func @transform_2(%arg0: i32, %arg1: i32) -> (i32, i32) {
    %c0_i32 = arith.constant 0 : i32
    %c0_i32_0 = arith.constant 0 : i32
    %c0_i32_1 = arith.constant 0 : i32
    return %c0_i32, %c0_i32_0 : i32, i32
  }
}

module attributes {stable_mosaic.version = 11 : i64} {
  func.func @_bn_apply_kernel(%arg0: i32, %arg1: i32, %arg2: memref<1x8x1x16x16xf32, #tpu.memory_space<vmem>>, %arg3: memref<8x1xf32, #tpu.memory_space<vmem>>, %arg4: memref<8x1xf32, #tpu.memory_space<vmem>>, %arg5: memref<8x1xf32, #tpu.memory_space<vmem>>, %arg6: memref<8x1xf32, #tpu.memory_space<vmem>>, %arg7: memref<1x1x8x16x16xf32, #tpu.memory_space<vmem>>) attributes {dimension_semantics = [#tpu.dimension_semantics<parallel>, #tpu.dimension_semantics<parallel>], iteration_bounds = array<i64: 2, 4>, scalar_prefetch = 0 : i64, scratch_operands = 0 : i64, tpu.core_type = #tpu.core_type<tc>, window_params = [{transform_indices = @transform_0, window_bounds = array<i64: 1, 8, 1, 16, 16>}, {pipeline_mode = #tpu.pipeline_mode<synchronous>, transform_indices = @transform_1, window_bounds = array<i64: 8, 1>}, {pipeline_mode = #tpu.pipeline_mode<synchronous>, transform_indices = @transform_2, window_bounds = array<i64: 8, 1>}, {pipeline_mode = #tpu.pipeline_mode<synchronous>, transform_indices = @transform_3, window_bounds = array<i64: 8, 1>}, {pipeline_mode = #tpu.pipeline_mode<synchronous>, transform_indices = @transform_4, window_bounds = array<i64: 8, 1>}, {transform_indices = @transform_5, window_bounds = array<i64: 1, 1, 8, 16, 16>}]} {
    %c0 = arith.constant 0 : index
    %c0_0 = arith.constant 0 : index
    %c0_1 = arith.constant 0 : index
    %c0_2 = arith.constant 0 : index
    %c0_3 = arith.constant 0 : index
    %0 = vector.load %arg2[%c0, %c0_0, %c0_1, %c0_2, %c0_3] : memref<1x8x1x16x16xf32, #tpu.memory_space<vmem>>, vector<1x8x1x16x16xf32>
    %1 = vector.shape_cast %0 : vector<1x8x1x16x16xf32> to vector<8x16x16xf32>
    %c0_4 = arith.constant 0 : index
    %c0_5 = arith.constant 0 : index
    %2 = vector.load %arg4[%c0_4, %c0_5] : memref<8x1xf32, #tpu.memory_space<vmem>>, vector<8x1xf32>
    %c0_6 = arith.constant 0 : index
    %c0_7 = arith.constant 0 : index
    %3 = vector.load %arg5[%c0_6, %c0_7] : memref<8x1xf32, #tpu.memory_space<vmem>>, vector<8x1xf32>
    %4 = arith.mulf %2, %3 : vector<8x1xf32>
    %5 = vector.shape_cast %4 : vector<8x1xf32> to vector<8x1x1xf32>
    %c0_8 = arith.constant 0 : index
    %c0_9 = arith.constant 0 : index
    %6 = vector.load %arg6[%c0_8, %c0_9] : memref<8x1xf32, #tpu.memory_space<vmem>>, vector<8x1xf32>
    %c0_10 = arith.constant 0 : index
    %c0_11 = arith.constant 0 : index
    %7 = vector.load %arg3[%c0_10, %c0_11] : memref<8x1xf32, #tpu.memory_space<vmem>>, vector<8x1xf32>
    %c0_12 = arith.constant 0 : index
    %c0_13 = arith.constant 0 : index
    %8 = vector.load %arg4[%c0_12, %c0_13] : memref<8x1xf32, #tpu.memory_space<vmem>>, vector<8x1xf32>
    %9 = arith.mulf %7, %8 : vector<8x1xf32>
    %c0_14 = arith.constant 0 : index
    %c0_15 = arith.constant 0 : index
    %10 = vector.load %arg5[%c0_14, %c0_15] : memref<8x1xf32, #tpu.memory_space<vmem>>, vector<8x1xf32>
    %11 = arith.mulf %9, %10 : vector<8x1xf32>
    %12 = arith.subf %6, %11 : vector<8x1xf32>
    %13 = vector.shape_cast %12 : vector<8x1xf32> to vector<8x1x1xf32>
    %14 = vector.broadcast %5 : vector<8x1x1xf32> to vector<8x16x16xf32>
    %15 = arith.mulf %1, %14 : vector<8x16x16xf32>
    %16 = vector.broadcast %13 : vector<8x1x1xf32> to vector<8x16x16xf32>
    %17 = arith.addf %15, %16 : vector<8x16x16xf32>
    %c0_16 = arith.constant 0 : index
    %c0_17 = arith.constant 0 : index
    %c0_18 = arith.constant 0 : index
    %c0_19 = arith.constant 0 : index
    %c0_20 = arith.constant 0 : index
    %18 = vector.load %arg7[%c0_16, %c0_17, %c0_18, %c0_19, %c0_20] : memref<1x1x8x16x16xf32, #tpu.memory_space<vmem>>, vector<1x1x8x16x16xf32>
    %19 = vector.shape_cast %18 : vector<1x1x8x16x16xf32> to vector<8x16x16xf32>
    %20 = vector.shape_cast %17 : vector<8x16x16xf32> to vector<1x1x8x16x16xf32>
    tpu.vector_store %arg7[%c0_16, %c0_17, %c0_18, %c0_19, %c0_20], %20 {strides = array<i32>} : memref<1x1x8x16x16xf32, #tpu.memory_space<vmem>>, vector<1x1x8x16x16xf32>,
    return
  }
  func.func @transform_0(%arg0: i32, %arg1: i32) -> (i32, i32, i32, i32, i32) {
    %c0_i32 = arith.constant 0 : i32
    %c0_i32_0 = arith.constant 0 : i32
    %c0_i32_1 = arith.constant 0 : i32
    %c0_i32_2 = arith.constant 0 : i32
    return %arg0, %c0_i32, %arg1, %c0_i32_0, %c0_i32_1 : i32, i32, i32, i32, i32
  }
  func.func @transform_1(%arg0: i32, %arg1: i32) -> (i32, i32) {
    %c0_i32 = arith.constant 0 : i32
    %c0_i32_0 = arith.constant 0 : i32
    %c0_i32_1 = arith.constant 0 : i32
    return %c0_i32, %c0_i32_0 : i32, i32
  }
  func.func @transform_2(%arg0: i32, %arg1: i32) -> (i32, i32) {
    %c0_i32 = arith.constant 0 : i32
    %c0_i32_0 = arith.constant 0 : i32
    %c0_i32_1 = arith.constant 0 : i32
    return %c0_i32, %c0_i32_0 : i32, i32
  }
  func.func @transform_3(%arg0: i32, %arg1: i32) -> (i32, i32) {
    %c0_i32 = arith.constant 0 : i32
    %c0_i32_0 = arith.constant 0 : i32
    %c0_i32_1 = arith.constant 0 : i32
    return %c0_i32, %c0_i32_0 : i32, i32
  }
  func.func @transform_4(%arg0: i32, %arg1: i32) -> (i32, i32) {
    %c0_i32 = arith.constant 0 : i32
    %c0_i32_0 = arith.constant 0 : i32
    %c0_i32_1 = arith.constant 0 : i32
    return %c0_i32, %c0_i32_0 : i32, i32
  }
  func.func @transform_5(%arg0: i32, %arg1: i32) -> (i32, i32, i32, i32, i32) {
    %c0_i32 = arith.constant 0 : i32
    %c0_i32_0 = arith.constant 0 : i32
    %c0_i32_1 = arith.constant 0 : i32
    %c0_i32_2 = arith.constant 0 : i32
    return %arg0, %arg1, %c0_i32, %c0_i32_0, %c0_i32_1 : i32, i32, i32, i32, i32
  }
}

module attributes {stable_mosaic.version = 11 : i64} {
  func.func @_head_kernel(%arg0: i32, %arg1: memref<24x392xf32, #tpu.memory_space<vmem>>, %arg2: memref<392x2048xbf16, #tpu.memory_space<vmem>>, %arg3: memref<1x2048xf32, #tpu.memory_space<vmem>>, %arg4: memref<2048x512xbf16, #tpu.memory_space<vmem>>, %arg5: memref<1x512xf32, #tpu.memory_space<vmem>>, %arg6: memref<512x128xbf16, #tpu.memory_space<vmem>>, %arg7: memref<1x128xf32, #tpu.memory_space<vmem>>, %arg8: memref<24x128xf32, #tpu.memory_space<vmem>>) attributes {dimension_semantics = [#tpu.dimension_semantics<arbitrary>], iteration_bounds = array<i64: 1>, scalar_prefetch = 0 : i64, scratch_operands = 0 : i64, tpu.core_type = #tpu.core_type<tc>, window_params = [{pipeline_mode = #tpu.pipeline_mode<synchronous>, transform_indices = @transform_0, window_bounds = array<i64: 24, 392>}, {pipeline_mode = #tpu.pipeline_mode<synchronous>, transform_indices = @transform_1, window_bounds = array<i64: 392, 2048>}, {pipeline_mode = #tpu.pipeline_mode<synchronous>, transform_indices = @transform_2, window_bounds = array<i64: 1, 2048>}, {pipeline_mode = #tpu.pipeline_mode<synchronous>, transform_indices = @transform_3, window_bounds = array<i64: 2048, 512>}, {pipeline_mode = #tpu.pipeline_mode<synchronous>, transform_indices = @transform_4, window_bounds = array<i64: 1, 512>}, {pipeline_mode = #tpu.pipeline_mode<synchronous>, transform_indices = @transform_5, window_bounds = array<i64: 512, 128>}, {pipeline_mode = #tpu.pipeline_mode<synchronous>, transform_indices = @transform_6, window_bounds = array<i64: 1, 128>}, {pipeline_mode = #tpu.pipeline_mode<synchronous>, transform_indices = @transform_7, window_bounds = array<i64: 24, 128>}]} {
    %c0 = arith.constant 0 : index
    %c0_0 = arith.constant 0 : index
    %0 = vector.load %arg1[%c0, %c0_0] : memref<24x392xf32, #tpu.memory_space<vmem>>, vector<24x392xf32>
    %1 = arith.truncf %0 : vector<24x392xf32> to vector<24x392xbf16>
    %c0_1 = arith.constant 0 : index
    %c0_2 = arith.constant 0 : index
    %2 = vector.load %arg2[%c0_1, %c0_2] : memref<392x2048xbf16, #tpu.memory_space<vmem>>, vector<392x2048xbf16>
    %cst = arith.constant dense<0.000000e+00> : vector<24x2048xf32>
    %3 = tpu.matmul %1, %2, %cst {dimension_numbers = #tpu.dot_dimension_numbers<[1], [0], [0], [1], [0, 0, 1, 1], [], []>} : vector<24x392xbf16>, vector<392x2048xbf16>, vector<24x2048xf32> -> vector<24x2048xf32>
    %c0_3 = arith.constant 0 : index
    %c0_4 = arith.constant 0 : index
    %4 = vector.load %arg3[%c0_3, %c0_4] : memref<1x2048xf32, #tpu.memory_space<vmem>>, vector<1x2048xf32>
    %5 = vector.broadcast %4 : vector<1x2048xf32> to vector<24x2048xf32>
    %6 = arith.addf %3, %5 : vector<24x2048xf32>
    %cst_5 = arith.constant 0.000000e+00 : f32
    %7 = vector.broadcast %cst_5 : f32 to vector<24x2048xf32>
    %8 = arith.maximumf %6, %7 : vector<24x2048xf32>
    %9 = arith.truncf %8 : vector<24x2048xf32> to vector<24x2048xbf16>
    %c0_6 = arith.constant 0 : index
    %c0_7 = arith.constant 0 : index
    %10 = vector.load %arg4[%c0_6, %c0_7] : memref<2048x512xbf16, #tpu.memory_space<vmem>>, vector<2048x512xbf16>
    %cst_8 = arith.constant dense<0.000000e+00> : vector<24x512xf32>
    %11 = tpu.matmul %9, %10, %cst_8 {dimension_numbers = #tpu.dot_dimension_numbers<[1], [0], [0], [1], [0, 0, 1, 1], [], []>} : vector<24x2048xbf16>, vector<2048x512xbf16>, vector<24x512xf32> -> vector<24x512xf32>
    %c0_9 = arith.constant 0 : index
    %c0_10 = arith.constant 0 : index
    %12 = vector.load %arg5[%c0_9, %c0_10] : memref<1x512xf32, #tpu.memory_space<vmem>>, vector<1x512xf32>
    %13 = vector.broadcast %12 : vector<1x512xf32> to vector<24x512xf32>
    %14 = arith.addf %11, %13 : vector<24x512xf32>
    %cst_11 = arith.constant 0.000000e+00 : f32
    %15 = vector.broadcast %cst_11 : f32 to vector<24x512xf32>
    %16 = arith.maximumf %14, %15 : vector<24x512xf32>
    %17 = arith.truncf %16 : vector<24x512xf32> to vector<24x512xbf16>
    %c0_12 = arith.constant 0 : index
    %c0_13 = arith.constant 0 : index
    %18 = vector.load %arg6[%c0_12, %c0_13] : memref<512x128xbf16, #tpu.memory_space<vmem>>, vector<512x128xbf16>
    %cst_14 = arith.constant dense<0.000000e+00> : vector<24x128xf32>
    %19 = tpu.matmul %17, %18, %cst_14 {dimension_numbers = #tpu.dot_dimension_numbers<[1], [0], [0], [1], [0, 0, 1, 1], [], []>} : vector<24x512xbf16>, vector<512x128xbf16>, vector<24x128xf32> -> vector<24x128xf32>
    %c0_15 = arith.constant 0 : index
    %c0_16 = arith.constant 0 : index
    %20 = vector.load %arg7[%c0_15, %c0_16] : memref<1x128xf32, #tpu.memory_space<vmem>>, vector<1x128xf32>
    %21 = vector.broadcast %20 : vector<1x128xf32> to vector<24x128xf32>
    %22 = arith.addf %19, %21 : vector<24x128xf32>
    %c0_17 = arith.constant 0 : index
    %c0_18 = arith.constant 0 : index
    %23 = vector.load %arg8[%c0_17, %c0_18] : memref<24x128xf32, #tpu.memory_space<vmem>>, vector<24x128xf32>
    tpu.vector_store %arg8[%c0_17, %c0_18], %22 {strides = array<i32>} : memref<24x128xf32, #tpu.memory_space<vmem>>, vector<24x128xf32>,
    return
  }
  func.func @transform_0(%arg0: i32) -> (i32, i32) {
    %c0_i32 = arith.constant 0 : i32
    %c0_i32_0 = arith.constant 0 : i32
    %c0_i32_1 = arith.constant 0 : i32
    return %c0_i32, %c0_i32_0 : i32, i32
  }
  func.func @transform_1(%arg0: i32) -> (i32, i32) {
    %c0_i32 = arith.constant 0 : i32
    %c0_i32_0 = arith.constant 0 : i32
    %c0_i32_1 = arith.constant 0 : i32
    return %c0_i32, %c0_i32_0 : i32, i32
  }
  func.func @transform_2(%arg0: i32) -> (i32, i32) {
    %c0_i32 = arith.constant 0 : i32
    %c0_i32_0 = arith.constant 0 : i32
    %c0_i32_1 = arith.constant 0 : i32
    return %c0_i32, %c0_i32_0 : i32, i32
  }
  func.func @transform_3(%arg0: i32) -> (i32, i32) {
    %c0_i32 = arith.constant 0 : i32
    %c0_i32_0 = arith.constant 0 : i32
    %c0_i32_1 = arith.constant 0 : i32
    return %c0_i32, %c0_i32_0 : i32, i32
  }
  func.func @transform_4(%arg0: i32) -> (i32, i32) {
    %c0_i32 = arith.constant 0 : i32
    %c0_i32_0 = arith.constant 0 : i32
    %c0_i32_1 = arith.constant 0 : i32
    return %c0_i32, %c0_i32_0 : i32, i32
  }
  func.func @transform_5(%arg0: i32) -> (i32, i32) {
    %c0_i32 = arith.constant 0 : i32
    %c0_i32_0 = arith.constant 0 : i32
    %c0_i32_1 = arith.constant 0 : i32
    return %c0_i32, %c0_i32_0 : i32, i32
  }
  func.func @transform_6(%arg0: i32) -> (i32, i32) {
    %c0_i32 = arith.constant 0 : i32
    %c0_i32_0 = arith.constant 0 : i32
    %c0_i32_1 = arith.constant 0 : i32
    return %c0_i32, %c0_i32_0 : i32, i32
  }
  func.func @transform_7(%arg0: i32) -> (i32, i32) {
    %c0_i32 = arith.constant 0 : i32
    %c0_i32_0 = arith.constant 0 : i32
    %c0_i32_1 = arith.constant 0 : i32
    return %c0_i32, %c0_i32_0 : i32, i32
  }
}

</mosaic_0001>

<llo_original>
// kernel: regression_layer_forward.4
$region0: #{regression_layer_forward.4}
  #allocation0 [shape = 'u32[]', space=smem, size = 0x4, offset = 0x4, fixed_abs, tag = 'smem constant byte address 0x4 - core index']
  #allocation1 [shape = 'u32[144,128]{1,0:T(1,128)}', space=vmem, size = 0x12000, scoped, tag = 'internal scratch']
  #allocation4 [shape = 's32[]', space=sflag, size = 0x4, offset = 0, fixed_abs, tag = 'sflag constant byte address 0x0 - dummy sync flag']
  %s0 = inlined_call_operand.hbm [shape: f32[2,8,4,16,16], index: 0, kind: input, shape index: {}]
  %s1 = inlined_call_operand.vmem [shape: f32[8,1], index: 1, kind: input, shape index: {}]
  %s2 = inlined_call_operand.vmem [shape: f32[8,1], index: 2, kind: input, shape index: {}]
  %s3 = inlined_call_operand.vmem [shape: f32[8,1], index: 3, kind: input, shape index: {}]
  %s4 = inlined_call_operand.vmem [shape: f32[8,1], index: 4, kind: input, shape index: {}]
  %s5 = inlined_call_operand.vmem [shape: f32[2,4,8,16,16], index: 5, kind: output, shape index: {}]
  %s6 = sld [smem:[#allocation0]]
  $region57: #{regression_layer_forward.4} parent=0
    _
  %s8 = ssub.s32 1, %s6
  %s9 = scalar_select 0, %s8, %s6
  $region1: #{regression_layer_forward.4} parent=0
    #allocation2 [shape = 'u8[131072]{0}', space=vmem, size = 0x20000, scoped, tag = 'input window, operand 0']
    #allocation3 [shape = 's32[2]{0}', space=sflag, size = 0x8, scoped, tag = 'scoped memory for regression_layer_forward.4']
    %10 = vsyncpa [#allocation3], 0
    %s11 = scalar_lea.sflag [#allocation3], 1
    %12 = vsyncpa %s11, 0
    loop: start=0, step=1, limit=10
    $region2: #{regression_layer_forward.4} parent=1 // loop_pre_header
      _
    $region3: #{regression_layer_forward.4} parent=1 // loop_header
      %s14 = sphi 0, %s18
      %p15 = scmp.ge.s32.totalorder %s14, 10
      %s21 = sphi 0, %s33
      %s22 = sphi 0, %s29
      %s23 = sphi 0, %s21
      %s24 = sphi 0, %s22
      %s25 = sphi 0, %s23
      %s26 = sphi 0, %s24
      %s38 = sphi 0, %s40
      %s41 = sphi 0, %s38
      %s42 = sphi 0, %s41
      %s58 = sphi 0, %s42
      %s62 = sphi 0, %s62
      %s64 = sphi 0, %s62
      %s65 = sphi 0, %s64
      %s79 = sphi 0, %s65
      %s83 = sphi 0, %s83
      %s85 = sphi 0, %s83
      %s86 = sphi 0, %s85
      %s100 = sphi 0, %s86
      %s104 = sphi 0, %s104
      %s106 = sphi 0, %s104
      %s107 = sphi 0, %s106
      %s121 = sphi 0, %s107
      %s125 = sphi 0, %s125
      %s127 = sphi 0, %s125
      %s128 = sphi 0, %s127
      %s142 = sphi 0, %s128
      %s150 = sphi 0, %s152
      %s153 = sphi 0, %s150
      %s154 = sphi 0, %s153
      %s170 = sphi 0, %s154
    $region4: #{regression_layer_forward.4} parent=1 // loop_header_branch
      %17 = sbr.rel (%p15) target = $region8
    $region5: #{regression_layer_forward.4} parent=1 // loop_body
      %s19 = ssub.s32 %s14, 1
      %s20 = ssub.s32 %s14, 2
      %s27 = sadd.s32 1, %s22
      %p28 = scmp.ge.s32.totalorder %s27, 4
      %s29 = scalar_select %p28, 0, %s27
      %s30 = sadd.s32 1, %s21
      %s31 = scalar_select %p28, %s30, %s21
      %p32 = scmp.ge.s32.totalorder %s31, 2
      %s33 = scalar_select %p32, 0, %s31
      %s34 = ssub.s32 %s21, %s33
      %s35 = ssub.s32 %s22, %s29
      %s36 = sor.u32 %s34, %s35
      %p37 = scmp.eq.s32.totalorder %s36, 0
      %s39 = sadd.s32 %s38, 1
      %s40 = scalar_select %p37, %s38, %s39
      %p43 = pneg %p37
      %p44 = scmp.eq.s32.totalorder %s14, 7
      %p45 = por %p43, %p44
      %p46 = scmp.ne.s32.totalorder %s38, %s41
      %p47 = scmp.eq.s32.totalorder %s14, 0
      %p48 = por %p46, %p47
      %p49 = scmp.ne.s32.totalorder %s38, %s41
      %p50 = scmp.eq.s32.totalorder %s19, 7
      %p51 = por %p49, %p50
      %p52 = scmp.ne.s32.totalorder %s41, %s42
      %p53 = scmp.eq.s32.totalorder %s19, 0
      %p54 = por %p52, %p53
      %p55 = scmp.ne.s32.totalorder %s41, %s42
      %p56 = scmp.eq.s32.totalorder %s20, 7
      %p57 = por %p55, %p56
      %p59 = scmp.ne.s32.totalorder %s42, %s58
      %p60 = scmp.eq.s32.totalorder %s20, 0
      %p61 = por %p59, %p60
      %s63 = sadd.s32 %s62, 1
      %p66 = scmp.eq.s32.totalorder %s14, 7
      %p67 = scmp.ne.s32.totalorder %s62, %s64
      %p68 = scmp.eq.s32.totalorder %s14, 0
      %p69 = por %p67, %p68
      %p70 = scmp.ne.s32.totalorder %s62, %s64
      %p71 = scmp.eq.s32.totalorder %s19, 7
      %p72 = por %p70, %p71
      %p73 = scmp.ne.s32.totalorder %s64, %s65
      %p74 = scmp.eq.s32.totalorder %s19, 0
      %p75 = por %p73, %p74
      %p76 = scmp.ne.s32.totalorder %s64, %s65
      %p77 = scmp.eq.s32.totalorder %s20, 7
      %p78 = por %p76, %p77
      %p80 = scmp.ne.s32.totalorder %s65, %s79
      %p81 = scmp.eq.s32.totalorder %s20, 0
      %p82 = por %p80, %p81
      %s84 = sadd.s32 %s83, 1
      %p87 = scmp.eq.s32.totalorder %s14, 7
      %p88 = scmp.ne.s32.totalorder %s83, %s85
      %p89 = scmp.eq.s32.totalorder %s14, 0
      %p90 = por %p88, %p89
      %p91 = scmp.ne.s32.totalorder %s83, %s85
      %p92 = scmp.eq.s32.totalorder %s19, 7
      %p93 = por %p91, %p92
      %p94 = scmp.ne.s32.totalorder %s85, %s86
      %p95 = scmp.eq.s32.totalorder %s19, 0
      %p96 = por %p94, %p95
      %p97 = scmp.ne.s32.totalorder %s85, %s86
      %p98 = scmp.eq.s32.totalorder %s20, 7
      %p99 = por %p97, %p98
      %p101 = scmp.ne.s32.totalorder %s86, %s100
      %p102 = scmp.eq.s32.totalorder %s20, 0
      %p103 = por %p101, %p102
      %s105 = sadd.s32 %s104, 1
      %p108 = scmp.eq.s32.totalorder %s14, 7
      %p109 = scmp.ne.s32.totalorder %s104, %s106
      %p110 = scmp.eq.s32.totalorder %s14, 0
      %p111 = por %p109, %p110
      %p112 = scmp.ne.s32.totalorder %s104, %s106
      %p113 = scmp.eq.s32.totalorder %s19, 7
      %p114 = por %p112, %p113
      %p115 = scmp.ne.s32.totalorder %s106, %s107
      %p116 = scmp.eq.s32.totalorder %s19, 0
      %p117 = por %p115, %p116
      %p118 = scmp.ne.s32.totalorder %s106, %s107
      %p119 = scmp.eq.s32.totalorder %s20, 7
      %p120 = por %p118, %p119
      %p122 = scmp.ne.s32.totalorder %s107, %s121
      %p123 = scmp.eq.s32.totalorder %s20, 0
      %p124 = por %p122, %p123
      %s126 = sadd.s32 %s125, 1
      %p129 = scmp.eq.s32.totalorder %s14, 7
      %p130 = scmp.ne.s32.totalorder %s125, %s127
      %p131 = scmp.eq.s32.totalorder %s14, 0
      %p132 = por %p130, %p131
      %p133 = scmp.ne.s32.totalorder %s125, %s127
      %p134 = scmp.eq.s32.totalorder %s19, 7
      %p135 = por %p133, %p134
      %p136 = scmp.ne.s32.totalorder %s127, %s128
      %p137 = scmp.eq.s32.totalorder %s19, 0
      %p138 = por %p136, %p137
      %p139 = scmp.ne.s32.totalorder %s127, %s128
      %p140 = scmp.eq.s32.totalorder %s20, 7
      %p141 = por %p139, %p140
      %p143 = scmp.ne.s32.totalorder %s128, %s142
      %p144 = scmp.eq.s32.totalorder %s20, 0
      %p145 = por %p143, %p144
      %s146 = ssub.s32 %s21, %s33
      %s147 = ssub.s32 %s22, %s29
      %s148 = sor.u32 %s146, %s147
      %p149 = scmp.eq.s32.totalorder %s148, 0
      %s151 = sadd.s32 %s150, 1
      %s152 = scalar_select %p149, %s150, %s151
      %p155 = pneg %p149
      %p156 = scmp.eq.s32.totalorder %s14, 7
      %p157 = por %p155, %p156
      %p158 = scmp.ne.s32.totalorder %s150, %s153
      %p159 = scmp.eq.s32.totalorder %s14, 0
      %p160 = por %p158, %p159
      %p161 = scmp.ne.s32.totalorder %s150, %s153
      %p162 = scmp.eq.s32.totalorder %s19, 7
      %p163 = por %p161, %p162
      %p164 = scmp.ne.s32.totalorder %s153, %s154
      %p165 = scmp.eq.s32.totalorder %s19, 0
      %p166 = por %p164, %p165
      %p167 = scmp.ne.s32.totalorder %s153, %s154
      %p168 = scmp.eq.s32.totalorder %s20, 7
      %p169 = por %p167, %p168
      %p171 = scmp.ne.s32.totalorder %s154, %s170
      %p172 = scmp.eq.s32.totalorder %s20, 0
      %p173 = por %p171, %p172
      %p174 = scmp.le.s32.totalorder 1, %s14
      %p175 = scmp.lt.s32.totalorder %s14, 9
      %p176 = pnand %p174, %p175
      %p177 = pneg %p176
      // Predicated region
      $region9: #{regression_layer_forward.4} parent=5 // pred_check
        _
      $region10: #{regression_layer_forward.4} parent=5 // pred_check_branch
        %179 = sbr.rel (%p176) target = $region12
      $region11: #{regression_layer_forward.4} parent=5 // pred_region
        %s180 = ssub.s32 %s14, 1
        // Predicated region
        $region13: #{regression_layer_forward.4} parent=11 // pred_check
          %p181 = pneg %p75
        $region14: #{regression_layer_forward.4} parent=11 // pred_check_branch
          %183 = sbr.rel (%p181) target = $region16
        $region15: #{regression_layer_forward.4} parent=11 // pred_region
          _
        $region16: #{regression_layer_forward.4} parent=11 // pred_fallthru
          _
        // Predicated region
        $region17: #{regression_layer_forward.4} parent=11 // pred_check
          %p184 = pneg %p96
        $region18: #{regression_layer_forward.4} parent=11 // pred_check_branch
          %186 = sbr.rel (%p184) target = $region20
        $region19: #{regression_layer_forward.4} parent=11 // pred_region
          _
        $region20: #{regression_layer_forward.4} parent=11 // pred_fallthru
          _
        // Predicated region
        $region21: #{regression_layer_forward.4} parent=11 // pred_check
          %p187 = pneg %p117
        $region22: #{regression_layer_forward.4} parent=11 // pred_check_branch
          %189 = sbr.rel (%p187) target = $region24
        $region23: #{regression_layer_forward.4} parent=11 // pred_region
          _
        $region24: #{regression_layer_forward.4} parent=11 // pred_fallthru
          _
        // Predicated region
        $region25: #{regression_layer_forward.4} parent=11 // pred_check
          %p190 = pneg %p138
        $region26: #{regression_layer_forward.4} parent=11 // pred_check_branch
          %192 = sbr.rel (%p190) target = $region28
        $region27: #{regression_layer_forward.4} parent=11 // pred_region
          _
        $region28: #{regression_layer_forward.4} parent=11 // pred_fallthru
          _
      $region12: #{regression_layer_forward.4} parent=5 // pred_fallthru
        _
      %p193 = scmp.lt.s32.totalorder %s14, 8
      // Predicated region
      $region29: #{regression_layer_forward.4} parent=5 // pred_check
        %p194 = pneg %p193
      $region30: #{regression_layer_forward.4} parent=5 // pred_check_branch
        %196 = sbr.rel (%p194) target = $region32
      $region31: #{regression_layer_forward.4} parent=5 // pred_region
        // Predicated region
        $region33: #{regression_layer_forward.4} parent=31 // pred_check
          %p197 = pneg %p48
        $region34: #{regression_layer_forward.4} parent=31 // pred_check_branch
          %199 = sbr.rel (%p197) target = $region36
        $region35: #{regression_layer_forward.4} parent=31 // pred_region
          #allocation5 [shape = 'u32[6]{0}', space=smem, size = 0x18, scoped, tag = 'DMA stride descriptor']
          %s200 = sand.u32 %s38, 1
          %s201 = scalar_lea.sflag [#allocation3], %s200
          %s202 = sand.u32 %s38, 1
          %s203 = smul.addr %s202, 128
          %s204 = scalar_lea.vmem [#allocation2], %s203
          %s206 = ssub.s32 2048, 2048
          %207 = vsyncadd %s201, %s206
          %s208 = smul.addr %s22, 2
          %s209 = smul.addr %s21, 64
          %s210 = sadd.s32 %s208, %s209
          %s211 = smul.addr %s210, 128
          %s212 = scalar_lea.hbm %s0, %s211
          %s214 = sshll.u32 1, 14
          %s215 = sxor.u32 4294967295, %s214
          %s217 = sld [smem:[#allocation0]]
          %s218 = sadd.s32 2, %s217
          %s220 = sshll.u32 7, 26
          %s221 = sxor.u32 4294967295, %s220
          %s222 = sand.u32 0, %s221
          %s223 = sshll.u32 %s218, 26
          %s224 = sor.u32 %s222, %s223
          %s225 = sshll.u32 %s204, 4
          %s226 = int_to_ptr.vmem [resolvable:$true] %s225
          %232 = sst [smem:[#allocation5]] 1024
          %s233 = scalar_lea.smem [#allocation5], 1
          %234 = sst [smem:[%s233]] 256
          %s235 = scalar_lea.smem [#allocation5], 2
          %236 = sst [smem:[%s235]] 2
          %s237 = scalar_lea.smem [#allocation5], 3
          %238 = sst [smem:[%s237]] 128
          %s239 = scalar_lea.smem [#allocation5], 4
          %240 = sst [smem:[%s239]] 128
          %s241 = scalar_lea.smem [#allocation5], 5
          %242 = sst [smem:[%s241]] 8
          %244 = dma.general %s212, 2048, %s226, %s201, [#allocation4], [#allocation5], %s224, 0
        $region36: #{regression_layer_forward.4} parent=31 // pred_fallthru
          _
      $region32: #{regression_layer_forward.4} parent=5 // pred_fallthru
        _
      %p245 = scmp.le.s32.totalorder 1, %s14
      %p246 = scmp.lt.s32.totalorder %s14, 9
      %p247 = pnand %p245, %p246
      %p248 = pneg %p247
      // Predicated region
      $region37: #{regression_layer_forward.4} parent=5 // pred_check
        _
      $region38: #{regression_layer_forward.4} parent=5 // pred_check_branch
        %250 = sbr.rel (%p247) target = $region40
      $region39: #{regression_layer_forward.4} parent=5 // pred_region
        %s251 = ssub.s32 %s14, 1
        %s252 = sand.u32 %s41, 1
        %s253 = scalar_lea.sflag [#allocation3], %s252
        %s254 = sand.u32 %s41, 1
        %s255 = smul.addr %s254, 128
        %s256 = scalar_lea.vmem [#allocation2], %s255
        // Predicated region
        $region41: #{regression_layer_forward.4} parent=39 // pred_check
          %p257 = pneg %p54
        $region42: #{regression_layer_forward.4} parent=39 // pred_check_branch
          %259 = sbr.rel (%p257) target = $region44
        $region43: #{regression_layer_forward.4} parent=39 // pred_region
          %260 = dma.done %s253, 2048
        $region44: #{regression_layer_forward.4} parent=39 // pred_fallthru
          _
        %s261 = sand.u32 %s41, 1
        %s262 = scalar_lea.sflag [#allocation3], %s261
        %s263 = sand.u32 %s41, 1
        %s264 = smul.addr %s263, 128
        %s265 = scalar_lea.vmem [#allocation2], %s264
        %p266 = pneg %p54
        %p267 = pneg %p51
        %p268 = pneg %p75
        %p269 = pneg %p72
        %p270 = pneg %p96
        %p271 = pneg %p93
        %p272 = pneg %p117
        %p273 = pneg %p114
        %p274 = pneg %p138
        %p275 = pneg %p135
        %p276 = pneg %p166
        %p277 = pneg %p163
        %p278 = scmp.lt.s32.totalorder %s23, 1
        %s279 = scalar_select %p278, %s23, 1
        %p280 = scmp.lt.s32.totalorder %s24, 3
        %s281 = scalar_select %p280, %s24, 3
        %s282 = smul.addr %s281, 16
        %s283 = smul.addr %s279, 64
        %s284 = sadd.s32 %s282, %s283
        %s285 = smul.addr %s284, 8
        %s286 = scalar_lea.vmem %s5, %s285
        %p287 = scmp.lt.s32.totalorder %s23, 1
        %s288 = scalar_select %p287, %s23, 1
        %p289 = scmp.lt.s32.totalorder %s24, 3
        %s290 = scalar_select %p289, %s24, 3
        %s291 = smul.addr %s290, 16
        %s292 = smul.addr %s288, 64
        %s293 = sadd.s32 %s291, %s292
        %s294 = smul.addr %s293, 8
        %s295 = scalar_lea.vmem %s5, %s294
        %v296 = vld [vmem:[%s256] sm:$0xff]
        %v297 = vld [vmem:[%s256 + $0x8] sm:$0xff]
        %v298 = vld [vmem:[%s256 + $0x10] sm:$0xff]
        %v299 = vld [vmem:[%s256 + $0x18] sm:$0xff]
        %v300 = vld [vmem:[%s256 + $0x20] sm:$0xff]
        %v301 = vld [vmem:[%s256 + $0x28] sm:$0xff]
        %v302 = vld [vmem:[%s256 + $0x30] sm:$0xff]
        %v303 = vld [vmem:[%s256 + $0x38] sm:$0xff]
        %v304 = vld [vmem:[%s256 + $0x40] sm:$0xff]
        %v305 = vld [vmem:[%s256 + $0x48] sm:$0xff]
        %v306 = vld [vmem:[%s256 + $0x50] sm:$0xff]
        %v307 = vld [vmem:[%s256 + $0x58] sm:$0xff]
        %v308 = vld [vmem:[%s256 + $0x60] sm:$0xff]
        %v309 = vld [vmem:[%s256 + $0x68] sm:$0xff]
        %v310 = vld [vmem:[%s256 + $0x70] sm:$0xff]
        %v311 = vld [vmem:[%s256 + $0x78] sm:$0xff]
        %v312 = vld [vmem:[%s2] sm:$0xff]
        %v313 = vld [vmem:[%s3] sm:$0xff]
        %v314 = vmul.f32 %v312, %v313
        %v316 = vcombine.high %v314, %v314
        %v318 = vunpack.c.l.s4 1966171168
        %v319 = vunpack.c.0.s8 %v318
        %v320 = vlaneseq
        %v321 = vshrl.u32 %v320, 7
        %v322 = vsub.s32 %v319, %v321
        %v323 = vrot.slane %v314, %v322
        %v325 = vunpack.c.l.s4 1966171168
        %v326 = vunpack.c.0.s8 %v325
        %v327 = vlaneseq
        %v328 = vshrl.u32 %v327, 7
        %v329 = vsub.s32 %v326, %v328
        %v330 = vrot.slane %v316, %v329
        %v331 = vcombine.high %v323, %v323
        %v332 = vcombine.high %v330, %v330
        %v334 = vunpack.c.l.s4 1966171168
        %v335 = vunpack.c.0.s8 %v334
        %v336 = vlaneseq
        %v337 = vshrl.u32 %v336, 7
        %v338 = vsub.s32 %v335, %v337
        %v339 = vrot.slane %v323, %v338
        %v341 = vunpack.c.l.s4 1966171168
        %v342 = vunpack.c.0.s8 %v341
        %v343 = vlaneseq
        %v344 = vshrl.u32 %v343, 7
        %v345 = vsub.s32 %v342, %v344
        %v346 = vrot.slane %v330, %v345
        %v348 = vunpack.c.l.s4 1966171168
        %v349 = vunpack.c.0.s8 %v348
        %v350 = vlaneseq
        %v351 = vshrl.u32 %v350, 7
        %v352 = vsub.s32 %v349, %v351
        %v353 = vrot.slane %v331, %v352
        %v355 = vunpack.c.l.s4 1966171168
        %v356 = vunpack.c.0.s8 %v355
        %v357 = vlaneseq
        %v358 = vshrl.u32 %v357, 7
        %v359 = vsub.s32 %v356, %v358
        %v360 = vrot.slane %v332, %v359
        %v361 = vcombine.high %v339, %v339
        %v362 = vcombine.high %v346, %v346
        %v363 = vcombine.high %v353, %v353
        %v364 = vcombine.high %v360, %v360
        %v365 = vld [vmem:[%s4] sm:$0xff]
        %v366 = vld [vmem:[%s1] sm:$0xff]
        %v367 = vmul.f32 %v366, %v312
        %v368 = vmul.f32 %v367, %v313
        %v369 = vsub.f32 %v365, %v368
        %v371 = vcombine.high %v369, %v369
        %v373 = vunpack.c.l.s4 1966171168
        %v374 = vunpack.c.0.s8 %v373
        %v375 = vlaneseq
        %v376 = vshrl.u32 %v375, 7
        %v377 = vsub.s32 %v374, %v376
        %v378 = vrot.slane %v369, %v377
        %v380 = vunpack.c.l.s4 1966171168
        %v381 = vunpack.c.0.s8 %v380
        %v382 = vlaneseq
        %v383 = vshrl.u32 %v382, 7
        %v384 = vsub.s32 %v381, %v383
        %v385 = vrot.slane %v371, %v384
        %v386 = vcombine.high %v378, %v378
        %v387 = vcombine.high %v385, %v385
        %v389 = vunpack.c.l.s4 1966171168
        %v390 = vunpack.c.0.s8 %v389
        %v391 = vlaneseq
        %v392 = vshrl.u32 %v391, 7
        %v393 = vsub.s32 %v390, %v392
        %v394 = vrot.slane %v378, %v393
        %v396 = vunpack.c.l.s4 1966171168
        %v397 = vunpack.c.0.s8 %v396
        %v398 = vlaneseq
        %v399 = vshrl.u32 %v398, 7
        %v400 = vsub.s32 %v397, %v399
        %v401 = vrot.slane %v385, %v400
        %v403 = vunpack.c.l.s4 1966171168
        %v404 = vunpack.c.0.s8 %v403
        %v405 = vlaneseq
        %v406 = vshrl.u32 %v405, 7
        %v407 = vsub.s32 %v404, %v406
        %v408 = vrot.slane %v386, %v407
        %v410 = vunpack.c.l.s4 1966171168
        %v411 = vunpack.c.0.s8 %v410
        %v412 = vlaneseq
        %v413 = vshrl.u32 %v412, 7
        %v414 = vsub.s32 %v411, %v413
        %v415 = vrot.slane %v387, %v414
        %v416 = vcombine.high %v394, %v394
        %v417 = vcombine.high %v401, %v401
        %v418 = vcombine.high %v408, %v408
        %v419 = vcombine.high %v415, %v415
        %v420 = vlaneseq
        %v421 = vshrl.u32 %v420, 7
        %v422 = vsub.s32 0, %v421
        %v423 = vrot.slane %v339, %v422
        %v424 = vlaneseq
        %v425 = vshrl.u32 %v424, 7
        %v426 = vsub.s32 0, %v425
        %v427 = vrot.slane %v353, %v426
        %v428 = vlaneseq
        %v429 = vshrl.u32 %v428, 7
        %v430 = vsub.s32 0, %v429
        %v431 = vrot.slane %v361, %v430
        %v432 = vlaneseq
        %v433 = vshrl.u32 %v432, 7
        %v434 = vsub.s32 0, %v433
        %v435 = vrot.slane %v363, %v434
        %v436 = vlaneseq
        %v437 = vshrl.u32 %v436, 7
        %v438 = vsub.s32 0, %v437
        %v439 = vrot.slane %v346, %v438
        %v440 = vlaneseq
        %v441 = vshrl.u32 %v440, 7
        %v442 = vsub.s32 0, %v441
        %v443 = vrot.slane %v360, %v442
        %v444 = vlaneseq
        %v445 = vshrl.u32 %v444, 7
        %v446 = vsub.s32 0, %v445
        %v447 = vrot.slane %v362, %v446
        %v448 = vlaneseq
        %v449 = vshrl.u32 %v448, 7
        %v450 = vsub.s32 0, %v449
        %v451 = vrot.slane %v364, %v450
        %452 = vset.pattern.permute.xlu0 0
        %453 = vperm.xlu0 %452, %v423
        %v454 = vpop.permute.xlu0 %453
        %456 = vset.pattern.permute.xlu0 0
        %457 = vperm.xlu0 %456, %v427
        %v458 = vpop.permute.xlu0 %457
        %460 = vset.pattern.permute.xlu0 0
        %461 = vperm.xlu0 %460, %v431
        %v462 = vpop.permute.xlu0 %461
        %464 = vset.pattern.permute.xlu0 0
        %465 = vperm.xlu0 %464, %v435
        %v466 = vpop.permute.xlu0 %465
        %468 = vset.pattern.permute.xlu0 0
        %469 = vperm.xlu0 %468, %v439
        %v470 = vpop.permute.xlu0 %469
        %472 = vset.pattern.permute.xlu0 0
        %473 = vperm.xlu0 %472, %v443
        %v474 = vpop.permute.xlu0 %473
        %476 = vset.pattern.permute.xlu0 0
        %477 = vperm.xlu0 %476, %v447
        %v478 = vpop.permute.xlu0 %477
        %480 = vset.pattern.permute.xlu0 0
        %481 = vperm.xlu0 %480, %v451
        %v482 = vpop.permute.xlu0 %481
        %v484 = vmul.f32 %v296, %v454
        %v485 = vmul.f32 %v297, %v454
        %v486 = vmul.f32 %v298, %v458
        %v487 = vmul.f32 %v299, %v458
        %v488 = vmul.f32 %v300, %v462
        %v489 = vmul.f32 %v301, %v462
        %v490 = vmul.f32 %v302, %v466
        %v491 = vmul.f32 %v303, %v466
        %v492 = vmul.f32 %v304, %v470
        %v493 = vmul.f32 %v305, %v470
        %v494 = vmul.f32 %v306, %v474
        %v495 = vmul.f32 %v307, %v474
        %v496 = vmul.f32 %v308, %v478
        %v497 = vmul.f32 %v309, %v478
        %v498 = vmul.f32 %v310, %v482
        %v499 = vmul.f32 %v311, %v482
        %v500 = vlaneseq
        %v501 = vshrl.u32 %v500, 7
        %v502 = vsub.s32 0, %v501
        %v503 = vrot.slane %v394, %v502
        %v504 = vlaneseq
        %v505 = vshrl.u32 %v504, 7
        %v506 = vsub.s32 0, %v505
        %v507 = vrot.slane %v408, %v506
        %v508 = vlaneseq
        %v509 = vshrl.u32 %v508, 7
        %v510 = vsub.s32 0, %v509
        %v511 = vrot.slane %v416, %v510
        %v512 = vlaneseq
        %v513 = vshrl.u32 %v512, 7
        %v514 = vsub.s32 0, %v513
        %v515 = vrot.slane %v418, %v514
        %v516 = vlaneseq
        %v517 = vshrl.u32 %v516, 7
        %v518 = vsub.s32 0, %v517
        %v519 = vrot.slane %v401, %v518
        %v520 = vlaneseq
        %v521 = vshrl.u32 %v520, 7
        %v522 = vsub.s32 0, %v521
        %v523 = vrot.slane %v415, %v522
        %v524 = vlaneseq
        %v525 = vshrl.u32 %v524, 7
        %v526 = vsub.s32 0, %v525
        %v527 = vrot.slane %v417, %v526
        %v528 = vlaneseq
        %v529 = vshrl.u32 %v528, 7
        %v530 = vsub.s32 0, %v529
        %v531 = vrot.slane %v419, %v530
        %532 = vset.pattern.permute.xlu0 0
        %533 = vperm.xlu0 %532, %v503
        %v534 = vpop.permute.xlu0 %533
        %536 = vset.pattern.permute.xlu0 0
        %537 = vperm.xlu0 %536, %v507
        %v538 = vpop.permute.xlu0 %537
        %540 = vset.pattern.permute.xlu0 0
        %541 = vperm.xlu0 %540, %v511
        %v542 = vpop.permute.xlu0 %541
        %544 = vset.pattern.permute.xlu0 0
        %545 = vperm.xlu0 %544, %v515
        %v546 = vpop.permute.xlu0 %545
        %548 = vset.pattern.permute.xlu0 0
        %549 = vperm.xlu0 %548, %v519
        %v550 = vpop.permute.xlu0 %549
        %552 = vset.pattern.permute.xlu0 0
        %553 = vperm.xlu0 %552, %v523
        %v554 = vpop.permute.xlu0 %553
        %556 = vset.pattern.permute.xlu0 0
        %557 = vperm.xlu0 %556, %v527
        %v558 = vpop.permute.xlu0 %557
        %560 = vset.pattern.permute.xlu0 0
        %561 = vperm.xlu0 %560, %v531
        %v562 = vpop.permute.xlu0 %561
        %v564 = vadd.f32 %v484, %v534
        %v565 = vadd.f32 %v485, %v534
        %v566 = vadd.f32 %v486, %v538
        %v567 = vadd.f32 %v487, %v538
        %v568 = vadd.f32 %v488, %v542
        %v569 = vadd.f32 %v489, %v542
        %v570 = vadd.f32 %v490, %v546
        %v571 = vadd.f32 %v491, %v546
        %v572 = vadd.f32 %v492, %v550
        %v573 = vadd.f32 %v493, %v550
        %v574 = vadd.f32 %v494, %v554
        %v575 = vadd.f32 %v495, %v554
        %v576 = vadd.f32 %v496, %v558
        %v577 = vadd.f32 %v497, %v558
        %v578 = vadd.f32 %v498, %v562
        %v579 = vadd.f32 %v499, %v562
        %vm580 = vcmask 130048
        %581 = vst.msk [vmem:[%s295] sm:$0xff] %vm580, %v564
        %582 = vst.msk [vmem:[%s295 + $0x8] sm:$0xff] %vm580, %v565
        %583 = vst.msk [vmem:[%s295 + $0x10] sm:$0xff] %vm580, %v566
        %584 = vst.msk [vmem:[%s295 + $0x18] sm:$0xff] %vm580, %v567
        %585 = vst.msk [vmem:[%s295 + $0x20] sm:$0xff] %vm580, %v568
        %586 = vst.msk [vmem:[%s295 + $0x28] sm:$0xff] %vm580, %v569
        %587 = vst.msk [vmem:[%s295 + $0x30] sm:$0xff] %vm580, %v570
        %588 = vst.msk [vmem:[%s295 + $0x38] sm:$0xff] %vm580, %v571
        %589 = vst.msk [vmem:[%s295 + $0x40] sm:$0xff] %vm580, %v572
        %590 = vst.msk [vmem:[%s295 + $0x48] sm:$0xff] %vm580, %v573
        %591 = vst.msk [vmem:[%s295 + $0x50] sm:$0xff] %vm580, %v574
        %592 = vst.msk [vmem:[%s295 + $0x58] sm:$0xff] %vm580, %v575
        %593 = vst.msk [vmem:[%s295 + $0x60] sm:$0xff] %vm580, %v576
        %594 = vst.msk [vmem:[%s295 + $0x68] sm:$0xff] %vm580, %v577
        %595 = vst.msk [vmem:[%s295 + $0x70] sm:$0xff] %vm580, %v578
        %596 = vst.msk [vmem:[%s295 + $0x78] sm:$0xff] %vm580, %v579
        %p597 = scmp.lt.s32.totalorder %s23, 1
        %s598 = scalar_select %p597, %s23, 1
        %p599 = scmp.lt.s32.totalorder %s24, 3
        %s600 = scalar_select %p599, %s24, 3
        %s601 = smul.addr %s600, 16
        %s602 = smul.addr %s598, 64
        %s603 = sadd.s32 %s601, %s602
        %s604 = smul.addr %s603, 8
        %s605 = scalar_lea.vmem %s5, %s604
        // Predicated region
        $region45: #{regression_layer_forward.4} parent=39 // pred_check
          %p606 = pneg %p163
        $region46: #{regression_layer_forward.4} parent=39 // pred_check_branch
          %608 = sbr.rel (%p606) target = $region48
        $region47: #{regression_layer_forward.4} parent=39 // pred_region
          _
        $region48: #{regression_layer_forward.4} parent=39 // pred_fallthru
          _
      $region40: #{regression_layer_forward.4} parent=5 // pred_fallthru
        _
      %p609 = scmp.le.s32.totalorder 2, %s14
      // Predicated region
      $region49: #{regression_layer_forward.4} parent=5 // pred_check
        %p610 = pneg %p609
      $region50: #{regression_layer_forward.4} parent=5 // pred_check_branch
        %612 = sbr.rel (%p610) target = $region52
      $region51: #{regression_layer_forward.4} parent=5 // pred_region
        %s613 = ssub.s32 %s14, 2
        // Predicated region
        $region53: #{regression_layer_forward.4} parent=51 // pred_check
          %p614 = pneg %p169
        $region54: #{regression_layer_forward.4} parent=51 // pred_check_branch
          %616 = sbr.rel (%p614) target = $region56
        $region55: #{regression_layer_forward.4} parent=51 // pred_region
          %p617 = scmp.lt.s32.totalorder %s25, 1
          %s618 = scalar_select %p617, %s25, 1
          %p619 = scmp.lt.s32.totalorder %s26, 3
          %s620 = scalar_select %p619, %s26, 3
          %s621 = smul.addr %s620, 16
          %s622 = smul.addr %s618, 64
          %s623 = sadd.s32 %s621, %s622
          %s624 = smul.addr %s623, 8
          %s625 = scalar_lea.vmem %s5, %s624
        $region56: #{regression_layer_forward.4} parent=51 // pred_fallthru
          _
      $region52: #{regression_layer_forward.4} parent=5 // pred_fallthru
        _
    $region6: #{regression_layer_forward.4} parent=1 // loop_footer
      %s18 = sadd.s32 1, %s14
    $region7: #{regression_layer_forward.4} parent=1 // loop_footer_branch
      %13 = sbr.rel target = $region3
    $region8: #{regression_layer_forward.4} parent=1 // loop_exit
      _
    %626 = vsyncpa [#allocation3], 1
    %s627 = scalar_lea.sflag [#allocation3], 1
    %628 = vsyncpa %s627, 1

// kernel: regression_layer_forward.3
$region0: #{regression_layer_forward.3}
  #allocation0 [shape = 'u32[]', space=smem, size = 0x4, offset = 0x4, fixed_abs, tag = 'smem constant byte address 0x4 - core index']
  #allocation1 [shape = 'u32[144,128]{1,0:T(1,128)}', space=vmem, size = 0x12000, scoped, tag = 'internal scratch']
  #allocation4 [shape = 's32[]', space=sflag, size = 0x4, offset = 0, fixed_abs, tag = 'sflag constant byte address 0x0 - dummy sync flag']
  %s0 = inlined_call_operand.hbm [shape: f32[2,8,4,16,16], index: 0, kind: input, shape index: {}]
  %s1 = inlined_call_operand.vmem [shape: f32[8,1], index: 1, kind: output, shape index: {0}]
  %s2 = inlined_call_operand.vmem [shape: f32[8,1], index: 2, kind: output, shape index: {1}]
  %3 = xla_tuple %s1, %s2
  %s4 = sld [smem:[#allocation0]]
  $region57: #{regression_layer_forward.3} parent=0
    _
  %s6 = ssub.s32 1, %s4
  %s7 = scalar_select 0, %s6, %s4
  $region1: #{regression_layer_forward.3} parent=0
    #allocation2 [shape = 'u8[131072]{0}', space=vmem, size = 0x20000, scoped, tag = 'input window, operand 0']
    #allocation3 [shape = 's32[2]{0}', space=sflag, size = 0x8, scoped, tag = 'scoped memory for regression_layer_forward.3']
    %8 = vsyncpa [#allocation3], 0
    %s9 = scalar_lea.sflag [#allocation3], 1
    %10 = vsyncpa %s9, 0
    loop: start=0, step=1, limit=10
    $region2: #{regression_layer_forward.3} parent=1 // loop_pre_header
      _
    $region3: #{regression_layer_forward.3} parent=1 // loop_header
      %s12 = sphi 0, %s16
      %p13 = scmp.ge.s32.totalorder %s12, 10
      %s19 = sphi 0, %s31
      %s20 = sphi 0, %s27
      %s21 = sphi 0, %s19
      %s22 = sphi 0, %s20
      %s23 = sphi 0, %s21
      %s24 = sphi 0, %s22
      %s36 = sphi 0, %s38
      %s39 = sphi 0, %s36
      %s40 = sphi 0, %s39
      %s56 = sphi 0, %s40
      %s60 = sphi 0, %s60
      %s62 = sphi 0, %s60
      %s63 = sphi 0, %s62
      %s77 = sphi 0, %s63
      %s81 = sphi 0, %s81
      %s83 = sphi 0, %s81
      %s84 = sphi 0, %s83
      %s98 = sphi 0, %s84
    $region4: #{regression_layer_forward.3} parent=1 // loop_header_branch
      %15 = sbr.rel (%p13) target = $region8
    $region5: #{regression_layer_forward.3} parent=1 // loop_body
      %s17 = ssub.s32 %s12, 1
      %s18 = ssub.s32 %s12, 2
      %s25 = sadd.s32 1, %s20
      %p26 = scmp.ge.s32.totalorder %s25, 4
      %s27 = scalar_select %p26, 0, %s25
      %s28 = sadd.s32 1, %s19
      %s29 = scalar_select %p26, %s28, %s19
      %p30 = scmp.ge.s32.totalorder %s29, 2
      %s31 = scalar_select %p30, 0, %s29
      %s32 = ssub.s32 %s19, %s31
      %s33 = ssub.s32 %s20, %s27
      %s34 = sor.u32 %s32, %s33
      %p35 = scmp.eq.s32.totalorder %s34, 0
      %s37 = sadd.s32 %s36, 1
      %s38 = scalar_select %p35, %s36, %s37
      %p41 = pneg %p35
      %p42 = scmp.eq.s32.totalorder %s12, 7
      %p43 = por %p41, %p42
      %p44 = scmp.ne.s32.totalorder %s36, %s39
      %p45 = scmp.eq.s32.totalorder %s12, 0
      %p46 = por %p44, %p45
      %p47 = scmp.ne.s32.totalorder %s36, %s39
      %p48 = scmp.eq.s32.totalorder %s17, 7
      %p49 = por %p47, %p48
      %p50 = scmp.ne.s32.totalorder %s39, %s40
      %p51 = scmp.eq.s32.totalorder %s17, 0
      %p52 = por %p50, %p51
      %p53 = scmp.ne.s32.totalorder %s39, %s40
      %p54 = scmp.eq.s32.totalorder %s18, 7
      %p55 = por %p53, %p54
      %p57 = scmp.ne.s32.totalorder %s40, %s56
      %p58 = scmp.eq.s32.totalorder %s18, 0
      %p59 = por %p57, %p58
      %s61 = sadd.s32 %s60, 1
      %p64 = scmp.eq.s32.totalorder %s12, 7
      %p65 = scmp.ne.s32.totalorder %s60, %s62
      %p66 = scmp.eq.s32.totalorder %s12, 0
      %p67 = por %p65, %p66
      %p68 = scmp.ne.s32.totalorder %s60, %s62
      %p69 = scmp.eq.s32.totalorder %s17, 7
      %p70 = por %p68, %p69
      %p71 = scmp.ne.s32.totalorder %s62, %s63
      %p72 = scmp.eq.s32.totalorder %s17, 0
      %p73 = por %p71, %p72
      %p74 = scmp.ne.s32.totalorder %s62, %s63
      %p75 = scmp.eq.s32.totalorder %s18, 7
      %p76 = por %p74, %p75
      %p78 = scmp.ne.s32.totalorder %s63, %s77
      %p79 = scmp.eq.s32.totalorder %s18, 0
      %p80 = por %p78, %p79
      %s82 = sadd.s32 %s81, 1
      %p85 = scmp.eq.s32.totalorder %s12, 7
      %p86 = scmp.ne.s32.totalorder %s81, %s83
      %p87 = scmp.eq.s32.totalorder %s12, 0
      %p88 = por %p86, %p87
      %p89 = scmp.ne.s32.totalorder %s81, %s83
      %p90 = scmp.eq.s32.totalorder %s17, 7
      %p91 = por %p89, %p90
      %p92 = scmp.ne.s32.totalorder %s83, %s84
      %p93 = scmp.eq.s32.totalorder %s17, 0
      %p94 = por %p92, %p93
      %p95 = scmp.ne.s32.totalorder %s83, %s84
      %p96 = scmp.eq.s32.totalorder %s18, 7
      %p97 = por %p95, %p96
      %p99 = scmp.ne.s32.totalorder %s84, %s98
      %p100 = scmp.eq.s32.totalorder %s18, 0
      %p101 = por %p99, %p100
      %p102 = scmp.le.s32.totalorder 1, %s12
      %p103 = scmp.lt.s32.totalorder %s12, 9
      %p104 = pnand %p102, %p103
      %p105 = pneg %p104
      // Predicated region
      $region9: #{regression_layer_forward.3} parent=5 // pred_check
        _
      $region10: #{regression_layer_forward.3} parent=5 // pred_check_branch
        %107 = sbr.rel (%p104) target = $region12
      $region11: #{regression_layer_forward.3} parent=5 // pred_region
        %s108 = ssub.s32 %s12, 1
      $region12: #{regression_layer_forward.3} parent=5 // pred_fallthru
        _
      %p109 = scmp.lt.s32.totalorder %s12, 8
      // Predicated region
      $region13: #{regression_layer_forward.3} parent=5 // pred_check
        %p110 = pneg %p109
      $region14: #{regression_layer_forward.3} parent=5 // pred_check_branch
        %112 = sbr.rel (%p110) target = $region16
      $region15: #{regression_layer_forward.3} parent=5 // pred_region
        // Predicated region
        $region17: #{regression_layer_forward.3} parent=15 // pred_check
          %p113 = pneg %p46
        $region18: #{regression_layer_forward.3} parent=15 // pred_check_branch
          %115 = sbr.rel (%p113) target = $region20
        $region19: #{regression_layer_forward.3} parent=15 // pred_region
          #allocation5 [shape = 'u32[6]{0}', space=smem, size = 0x18, scoped, tag = 'DMA stride descriptor']
          %s116 = sand.u32 %s36, 1
          %s117 = scalar_lea.sflag [#allocation3], %s116
          %s118 = sand.u32 %s36, 1
          %s119 = smul.addr %s118, 128
          %s120 = scalar_lea.vmem [#allocation2], %s119
          %s122 = ssub.s32 2048, 2048
          %123 = vsyncadd %s117, %s122
          %s124 = smul.addr %s20, 2
          %s125 = smul.addr %s19, 64
          %s126 = sadd.s32 %s124, %s125
          %s127 = smul.addr %s126, 128
          %s128 = scalar_lea.hbm %s0, %s127
          %s130 = sshll.u32 1, 14
          %s131 = sxor.u32 4294967295, %s130
          %s133 = sld [smem:[#allocation0]]
          %s134 = sadd.s32 2, %s133
          %s136 = sshll.u32 7, 26
          %s137 = sxor.u32 4294967295, %s136
          %s138 = sand.u32 0, %s137
          %s139 = sshll.u32 %s134, 26
          %s140 = sor.u32 %s138, %s139
          %s141 = sshll.u32 %s120, 4
          %s142 = int_to_ptr.vmem [resolvable:$true] %s141
          %148 = sst [smem:[#allocation5]] 1024
          %s149 = scalar_lea.smem [#allocation5], 1
          %150 = sst [smem:[%s149]] 256
          %s151 = scalar_lea.smem [#allocation5], 2
          %152 = sst [smem:[%s151]] 2
          %s153 = scalar_lea.smem [#allocation5], 3
          %154 = sst [smem:[%s153]] 128
          %s155 = scalar_lea.smem [#allocation5], 4
          %156 = sst [smem:[%s155]] 128
          %s157 = scalar_lea.smem [#allocation5], 5
          %158 = sst [smem:[%s157]] 8
          %160 = dma.general %s128, 2048, %s142, %s117, [#allocation4], [#allocation5], %s140, 0
        $region20: #{regression_layer_forward.3} parent=15 // pred_fallthru
          _
      $region16: #{regression_layer_forward.3} parent=5 // pred_fallthru
        _
      %p161 = scmp.le.s32.totalorder 1, %s12
      %p162 = scmp.lt.s32.totalorder %s12, 9
      %p163 = pnand %p161, %p162
      %p164 = pneg %p163
      // Predicated region
      $region21: #{regression_layer_forward.3} parent=5 // pred_check
        _
      $region22: #{regression_layer_forward.3} parent=5 // pred_check_branch
        %166 = sbr.rel (%p163) target = $region24
      $region23: #{regression_layer_forward.3} parent=5 // pred_region
        %s167 = ssub.s32 %s12, 1
        %s168 = sand.u32 %s39, 1
        %s169 = scalar_lea.sflag [#allocation3], %s168
        %s170 = sand.u32 %s39, 1
        %s171 = smul.addr %s170, 128
        %s172 = scalar_lea.vmem [#allocation2], %s171
        // Predicated region
        $region25: #{regression_layer_forward.3} parent=23 // pred_check
          %p173 = pneg %p52
        $region26: #{regression_layer_forward.3} parent=23 // pred_check_branch
          %175 = sbr.rel (%p173) target = $region28
        $region27: #{regression_layer_forward.3} parent=23 // pred_region
          %176 = dma.done %s169, 2048
        $region28: #{regression_layer_forward.3} parent=23 // pred_fallthru
          _
        %s177 = sand.u32 %s39, 1
        %s178 = scalar_lea.sflag [#allocation3], %s177
        %s179 = sand.u32 %s39, 1
        %s180 = smul.addr %s179, 128
        %s181 = scalar_lea.vmem [#allocation2], %s180
        %p182 = pneg %p52
        %p183 = pneg %p49
        %p184 = pneg %p73
        %p185 = pneg %p70
        %p186 = pneg %p94
        %p187 = pneg %p91
        %p188 = scmp.eq.s32.totalorder %s21, 0
        %p189 = scmp.eq.s32.totalorder %s22, 0
        %p190 = pnand %p188, %p189
        %p191 = pneg %p190
        // Predicated region
        $region29: #{regression_layer_forward.3} parent=23 // pred_check
          _
        $region30: #{regression_layer_forward.3} parent=23 // pred_check_branch
          %193 = sbr.rel (%p190) target = $region32
        $region31: #{regression_layer_forward.3} parent=23 // pred_region
          %vm194 = vcmask 7168
          %195 = vst.msk [vmem:[%s1] sm:$0xff] %vm194, 0.0
          %196 = vst.msk [vmem:[%s2] sm:$0xff] %vm194, 0.0
        $region32: #{regression_layer_forward.3} parent=23 // pred_fallthru
          _
        %v197 = vld [vmem:[%s172] sm:$0xff]
        %v198 = vld [vmem:[%s172 + $0x8] sm:$0xff]
        %v199 = vld [vmem:[%s172 + $0x10] sm:$0xff]
        %v200 = vld [vmem:[%s172 + $0x18] sm:$0xff]
        %v201 = vld [vmem:[%s172 + $0x20] sm:$0xff]
        %v202 = vld [vmem:[%s172 + $0x28] sm:$0xff]
        %v203 = vld [vmem:[%s172 + $0x30] sm:$0xff]
        %v204 = vld [vmem:[%s172 + $0x38] sm:$0xff]
        %v205 = vld [vmem:[%s172 + $0x40] sm:$0xff]
        %v206 = vld [vmem:[%s172 + $0x48] sm:$0xff]
        %v207 = vld [vmem:[%s172 + $0x50] sm:$0xff]
        %v208 = vld [vmem:[%s172 + $0x58] sm:$0xff]
        %v209 = vld [vmem:[%s172 + $0x60] sm:$0xff]
        %v210 = vld [vmem:[%s172 + $0x68] sm:$0xff]
        %v211 = vld [vmem:[%s172 + $0x70] sm:$0xff]
        %v212 = vld [vmem:[%s172 + $0x78] sm:$0xff]
        %v213 = vld [vmem:[%s1] sm:$0xff]
        %vm214 = vcmask 130048
        %v215 = vsel %vm214, %v197, 0.0
        %216 = vadd.xlane.f32.xlu0 %v215
        %v217 = vpop.xlane.xlu0 %216
        %v218 = vsel %vm214, %v198, 0.0
        %219 = vadd.xlane.f32.xlu0 %v218
        %v220 = vpop.xlane.xlu0 %219
        %v221 = vsel %vm214, %v199, 0.0
        %222 = vadd.xlane.f32.xlu0 %v221
        %v223 = vpop.xlane.xlu0 %222
        %v224 = vsel %vm214, %v200, 0.0
        %225 = vadd.xlane.f32.xlu0 %v224
        %v226 = vpop.xlane.xlu0 %225
        %v227 = vsel %vm214, %v201, 0.0
        %228 = vadd.xlane.f32.xlu0 %v227
        %v229 = vpop.xlane.xlu0 %228
        %v230 = vsel %vm214, %v202, 0.0
        %231 = vadd.xlane.f32.xlu0 %v230
        %v232 = vpop.xlane.xlu0 %231
        %v233 = vsel %vm214, %v203, 0.0
        %234 = vadd.xlane.f32.xlu0 %v233
        %v235 = vpop.xlane.xlu0 %234
        %v236 = vsel %vm214, %v204, 0.0
        %237 = vadd.xlane.f32.xlu0 %v236
        %v238 = vpop.xlane.xlu0 %237
        %v239 = vsel %vm214, %v205, 0.0
        %240 = vadd.xlane.f32.xlu0 %v239
        %v241 = vpop.xlane.xlu0 %240
        %v242 = vsel %vm214, %v206, 0.0
        %243 = vadd.xlane.f32.xlu0 %v242
        %v244 = vpop.xlane.xlu0 %243
        %v245 = vsel %vm214, %v207, 0.0
        %246 = vadd.xlane.f32.xlu0 %v245
        %v247 = vpop.xlane.xlu0 %246
        %v248 = vsel %vm214, %v208, 0.0
        %249 = vadd.xlane.f32.xlu0 %v248
        %v250 = vpop.xlane.xlu0 %249
        %v251 = vsel %vm214, %v209, 0.0
        %252 = vadd.xlane.f32.xlu0 %v251
        %v253 = vpop.xlane.xlu0 %252
        %v254 = vsel %vm214, %v210, 0.0
        %255 = vadd.xlane.f32.xlu0 %v254
        %v256 = vpop.xlane.xlu0 %255
        %v257 = vsel %vm214, %v211, 0.0
        %258 = vadd.xlane.f32.xlu0 %v257
        %v259 = vpop.xlane.xlu0 %258
        %v260 = vsel %vm214, %v212, 0.0
        %261 = vadd.xlane.f32.xlu0 %v260
        %v262 = vpop.xlane.xlu0 %261
        %v279 = vlaneseq
        %v280 = vand.u32 %v279, 127
        %v281 = vlaneseq
        %v282 = vshrl.u32 %v281, 7
        %v283 = vsub.s32 %v280, %v282
        %v284 = vrot.slane %v217, %v283
        %v285 = vadd.s32 %v280, 4294967288
        %v286 = vlaneseq
        %v287 = vshrl.u32 %v286, 7
        %v288 = vsub.s32 %v285, %v287
        %v289 = vrot.slane %v220, %v288
        %vm290 = vcmask 130112
        %v291 = vsel %vm290, %v289, %v284
        %v292 = vlaneseq
        %v293 = vshrl.u32 %v292, 7
        %v294 = vsub.s32 %v280, %v293
        %v295 = vrot.slane %v223, %v294
        %v296 = vlaneseq
        %v297 = vshrl.u32 %v296, 7
        %v298 = vsub.s32 %v285, %v297
        %v299 = vrot.slane %v226, %v298
        %v300 = vsel %vm290, %v299, %v295
        %v301 = vlaneseq
        %v302 = vshrl.u32 %v301, 7
        %v303 = vsub.s32 %v280, %v302
        %v304 = vrot.slane %v229, %v303
        %v305 = vlaneseq
        %v306 = vshrl.u32 %v305, 7
        %v307 = vsub.s32 %v285, %v306
        %v308 = vrot.slane %v232, %v307
        %v309 = vsel %vm290, %v308, %v304
        %v310 = vlaneseq
        %v311 = vshrl.u32 %v310, 7
        %v312 = vsub.s32 %v280, %v311
        %v313 = vrot.slane %v235, %v312
        %v314 = vlaneseq
        %v315 = vshrl.u32 %v314, 7
        %v316 = vsub.s32 %v285, %v315
        %v317 = vrot.slane %v238, %v316
        %v318 = vsel %vm290, %v317, %v313
        %v319 = vlaneseq
        %v320 = vshrl.u32 %v319, 7
        %v321 = vsub.s32 %v280, %v320
        %v322 = vrot.slane %v241, %v321
        %v323 = vlaneseq
        %v324 = vshrl.u32 %v323, 7
        %v325 = vsub.s32 %v285, %v324
        %v326 = vrot.slane %v244, %v325
        %v327 = vsel %vm290, %v326, %v322
        %v328 = vlaneseq
        %v329 = vshrl.u32 %v328, 7
        %v330 = vsub.s32 %v280, %v329
        %v331 = vrot.slane %v247, %v330
        %v332 = vlaneseq
        %v333 = vshrl.u32 %v332, 7
        %v334 = vsub.s32 %v285, %v333
        %v335 = vrot.slane %v250, %v334
        %v336 = vsel %vm290, %v335, %v331
        %v337 = vlaneseq
        %v338 = vshrl.u32 %v337, 7
        %v339 = vsub.s32 %v280, %v338
        %v340 = vrot.slane %v253, %v339
        %v341 = vlaneseq
        %v342 = vshrl.u32 %v341, 7
        %v343 = vsub.s32 %v285, %v342
        %v344 = vrot.slane %v256, %v343
        %v345 = vsel %vm290, %v344, %v340
        %v346 = vlaneseq
        %v347 = vshrl.u32 %v346, 7
        %v348 = vsub.s32 %v280, %v347
        %v349 = vrot.slane %v259, %v348
        %v350 = vlaneseq
        %v351 = vshrl.u32 %v350, 7
        %v352 = vsub.s32 %v285, %v351
        %v353 = vrot.slane %v262, %v352
        %v354 = vsel %vm290, %v353, %v349
        %vm355 = vcmask 1041409
        %v356 = vsel %vm355, %v300, %v291
        %vm357 = vcmask 1042434
        %v358 = vsel %vm357, %v309, %v356
        %vm359 = vcmask 1043459
        %v360 = vsel %vm359, %v318, %v358
        %vm361 = vcmask 1044484
        %v362 = vsel %vm361, %v327, %v360
        %vm363 = vcmask 1045509
        %v364 = vsel %vm363, %v336, %v362
        %vm365 = vcmask 1046534
        %v366 = vsel %vm365, %v345, %v364
        %vm367 = vcmask 1047559
        %v368 = vsel %vm367, %v354, %v366
        %v370 = vsel %vm214, %v368, 0.0
        %371 = vadd.xlane.f32.xlu0 %v370
        %v372 = vpop.xlane.xlu0 %371
        %v373 = vadd.f32 %v213, %v372
        %vm374 = vcmask 7168
        %375 = vst.msk [vmem:[%s1] sm:$0xff] %vm374, %v373
        %v376 = vld [vmem:[%s2] sm:$0xff]
        %v377 = vmul.f32 %v197, %v197
        %v378 = vmul.f32 %v198, %v198
        %v379 = vmul.f32 %v199, %v199
        %v380 = vmul.f32 %v200, %v200
        %v381 = vmul.f32 %v201, %v201
        %v382 = vmul.f32 %v202, %v202
        %v383 = vmul.f32 %v203, %v203
        %v384 = vmul.f32 %v204, %v204
        %v385 = vmul.f32 %v205, %v205
        %v386 = vmul.f32 %v206, %v206
        %v387 = vmul.f32 %v207, %v207
        %v388 = vmul.f32 %v208, %v208
        %v389 = vmul.f32 %v209, %v209
        %v390 = vmul.f32 %v210, %v210
        %v391 = vmul.f32 %v211, %v211
        %v392 = vmul.f32 %v212, %v212
        %v393 = vsel %vm214, %v377, 0.0
        %394 = vadd.xlane.f32.xlu0 %v393
        %v395 = vpop.xlane.xlu0 %394
        %v396 = vsel %vm214, %v378, 0.0
        %397 = vadd.xlane.f32.xlu0 %v396
        %v398 = vpop.xlane.xlu0 %397
        %v399 = vsel %vm214, %v379, 0.0
        %400 = vadd.xlane.f32.xlu0 %v399
        %v401 = vpop.xlane.xlu0 %400
        %v402 = vsel %vm214, %v380, 0.0
        %403 = vadd.xlane.f32.xlu0 %v402
        %v404 = vpop.xlane.xlu0 %403
        %v405 = vsel %vm214, %v381, 0.0
        %406 = vadd.xlane.f32.xlu0 %v405
        %v407 = vpop.xlane.xlu0 %406
        %v408 = vsel %vm214, %v382, 0.0
        %409 = vadd.xlane.f32.xlu0 %v408
        %v410 = vpop.xlane.xlu0 %409
        %v411 = vsel %vm214, %v383, 0.0
        %412 = vadd.xlane.f32.xlu0 %v411
        %v413 = vpop.xlane.xlu0 %412
        %v414 = vsel %vm214, %v384, 0.0
        %415 = vadd.xlane.f32.xlu0 %v414
        %v416 = vpop.xlane.xlu0 %415
        %v417 = vsel %vm214, %v385, 0.0
        %418 = vadd.xlane.f32.xlu0 %v417
        %v419 = vpop.xlane.xlu0 %418
        %v420 = vsel %vm214, %v386, 0.0
        %421 = vadd.xlane.f32.xlu0 %v420
        %v422 = vpop.xlane.xlu0 %421
        %v423 = vsel %vm214, %v387, 0.0
        %424 = vadd.xlane.f32.xlu0 %v423
        %v425 = vpop.xlane.xlu0 %424
        %v426 = vsel %vm214, %v388, 0.0
        %427 = vadd.xlane.f32.xlu0 %v426
        %v428 = vpop.xlane.xlu0 %427
        %v429 = vsel %vm214, %v389, 0.0
        %430 = vadd.xlane.f32.xlu0 %v429
        %v431 = vpop.xlane.xlu0 %430
        %v432 = vsel %vm214, %v390, 0.0
        %433 = vadd.xlane.f32.xlu0 %v432
        %v434 = vpop.xlane.xlu0 %433
        %v435 = vsel %vm214, %v391, 0.0
        %436 = vadd.xlane.f32.xlu0 %v435
        %v437 = vpop.xlane.xlu0 %436
        %v438 = vsel %vm214, %v392, 0.0
        %439 = vadd.xlane.f32.xlu0 %v438
        %v440 = vpop.xlane.xlu0 %439
        %v457 = vlaneseq
        %v458 = vshrl.u32 %v457, 7
        %v459 = vsub.s32 %v280, %v458
        %v460 = vrot.slane %v395, %v459
        %v461 = vlaneseq
        %v462 = vshrl.u32 %v461, 7
        %v463 = vsub.s32 %v285, %v462
        %v464 = vrot.slane %v398, %v463
        %v465 = vsel %vm290, %v464, %v460
        %v466 = vlaneseq
        %v467 = vshrl.u32 %v466, 7
        %v468 = vsub.s32 %v280, %v467
        %v469 = vrot.slane %v401, %v468
        %v470 = vlaneseq
        %v471 = vshrl.u32 %v470, 7
        %v472 = vsub.s32 %v285, %v471
        %v473 = vrot.slane %v404, %v472
        %v474 = vsel %vm290, %v473, %v469
        %v475 = vlaneseq
        %v476 = vshrl.u32 %v475, 7
        %v477 = vsub.s32 %v280, %v476
        %v478 = vrot.slane %v407, %v477
        %v479 = vlaneseq
        %v480 = vshrl.u32 %v479, 7
        %v481 = vsub.s32 %v285, %v480
        %v482 = vrot.slane %v410, %v481
        %v483 = vsel %vm290, %v482, %v478
        %v484 = vlaneseq
        %v485 = vshrl.u32 %v484, 7
        %v486 = vsub.s32 %v280, %v485
        %v487 = vrot.slane %v413, %v486
        %v488 = vlaneseq
        %v489 = vshrl.u32 %v488, 7
        %v490 = vsub.s32 %v285, %v489
        %v491 = vrot.slane %v416, %v490
        %v492 = vsel %vm290, %v491, %v487
        %v493 = vlaneseq
        %v494 = vshrl.u32 %v493, 7
        %v495 = vsub.s32 %v280, %v494
        %v496 = vrot.slane %v419, %v495
        %v497 = vlaneseq
        %v498 = vshrl.u32 %v497, 7
        %v499 = vsub.s32 %v285, %v498
        %v500 = vrot.slane %v422, %v499
        %v501 = vsel %vm290, %v500, %v496
        %v502 = vlaneseq
        %v503 = vshrl.u32 %v502, 7
        %v504 = vsub.s32 %v280, %v503
        %v505 = vrot.slane %v425, %v504
        %v506 = vlaneseq
        %v507 = vshrl.u32 %v506, 7
        %v508 = vsub.s32 %v285, %v507
        %v509 = vrot.slane %v428, %v508
        %v510 = vsel %vm290, %v509, %v505
        %v511 = vlaneseq
        %v512 = vshrl.u32 %v511, 7
        %v513 = vsub.s32 %v280, %v512
        %v514 = vrot.slane %v431, %v513
        %v515 = vlaneseq
        %v516 = vshrl.u32 %v515, 7
        %v517 = vsub.s32 %v285, %v516
        %v518 = vrot.slane %v434, %v517
        %v519 = vsel %vm290, %v518, %v514
        %v520 = vlaneseq
        %v521 = vshrl.u32 %v520, 7
        %v522 = vsub.s32 %v280, %v521
        %v523 = vrot.slane %v437, %v522
        %v524 = vlaneseq
        %v525 = vshrl.u32 %v524, 7
        %v526 = vsub.s32 %v285, %v525
        %v527 = vrot.slane %v440, %v526
        %v528 = vsel %vm290, %v527, %v523
        %v529 = vsel %vm355, %v474, %v465
        %v530 = vsel %vm357, %v483, %v529
        %v531 = vsel %vm359, %v492, %v530
        %v532 = vsel %vm361, %v501, %v531
        %v533 = vsel %vm363, %v510, %v532
        %v534 = vsel %vm365, %v519, %v533
        %v535 = vsel %vm367, %v528, %v534
        %v537 = vsel %vm214, %v535, 0.0
        %538 = vadd.xlane.f32.xlu0 %v537
        %v539 = vpop.xlane.xlu0 %538
        %v540 = vadd.f32 %v376, %v539
        %541 = vst.msk [vmem:[%s2] sm:$0xff] %vm374, %v540
        %p542 = scmp.eq.s32.totalorder %s21, 1
        %p543 = scmp.eq.s32.totalorder %s22, 3
        %p544 = pnand %p542, %p543
        %p545 = pneg %p544
        // Predicated region
        $region33: #{regression_layer_forward.3} parent=23 // pred_check
          _
        $region34: #{regression_layer_forward.3} parent=23 // pred_check_branch
          %547 = sbr.rel (%p544) target = $region36
        $region35: #{regression_layer_forward.3} parent=23 // pred_region
          %v548 = vld [vmem:[%s1] sm:$0xff]
          %v549 = vmul.f32 %v548, 0.00048828125
          %v550 = vld [vmem:[%s2] sm:$0xff]
          %v551 = vmul.f32 %v550, 0.00048828125
          %v552 = vmul.f32 %v549, %v549
          %v553 = vsub.f32 %v551, %v552
          %554 = vst.msk [vmem:[%s1] sm:$0xff] %vm374, %v549
          %v555 = vadd.f32 %v553, 1e-05
          %v556 = vrsqrt.pop %v555
          %557 = vst.msk [vmem:[%s2] sm:$0xff] %vm374, %v556
        $region36: #{regression_layer_forward.3} parent=23 // pred_fallthru
          _
        // Predicated region
        $region37: #{regression_layer_forward.3} parent=23 // pred_check
          %p558 = pneg %p70
        $region38: #{regression_layer_forward.3} parent=23 // pred_check_branch
          %560 = sbr.rel (%p558) target = $region40
        $region39: #{regression_layer_forward.3} parent=23 // pred_region
          _
        $region40: #{regression_layer_forward.3} parent=23 // pred_fallthru
          _
        // Predicated region
        $region41: #{regression_layer_forward.3} parent=23 // pred_check
          %p561 = pneg %p91
        $region42: #{regression_layer_forward.3} parent=23 // pred_check_branch
          %563 = sbr.rel (%p561) target = $region44
        $region43: #{regression_layer_forward.3} parent=23 // pred_region
          _
        $region44: #{regression_layer_forward.3} parent=23 // pred_fallthru
          _
        // Predicated region
        $region45: #{regression_layer_forward.3} parent=23 // pred_check
          %p564 = pneg %p70
        $region46: #{regression_layer_forward.3} parent=23 // pred_check_branch
          %566 = sbr.rel (%p564) target = $region48
        $region47: #{regression_layer_forward.3} parent=23 // pred_region
          _
        $region48: #{regression_layer_forward.3} parent=23 // pred_fallthru
          _
        // Predicated region
        $region49: #{regression_layer_forward.3} parent=23 // pred_check
          %p567 = pneg %p91
        $region50: #{regression_layer_forward.3} parent=23 // pred_check_branch
          %569 = sbr.rel (%p567) target = $region52
        $region51: #{regression_layer_forward.3} parent=23 // pred_region
          _
        $region52: #{regression_layer_forward.3} parent=23 // pred_fallthru
          _
      $region24: #{regression_layer_forward.3} parent=5 // pred_fallthru
        _
      %p570 = scmp.le.s32.totalorder 2, %s12
      // Predicated region
      $region53: #{regression_layer_forward.3} parent=5 // pred_check
        %p571 = pneg %p570
      $region54: #{regression_layer_forward.3} parent=5 // pred_check_branch
        %573 = sbr.rel (%p571) target = $region56
      $region55: #{regression_layer_forward.3} parent=5 // pred_region
        %s574 = ssub.s32 %s12, 2
      $region56: #{regression_layer_forward.3} parent=5 // pred_fallthru
        _
    $region6: #{regression_layer_forward.3} parent=1 // loop_footer
      %s16 = sadd.s32 1, %s12
    $region7: #{regression_layer_forward.3} parent=1 // loop_footer_branch
      %11 = sbr.rel target = $region3
    $region8: #{regression_layer_forward.3} parent=1 // loop_exit
      _
    %575 = vsyncpa [#allocation3], 1
    %s576 = scalar_lea.sflag [#allocation3], 1
    %577 = vsyncpa %s576, 1

// kernel: regression_layer_forward.5
$region0: #{regression_layer_forward.5}
  #allocation0 [shape = 'u32[]', space=smem, size = 0x4, offset = 0x4, fixed_abs, tag = 'smem constant byte address 0x4 - core index']
  #allocation1 [shape = 'u32[144,128]{1,0:T(1,128)}', space=vmem, size = 0x12000, scoped, tag = 'internal scratch']
  %s0 = inlined_call_operand.vmem [shape: f32[24,392], index: 0, kind: input, shape index: {}]
  %s1 = inlined_call_operand.vmem [shape: bf16[392,2048], index: 1, kind: input, shape index: {}]
  %s2 = inlined_call_operand.vmem [shape: f32[1,2048], index: 2, kind: input, shape index: {}]
  %s3 = inlined_call_operand.vmem [shape: bf16[2048,512], index: 3, kind: input, shape index: {}]
  %s4 = inlined_call_operand.vmem [shape: f32[1,512], index: 4, kind: input, shape index: {}]
  %s5 = inlined_call_operand.vmem [shape: bf16[512,128], index: 5, kind: input, shape index: {}]
  %s6 = inlined_call_operand.vmem [shape: f32[1,128], index: 6, kind: input, shape index: {}]
  %s7 = inlined_call_operand.vmem [shape: f32[24,128], index: 7, kind: output, shape index: {}]
  %s8 = sld [smem:[#allocation0]]
  $region38: #{regression_layer_forward.5} parent=0
    _
  %s10 = ssub.s32 1, %s8
  %s11 = scalar_select 0, %s10, %s8
  // Predicated region
  $region2: #{regression_layer_forward.5} parent=0 // pred_check
    _
  $region3: #{regression_layer_forward.5} parent=0 // pred_check_branch
    %13 = sbr.rel (0) target = $region5
  $region4: #{regression_layer_forward.5} parent=0 // pred_region
    _
  $region5: #{regression_layer_forward.5} parent=0 // pred_fallthru
    _
  // Predicated region
  $region6: #{regression_layer_forward.5} parent=0 // pred_check
    _
  $region7: #{regression_layer_forward.5} parent=0 // pred_check_branch
    %15 = sbr.rel (0) target = $region9
  $region8: #{regression_layer_forward.5} parent=0 // pred_region
    _
  $region9: #{regression_layer_forward.5} parent=0 // pred_fallthru
    _
  // Predicated region
  $region10: #{regression_layer_forward.5} parent=0 // pred_check
    _
  $region11: #{regression_layer_forward.5} parent=0 // pred_check_branch
    %17 = sbr.rel (0) target = $region13
  $region12: #{regression_layer_forward.5} parent=0 // pred_region
    _
  $region13: #{regression_layer_forward.5} parent=0 // pred_fallthru
    _
  // Predicated region
  $region14: #{regression_layer_forward.5} parent=0 // pred_check
    _
  $region15: #{regression_layer_forward.5} parent=0 // pred_check_branch
    %19 = sbr.rel (0) target = $region17
  $region16: #{regression_layer_forward.5} parent=0 // pred_region
    _
  $region17: #{regression_layer_forward.5} parent=0 // pred_fallthru
    _
  // Predicated region
  $region18: #{regression_layer_forward.5} parent=0 // pred_check
    _
  $region19: #{regression_layer_forward.5} parent=0 // pred_check_branch
    %21 = sbr.rel (0) target = $region21
  $region20: #{regression_layer_forward.5} parent=0 // pred_region
    _
  $region21: #{regression_layer_forward.5} parent=0 // pred_fallthru
    _
  // Predicated region
  $region22: #{regression_layer_forward.5} parent=0 // pred_check
    _
  $region23: #{regression_layer_forward.5} parent=0 // pred_check_branch
    %23 = sbr.rel (0) target = $region25
  $region24: #{regression_layer_forward.5} parent=0 // pred_region
    _
  $region25: #{regression_layer_forward.5} parent=0 // pred_fallthru
    _
  // Predicated region
  $region26: #{regression_layer_forward.5} parent=0 // pred_check
    _
  $region27: #{regression_layer_forward.5} parent=0 // pred_check_branch
    %25 = sbr.rel (0) target = $region29
  $region28: #{regression_layer_forward.5} parent=0 // pred_region
    _
  $region29: #{regression_layer_forward.5} parent=0 // pred_fallthru
    _
  %v27 = vld [vmem:[%s0] sm:$0xff]
  %v28 = vld [vmem:[%s0 + $0x8] sm:$0xff]
  %v29 = vld [vmem:[%s0 + $0x10] sm:$0xff]
  %v30 = vld [vmem:[%s0 + $0x18] sm:$0xff]
  %v31 = vld [vmem:[%s0 + $0x20] sm:$0xff]
  %v32 = vld [vmem:[%s0 + $0x28] sm:$0xff]
  %v33 = vld [vmem:[%s0 + $0x30] sm:$0xff]
  %v34 = vld [vmem:[%s0 + $0x38] sm:$0xff]
  %v35 = vld [vmem:[%s0 + $0x40] sm:$0xff]
  %v36 = vld [vmem:[%s0 + $0x48] sm:$0xff]
  %v37 = vld [vmem:[%s0 + $0x50] sm:$0xff]
  %v38 = vld [vmem:[%s0 + $0x58] sm:$0xff]
  %v39 = vpack.c.bf16 %v31, %v27
  %v40 = vpack.c.bf16 %v32, %v28
  %v41 = vpack.c.bf16 %v33, %v29
  %v42 = vpack.c.bf16 %v34, %v30
  %v43 = vpack.c.bf16 %v35, %v35
  %v44 = vpack.c.bf16 %v36, %v36
  %v45 = vpack.c.bf16 %v37, %v37
  %v46 = vpack.c.bf16 %v38, %v38
  %v47 = vld [vmem:[%s1] sm:$0xff]
  %v48 = vld [vmem:[%s1 + $0x8] sm:$0xff]
  %v49 = vld [vmem:[%s1 + $0x10] sm:$0xff]
  %v50 = vld [vmem:[%s1 + $0x18] sm:$0xff]
  %v51 = vld [vmem:[%s1 + $0x20] sm:$0xff]
  %v52 = vld [vmem:[%s1 + $0x28] sm:$0xff]
  %v53 = vld [vmem:[%s1 + $0x30] sm:$0xff]
  %v54 = vld [vmem:[%s1 + $0x38] sm:$0xff]
  %v55 = vld [vmem:[%s1 + $0x40] sm:$0xff]
  %v56 = vld [vmem:[%s1 + $0x48] sm:$0xff]
  %v57 = vld [vmem:[%s1 + $0x50] sm:$0xff]
  %v58 = vld [vmem:[%s1 + $0x58] sm:$0xff]
  %v59 = vld [vmem:[%s1 + $0x60] sm:$0xff]
  %v60 = vld [vmem:[%s1 + $0x68] sm:$0xff]
  %v61 = vld [vmem:[%s1 + $0x70] sm:$0xff]
  %v62 = vld [vmem:[%s1 + $0x78] sm:$0xff]
  %v63 = vld [vmem:[%s1 + $0x80] sm:$0xff]
  %v64 = vld [vmem:[%s1 + $0x88] sm:$0xff]
  %v65 = vld [vmem:[%s1 + $0x90] sm:$0xff]
  %v66 = vld [vmem:[%s1 + $0x98] sm:$0xff]
  %v67 = vld [vmem:[%s1 + $0xa0] sm:$0xff]
  %v68 = vld [vmem:[%s1 + $0xa8] sm:$0xff]
  %v69 = vld [vmem:[%s1 + $0xb0] sm:$0xff]
  %v70 = vld [vmem:[%s1 + $0xb8] sm:$0xff]
  %v71 = vld [vmem:[%s1 + $0xc0] sm:$0xff]
  %v72 = vld [vmem:[%s1 + $0xc8] sm:$0xff]
  %v73 = vld [vmem:[%s1 + $0xd0] sm:$0xff]
  %v74 = vld [vmem:[%s1 + $0xd8] sm:$0xff]
  %v75 = vld [vmem:[%s1 + $0xe0] sm:$0xff]
  %v76 = vld [vmem:[%s1 + $0xe8] sm:$0xff]
  %v77 = vld [vmem:[%s1 + $0xf0] sm:$0xff]
  %v78 = vld [vmem:[%s1 + $0xf8] sm:$0xff]
  %v79 = vld [vmem:[%s1 + $0x100] sm:$0xff]
  %v80 = vld [vmem:[%s1 + $0x108] sm:$0xff]
  %v81 = vld [vmem:[%s1 + $0x110] sm:$0xff]
  %v82 = vld [vmem:[%s1 + $0x118] sm:$0xff]
  %v83 = vld [vmem:[%s1 + $0x120] sm:$0xff]
  %v84 = vld [vmem:[%s1 + $0x128] sm:$0xff]
  %v85 = vld [vmem:[%s1 + $0x130] sm:$0xff]
  %v86 = vld [vmem:[%s1 + $0x138] sm:$0xff]
  %v87 = vld [vmem:[%s1 + $0x140] sm:$0xff]
  %v88 = vld [vmem:[%s1 + $0x148] sm:$0xff]
  %v89 = vld [vmem:[%s1 + $0x150] sm:$0xff]
  %v90 = vld [vmem:[%s1 + $0x158] sm:$0xff]
  %v91 = vld [vmem:[%s1 + $0x160] sm:$0xff]
  %v92 = vld [vmem:[%s1 + $0x168] sm:$0xff]
  %v93 = vld [vmem:[%s1 + $0x170] sm:$0xff]
  %v94 = vld [vmem:[%s1 + $0x178] sm:$0xff]
  %v95 = vld [vmem:[%s1 + $0x180] sm:$0xff]
  %v96 = vld [vmem:[%s1 + $0x188] sm:$0xff]
  %v97 = vld [vmem:[%s1 + $0x190] sm:$0xff]
  %v98 = vld [vmem:[%s1 + $0x198] sm:$0xff]
  %v99 = vld [vmem:[%s1 + $0x1a0] sm:$0xff]
  %v100 = vld [vmem:[%s1 + $0x1a8] sm:$0xff]
  %v101 = vld [vmem:[%s1 + $0x1b0] sm:$0xff]
  %v102 = vld [vmem:[%s1 + $0x1b8] sm:$0xff]
  %v103 = vld [vmem:[%s1 + $0x1c0] sm:$0xff]
  %v104 = vld [vmem:[%s1 + $0x1c8] sm:$0xff]
  %v105 = vld [vmem:[%s1 + $0x1d0] sm:$0xff]
  %v106 = vld [vmem:[%s1 + $0x1d8] sm:$0xff]
  %v107 = vld [vmem:[%s1 + $0x1e0] sm:$0xff]
  %v108 = vld [vmem:[%s1 + $0x1e8] sm:$0xff]
  %v109 = vld [vmem:[%s1 + $0x1f0] sm:$0xff]
  %v110 = vld [vmem:[%s1 + $0x1f8] sm:$0xff]
  %v111 = vld [vmem:[%s1 + $0x200] sm:$0xff]
  %v112 = vld [vmem:[%s1 + $0x208] sm:$0xff]
  %v113 = vld [vmem:[%s1 + $0x210] sm:$0xff]
  %v114 = vld [vmem:[%s1 + $0x218] sm:$0xff]
  %v115 = vld [vmem:[%s1 + $0x220] sm:$0xff]
  %v116 = vld [vmem:[%s1 + $0x228] sm:$0xff]
  %v117 = vld [vmem:[%s1 + $0x230] sm:$0xff]
  %v118 = vld [vmem:[%s1 + $0x238] sm:$0xff]
  %v119 = vld [vmem:[%s1 + $0x240] sm:$0xff]
  %v120 = vld [vmem:[%s1 + $0x248] sm:$0xff]
  %v121 = vld [vmem:[%s1 + $0x250] sm:$0xff]
  %v122 = vld [vmem:[%s1 + $0x258] sm:$0xff]
  %v123 = vld [vmem:[%s1 + $0x260] sm:$0xff]
  %v124 = vld [vmem:[%s1 + $0x268] sm:$0xff]
  %v125 = vld [vmem:[%s1 + $0x270] sm:$0xff]
  %v126 = vld [vmem:[%s1 + $0x278] sm:$0xff]
  %v127 = vld [vmem:[%s1 + $0x280] sm:$0xff]
  %v128 = vld [vmem:[%s1 + $0x288] sm:$0xff]
  %v129 = vld [vmem:[%s1 + $0x290] sm:$0xff]
  %v130 = vld [vmem:[%s1 + $0x298] sm:$0xff]
  %v131 = vld [vmem:[%s1 + $0x2a0] sm:$0xff]
  %v132 = vld [vmem:[%s1 + $0x2a8] sm:$0xff]
  %v133 = vld [vmem:[%s1 + $0x2b0] sm:$0xff]
  %v134 = vld [vmem:[%s1 + $0x2b8] sm:$0xff]
  %v135 = vld [vmem:[%s1 + $0x2c0] sm:$0xff]
  %v136 = vld [vmem:[%s1 + $0x2c8] sm:$0xff]
  %v137 = vld [vmem:[%s1 + $0x2d0] sm:$0xff]
  %v138 = vld [vmem:[%s1 + $0x2d8] sm:$0xff]
  %v139 = vld [vmem:[%s1 + $0x2e0] sm:$0xff]
  %v140 = vld [vmem:[%s1 + $0x2e8] sm:$0xff]
  %v141 = vld [vmem:[%s1 + $0x2f0] sm:$0xff]
  %v142 = vld [vmem:[%s1 + $0x2f8] sm:$0xff]
  %v143 = vld [vmem:[%s1 + $0x300] sm:$0xff]
  %v144 = vld [vmem:[%s1 + $0x308] sm:$0xff]
  %v145 = vld [vmem:[%s1 + $0x310] sm:$0xff]
  %v146 = vld [vmem:[%s1 + $0x318] sm:$0xff]
  %v147 = vld [vmem:[%s1 + $0x320] sm:$0xff]
  %v148 = vld [vmem:[%s1 + $0x328] sm:$0xff]
  %v149 = vld [vmem:[%s1 + $0x330] sm:$0xff]
  %v150 = vld [vmem:[%s1 + $0x338] sm:$0xff]
  %v151 = vld [vmem:[%s1 + $0x340] sm:$0xff]
  %v152 = vld [vmem:[%s1 + $0x348] sm:$0xff]
  %v153 = vld [vmem:[%s1 + $0x350] sm:$0xff]
  %v154 = vld [vmem:[%s1 + $0x358] sm:$0xff]
  %v155 = vld [vmem:[%s1 + $0x360] sm:$0xff]
  %v156 = vld [vmem:[%s1 + $0x368] sm:$0xff]
  %v157 = vld [vmem:[%s1 + $0x370] sm:$0xff]
  %v158 = vld [vmem:[%s1 + $0x378] sm:$0xff]
  %v159 = vld [vmem:[%s1 + $0x380] sm:$0xff]
  %v160 = vld [vmem:[%s1 + $0x388] sm:$0xff]
  %v161 = vld [vmem:[%s1 + $0x390] sm:$0xff]
  %v162 = vld [vmem:[%s1 + $0x398] sm:$0xff]
  %v163 = vld [vmem:[%s1 + $0x3a0] sm:$0xff]
  %v164 = vld [vmem:[%s1 + $0x3a8] sm:$0xff]
  %v165 = vld [vmem:[%s1 + $0x3b0] sm:$0xff]
  %v166 = vld [vmem:[%s1 + $0x3b8] sm:$0xff]
  %v167 = vld [vmem:[%s1 + $0x3c0] sm:$0xff]
  %v168 = vld [vmem:[%s1 + $0x3c8] sm:$0xff]
  %v169 = vld [vmem:[%s1 + $0x3d0] sm:$0xff]
  %v170 = vld [vmem:[%s1 + $0x3d8] sm:$0xff]
  %v171 = vld [vmem:[%s1 + $0x3e0] sm:$0xff]
  %v172 = vld [vmem:[%s1 + $0x3e8] sm:$0xff]
  %v173 = vld [vmem:[%s1 + $0x3f0] sm:$0xff]
  %v174 = vld [vmem:[%s1 + $0x3f8] sm:$0xff]
  %v175 = vld [vmem:[%s1 + $0x400] sm:$0xff]
  %v176 = vld [vmem:[%s1 + $0x408] sm:$0xff]
  %v177 = vld [vmem:[%s1 + $0x410] sm:$0xff]
  %v178 = vld [vmem:[%s1 + $0x418] sm:$0xff]
  %v179 = vld [vmem:[%s1 + $0x420] sm:$0xff]
  %v180 = vld [vmem:[%s1 + $0x428] sm:$0xff]
  %v181 = vld [vmem:[%s1 + $0x430] sm:$0xff]
  %v182 = vld [vmem:[%s1 + $0x438] sm:$0xff]
  %v183 = vld [vmem:[%s1 + $0x440] sm:$0xff]
  %v184 = vld [vmem:[%s1 + $0x448] sm:$0xff]
  %v185 = vld [vmem:[%s1 + $0x450] sm:$0xff]
  %v186 = vld [vmem:[%s1 + $0x458] sm:$0xff]
  %v187 = vld [vmem:[%s1 + $0x460] sm:$0xff]
  %v188 = vld [vmem:[%s1 + $0x468] sm:$0xff]
  %v189 = vld [vmem:[%s1 + $0x470] sm:$0xff]
  %v190 = vld [vmem:[%s1 + $0x478] sm:$0xff]
  %v191 = vld [vmem:[%s1 + $0x480] sm:$0xff]
  %v192 = vld [vmem:[%s1 + $0x488] sm:$0xff]
  %v193 = vld [vmem:[%s1 + $0x490] sm:$0xff]
  %v194 = vld [vmem:[%s1 + $0x498] sm:$0xff]
  %v195 = vld [vmem:[%s1 + $0x4a0] sm:$0xff]
  %v196 = vld [vmem:[%s1 + $0x4a8] sm:$0xff]
  %v197 = vld [vmem:[%s1 + $0x4b0] sm:$0xff]
  %v198 = vld [vmem:[%s1 + $0x4b8] sm:$0xff]
  %v199 = vld [vmem:[%s1 + $0x4c0] sm:$0xff]
  %v200 = vld [vmem:[%s1 + $0x4c8] sm:$0xff]
  %v201 = vld [vmem:[%s1 + $0x4d0] sm:$0xff]
  %v202 = vld [vmem:[%s1 + $0x4d8] sm:$0xff]
  %v203 = vld [vmem:[%s1 + $0x4e0] sm:$0xff]
  %v204 = vld [vmem:[%s1 + $0x4e8] sm:$0xff]
  %v205 = vld [vmem:[%s1 + $0x4f0] sm:$0xff]
  %v206 = vld [vmem:[%s1 + $0x4f8] sm:$0xff]
  %v207 = vld [vmem:[%s1 + $0x500] sm:$0xff]
  %v208 = vld [vmem:[%s1 + $0x508] sm:$0xff]
  %v209 = vld [vmem:[%s1 + $0x510] sm:$0xff]
  %v210 = vld [vmem:[%s1 + $0x518] sm:$0xff]
  %v211 = vld [vmem:[%s1 + $0x520] sm:$0xff]
  %v212 = vld [vmem:[%s1 + $0x528] sm:$0xff]
  %v213 = vld [vmem:[%s1 + $0x530] sm:$0xff]
  %v214 = vld [vmem:[%s1 + $0x538] sm:$0xff]
  %v215 = vld [vmem:[%s1 + $0x540] sm:$0xff]
  %v216 = vld [vmem:[%s1 + $0x548] sm:$0xff]
  %v217 = vld [vmem:[%s1 + $0x550] sm:$0xff]
  %v218 = vld [vmem:[%s1 + $0x558] sm:$0xff]
  %v219 = vld [vmem:[%s1 + $0x560] sm:$0xff]
  %v220 = vld [vmem:[%s1 + $0x568] sm:$0xff]
  %v221 = vld [vmem:[%s1 + $0x570] sm:$0xff]
  %v222 = vld [vmem:[%s1 + $0x578] sm:$0xff]
  %v223 = vld [vmem:[%s1 + $0x580] sm:$0xff]
  %v224 = vld [vmem:[%s1 + $0x588] sm:$0xff]
  %v225 = vld [vmem:[%s1 + $0x590] sm:$0xff]
  %v226 = vld [vmem:[%s1 + $0x598] sm:$0xff]
  %v227 = vld [vmem:[%s1 + $0x5a0] sm:$0xff]
  %v228 = vld [vmem:[%s1 + $0x5a8] sm:$0xff]
  %v229 = vld [vmem:[%s1 + $0x5b0] sm:$0xff]
  %v230 = vld [vmem:[%s1 + $0x5b8] sm:$0xff]
  %v231 = vld [vmem:[%s1 + $0x5c0] sm:$0xff]
  %v232 = vld [vmem:[%s1 + $0x5c8] sm:$0xff]
  %v233 = vld [vmem:[%s1 + $0x5d0] sm:$0xff]
  %v234 = vld [vmem:[%s1 + $0x5d8] sm:$0xff]
  %v235 = vld [vmem:[%s1 + $0x5e0] sm:$0xff]
  %v236 = vld [vmem:[%s1 + $0x5e8] sm:$0xff]
  %v237 = vld [vmem:[%s1 + $0x5f0] sm:$0xff]
  %v238 = vld [vmem:[%s1 + $0x5f8] sm:$0xff]
  %v239 = vld [vmem:[%s1 + $0x600] sm:$0xff]
  %v240 = vld [vmem:[%s1 + $0x608] sm:$0xff]
  %v241 = vld [vmem:[%s1 + $0x610] sm:$0xff]
  %v242 = vld [vmem:[%s1 + $0x618] sm:$0xff]
  %v243 = vld [vmem:[%s1 + $0x620] sm:$0xff]
  %v244 = vld [vmem:[%s1 + $0x628] sm:$0xff]
  %v245 = vld [vmem:[%s1 + $0x630] sm:$0xff]
  %v246 = vld [vmem:[%s1 + $0x638] sm:$0xff]
  %v247 = vld [vmem:[%s1 + $0x640] sm:$0xff]
  %v248 = vld [vmem:[%s1 + $0x648] sm:$0xff]
  %v249 = vld [vmem:[%s1 + $0x650] sm:$0xff]
  %v250 = vld [vmem:[%s1 + $0x658] sm:$0xff]
  %v251 = vld [vmem:[%s1 + $0x660] sm:$0xff]
  %v252 = vld [vmem:[%s1 + $0x668] sm:$0xff]
  %v253 = vld [vmem:[%s1 + $0x670] sm:$0xff]
  %v254 = vld [vmem:[%s1 + $0x678] sm:$0xff]
  %v255 = vld [vmem:[%s1 + $0x680] sm:$0xff]
  %v256 = vld [vmem:[%s1 + $0x688] sm:$0xff]
  %v257 = vld [vmem:[%s1 + $0x690] sm:$0xff]
  %v258 = vld [vmem:[%s1 + $0x698] sm:$0xff]
  %v259 = vld [vmem:[%s1 + $0x6a0] sm:$0xff]
  %v260 = vld [vmem:[%s1 + $0x6a8] sm:$0xff]
  %v261 = vld [vmem:[%s1 + $0x6b0] sm:$0xff]
  %v262 = vld [vmem:[%s1 + $0x6b8] sm:$0xff]
  %v263 = vld [vmem:[%s1 + $0x6c0] sm:$0xff]
  %v264 = vld [vmem:[%s1 + $0x6c8] sm:$0xff]
  %v265 = vld [vmem:[%s1 + $0x6d0] sm:$0xff]
  %v266 = vld [vmem:[%s1 + $0x6d8] sm:$0xff]
  %v267 = vld [vmem:[%s1 + $0x6e0] sm:$0xff]
  %v268 = vld [vmem:[%s1 + $0x6e8] sm:$0xff]
  %v269 = vld [vmem:[%s1 + $0x6f0] sm:$0xff]
  %v270 = vld [vmem:[%s1 + $0x6f8] sm:$0xff]
  %v271 = vld [vmem:[%s1 + $0x700] sm:$0xff]
  %v272 = vld [vmem:[%s1 + $0x708] sm:$0xff]
  %v273 = vld [vmem:[%s1 + $0x710] sm:$0xff]
  %v274 = vld [vmem:[%s1 + $0x718] sm:$0xff]
  %v275 = vld [vmem:[%s1 + $0x720] sm:$0xff]
  %v276 = vld [vmem:[%s1 + $0x728] sm:$0xff]
  %v277 = vld [vmem:[%s1 + $0x730] sm:$0xff]
  %v278 = vld [vmem:[%s1 + $0x738] sm:$0xff]
  %v279 = vld [vmem:[%s1 + $0x740] sm:$0xff]
  %v280 = vld [vmem:[%s1 + $0x748] sm:$0xff]
  %v281 = vld [vmem:[%s1 + $0x750] sm:$0xff]
  %v282 = vld [vmem:[%s1 + $0x758] sm:$0xff]
  %v283 = vld [vmem:[%s1 + $0x760] sm:$0xff]
  %v284 = vld [vmem:[%s1 + $0x768] sm:$0xff]
  %v285 = vld [vmem:[%s1 + $0x770] sm:$0xff]
  %v286 = vld [vmem:[%s1 + $0x778] sm:$0xff]
  %v287 = vld [vmem:[%s1 + $0x780] sm:$0xff]
  %v288 = vld [vmem:[%s1 + $0x788] sm:$0xff]
  %v289 = vld [vmem:[%s1 + $0x790] sm:$0xff]
  %v290 = vld [vmem:[%s1 + $0x798] sm:$0xff]
  %v291 = vld [vmem:[%s1 + $0x7a0] sm:$0xff]
  %v292 = vld [vmem:[%s1 + $0x7a8] sm:$0xff]
  %v293 = vld [vmem:[%s1 + $0x7b0] sm:$0xff]
  %v294 = vld [vmem:[%s1 + $0x7b8] sm:$0xff]
  %v295 = vld [vmem:[%s1 + $0x7c0] sm:$0xff]
  %v296 = vld [vmem:[%s1 + $0x7c8] sm:$0xff]
  %v297 = vld [vmem:[%s1 + $0x7d0] sm:$0xff]
  %v298 = vld [vmem:[%s1 + $0x7d8] sm:$0xff]
  %v299 = vld [vmem:[%s1 + $0x7e0] sm:$0xff]
  %v300 = vld [vmem:[%s1 + $0x7e8] sm:$0xff]
  %v301 = vld [vmem:[%s1 + $0x7f0] sm:$0xff]
  %v302 = vld [vmem:[%s1 + $0x7f8] sm:$0xff]
  %v303 = vld [vmem:[%s1 + $0x800] sm:$0xff]
  %v304 = vld [vmem:[%s1 + $0x808] sm:$0xff]
  %v305 = vld [vmem:[%s1 + $0x810] sm:$0xff]
  %v306 = vld [vmem:[%s1 + $0x818] sm:$0xff]
  %v307 = vld [vmem:[%s1 + $0x820] sm:$0xff]
  %v308 = vld [vmem:[%s1 + $0x828] sm:$0xff]
  %v309 = vld [vmem:[%s1 + $0x830] sm:$0xff]
  %v310 = vld [vmem:[%s1 + $0x838] sm:$0xff]
  %v311 = vld [vmem:[%s1 + $0x840] sm:$0xff]
  %v312 = vld [vmem:[%s1 + $0x848] sm:$0xff]
  %v313 = vld [vmem:[%s1 + $0x850] sm:$0xff]
  %v314 = vld [vmem:[%s1 + $0x858] sm:$0xff]
  %v315 = vld [vmem:[%s1 + $0x860] sm:$0xff]
  %v316 = vld [vmem:[%s1 + $0x868] sm:$0xff]
  %v317 = vld [vmem:[%s1 + $0x870] sm:$0xff]
  %v318 = vld [vmem:[%s1 + $0x878] sm:$0xff]
  %v319 = vld [vmem:[%s1 + $0x880] sm:$0xff]
  %v320 = vld [vmem:[%s1 + $0x888] sm:$0xff]
  %v321 = vld [vmem:[%s1 + $0x890] sm:$0xff]
  %v322 = vld [vmem:[%s1 + $0x898] sm:$0xff]
  %v323 = vld [vmem:[%s1 + $0x8a0] sm:$0xff]
  %v324 = vld [vmem:[%s1 + $0x8a8] sm:$0xff]
  %v325 = vld [vmem:[%s1 + $0x8b0] sm:$0xff]
  %v326 = vld [vmem:[%s1 + $0x8b8] sm:$0xff]
  %v327 = vld [vmem:[%s1 + $0x8c0] sm:$0xff]
  %v328 = vld [vmem:[%s1 + $0x8c8] sm:$0xff]
  %v329 = vld [vmem:[%s1 + $0x8d0] sm:$0xff]
  %v330 = vld [vmem:[%s1 + $0x8d8] sm:$0xff]
  %v331 = vld [vmem:[%s1 + $0x8e0] sm:$0xff]
  %v332 = vld [vmem:[%s1 + $0x8e8] sm:$0xff]
  %v333 = vld [vmem:[%s1 + $0x8f0] sm:$0xff]
  %v334 = vld [vmem:[%s1 + $0x8f8] sm:$0xff]
  %v335 = vld [vmem:[%s1 + $0x900] sm:$0xff]
  %v336 = vld [vmem:[%s1 + $0x908] sm:$0xff]
  %v337 = vld [vmem:[%s1 + $0x910] sm:$0xff]
  %v338 = vld [vmem:[%s1 + $0x918] sm:$0xff]
  %v339 = vld [vmem:[%s1 + $0x920] sm:$0xff]
  %v340 = vld [vmem:[%s1 + $0x928] sm:$0xff]
  %v341 = vld [vmem:[%s1 + $0x930] sm:$0xff]
  %v342 = vld [vmem:[%s1 + $0x938] sm:$0xff]
  %v343 = vld [vmem:[%s1 + $0x940] sm:$0xff]
  %v344 = vld [vmem:[%s1 + $0x948] sm:$0xff]
  %v345 = vld [vmem:[%s1 + $0x950] sm:$0xff]
  %v346 = vld [vmem:[%s1 + $0x958] sm:$0xff]
  %v347 = vld [vmem:[%s1 + $0x960] sm:$0xff]
  %v348 = vld [vmem:[%s1 + $0x968] sm:$0xff]
  %v349 = vld [vmem:[%s1 + $0x970] sm:$0xff]
  %v350 = vld [vmem:[%s1 + $0x978] sm:$0xff]
  %v351 = vld [vmem:[%s1 + $0x980] sm:$0xff]
  %v352 = vld [vmem:[%s1 + $0x988] sm:$0xff]
  %v353 = vld [vmem:[%s1 + $0x990] sm:$0xff]
  %v354 = vld [vmem:[%s1 + $0x998] sm:$0xff]
  %v355 = vld [vmem:[%s1 + $0x9a0] sm:$0xff]
  %v356 = vld [vmem:[%s1 + $0x9a8] sm:$0xff]
  %v357 = vld [vmem:[%s1 + $0x9b0] sm:$0xff]
  %v358 = vld [vmem:[%s1 + $0x9b8] sm:$0xff]
  %v359 = vld [vmem:[%s1 + $0x9c0] sm:$0xff]
  %v360 = vld [vmem:[%s1 + $0x9c8] sm:$0xff]
  %v361 = vld [vmem:[%s1 + $0x9d0] sm:$0xff]
  %v362 = vld [vmem:[%s1 + $0x9d8] sm:$0xff]
  %v363 = vld [vmem:[%s1 + $0x9e0] sm:$0xff]
  %v364 = vld [vmem:[%s1 + $0x9e8] sm:$0xff]
  %v365 = vld [vmem:[%s1 + $0x9f0] sm:$0xff]
  %v366 = vld [vmem:[%s1 + $0x9f8] sm:$0xff]
  %v367 = vld [vmem:[%s1 + $0xa00] sm:$0xff]
  %v368 = vld [vmem:[%s1 + $0xa08] sm:$0xff]
  %v369 = vld [vmem:[%s1 + $0xa10] sm:$0xff]
  %v370 = vld [vmem:[%s1 + $0xa18] sm:$0xff]
  %v371 = vld [vmem:[%s1 + $0xa20] sm:$0xff]
  %v372 = vld [vmem:[%s1 + $0xa28] sm:$0xff]
  %v373 = vld [vmem:[%s1 + $0xa30] sm:$0xff]
  %v374 = vld [vmem:[%s1 + $0xa38] sm:$0xff]
  %v375 = vld [vmem:[%s1 + $0xa40] sm:$0xff]
  %v376 = vld [vmem:[%s1 + $0xa48] sm:$0xff]
  %v377 = vld [vmem:[%s1 + $0xa50] sm:$0xff]
  %v378 = vld [vmem:[%s1 + $0xa58] sm:$0xff]
  %v379 = vld [vmem:[%s1 + $0xa60] sm:$0xff]
  %v380 = vld [vmem:[%s1 + $0xa68] sm:$0xff]
  %v381 = vld [vmem:[%s1 + $0xa70] sm:$0xff]
  %v382 = vld [vmem:[%s1 + $0xa78] sm:$0xff]
  %v383 = vld [vmem:[%s1 + $0xa80] sm:$0xff]
  %v384 = vld [vmem:[%s1 + $0xa88] sm:$0xff]
  %v385 = vld [vmem:[%s1 + $0xa90] sm:$0xff]
  %v386 = vld [vmem:[%s1 + $0xa98] sm:$0xff]
  %v387 = vld [vmem:[%s1 + $0xaa0] sm:$0xff]
  %v388 = vld [vmem:[%s1 + $0xaa8] sm:$0xff]
  %v389 = vld [vmem:[%s1 + $0xab0] sm:$0xff]
  %v390 = vld [vmem:[%s1 + $0xab8] sm:$0xff]
  %v391 = vld [vmem:[%s1 + $0xac0] sm:$0xff]
  %v392 = vld [vmem:[%s1 + $0xac8] sm:$0xff]
  %v393 = vld [vmem:[%s1 + $0xad0] sm:$0xff]
  %v394 = vld [vmem:[%s1 + $0xad8] sm:$0xff]
  %v395 = vld [vmem:[%s1 + $0xae0] sm:$0xff]
  %v396 = vld [vmem:[%s1 + $0xae8] sm:$0xff]
  %v397 = vld [vmem:[%s1 + $0xaf0] sm:$0xff]
  %v398 = vld [vmem:[%s1 + $0xaf8] sm:$0xff]
  %v399 = vld [vmem:[%s1 + $0xb00] sm:$0xff]
  %v400 = vld [vmem:[%s1 + $0xb08] sm:$0xff]
  %v401 = vld [vmem:[%s1 + $0xb10] sm:$0xff]
  %v402 = vld [vmem:[%s1 + $0xb18] sm:$0xff]
  %v403 = vld [vmem:[%s1 + $0xb20] sm:$0xff]
  %v404 = vld [vmem:[%s1 + $0xb28] sm:$0xff]
  %v405 = vld [vmem:[%s1 + $0xb30] sm:$0xff]
  %v406 = vld [vmem:[%s1 + $0xb38] sm:$0xff]
  %v407 = vld [vmem:[%s1 + $0xb40] sm:$0xff]
  %v408 = vld [vmem:[%s1 + $0xb48] sm:$0xff]
  %v409 = vld [vmem:[%s1 + $0xb50] sm:$0xff]
  %v410 = vld [vmem:[%s1 + $0xb58] sm:$0xff]
  %v411 = vld [vmem:[%s1 + $0xb60] sm:$0xff]
  %v412 = vld [vmem:[%s1 + $0xb68] sm:$0xff]
  %v413 = vld [vmem:[%s1 + $0xb70] sm:$0xff]
  %v414 = vld [vmem:[%s1 + $0xb78] sm:$0xff]
  %v415 = vld [vmem:[%s1 + $0xb80] sm:$0xff]
  %v416 = vld [vmem:[%s1 + $0xb88] sm:$0xff]
  %v417 = vld [vmem:[%s1 + $0xb90] sm:$0xff]
  %v418 = vld [vmem:[%s1 + $0xb98] sm:$0xff]
  %v419 = vld [vmem:[%s1 + $0xba0] sm:$0xff]
  %v420 = vld [vmem:[%s1 + $0xba8] sm:$0xff]
  %v421 = vld [vmem:[%s1 + $0xbb0] sm:$0xff]
  %v422 = vld [vmem:[%s1 + $0xbb8] sm:$0xff]
  %v423 = vld [vmem:[%s1 + $0xbc0] sm:$0xff]
  %v424 = vld [vmem:[%s1 + $0xbc8] sm:$0xff]
  %v425 = vld [vmem:[%s1 + $0xbd0] sm:$0xff]
  %v426 = vld [vmem:[%s1 + $0xbd8] sm:$0xff]
  %v427 = vld [vmem:[%s1 + $0xbe0] sm:$0xff]
  %v428 = vld [vmem:[%s1 + $0xbe8] sm:$0xff]
  %v429 = vld [vmem:[%s1 + $0xbf0] sm:$0xff]
  %v430 = vld [vmem:[%s1 + $0xbf8] sm:$0xff]
  %v431 = vld [vmem:[%s1 + $0xc00] sm:$0xff]
  %v432 = vld [vmem:[%s1 + $0xc08] sm:$0xff]
  %v433 = vld [vmem:[%s1 + $0xc10] sm:$0xff]
  %v434 = vld [vmem:[%s1 + $0xc18] sm:$0xff]
  %v435 = vld [vmem:[%s1 + $0xc20] sm:$0xff]
  %v436 = vld [vmem:[%s1 + $0xc28] sm:$0xff]
  %v437 = vld [vmem:[%s1 + $0xc30] sm:$0xff]
  %v438 = vld [vmem:[%s1 + $0xc38] sm:$0xff]
  %v439 = vld [vmem:[%s2] sm:$0xff]
  %v440 = vld [vmem:[%s2 + $0x8] sm:$0xff]
  %v443 = vlaneseq
  %v444 = vshrl.u32 %v443, 7
  %v445 = vsub.s32 0, %v444
  %v446 = vrot.slane %v439, %v445
  %v447 = vlaneseq
  %v448 = vshrl.u32 %v447, 7
  %v449 = vsub.s32 1, %v448
  %v450 = vrot.slane %v439, %v449
  %v451 = vlaneseq
  %v452 = vshrl.u32 %v451, 7
  %v453 = vsub.s32 2, %v452
  %v454 = vrot.slane %v439, %v453
  %v455 = vlaneseq
  %v456 = vshrl.u32 %v455, 7
  %v457 = vsub.s32 3, %v456
  %v458 = vrot.slane %v439, %v457
  %v459 = vlaneseq
  %v460 = vshrl.u32 %v459, 7
  %v461 = vsub.s32 4, %v460
  %v462 = vrot.slane %v439, %v461
  %v463 = vlaneseq
  %v464 = vshrl.u32 %v463, 7
  %v465 = vsub.s32 5, %v464
  %v466 = vrot.slane %v439, %v465
  %v467 = vlaneseq
  %v468 = vshrl.u32 %v467, 7
  %v469 = vsub.s32 6, %v468
  %v470 = vrot.slane %v439, %v469
  %v471 = vlaneseq
  %v472 = vshrl.u32 %v471, 7
  %v473 = vsub.s32 7, %v472
  %v474 = vrot.slane %v439, %v473
  %v475 = vlaneseq
  %v476 = vshrl.u32 %v475, 7
  %v477 = vsub.s32 0, %v476
  %v478 = vrot.slane %v440, %v477
  %v479 = vlaneseq
  %v480 = vshrl.u32 %v479, 7
  %v481 = vsub.s32 1, %v480
  %v482 = vrot.slane %v440, %v481
  %v483 = vlaneseq
  %v484 = vshrl.u32 %v483, 7
  %v485 = vsub.s32 2, %v484
  %v486 = vrot.slane %v440, %v485
  %v487 = vlaneseq
  %v488 = vshrl.u32 %v487, 7
  %v489 = vsub.s32 3, %v488
  %v490 = vrot.slane %v440, %v489
  %v491 = vlaneseq
  %v492 = vshrl.u32 %v491, 7
  %v493 = vsub.s32 4, %v492
  %v494 = vrot.slane %v440, %v493
  %v495 = vlaneseq
  %v496 = vshrl.u32 %v495, 7
  %v497 = vsub.s32 5, %v496
  %v498 = vrot.slane %v440, %v497
  %v499 = vlaneseq
  %v500 = vshrl.u32 %v499, 7
  %v501 = vsub.s32 6, %v500
  %v502 = vrot.slane %v440, %v501
  %v503 = vlaneseq
  %v504 = vshrl.u32 %v503, 7
  %v505 = vsub.s32 7, %v504
  %v506 = vrot.slane %v440, %v505
  %v915 = vunpack.c.l.b16 %v47
  %v916 = vunpack.c.h.b16 %v47
  %v917 = vunpack.c.l.b16 %v48
  %v918 = vunpack.c.h.b16 %v48
  %v919 = vunpack.c.l.b16 %v49
  %v920 = vunpack.c.h.b16 %v49
  %v921 = vunpack.c.l.b16 %v50
  %v922 = vunpack.c.h.b16 %v50
  %v923 = vunpack.c.l.b16 %v51
  %v924 = vunpack.c.h.b16 %v51
  %v925 = vunpack.c.l.b16 %v52
  %v926 = vunpack.c.h.b16 %v52
  %v927 = vunpack.c.l.b16 %v53
  %v928 = vunpack.c.h.b16 %v53
  %v929 = vunpack.c.l.b16 %v54
  %v930 = vunpack.c.h.b16 %v54
  %v931 = vunpack.c.l.b16 %v55
  %v932 = vunpack.c.h.b16 %v55
  %v933 = vunpack.c.l.b16 %v56
  %v934 = vunpack.c.h.b16 %v56
  %v935 = vunpack.c.l.b16 %v57
  %v936 = vunpack.c.h.b16 %v57
  %v937 = vunpack.c.l.b16 %v58
  %v938 = vunpack.c.h.b16 %v58
  %v939 = vunpack.c.l.b16 %v59
  %v940 = vunpack.c.h.b16 %v59
  %v941 = vunpack.c.l.b16 %v60
  %v942 = vunpack.c.h.b16 %v60
  %v943 = vunpack.c.l.b16 %v61
  %v944 = vunpack.c.h.b16 %v61
  %v945 = vunpack.c.l.b16 %v62
  %v946 = vunpack.c.h.b16 %v62
  %v947 = vunpack.c.l.b16 %v63
  %v948 = vunpack.c.h.b16 %v63
  %v949 = vunpack.c.l.b16 %v64
  %v950 = vunpack.c.h.b16 %v64
  %v951 = vunpack.c.l.b16 %v65
  %v952 = vunpack.c.h.b16 %v65
  %v953 = vunpack.c.l.b16 %v66
  %v954 = vunpack.c.h.b16 %v66
  %v955 = vunpack.c.l.b16 %v67
  %v956 = vunpack.c.h.b16 %v67
  %v957 = vunpack.c.l.b16 %v68
  %v958 = vunpack.c.h.b16 %v68
  %v959 = vunpack.c.l.b16 %v69
  %v960 = vunpack.c.h.b16 %v69
  %v961 = vunpack.c.l.b16 %v70
  %v962 = vunpack.c.h.b16 %v70
  %v963 = vunpack.c.l.b16 %v71
  %v964 = vunpack.c.h.b16 %v71
  %v965 = vunpack.c.l.b16 %v72
  %v966 = vunpack.c.h.b16 %v72
  %v967 = vunpack.c.l.b16 %v73
  %v968 = vunpack.c.h.b16 %v73
  %v969 = vunpack.c.l.b16 %v74
  %v970 = vunpack.c.h.b16 %v74
  %v971 = vunpack.c.l.b16 %v75
  %v972 = vunpack.c.h.b16 %v75
  %v973 = vunpack.c.l.b16 %v76
  %v974 = vunpack.c.h.b16 %v76
  %v975 = vunpack.c.l.b16 %v77
  %v976 = vunpack.c.h.b16 %v77
  %v977 = vunpack.c.l.b16 %v78
  %v978 = vunpack.c.h.b16 %v78
  %v979 = vunpack.c.l.b16 %v79
  %v980 = vunpack.c.h.b16 %v79
  %v981 = vunpack.c.l.b16 %v80
  %v982 = vunpack.c.h.b16 %v80
  %v983 = vunpack.c.l.b16 %v81
  %v984 = vunpack.c.h.b16 %v81
  %v985 = vunpack.c.l.b16 %v82
  %v986 = vunpack.c.h.b16 %v82
  %v987 = vunpack.c.l.b16 %v83
  %v988 = vunpack.c.h.b16 %v83
  %v989 = vunpack.c.l.b16 %v84
  %v990 = vunpack.c.h.b16 %v84
  %v991 = vunpack.c.l.b16 %v85
  %v992 = vunpack.c.h.b16 %v85
  %v993 = vunpack.c.l.b16 %v86
  %v994 = vunpack.c.h.b16 %v86
  %v995 = vunpack.c.l.b16 %v87
  %v996 = vunpack.c.h.b16 %v87
  %v997 = vunpack.c.l.b16 %v88
  %v998 = vunpack.c.h.b16 %v88
  %v999 = vunpack.c.l.b16 %v89
  %v1000 = vunpack.c.h.b16 %v89
  %v1001 = vunpack.c.l.b16 %v90
  %v1002 = vunpack.c.h.b16 %v90
  %v1003 = vunpack.c.l.b16 %v91
  %v1004 = vunpack.c.h.b16 %v91
  %v1005 = vunpack.c.l.b16 %v92
  %v1006 = vunpack.c.h.b16 %v92
  %v1007 = vunpack.c.l.b16 %v93
  %v1008 = vunpack.c.h.b16 %v93
  %v1009 = vunpack.c.l.b16 %v94
  %v1010 = vunpack.c.h.b16 %v94
  %v1011 = vunpack.c.l.b16 %v95
  %v1012 = vunpack.c.h.b16 %v95
  %v1013 = vunpack.c.l.b16 %v96
  %v1014 = vunpack.c.h.b16 %v96
  %v1015 = vunpack.c.l.b16 %v97
  %v1016 = vunpack.c.h.b16 %v97
  %v1017 = vunpack.c.l.b16 %v98
  %v1018 = vunpack.c.h.b16 %v98
  %v1019 = vunpack.c.l.b16 %v99
  %v1020 = vunpack.c.h.b16 %v99
  %v1021 = vunpack.c.l.b16 %v100
  %v1022 = vunpack.c.h.b16 %v100
  %v1023 = vunpack.c.l.b16 %v101
  %v1024 = vunpack.c.h.b16 %v101
  %v1025 = vunpack.c.l.b16 %v102
  %v1026 = vunpack.c.h.b16 %v102
  %v1027 = vunpack.c.l.b16 %v103
  %v1028 = vunpack.c.h.b16 %v103
  %v1029 = vunpack.c.l.b16 %v104
  %v1030 = vunpack.c.h.b16 %v104
  %v1031 = vunpack.c.l.b16 %v105
  %v1032 = vunpack.c.h.b16 %v105
  %v1033 = vunpack.c.l.b16 %v106
  %v1034 = vunpack.c.h.b16 %v106
  %v1035 = vunpack.c.l.b16 %v107
  %v1036 = vunpack.c.h.b16 %v107
  %v1037 = vunpack.c.l.b16 %v108
  %v1038 = vunpack.c.h.b16 %v108
  %v1039 = vunpack.c.l.b16 %v109
  %v1040 = vunpack.c.h.b16 %v109
  %v1041 = vunpack.c.l.b16 %v110
  %v1042 = vunpack.c.h.b16 %v110
  %v1043 = vunpack.c.l.b16 %v111
  %v1044 = vunpack.c.h.b16 %v111
  %v1045 = vunpack.c.l.b16 %v112
  %v1046 = vunpack.c.h.b16 %v112
  %v1047 = vunpack.c.l.b16 %v113
  %v1048 = vunpack.c.h.b16 %v113
  %v1049 = vunpack.c.l.b16 %v114
  %v1050 = vunpack.c.h.b16 %v114
  %v1051 = vunpack.c.l.b16 %v115
  %v1052 = vunpack.c.h.b16 %v115
  %v1053 = vunpack.c.l.b16 %v116
  %v1054 = vunpack.c.h.b16 %v116
  %v1055 = vunpack.c.l.b16 %v117
  %v1056 = vunpack.c.h.b16 %v117
  %v1057 = vunpack.c.l.b16 %v118
  %v1058 = vunpack.c.h.b16 %v118
  %v1059 = vunpack.c.l.b16 %v119
  %v1060 = vunpack.c.h.b16 %v119
  %v1061 = vunpack.c.l.b16 %v120
  %v1062 = vunpack.c.h.b16 %v120
  %v1063 = vunpack.c.l.b16 %v121
  %v1064 = vunpack.c.h.b16 %v121
  %v1065 = vunpack.c.l.b16 %v122
  %v1066 = vunpack.c.h.b16 %v122
  %v1067 = vunpack.c.l.b16 %v123
  %v1068 = vunpack.c.h.b16 %v123
  %v1069 = vunpack.c.l.b16 %v124
  %v1070 = vunpack.c.h.b16 %v124
  %v1071 = vunpack.c.l.b16 %v125
  %v1072 = vunpack.c.h.b16 %v125
  %v1073 = vunpack.c.l.b16 %v126
  %v1074 = vunpack.c.h.b16 %v126
  %v1075 = vunpack.c.l.b16 %v127
  %v1076 = vunpack.c.h.b16 %v127
  %v1077 = vunpack.c.l.b16 %v128
  %v1078 = vunpack.c.h.b16 %v128
  %v1079 = vunpack.c.l.b16 %v129
  %v1080 = vunpack.c.h.b16 %v129
  %v1081 = vunpack.c.l.b16 %v130
  %v1082 = vunpack.c.h.b16 %v130
  %v1083 = vunpack.c.l.b16 %v131
  %v1084 = vunpack.c.h.b16 %v131
  %v1085 = vunpack.c.l.b16 %v132
  %v1086 = vunpack.c.h.b16 %v132
  %v1087 = vunpack.c.l.b16 %v133
  %v1088 = vunpack.c.h.b16 %v133
  %v1089 = vunpack.c.l.b16 %v134
  %v1090 = vunpack.c.h.b16 %v134
  %v1091 = vunpack.c.l.b16 %v135
  %v1092 = vunpack.c.h.b16 %v135
  %v1093 = vunpack.c.l.b16 %v136
  %v1094 = vunpack.c.h.b16 %v136
  %v1095 = vunpack.c.l.b16 %v137
  %v1096 = vunpack.c.h.b16 %v137
  %v1097 = vunpack.c.l.b16 %v138
  %v1098 = vunpack.c.h.b16 %v138
  %v1099 = vunpack.c.l.b16 %v139
  %v1100 = vunpack.c.h.b16 %v139
  %v1101 = vunpack.c.l.b16 %v140
  %v1102 = vunpack.c.h.b16 %v140
  %v1103 = vunpack.c.l.b16 %v141
  %v1104 = vunpack.c.h.b16 %v141
  %v1105 = vunpack.c.l.b16 %v142
  %v1106 = vunpack.c.h.b16 %v142
  %v1107 = vunpack.c.l.b16 %v143
  %v1108 = vunpack.c.h.b16 %v143
  %v1109 = vunpack.c.l.b16 %v144
  %v1110 = vunpack.c.h.b16 %v144
  %v1111 = vunpack.c.l.b16 %v145
  %v1112 = vunpack.c.h.b16 %v145
  %v1113 = vunpack.c.l.b16 %v146
  %v1114 = vunpack.c.h.b16 %v146
  %v1115 = vunpack.c.l.b16 %v147
  %v1116 = vunpack.c.h.b16 %v147
  %v1117 = vunpack.c.l.b16 %v148
  %v1118 = vunpack.c.h.b16 %v148
  %v1119 = vunpack.c.l.b16 %v149
  %v1120 = vunpack.c.h.b16 %v149
  %v1121 = vunpack.c.l.b16 %v150
  %v1122 = vunpack.c.h.b16 %v150
  %v1123 = vunpack.c.l.b16 %v151
  %v1124 = vunpack.c.h.b16 %v151
  %v1125 = vunpack.c.l.b16 %v152
  %v1126 = vunpack.c.h.b16 %v152
  %v1127 = vunpack.c.l.b16 %v153
  %v1128 = vunpack.c.h.b16 %v153
  %v1129 = vunpack.c.l.b16 %v154
  %v1130 = vunpack.c.h.b16 %v154
  %v1131 = vunpack.c.l.b16 %v155
  %v1132 = vunpack.c.h.b16 %v155
  %v1133 = vunpack.c.l.b16 %v156
  %v1134 = vunpack.c.h.b16 %v156
  %v1135 = vunpack.c.l.b16 %v157
  %v1136 = vunpack.c.h.b16 %v157
  %v1137 = vunpack.c.l.b16 %v158
  %v1138 = vunpack.c.h.b16 %v158
  %v1139 = vunpack.c.l.b16 %v159
  %v1140 = vunpack.c.h.b16 %v159
  %v1141 = vunpack.c.l.b16 %v160
  %v1142 = vunpack.c.h.b16 %v160
  %v1143 = vunpack.c.l.b16 %v161
  %v1144 = vunpack.c.h.b16 %v161
  %v1145 = vunpack.c.l.b16 %v162
  %v1146 = vunpack.c.h.b16 %v162
  %v1147 = vunpack.c.l.b16 %v163
  %v1148 = vunpack.c.h.b16 %v163
  %v1149 = vunpack.c.l.b16 %v164
  %v1150 = vunpack.c.h.b16 %v164
  %v1151 = vunpack.c.l.b16 %v165
  %v1152 = vunpack.c.h.b16 %v165
  %v1153 = vunpack.c.l.b16 %v166
  %v1154 = vunpack.c.h.b16 %v166
  %v1155 = vunpack.c.l.b16 %v167
  %v1156 = vunpack.c.h.b16 %v167
  %v1157 = vunpack.c.l.b16 %v168
  %v1158 = vunpack.c.h.b16 %v168
  %v1159 = vunpack.c.l.b16 %v169
  %v1160 = vunpack.c.h.b16 %v169
  %v1161 = vunpack.c.l.b16 %v170
  %v1162 = vunpack.c.h.b16 %v170
  %v1163 = vunpack.c.l.b16 %v171
  %v1164 = vunpack.c.h.b16 %v171
  %v1165 = vunpack.c.l.b16 %v172
  %v1166 = vunpack.c.h.b16 %v172
  %v1167 = vunpack.c.l.b16 %v173
  %v1168 = vunpack.c.h.b16 %v173
  %v1169 = vunpack.c.l.b16 %v174
  %v1170 = vunpack.c.h.b16 %v174
  %v1171 = vunpack.c.l.b16 %v175
  %v1172 = vunpack.c.h.b16 %v175
  %v1173 = vunpack.c.l.b16 %v176
  %v1174 = vunpack.c.h.b16 %v176
  %v1175 = vunpack.c.l.b16 %v177
  %v1176 = vunpack.c.h.b16 %v177
  %v1177 = vunpack.c.l.b16 %v178
  %v1178 = vunpack.c.h.b16 %v178
  %v1179 = vunpack.c.l.b16 %v179
  %v1180 = vunpack.c.h.b16 %v179
  %v1181 = vunpack.c.l.b16 %v180
  %v1182 = vunpack.c.h.b16 %v180
  %v1183 = vunpack.c.l.b16 %v181
  %v1184 = vunpack.c.h.b16 %v181
  %v1185 = vunpack.c.l.b16 %v182
  %v1186 = vunpack.c.h.b16 %v182
  %v1187 = vunpack.c.l.b16 %v183
  %v1188 = vunpack.c.h.b16 %v183
  %v1189 = vunpack.c.l.b16 %v184
  %v1190 = vunpack.c.h.b16 %v184
  %v1191 = vunpack.c.l.b16 %v185
  %v1192 = vunpack.c.h.b16 %v185
  %v1193 = vunpack.c.l.b16 %v186
  %v1194 = vunpack.c.h.b16 %v186
  %v1195 = vunpack.c.l.b16 %v187
  %v1196 = vunpack.c.h.b16 %v187
  %v1197 = vunpack.c.l.b16 %v188
  %v1198 = vunpack.c.h.b16 %v188
  %v1199 = vunpack.c.l.b16 %v189
  %v1200 = vunpack.c.h.b16 %v189
  %v1201 = vunpack.c.l.b16 %v190
  %v1202 = vunpack.c.h.b16 %v190
  %v1203 = vunpack.c.l.b16 %v191
  %v1204 = vunpack.c.h.b16 %v191
  %v1205 = vunpack.c.l.b16 %v192
  %v1206 = vunpack.c.h.b16 %v192
  %v1207 = vunpack.c.l.b16 %v193
  %v1208 = vunpack.c.h.b16 %v193
  %v1209 = vunpack.c.l.b16 %v194
  %v1210 = vunpack.c.h.b16 %v194
  %v1211 = vunpack.c.l.b16 %v195
  %v1212 = vunpack.c.h.b16 %v195
  %v1213 = vunpack.c.l.b16 %v196
  %v1214 = vunpack.c.h.b16 %v196
  %v1215 = vunpack.c.l.b16 %v197
  %v1216 = vunpack.c.h.b16 %v197
  %v1217 = vunpack.c.l.b16 %v198
  %v1218 = vunpack.c.h.b16 %v198
  %v1219 = vunpack.c.l.b16 %v199
  %v1220 = vunpack.c.h.b16 %v199
  %v1221 = vunpack.c.l.b16 %v200
  %v1222 = vunpack.c.h.b16 %v200
  %v1223 = vunpack.c.l.b16 %v201
  %v1224 = vunpack.c.h.b16 %v201
  %v1225 = vunpack.c.l.b16 %v202
  %v1226 = vunpack.c.h.b16 %v202
  %v1227 = vunpack.c.l.b16 %v203
  %v1228 = vunpack.c.h.b16 %v203
  %v1229 = vunpack.c.l.b16 %v204
  %v1230 = vunpack.c.h.b16 %v204
  %v1231 = vunpack.c.l.b16 %v205
  %v1232 = vunpack.c.h.b16 %v205
  %v1233 = vunpack.c.l.b16 %v206
  %v1234 = vunpack.c.h.b16 %v206
  %v1235 = vunpack.c.l.b16 %v207
  %v1236 = vunpack.c.h.b16 %v207
  %v1237 = vunpack.c.l.b16 %v208
  %v1238 = vunpack.c.h.b16 %v208
  %v1239 = vunpack.c.l.b16 %v209
  %v1240 = vunpack.c.h.b16 %v209
  %v1241 = vunpack.c.l.b16 %v210
  %v1242 = vunpack.c.h.b16 %v210
  %v1243 = vunpack.c.l.b16 %v211
  %v1244 = vunpack.c.h.b16 %v211
  %v1245 = vunpack.c.l.b16 %v212
  %v1246 = vunpack.c.h.b16 %v212
  %v1247 = vunpack.c.l.b16 %v213
  %v1248 = vunpack.c.h.b16 %v213
  %v1249 = vunpack.c.l.b16 %v214
  %v1250 = vunpack.c.h.b16 %v214
  %v1251 = vunpack.c.l.b16 %v215
  %v1252 = vunpack.c.h.b16 %v215
  %v1253 = vunpack.c.l.b16 %v216
  %v1254 = vunpack.c.h.b16 %v216
  %v1255 = vunpack.c.l.b16 %v217
  %v1256 = vunpack.c.h.b16 %v217
  %v1257 = vunpack.c.l.b16 %v218
  %v1258 = vunpack.c.h.b16 %v218
  %v1259 = vunpack.c.l.b16 %v219
  %v1260 = vunpack.c.h.b16 %v219
  %v1261 = vunpack.c.l.b16 %v220
  %v1262 = vunpack.c.h.b16 %v220
  %v1263 = vunpack.c.l.b16 %v221
  %v1264 = vunpack.c.h.b16 %v221
  %v1265 = vunpack.c.l.b16 %v222
  %v1266 = vunpack.c.h.b16 %v222
  %v1267 = vunpack.c.l.b16 %v223
  %v1268 = vunpack.c.h.b16 %v223
  %v1269 = vunpack.c.l.b16 %v224
  %v1270 = vunpack.c.h.b16 %v224
  %v1271 = vunpack.c.l.b16 %v225
  %v1272 = vunpack.c.h.b16 %v225
  %v1273 = vunpack.c.l.b16 %v226
  %v1274 = vunpack.c.h.b16 %v226
  %v1275 = vunpack.c.l.b16 %v227
  %v1276 = vunpack.c.h.b16 %v227
  %v1277 = vunpack.c.l.b16 %v228
  %v1278 = vunpack.c.h.b16 %v228
  %v1279 = vunpack.c.l.b16 %v229
  %v1280 = vunpack.c.h.b16 %v229
  %v1281 = vunpack.c.l.b16 %v230
  %v1282 = vunpack.c.h.b16 %v230
  %v1283 = vunpack.c.l.b16 %v231
  %v1284 = vunpack.c.h.b16 %v231
  %v1285 = vunpack.c.l.b16 %v232
  %v1286 = vunpack.c.h.b16 %v232
  %v1287 = vunpack.c.l.b16 %v233
  %v1288 = vunpack.c.h.b16 %v233
  %v1289 = vunpack.c.l.b16 %v234
  %v1290 = vunpack.c.h.b16 %v234
  %v1291 = vunpack.c.l.b16 %v235
  %v1292 = vunpack.c.h.b16 %v235
  %v1293 = vunpack.c.l.b16 %v236
  %v1294 = vunpack.c.h.b16 %v236
  %v1295 = vunpack.c.l.b16 %v237
  %v1296 = vunpack.c.h.b16 %v237
  %v1297 = vunpack.c.l.b16 %v238
  %v1298 = vunpack.c.h.b16 %v238
  %v1299 = vunpack.c.l.b16 %v239
  %v1300 = vunpack.c.h.b16 %v239
  %v1301 = vunpack.c.l.b16 %v240
  %v1302 = vunpack.c.h.b16 %v240
  %v1303 = vunpack.c.l.b16 %v241
  %v1304 = vunpack.c.h.b16 %v241
  %v1305 = vunpack.c.l.b16 %v242
  %v1306 = vunpack.c.h.b16 %v242
  %v1307 = vunpack.c.l.b16 %v243
  %v1308 = vunpack.c.h.b16 %v243
  %v1309 = vunpack.c.l.b16 %v244
  %v1310 = vunpack.c.h.b16 %v244
  %v1311 = vunpack.c.l.b16 %v245
  %v1312 = vunpack.c.h.b16 %v245
  %v1313 = vunpack.c.l.b16 %v246
  %v1314 = vunpack.c.h.b16 %v246
  %v1315 = vunpack.c.l.b16 %v247
  %v1316 = vunpack.c.h.b16 %v247
  %v1317 = vunpack.c.l.b16 %v248
  %v1318 = vunpack.c.h.b16 %v248
  %v1319 = vunpack.c.l.b16 %v249
  %v1320 = vunpack.c.h.b16 %v249
  %v1321 = vunpack.c.l.b16 %v250
  %v1322 = vunpack.c.h.b16 %v250
  %v1323 = vunpack.c.l.b16 %v251
  %v1324 = vunpack.c.h.b16 %v251
  %v1325 = vunpack.c.l.b16 %v252
  %v1326 = vunpack.c.h.b16 %v252
  %v1327 = vunpack.c.l.b16 %v253
  %v1328 = vunpack.c.h.b16 %v253
  %v1329 = vunpack.c.l.b16 %v254
  %v1330 = vunpack.c.h.b16 %v254
  %v1331 = vunpack.c.l.b16 %v255
  %v1332 = vunpack.c.h.b16 %v255
  %v1333 = vunpack.c.l.b16 %v256
  %v1334 = vunpack.c.h.b16 %v256
  %v1335 = vunpack.c.l.b16 %v257
  %v1336 = vunpack.c.h.b16 %v257
  %v1337 = vunpack.c.l.b16 %v258
  %v1338 = vunpack.c.h.b16 %v258
  %v1339 = vunpack.c.l.b16 %v259
  %v1340 = vunpack.c.h.b16 %v259
  %v1341 = vunpack.c.l.b16 %v260
  %v1342 = vunpack.c.h.b16 %v260
  %v1343 = vunpack.c.l.b16 %v261
  %v1344 = vunpack.c.h.b16 %v261
  %v1345 = vunpack.c.l.b16 %v262
  %v1346 = vunpack.c.h.b16 %v262
  %v1347 = vunpack.c.l.b16 %v263
  %v1348 = vunpack.c.h.b16 %v263
  %v1349 = vunpack.c.l.b16 %v264
  %v1350 = vunpack.c.h.b16 %v264
  %v1351 = vunpack.c.l.b16 %v265
  %v1352 = vunpack.c.h.b16 %v265
  %v1353 = vunpack.c.l.b16 %v266
  %v1354 = vunpack.c.h.b16 %v266
  %v1355 = vunpack.c.l.b16 %v267
  %v1356 = vunpack.c.h.b16 %v267
  %v1357 = vunpack.c.l.b16 %v268
  %v1358 = vunpack.c.h.b16 %v268
  %v1359 = vunpack.c.l.b16 %v269
  %v1360 = vunpack.c.h.b16 %v269
  %v1361 = vunpack.c.l.b16 %v270
  %v1362 = vunpack.c.h.b16 %v270
  %v1363 = vunpack.c.l.b16 %v271
  %v1364 = vunpack.c.h.b16 %v271
  %v1365 = vunpack.c.l.b16 %v272
  %v1366 = vunpack.c.h.b16 %v272
  %v1367 = vunpack.c.l.b16 %v273
  %v1368 = vunpack.c.h.b16 %v273
  %v1369 = vunpack.c.l.b16 %v274
  %v1370 = vunpack.c.h.b16 %v274
  %v1371 = vunpack.c.l.b16 %v275
  %v1372 = vunpack.c.h.b16 %v275
  %v1373 = vunpack.c.l.b16 %v276
  %v1374 = vunpack.c.h.b16 %v276
  %v1375 = vunpack.c.l.b16 %v277
  %v1376 = vunpack.c.h.b16 %v277
  %v1377 = vunpack.c.l.b16 %v278
  %v1378 = vunpack.c.h.b16 %v278
  %v1379 = vunpack.c.l.b16 %v279
  %v1380 = vunpack.c.h.b16 %v279
  %v1381 = vunpack.c.l.b16 %v280
  %v1382 = vunpack.c.h.b16 %v280
  %v1383 = vunpack.c.l.b16 %v281
  %v1384 = vunpack.c.h.b16 %v281
  %v1385 = vunpack.c.l.b16 %v282
  %v1386 = vunpack.c.h.b16 %v282
  %v1387 = vunpack.c.l.b16 %v283
  %v1388 = vunpack.c.h.b16 %v283
  %v1389 = vunpack.c.l.b16 %v284
  %v1390 = vunpack.c.h.b16 %v284
  %v1391 = vunpack.c.l.b16 %v285
  %v1392 = vunpack.c.h.b16 %v285
  %v1393 = vunpack.c.l.b16 %v286
  %v1394 = vunpack.c.h.b16 %v286
  %v1395 = vunpack.c.l.b16 %v287
  %v1396 = vunpack.c.h.b16 %v287
  %v1397 = vunpack.c.l.b16 %v288
  %v1398 = vunpack.c.h.b16 %v288
  %v1399 = vunpack.c.l.b16 %v289
  %v1400 = vunpack.c.h.b16 %v289
  %v1401 = vunpack.c.l.b16 %v290
  %v1402 = vunpack.c.h.b16 %v290
  %v1403 = vunpack.c.l.b16 %v291
  %v1404 = vunpack.c.h.b16 %v291
  %v1405 = vunpack.c.l.b16 %v292
  %v1406 = vunpack.c.h.b16 %v292
  %v1407 = vunpack.c.l.b16 %v293
  %v1408 = vunpack.c.h.b16 %v293
  %v1409 = vunpack.c.l.b16 %v294
  %v1410 = vunpack.c.h.b16 %v294
  %v1411 = vunpack.c.l.b16 %v295
  %v1412 = vunpack.c.h.b16 %v295
  %v1413 = vunpack.c.l.b16 %v296
  %v1414 = vunpack.c.h.b16 %v296
  %v1415 = vunpack.c.l.b16 %v297
  %v1416 = vunpack.c.h.b16 %v297
  %v1417 = vunpack.c.l.b16 %v298
  %v1418 = vunpack.c.h.b16 %v298
  %v1419 = vunpack.c.l.b16 %v299
  %v1420 = vunpack.c.h.b16 %v299
  %v1421 = vunpack.c.l.b16 %v300
  %v1422 = vunpack.c.h.b16 %v300
  %v1423 = vunpack.c.l.b16 %v301
  %v1424 = vunpack.c.h.b16 %v301
  %v1425 = vunpack.c.l.b16 %v302
  %v1426 = vunpack.c.h.b16 %v302
  %v1427 = vunpack.c.l.b16 %v303
  %v1428 = vunpack.c.h.b16 %v303
  %v1429 = vunpack.c.l.b16 %v304
  %v1430 = vunpack.c.h.b16 %v304
  %v1431 = vunpack.c.l.b16 %v305
  %v1432 = vunpack.c.h.b16 %v305
  %v1433 = vunpack.c.l.b16 %v306
  %v1434 = vunpack.c.h.b16 %v306
  %v1435 = vunpack.c.l.b16 %v307
  %v1436 = vunpack.c.h.b16 %v307
  %v1437 = vunpack.c.l.b16 %v308
  %v1438 = vunpack.c.h.b16 %v308
  %v1439 = vunpack.c.l.b16 %v309
  %v1440 = vunpack.c.h.b16 %v309
  %v1441 = vunpack.c.l.b16 %v310
  %v1442 = vunpack.c.h.b16 %v310
  %v1443 = vunpack.c.l.b16 %v311
  %v1444 = vunpack.c.h.b16 %v311
  %v1445 = vunpack.c.l.b16 %v312
  %v1446 = vunpack.c.h.b16 %v312
  %v1447 = vunpack.c.l.b16 %v313
  %v1448 = vunpack.c.h.b16 %v313
  %v1449 = vunpack.c.l.b16 %v314
  %v1450 = vunpack.c.h.b16 %v314
  %v1451 = vunpack.c.l.b16 %v315
  %v1452 = vunpack.c.h.b16 %v315
  %v1453 = vunpack.c.l.b16 %v316
  %v1454 = vunpack.c.h.b16 %v316
  %v1455 = vunpack.c.l.b16 %v317
  %v1456 = vunpack.c.h.b16 %v317
  %v1457 = vunpack.c.l.b16 %v318
  %v1458 = vunpack.c.h.b16 %v318
  %v1459 = vunpack.c.l.b16 %v319
  %v1460 = vunpack.c.h.b16 %v319
  %v1461 = vunpack.c.l.b16 %v320
  %v1462 = vunpack.c.h.b16 %v320
  %v1463 = vunpack.c.l.b16 %v321
  %v1464 = vunpack.c.h.b16 %v321
  %v1465 = vunpack.c.l.b16 %v322
  %v1466 = vunpack.c.h.b16 %v322
  %v1467 = vunpack.c.l.b16 %v323
  %v1468 = vunpack.c.h.b16 %v323
  %v1469 = vunpack.c.l.b16 %v324
  %v1470 = vunpack.c.h.b16 %v324
  %v1471 = vunpack.c.l.b16 %v325
  %v1472 = vunpack.c.h.b16 %v325
  %v1473 = vunpack.c.l.b16 %v326
  %v1474 = vunpack.c.h.b16 %v326
  %v1475 = vunpack.c.l.b16 %v327
  %v1476 = vunpack.c.h.b16 %v327
  %v1477 = vunpack.c.l.b16 %v328
  %v1478 = vunpack.c.h.b16 %v328
  %v1479 = vunpack.c.l.b16 %v329
  %v1480 = vunpack.c.h.b16 %v329
  %v1481 = vunpack.c.l.b16 %v330
  %v1482 = vunpack.c.h.b16 %v330
  %v1483 = vunpack.c.l.b16 %v331
  %v1484 = vunpack.c.h.b16 %v331
  %v1485 = vunpack.c.l.b16 %v332
  %v1486 = vunpack.c.h.b16 %v332
  %v1487 = vunpack.c.l.b16 %v333
  %v1488 = vunpack.c.h.b16 %v333
  %v1489 = vunpack.c.l.b16 %v334
  %v1490 = vunpack.c.h.b16 %v334
  %v1491 = vunpack.c.l.b16 %v335
  %v1492 = vunpack.c.h.b16 %v335
  %v1493 = vunpack.c.l.b16 %v336
  %v1494 = vunpack.c.h.b16 %v336
  %v1495 = vunpack.c.l.b16 %v337
  %v1496 = vunpack.c.h.b16 %v337
  %v1497 = vunpack.c.l.b16 %v338
  %v1498 = vunpack.c.h.b16 %v338
  %v1499 = vunpack.c.l.b16 %v339
  %v1500 = vunpack.c.h.b16 %v339
  %v1501 = vunpack.c.l.b16 %v340
  %v1502 = vunpack.c.h.b16 %v340
  %v1503 = vunpack.c.l.b16 %v341
  %v1504 = vunpack.c.h.b16 %v341
  %v1505 = vunpack.c.l.b16 %v342
  %v1506 = vunpack.c.h.b16 %v342
  %v1507 = vunpack.c.l.b16 %v343
  %v1508 = vunpack.c.h.b16 %v343
  %v1509 = vunpack.c.l.b16 %v344
  %v1510 = vunpack.c.h.b16 %v344
  %v1511 = vunpack.c.l.b16 %v345
  %v1512 = vunpack.c.h.b16 %v345
  %v1513 = vunpack.c.l.b16 %v346
  %v1514 = vunpack.c.h.b16 %v346
  %v1515 = vunpack.c.l.b16 %v347
  %v1516 = vunpack.c.h.b16 %v347
  %v1517 = vunpack.c.l.b16 %v348
  %v1518 = vunpack.c.h.b16 %v348
  %v1519 = vunpack.c.l.b16 %v349
  %v1520 = vunpack.c.h.b16 %v349
  %v1521 = vunpack.c.l.b16 %v350
  %v1522 = vunpack.c.h.b16 %v350
  %v1523 = vunpack.c.l.b16 %v351
  %v1524 = vunpack.c.h.b16 %v351
  %v1525 = vunpack.c.l.b16 %v352
  %v1526 = vunpack.c.h.b16 %v352
  %v1527 = vunpack.c.l.b16 %v353
  %v1528 = vunpack.c.h.b16 %v353
  %v1529 = vunpack.c.l.b16 %v354
  %v1530 = vunpack.c.h.b16 %v354
  %v1531 = vunpack.c.l.b16 %v355
  %v1532 = vunpack.c.h.b16 %v355
  %v1533 = vunpack.c.l.b16 %v356
  %v1534 = vunpack.c.h.b16 %v356
  %v1535 = vunpack.c.l.b16 %v357
  %v1536 = vunpack.c.h.b16 %v357
  %v1537 = vunpack.c.l.b16 %v358
  %v1538 = vunpack.c.h.b16 %v358
  %v1539 = vunpack.c.l.b16 %v359
  %v1540 = vunpack.c.h.b16 %v359
  %v1541 = vunpack.c.l.b16 %v360
  %v1542 = vunpack.c.h.b16 %v360
  %v1543 = vunpack.c.l.b16 %v361
  %v1544 = vunpack.c.h.b16 %v361
  %v1545 = vunpack.c.l.b16 %v362
  %v1546 = vunpack.c.h.b16 %v362
  %v1547 = vunpack.c.l.b16 %v363
  %v1548 = vunpack.c.h.b16 %v363
  %v1549 = vunpack.c.l.b16 %v364
  %v1550 = vunpack.c.h.b16 %v364
  %v1551 = vunpack.c.l.b16 %v365
  %v1552 = vunpack.c.h.b16 %v365
  %v1553 = vunpack.c.l.b16 %v366
  %v1554 = vunpack.c.h.b16 %v366
  %v1555 = vunpack.c.l.b16 %v367
  %v1556 = vunpack.c.h.b16 %v367
  %v1557 = vunpack.c.l.b16 %v368
  %v1558 = vunpack.c.h.b16 %v368
  %v1559 = vunpack.c.l.b16 %v369
  %v1560 = vunpack.c.h.b16 %v369
  %v1561 = vunpack.c.l.b16 %v370
  %v1562 = vunpack.c.h.b16 %v370
  %v1563 = vunpack.c.l.b16 %v371
  %v1564 = vunpack.c.h.b16 %v371
  %v1565 = vunpack.c.l.b16 %v372
  %v1566 = vunpack.c.h.b16 %v372
  %v1567 = vunpack.c.l.b16 %v373
  %v1568 = vunpack.c.h.b16 %v373
  %v1569 = vunpack.c.l.b16 %v374
  %v1570 = vunpack.c.h.b16 %v374
  %v1571 = vunpack.c.l.b16 %v375
  %v1572 = vunpack.c.h.b16 %v375
  %v1573 = vunpack.c.l.b16 %v376
  %v1574 = vunpack.c.h.b16 %v376
  %v1575 = vunpack.c.l.b16 %v377
  %v1576 = vunpack.c.h.b16 %v377
  %v1577 = vunpack.c.l.b16 %v378
  %v1578 = vunpack.c.h.b16 %v378
  %v1579 = vunpack.c.l.b16 %v379
  %v1580 = vunpack.c.h.b16 %v379
  %v1581 = vunpack.c.l.b16 %v380
  %v1582 = vunpack.c.h.b16 %v380
  %v1583 = vunpack.c.l.b16 %v381
  %v1584 = vunpack.c.h.b16 %v381
  %v1585 = vunpack.c.l.b16 %v382
  %v1586 = vunpack.c.h.b16 %v382
  %v1587 = vunpack.c.l.b16 %v383
  %v1588 = vunpack.c.h.b16 %v383
  %v1589 = vunpack.c.l.b16 %v384
  %v1590 = vunpack.c.h.b16 %v384
  %v1591 = vunpack.c.l.b16 %v385
  %v1592 = vunpack.c.h.b16 %v385
  %v1593 = vunpack.c.l.b16 %v386
  %v1594 = vunpack.c.h.b16 %v386
  %v1595 = vunpack.c.l.b16 %v387
  %v1596 = vunpack.c.h.b16 %v387
  %v1597 = vunpack.c.l.b16 %v388
  %v1598 = vunpack.c.h.b16 %v388
  %v1599 = vunpack.c.l.b16 %v389
  %v1600 = vunpack.c.h.b16 %v389
  %v1601 = vunpack.c.l.b16 %v390
  %v1602 = vunpack.c.h.b16 %v390
  %v1603 = vunpack.c.l.b16 %v391
  %v1604 = vunpack.c.h.b16 %v391
  %v1605 = vunpack.c.l.b16 %v392
  %v1606 = vunpack.c.h.b16 %v392
  %v1607 = vunpack.c.l.b16 %v393
  %v1608 = vunpack.c.h.b16 %v393
  %v1609 = vunpack.c.l.b16 %v394
  %v1610 = vunpack.c.h.b16 %v394
  %v1611 = vunpack.c.l.b16 %v395
  %v1612 = vunpack.c.h.b16 %v395
  %v1613 = vunpack.c.l.b16 %v396
  %v1614 = vunpack.c.h.b16 %v396
  %v1615 = vunpack.c.l.b16 %v397
  %v1616 = vunpack.c.h.b16 %v397
  %v1617 = vunpack.c.l.b16 %v398
  %v1618 = vunpack.c.h.b16 %v398
  %v1619 = vunpack.c.l.b16 %v399
  %v1620 = vunpack.c.h.b16 %v399
  %v1621 = vunpack.c.l.b16 %v400
  %v1622 = vunpack.c.h.b16 %v400
  %v1623 = vunpack.c.l.b16 %v401
  %v1624 = vunpack.c.h.b16 %v401
  %v1625 = vunpack.c.l.b16 %v402
  %v1626 = vunpack.c.h.b16 %v402
  %v1627 = vunpack.c.l.b16 %v403
  %v1628 = vunpack.c.h.b16 %v403
  %v1629 = vunpack.c.l.b16 %v404
  %v1630 = vunpack.c.h.b16 %v404
  %v1631 = vunpack.c.l.b16 %v405
  %v1632 = vunpack.c.h.b16 %v405
  %v1633 = vunpack.c.l.b16 %v406
  %v1634 = vunpack.c.h.b16 %v406
  %v1635 = vunpack.c.l.b16 %v407
  %v1636 = vunpack.c.h.b16 %v407
  %v1637 = vunpack.c.l.b16 %v408
  %v1638 = vunpack.c.h.b16 %v408
  %v1639 = vunpack.c.l.b16 %v409
  %v1640 = vunpack.c.h.b16 %v409
  %v1641 = vunpack.c.l.b16 %v410
  %v1642 = vunpack.c.h.b16 %v410
  %v1643 = vunpack.c.l.b16 %v411
  %v1644 = vunpack.c.h.b16 %v411
  %v1645 = vunpack.c.l.b16 %v412
  %v1646 = vunpack.c.h.b16 %v412
  %v1647 = vunpack.c.l.b16 %v413
  %v1648 = vunpack.c.h.b16 %v413
  %v1649 = vunpack.c.l.b16 %v414
  %v1650 = vunpack.c.h.b16 %v414
  %v1651 = vunpack.c.l.b16 %v415
  %v1652 = vunpack.c.h.b16 %v415
  %v1653 = vunpack.c.l.b16 %v416
  %v1654 = vunpack.c.h.b16 %v416
  %v1655 = vunpack.c.l.b16 %v417
  %v1656 = vunpack.c.h.b16 %v417
  %v1657 = vunpack.c.l.b16 %v418
  %v1658 = vunpack.c.h.b16 %v418
  %v1659 = vunpack.c.l.b16 %v419
  %v1660 = vunpack.c.h.b16 %v419
  %v1661 = vunpack.c.l.b16 %v420
  %v1662 = vunpack.c.h.b16 %v420
  %v1663 = vunpack.c.l.b16 %v421
  %v1664 = vunpack.c.h.b16 %v421
  %v1665 = vunpack.c.l.b16 %v422
  %v1666 = vunpack.c.h.b16 %v422
  %v1667 = vunpack.c.l.b16 %v423
  %v1668 = vunpack.c.h.b16 %v423
  %v1669 = vunpack.c.l.b16 %v424
  %v1670 = vunpack.c.h.b16 %v424
  %v1671 = vunpack.c.l.b16 %v425
  %v1672 = vunpack.c.h.b16 %v425
  %v1673 = vunpack.c.l.b16 %v426
  %v1674 = vunpack.c.h.b16 %v426
  %v1675 = vunpack.c.l.b16 %v427
  %v1676 = vunpack.c.h.b16 %v427
  %v1677 = vunpack.c.l.b16 %v428
  %v1678 = vunpack.c.h.b16 %v428
  %v1679 = vunpack.c.l.b16 %v429
  %v1680 = vunpack.c.h.b16 %v429
  %v1681 = vunpack.c.l.b16 %v430
  %v1682 = vunpack.c.h.b16 %v430
  %v1683 = vunpack.c.l.b16 %v431
  %v1684 = vunpack.c.h.b16 %v431
  %v1685 = vunpack.c.l.b16 %v432
  %v1686 = vunpack.c.h.b16 %v432
  %v1687 = vunpack.c.l.b16 %v433
  %v1688 = vunpack.c.h.b16 %v433
  %v1689 = vunpack.c.l.b16 %v434
  %v1690 = vunpack.c.h.b16 %v434
  %v1691 = vunpack.c.l.b16 %v435
  %v1692 = vunpack.c.h.b16 %v435
  %v1693 = vunpack.c.l.b16 %v436
  %v1694 = vunpack.c.h.b16 %v436
  %v1695 = vunpack.c.l.b16 %v437
  %v1696 = vunpack.c.h.b16 %v437
  %v1697 = vunpack.c.l.b16 %v438
  %v1698 = vunpack.c.h.b16 %v438
  %v1699 = vpack.c.b16 %v931, %v915
  %v1700 = vpack.c.b16 %v932, %v916
  %v1701 = vpack.c.b16 %v933, %v917
  %v1702 = vpack.c.b16 %v934, %v918
  %v1703 = vpack.c.b16 %v935, %v919
  %v1704 = vpack.c.b16 %v936, %v920
  %v1705 = vpack.c.b16 %v937, %v921
  %v1706 = vpack.c.b16 %v938, %v922
  %v1707 = vpack.c.b16 %v939, %v923
  %v1708 = vpack.c.b16 %v940, %v924
  %v1709 = vpack.c.b16 %v941, %v925
  %v1710 = vpack.c.b16 %v942, %v926
  %v1711 = vpack.c.b16 %v943, %v927
  %v1712 = vpack.c.b16 %v944, %v928
  %v1713 = vpack.c.b16 %v945, %v929
  %v1714 = vpack.c.b16 %v946, %v930
  %v1715 = vpack.c.b16 %v963, %v947
  %v1716 = vpack.c.b16 %v964, %v948
  %v1717 = vpack.c.b16 %v965, %v949
  %v1718 = vpack.c.b16 %v966, %v950
  %v1719 = vpack.c.b16 %v967, %v951
  %v1720 = vpack.c.b16 %v968, %v952
  %v1721 = vpack.c.b16 %v969, %v953
  %v1722 = vpack.c.b16 %v970, %v954
  %v1723 = vpack.c.b16 %v971, %v955
  %v1724 = vpack.c.b16 %v972, %v956
  %v1725 = vpack.c.b16 %v973, %v957
  %v1726 = vpack.c.b16 %v974, %v958
  %v1727 = vpack.c.b16 %v975, %v959
  %v1728 = vpack.c.b16 %v976, %v960
  %v1729 = vpack.c.b16 %v977, %v961
  %v1730 = vpack.c.b16 %v978, %v962
  %v1731 = vpack.c.b16 %v995, %v979
  %v1732 = vpack.c.b16 %v996, %v980
  %v1733 = vpack.c.b16 %v997, %v981
  %v1734 = vpack.c.b16 %v998, %v982
  %v1735 = vpack.c.b16 %v999, %v983
  %v1736 = vpack.c.b16 %v1000, %v984
  %v1737 = vpack.c.b16 %v1001, %v985
  %v1738 = vpack.c.b16 %v1002, %v986
  %v1739 = vpack.c.b16 %v1003, %v987
  %v1740 = vpack.c.b16 %v1004, %v988
  %v1741 = vpack.c.b16 %v1005, %v989
  %v1742 = vpack.c.b16 %v1006, %v990
  %v1743 = vpack.c.b16 %v1007, %v991
  %v1744 = vpack.c.b16 %v1008, %v992
  %v1745 = vpack.c.b16 %v1009, %v993
  %v1746 = vpack.c.b16 %v1010, %v994
  %v1747 = vpack.c.b16 %v1027, %v1011
  %v1748 = vpack.c.b16 %v1028, %v1012
  %v1749 = vpack.c.b16 %v1029, %v1013
  %v1750 = vpack.c.b16 %v1030, %v1014
  %v1751 = vpack.c.b16 %v1031, %v1015
  %v1752 = vpack.c.b16 %v1032, %v1016
  %v1753 = vpack.c.b16 %v1033, %v1017
  %v1754 = vpack.c.b16 %v1034, %v1018
  %v1755 = vpack.c.b16 %v1035, %v1019
  %v1756 = vpack.c.b16 %v1036, %v1020
  %v1757 = vpack.c.b16 %v1037, %v1021
  %v1758 = vpack.c.b16 %v1038, %v1022
  %v1759 = vpack.c.b16 %v1039, %v1023
  %v1760 = vpack.c.b16 %v1040, %v1024
  %v1761 = vpack.c.b16 %v1041, %v1025
  %v1762 = vpack.c.b16 %v1042, %v1026
  %v1763 = vpack.c.b16 %v1059, %v1043
  %v1764 = vpack.c.b16 %v1060, %v1044
  %v1765 = vpack.c.b16 %v1061, %v1045
  %v1766 = vpack.c.b16 %v1062, %v1046
  %v1767 = vpack.c.b16 %v1063, %v1047
  %v1768 = vpack.c.b16 %v1064, %v1048
  %v1769 = vpack.c.b16 %v1065, %v1049
  %v1770 = vpack.c.b16 %v1066, %v1050
  %v1771 = vpack.c.b16 %v1067, %v1051
  %v1772 = vpack.c.b16 %v1068, %v1052
  %v1773 = vpack.c.b16 %v1069, %v1053
  %v1774 = vpack.c.b16 %v1070, %v1054
  %v1775 = vpack.c.b16 %v1071, %v1055
  %v1776 = vpack.c.b16 %v1072, %v1056
  %v1777 = vpack.c.b16 %v1073, %v1057
  %v1778 = vpack.c.b16 %v1074, %v1058
  %v1779 = vpack.c.b16 %v1091, %v1075
  %v1780 = vpack.c.b16 %v1092, %v1076
  %v1781 = vpack.c.b16 %v1093, %v1077
  %v1782 = vpack.c.b16 %v1094, %v1078
  %v1783 = vpack.c.b16 %v1095, %v1079
  %v1784 = vpack.c.b16 %v1096, %v1080
  %v1785 = vpack.c.b16 %v1097, %v1081
  %v1786 = vpack.c.b16 %v1098, %v1082
  %v1787 = vpack.c.b16 %v1099, %v1083
  %v1788 = vpack.c.b16 %v1100, %v1084
  %v1789 = vpack.c.b16 %v1101, %v1085
  %v1790 = vpack.c.b16 %v1102, %v1086
  %v1791 = vpack.c.b16 %v1103, %v1087
  %v1792 = vpack.c.b16 %v1104, %v1088
  %v1793 = vpack.c.b16 %v1105, %v1089
  %v1794 = vpack.c.b16 %v1106, %v1090
  %v1795 = vpack.c.b16 %v1123, %v1107
  %v1796 = vpack.c.b16 %v1124, %v1108
  %v1797 = vpack.c.b16 %v1125, %v1109
  %v1798 = vpack.c.b16 %v1126, %v1110
  %v1799 = vpack.c.b16 %v1127, %v1111
  %v1800 = vpack.c.b16 %v1128, %v1112
  %v1801 = vpack.c.b16 %v1129, %v1113
  %v1802 = vpack.c.b16 %v1130, %v1114
  %v1803 = vpack.c.b16 %v1131, %v1115
  %v1804 = vpack.c.b16 %v1132, %v1116
  %v1805 = vpack.c.b16 %v1133, %v1117
  %v1806 = vpack.c.b16 %v1134, %v1118
  %v1807 = vpack.c.b16 %v1135, %v1119
  %v1808 = vpack.c.b16 %v1136, %v1120
  %v1809 = vpack.c.b16 %v1137, %v1121
  %v1810 = vpack.c.b16 %v1138, %v1122
  %v1811 = vpack.c.b16 %v1155, %v1139
  %v1812 = vpack.c.b16 %v1156, %v1140
  %v1813 = vpack.c.b16 %v1157, %v1141
  %v1814 = vpack.c.b16 %v1158, %v1142
  %v1815 = vpack.c.b16 %v1159, %v1143
  %v1816 = vpack.c.b16 %v1160, %v1144
  %v1817 = vpack.c.b16 %v1161, %v1145
  %v1818 = vpack.c.b16 %v1162, %v1146
  %v1819 = vpack.c.b16 %v1163, %v1147
  %v1820 = vpack.c.b16 %v1164, %v1148
  %v1821 = vpack.c.b16 %v1165, %v1149
  %v1822 = vpack.c.b16 %v1166, %v1150
  %v1823 = vpack.c.b16 %v1167, %v1151
  %v1824 = vpack.c.b16 %v1168, %v1152
  %v1825 = vpack.c.b16 %v1169, %v1153
  %v1826 = vpack.c.b16 %v1170, %v1154
  %v1827 = vpack.c.b16 %v1187, %v1171
  %v1828 = vpack.c.b16 %v1188, %v1172
  %v1829 = vpack.c.b16 %v1189, %v1173
  %v1830 = vpack.c.b16 %v1190, %v1174
  %v1831 = vpack.c.b16 %v1191, %v1175
  %v1832 = vpack.c.b16 %v1192, %v1176
  %v1833 = vpack.c.b16 %v1193, %v1177
  %v1834 = vpack.c.b16 %v1194, %v1178
  %v1835 = vpack.c.b16 %v1195, %v1179
  %v1836 = vpack.c.b16 %v1196, %v1180
  %v1837 = vpack.c.b16 %v1197, %v1181
  %v1838 = vpack.c.b16 %v1198, %v1182
  %v1839 = vpack.c.b16 %v1199, %v1183
  %v1840 = vpack.c.b16 %v1200, %v1184
  %v1841 = vpack.c.b16 %v1201, %v1185
  %v1842 = vpack.c.b16 %v1202, %v1186
  %v1843 = vpack.c.b16 %v1219, %v1203
  %v1844 = vpack.c.b16 %v1220, %v1204
  %v1845 = vpack.c.b16 %v1221, %v1205
  %v1846 = vpack.c.b16 %v1222, %v1206
  %v1847 = vpack.c.b16 %v1223, %v1207
  %v1848 = vpack.c.b16 %v1224, %v1208
  %v1849 = vpack.c.b16 %v1225, %v1209
  %v1850 = vpack.c.b16 %v1226, %v1210
  %v1851 = vpack.c.b16 %v1227, %v1211
  %v1852 = vpack.c.b16 %v1228, %v1212
  %v1853 = vpack.c.b16 %v1229, %v1213
  %v1854 = vpack.c.b16 %v1230, %v1214
  %v1855 = vpack.c.b16 %v1231, %v1215
  %v1856 = vpack.c.b16 %v1232, %v1216
  %v1857 = vpack.c.b16 %v1233, %v1217
  %v1858 = vpack.c.b16 %v1234, %v1218
  %v1859 = vpack.c.b16 %v1251, %v1235
  %v1860 = vpack.c.b16 %v1252, %v1236
  %v1861 = vpack.c.b16 %v1253, %v1237
  %v1862 = vpack.c.b16 %v1254, %v1238
  %v1863 = vpack.c.b16 %v1255, %v1239
  %v1864 = vpack.c.b16 %v1256, %v1240
  %v1865 = vpack.c.b16 %v1257, %v1241
  %v1866 = vpack.c.b16 %v1258, %v1242
  %v1867 = vpack.c.b16 %v1259, %v1243
  %v1868 = vpack.c.b16 %v1260, %v1244
  %v1869 = vpack.c.b16 %v1261, %v1245
  %v1870 = vpack.c.b16 %v1262, %v1246
  %v1871 = vpack.c.b16 %v1263, %v1247
  %v1872 = vpack.c.b16 %v1264, %v1248
  %v1873 = vpack.c.b16 %v1265, %v1249
  %v1874 = vpack.c.b16 %v1266, %v1250
  %v1875 = vpack.c.b16 %v1283, %v1267
  %v1876 = vpack.c.b16 %v1284, %v1268
  %v1877 = vpack.c.b16 %v1285, %v1269
  %v1878 = vpack.c.b16 %v1286, %v1270
  %v1879 = vpack.c.b16 %v1287, %v1271
  %v1880 = vpack.c.b16 %v1288, %v1272
  %v1881 = vpack.c.b16 %v1289, %v1273
  %v1882 = vpack.c.b16 %v1290, %v1274
  %v1883 = vpack.c.b16 %v1291, %v1275
  %v1884 = vpack.c.b16 %v1292, %v1276
  %v1885 = vpack.c.b16 %v1293, %v1277
  %v1886 = vpack.c.b16 %v1294, %v1278
  %v1887 = vpack.c.b16 %v1295, %v1279
  %v1888 = vpack.c.b16 %v1296, %v1280
  %v1889 = vpack.c.b16 %v1297, %v1281
  %v1890 = vpack.c.b16 %v1298, %v1282
  %v1891 = vpack.c.b16 %v1315, %v1299
  %v1892 = vpack.c.b16 %v1316, %v1300
  %v1893 = vpack.c.b16 %v1317, %v1301
  %v1894 = vpack.c.b16 %v1318, %v1302
  %v1895 = vpack.c.b16 %v1319, %v1303
  %v1896 = vpack.c.b16 %v1320, %v1304
  %v1897 = vpack.c.b16 %v1321, %v1305
  %v1898 = vpack.c.b16 %v1322, %v1306
  %v1899 = vpack.c.b16 %v1323, %v1307
  %v1900 = vpack.c.b16 %v1324, %v1308
  %v1901 = vpack.c.b16 %v1325, %v1309
  %v1902 = vpack.c.b16 %v1326, %v1310
  %v1903 = vpack.c.b16 %v1327, %v1311
  %v1904 = vpack.c.b16 %v1328, %v1312
  %v1905 = vpack.c.b16 %v1329, %v1313
  %v1906 = vpack.c.b16 %v1330, %v1314
  %v1907 = vpack.c.b16 %v1347, %v1331
  %v1908 = vpack.c.b16 %v1348, %v1332
  %v1909 = vpack.c.b16 %v1349, %v1333
  %v1910 = vpack.c.b16 %v1350, %v1334
  %v1911 = vpack.c.b16 %v1351, %v1335
  %v1912 = vpack.c.b16 %v1352, %v1336
  %v1913 = vpack.c.b16 %v1353, %v1337
  %v1914 = vpack.c.b16 %v1354, %v1338
  %v1915 = vpack.c.b16 %v1355, %v1339
  %v1916 = vpack.c.b16 %v1356, %v1340
  %v1917 = vpack.c.b16 %v1357, %v1341
  %v1918 = vpack.c.b16 %v1358, %v1342
  %v1919 = vpack.c.b16 %v1359, %v1343
  %v1920 = vpack.c.b16 %v1360, %v1344
  %v1921 = vpack.c.b16 %v1361, %v1345
  %v1922 = vpack.c.b16 %v1362, %v1346
  %v1923 = vpack.c.b16 %v1379, %v1363
  %v1924 = vpack.c.b16 %v1380, %v1364
  %v1925 = vpack.c.b16 %v1381, %v1365
  %v1926 = vpack.c.b16 %v1382, %v1366
  %v1927 = vpack.c.b16 %v1383, %v1367
  %v1928 = vpack.c.b16 %v1384, %v1368
  %v1929 = vpack.c.b16 %v1385, %v1369
  %v1930 = vpack.c.b16 %v1386, %v1370
  %v1931 = vpack.c.b16 %v1387, %v1371
  %v1932 = vpack.c.b16 %v1388, %v1372
  %v1933 = vpack.c.b16 %v1389, %v1373
  %v1934 = vpack.c.b16 %v1390, %v1374
  %v1935 = vpack.c.b16 %v1391, %v1375
  %v1936 = vpack.c.b16 %v1392, %v1376
  %v1937 = vpack.c.b16 %v1393, %v1377
  %v1938 = vpack.c.b16 %v1394, %v1378
  %v1939 = vpack.c.b16 %v1411, %v1395
  %v1940 = vpack.c.b16 %v1412, %v1396
  %v1941 = vpack.c.b16 %v1413, %v1397
  %v1942 = vpack.c.b16 %v1414, %v1398
  %v1943 = vpack.c.b16 %v1415, %v1399
  %v1944 = vpack.c.b16 %v1416, %v1400
  %v1945 = vpack.c.b16 %v1417, %v1401
  %v1946 = vpack.c.b16 %v1418, %v1402
  %v1947 = vpack.c.b16 %v1419, %v1403
  %v1948 = vpack.c.b16 %v1420, %v1404
  %v1949 = vpack.c.b16 %v1421, %v1405
  %v1950 = vpack.c.b16 %v1422, %v1406
  %v1951 = vpack.c.b16 %v1423, %v1407
  %v1952 = vpack.c.b16 %v1424, %v1408
  %v1953 = vpack.c.b16 %v1425, %v1409
  %v1954 = vpack.c.b16 %v1426, %v1410
  %v1955 = vpack.c.b16 %v1443, %v1427
  %v1956 = vpack.c.b16 %v1444, %v1428
  %v1957 = vpack.c.b16 %v1445, %v1429
  %v1958 = vpack.c.b16 %v1446, %v1430
  %v1959 = vpack.c.b16 %v1447, %v1431
  %v1960 = vpack.c.b16 %v1448, %v1432
  %v1961 = vpack.c.b16 %v1449, %v1433
  %v1962 = vpack.c.b16 %v1450, %v1434
  %v1963 = vpack.c.b16 %v1451, %v1435
  %v1964 = vpack.c.b16 %v1452, %v1436
  %v1965 = vpack.c.b16 %v1453, %v1437
  %v1966 = vpack.c.b16 %v1454, %v1438
  %v1967 = vpack.c.b16 %v1455, %v1439
  %v1968 = vpack.c.b16 %v1456, %v1440
  %v1969 = vpack.c.b16 %v1457, %v1441
  %v1970 = vpack.c.b16 %v1458, %v1442
  %v1971 = vpack.c.b16 %v1475, %v1459
  %v1972 = vpack.c.b16 %v1476, %v1460
  %v1973 = vpack.c.b16 %v1477, %v1461
  %v1974 = vpack.c.b16 %v1478, %v1462
  %v1975 = vpack.c.b16 %v1479, %v1463
  %v1976 = vpack.c.b16 %v1480, %v1464
  %v1977 = vpack.c.b16 %v1481, %v1465
  %v1978 = vpack.c.b16 %v1482, %v1466
  %v1979 = vpack.c.b16 %v1483, %v1467
  %v1980 = vpack.c.b16 %v1484, %v1468
  %v1981 = vpack.c.b16 %v1485, %v1469
  %v1982 = vpack.c.b16 %v1486, %v1470
  %v1983 = vpack.c.b16 %v1487, %v1471
  %v1984 = vpack.c.b16 %v1488, %v1472
  %v1985 = vpack.c.b16 %v1489, %v1473
  %v1986 = vpack.c.b16 %v1490, %v1474
  %v1987 = vpack.c.b16 %v1507, %v1491
  %v1988 = vpack.c.b16 %v1508, %v1492
  %v1989 = vpack.c.b16 %v1509, %v1493
  %v1990 = vpack.c.b16 %v1510, %v1494
  %v1991 = vpack.c.b16 %v1511, %v1495
  %v1992 = vpack.c.b16 %v1512, %v1496
  %v1993 = vpack.c.b16 %v1513, %v1497
  %v1994 = vpack.c.b16 %v1514, %v1498
  %v1995 = vpack.c.b16 %v1515, %v1499
  %v1996 = vpack.c.b16 %v1516, %v1500
  %v1997 = vpack.c.b16 %v1517, %v1501
  %v1998 = vpack.c.b16 %v1518, %v1502
  %v1999 = vpack.c.b16 %v1519, %v1503
  %v2000 = vpack.c.b16 %v1520, %v1504
  %v2001 = vpack.c.b16 %v1521, %v1505
  %v2002 = vpack.c.b16 %v1522, %v1506
  %v2003 = vpack.c.b16 %v1539, %v1523
  %v2004 = vpack.c.b16 %v1540, %v1524
  %v2005 = vpack.c.b16 %v1541, %v1525
  %v2006 = vpack.c.b16 %v1542, %v1526
  %v2007 = vpack.c.b16 %v1543, %v1527
  %v2008 = vpack.c.b16 %v1544, %v1528
  %v2009 = vpack.c.b16 %v1545, %v1529
  %v2010 = vpack.c.b16 %v1546, %v1530
  %v2011 = vpack.c.b16 %v1547, %v1531
  %v2012 = vpack.c.b16 %v1548, %v1532
  %v2013 = vpack.c.b16 %v1549, %v1533
  %v2014 = vpack.c.b16 %v1550, %v1534
  %v2015 = vpack.c.b16 %v1551, %v1535
  %v2016 = vpack.c.b16 %v1552, %v1536
  %v2017 = vpack.c.b16 %v1553, %v1537
  %v2018 = vpack.c.b16 %v1554, %v1538
  %v2019 = vpack.c.b16 %v1571, %v1555
  %v2020 = vpack.c.b16 %v1572, %v1556
  %v2021 = vpack.c.b16 %v1573, %v1557
  %v2022 = vpack.c.b16 %v1574, %v1558
  %v2023 = vpack.c.b16 %v1575, %v1559
  %v2024 = vpack.c.b16 %v1576, %v1560
  %v2025 = vpack.c.b16 %v1577, %v1561
  %v2026 = vpack.c.b16 %v1578, %v1562
  %v2027 = vpack.c.b16 %v1579, %v1563
  %v2028 = vpack.c.b16 %v1580, %v1564
  %v2029 = vpack.c.b16 %v1581, %v1565
  %v2030 = vpack.c.b16 %v1582, %v1566
  %v2031 = vpack.c.b16 %v1583, %v1567
  %v2032 = vpack.c.b16 %v1584, %v1568
  %v2033 = vpack.c.b16 %v1585, %v1569
  %v2034 = vpack.c.b16 %v1586, %v1570
  %v2035 = vpack.c.b16 %v1603, %v1587
  %v2036 = vpack.c.b16 %v1604, %v1588
  %v2037 = vpack.c.b16 %v1605, %v1589
  %v2038 = vpack.c.b16 %v1606, %v1590
  %v2039 = vpack.c.b16 %v1607, %v1591
  %v2040 = vpack.c.b16 %v1608, %v1592
  %v2041 = vpack.c.b16 %v1609, %v1593
  %v2042 = vpack.c.b16 %v1610, %v1594
  %v2043 = vpack.c.b16 %v1611, %v1595
  %v2044 = vpack.c.b16 %v1612, %v1596
  %v2045 = vpack.c.b16 %v1613, %v1597
  %v2046 = vpack.c.b16 %v1614, %v1598
  %v2047 = vpack.c.b16 %v1615, %v1599
  %v2048 = vpack.c.b16 %v1616, %v1600
  %v2049 = vpack.c.b16 %v1617, %v1601
  %v2050 = vpack.c.b16 %v1618, %v1602
  %v2051 = vpack.c.b16 %v1635, %v1619
  %v2052 = vpack.c.b16 %v1636, %v1620
  %v2053 = vpack.c.b16 %v1637, %v1621
  %v2054 = vpack.c.b16 %v1638, %v1622
  %v2055 = vpack.c.b16 %v1639, %v1623
  %v2056 = vpack.c.b16 %v1640, %v1624
  %v2057 = vpack.c.b16 %v1641, %v1625
  %v2058 = vpack.c.b16 %v1642, %v1626
  %v2059 = vpack.c.b16 %v1643, %v1627
  %v2060 = vpack.c.b16 %v1644, %v1628
  %v2061 = vpack.c.b16 %v1645, %v1629
  %v2062 = vpack.c.b16 %v1646, %v1630
  %v2063 = vpack.c.b16 %v1647, %v1631
  %v2064 = vpack.c.b16 %v1648, %v1632
  %v2065 = vpack.c.b16 %v1649, %v1633
  %v2066 = vpack.c.b16 %v1650, %v1634
  %v2067 = vpack.c.b16 %v1667, %v1651
  %v2068 = vpack.c.b16 %v1668, %v1652
  %v2069 = vpack.c.b16 %v1669, %v1653
  %v2070 = vpack.c.b16 %v1670, %v1654
  %v2071 = vpack.c.b16 %v1671, %v1655
  %v2072 = vpack.c.b16 %v1672, %v1656
  %v2073 = vpack.c.b16 %v1673, %v1657
  %v2074 = vpack.c.b16 %v1674, %v1658
  %v2075 = vpack.c.b16 %v1675, %v1659
  %v2076 = vpack.c.b16 %v1676, %v1660
  %v2077 = vpack.c.b16 %v1677, %v1661
  %v2078 = vpack.c.b16 %v1678, %v1662
  %v2079 = vpack.c.b16 %v1679, %v1663
  %v2080 = vpack.c.b16 %v1680, %v1664
  %v2081 = vpack.c.b16 %v1681, %v1665
  %v2082 = vpack.c.b16 %v1682, %v1666
  %v2083 = vpack.c.b16 %v1683, %v1683
  %v2084 = vpack.c.b16 %v1684, %v1684
  %v2085 = vpack.c.b16 %v1685, %v1685
  %v2086 = vpack.c.b16 %v1686, %v1686
  %v2087 = vpack.c.b16 %v1687, %v1687
  %v2088 = vpack.c.b16 %v1688, %v1688
  %v2089 = vpack.c.b16 %v1689, %v1689
  %v2090 = vpack.c.b16 %v1690, %v1690
  %v2091 = vpack.c.b16 %v1691, %v1691
  %v2092 = vpack.c.b16 %v1692, %v1692
  %v2093 = vpack.c.b16 %v1693, %v1693
  %v2094 = vpack.c.b16 %v1694, %v1694
  %v2095 = vpack.c.b16 %v1695, %v1695
  %v2096 = vpack.c.b16 %v1696, %v1696
  %v2097 = vpack.c.b16 %v1697, %v1697
  %v2098 = vpack.c.b16 %v1698, %v1698
  %vm2483 = vcmask 64512
  %v2485 = vsel %vm2483, %v42, 0
  %v2488 = vsel %vm2483, %v46, 0
  %vm2490 = vcmask 1043456
  %v2492 = vsel %vm2490, %v2083, 0
  %v2495 = vsel %vm2490, %v2084, 0
  %v2498 = vsel %vm2490, %v2085, 0
  %v2501 = vsel %vm2490, %v2086, 0
  %v2504 = vsel %vm2490, %v2087, 0
  %v2507 = vsel %vm2490, %v2088, 0
  %v2510 = vsel %vm2490, %v2089, 0
  %v2513 = vsel %vm2490, %v2090, 0
  %v2516 = vsel %vm2490, %v2091, 0
  %v2519 = vsel %vm2490, %v2092, 0
  %v2522 = vsel %vm2490, %v2093, 0
  %v2525 = vsel %vm2490, %v2094, 0
  %v2528 = vsel %vm2490, %v2095, 0
  %v2531 = vsel %vm2490, %v2096, 0
  %v2534 = vsel %vm2490, %v2097, 0
  %v2537 = vsel %vm2490, %v2098, 0
  %2539 = vmatprep.subr.bf16.mxu0 %v1700
  %2540 = vmatpush1.bf16.msra.mxu0 %v1699
  %2541 = vmatprep.subr.bf16.mxu0 %v1716
  %2542 = vmatpush1.bf16.msra.mxu0 %v1715
  %2543 = vmatprep.subr.bf16.mxu0 %v1732
  %2544 = vmatpush1.bf16.msra.mxu0 %v1731
  %2545 = vmatprep.subr.bf16.mxu0 %v1748
  %2546 = vmatpush1.bf16.msra.mxu0 %v1747
  %2547 = vmatprep.subr.bf16.mxu0 %v1764
  %2548 = vmatpush1.bf16.msra.mxu0 %v1763
  %2549 = vmatprep.subr.bf16.mxu0 %v1780
  %2550 = vmatpush1.bf16.msra.mxu0 %v1779
  %2551 = vmatprep.subr.bf16.mxu0 %v1796
  %2552 = vmatpush1.bf16.msra.mxu0 %v1795
  %2553 = vmatprep.subr.bf16.mxu0 %v1812
  %2554 = vmatpush1.bf16.msra.mxu0 %v1811
  %2555 = vmatprep.subr.bf16.mxu0 %v1828
  %2556 = vmatpush1.bf16.msra.mxu0 %v1827
  %2557 = vmatprep.subr.bf16.mxu0 %v1844
  %2558 = vmatpush1.bf16.msra.mxu0 %v1843
  %2559 = vmatprep.subr.bf16.mxu0 %v1860
  %2560 = vmatpush1.bf16.msra.mxu0 %v1859
  %2561 = vmatprep.subr.bf16.mxu0 %v1876
  %2562 = vmatpush1.bf16.msra.mxu0 %v1875
  %2563 = vmatprep.subr.bf16.mxu0 %v1892
  %2564 = vmatpush1.bf16.msra.mxu0 %v1891
  %2565 = vmatprep.subr.bf16.mxu0 %v1908
  %2566 = vmatpush1.bf16.msra.mxu0 %v1907
  %2567 = vmatprep.subr.bf16.mxu0 %v1924
  %2568 = vmatpush1.bf16.msra.mxu0 %v1923
  %2569 = vmatprep.subr.bf16.mxu0 %v1940
  %2570 = vmatpush1.bf16.msra.mxu0 %v1939
  %2571 = vmatprep.mubr.bf16.mxu0 %v40
  %2572 = vmatmul.mubr.bf16.gmra.mrb[0].mxu0 %v39
  %v2573 = vpop.f32.mrb[0].mxu0
  %v2574 = vadd.f32 %v446, %v2573
  %v2575 = vpop.f32.mrb[0].mxu0
  %v2576 = vadd.f32 %v450, %v2575
  %v2577 = vpop.f32.mrb[0].mxu0
  %v2578 = vadd.f32 %v446, %v2577
  %v2579 = vpop.f32.mrb[0].mxu0
  %v2580 = vadd.f32 %v450, %v2579
  %2581 = vmatprep.mubr.bf16.mxu0 %v44
  %2582 = vmatmul.mubr.bf16.gmra.mrb[0].mxu0 %v43
  %v2583 = vpop.f32.mrb[0].mxu0
  %v2584 = vadd.f32 %v446, %v2583
  %v2585 = vpop.f32.mrb[0].mxu0
  %v2586 = vadd.f32 %v450, %v2585
  %v2587 = vpop.f32.mrb[0].mxu0
  %v2588 = vpop.f32.mrb[0].mxu0
  %2589 = vdwg.mxu0
  %2590 = vmatprep.subr.bf16.mxu0 %v1956
  %2591 = vmatpush1.bf16.msra.mxu0 %v1955
  %2592 = vmatprep.subr.bf16.mxu0 %v1972
  %2593 = vmatpush1.bf16.msra.mxu0 %v1971
  %2594 = vmatprep.subr.bf16.mxu0 %v1988
  %2595 = vmatpush1.bf16.msra.mxu0 %v1987
  %2596 = vmatprep.subr.bf16.mxu0 %v2004
  %2597 = vmatpush1.bf16.msra.mxu0 %v2003
  %2598 = vmatprep.subr.bf16.mxu0 %v2020
  %2599 = vmatpush1.bf16.msra.mxu0 %v2019
  %2600 = vmatprep.subr.bf16.mxu0 %v2036
  %2601 = vmatpush1.bf16.msra.mxu0 %v2035
  %2602 = vmatprep.subr.bf16.mxu0 %v2052
  %2603 = vmatpush1.bf16.msra.mxu0 %v2051
  %2604 = vmatprep.subr.bf16.mxu0 %v2068
  %2605 = vmatpush1.bf16.msra.mxu0 %v2067
  %2606 = vmatprep.subr.bf16.mxu0 %v2495
  %2607 = vmatpush1.bf16.msra.mxu0 %v2492
  %2608 = vmatprep.subr.bf16.mxu0 0
  %2609 = vmatpush1.bf16.msra.mxu0 0
  %2610 = vmatprep.subr.bf16.mxu0 0
  %2611 = vmatpush1.bf16.msra.mxu0 0
  %2612 = vmatprep.subr.bf16.mxu0 0
  %2613 = vmatpush1.bf16.msra.mxu0 0
  %2614 = vmatprep.subr.bf16.mxu0 0
  %2615 = vmatpush1.bf16.msra.mxu0 0
  %2616 = vmatprep.subr.bf16.mxu0 0
  %2617 = vmatpush1.bf16.msra.mxu0 0
  %2618 = vmatprep.subr.bf16.mxu0 0
  %2619 = vmatpush1.bf16.msra.mxu0 0
  %2620 = vmatprep.subr.bf16.mxu0 0
  %2621 = vmatpush1.bf16.msra.mxu0 0
  %2622 = vmatprep.mubr.bf16.mxu0 %v2485
  %2623 = vmatmul.mubr.bf16.gmra.mrb[0].mxu0 %v41
  %v2624 = vpop.f32.mrb[0].mxu0
  %v2625 = vadd.f32 %v2574, %v2624
  %v2626 = vpop.f32.mrb[0].mxu0
  %v2627 = vadd.f32 %v2576, %v2626
  %v2628 = vpop.f32.mrb[0].mxu0
  %v2629 = vadd.f32 %v2578, %v2628
  %v2630 = vpop.f32.mrb[0].mxu0
  %v2631 = vadd.f32 %v2580, %v2630
  %2632 = vmatprep.mubr.bf16.mxu0 %v2488
  %2633 = vmatmul.mubr.bf16.gmra.mrb[0].mxu0 %v45
  %v2634 = vpop.f32.mrb[0].mxu0
  %v2635 = vadd.f32 %v2584, %v2634
  %v2636 = vpop.f32.mrb[0].mxu0
  %v2637 = vadd.f32 %v2586, %v2636
  %v2638 = vpop.f32.mrb[0].mxu0
  %v2639 = vpop.f32.mrb[0].mxu0
  %2640 = vdwg.mxu0
  %2641 = vmatprep.subr.bf16.mxu0 %v1702
  %2642 = vmatpush1.bf16.msra.mxu0 %v1701
  %2643 = vmatprep.subr.bf16.mxu0 %v1718
  %2644 = vmatpush1.bf16.msra.mxu0 %v1717
  %2645 = vmatprep.subr.bf16.mxu0 %v1734
  %2646 = vmatpush1.bf16.msra.mxu0 %v1733
  %2647 = vmatprep.subr.bf16.mxu0 %v1750
  %2648 = vmatpush1.bf16.msra.mxu0 %v1749
  %2649 = vmatprep.subr.bf16.mxu0 %v1766
  %2650 = vmatpush1.bf16.msra.mxu0 %v1765
  %2651 = vmatprep.subr.bf16.mxu0 %v1782
  %2652 = vmatpush1.bf16.msra.mxu0 %v1781
  %2653 = vmatprep.subr.bf16.mxu0 %v1798
  %2654 = vmatpush1.bf16.msra.mxu0 %v1797
  %2655 = vmatprep.subr.bf16.mxu0 %v1814
  %2656 = vmatpush1.bf16.msra.mxu0 %v1813
  %2657 = vmatprep.subr.bf16.mxu0 %v1830
  %2658 = vmatpush1.bf16.msra.mxu0 %v1829
  %2659 = vmatprep.subr.bf16.mxu0 %v1846
  %2660 = vmatpush1.bf16.msra.mxu0 %v1845
  %2661 = vmatprep.subr.bf16.mxu0 %v1862
  %2662 = vmatpush1.bf16.msra.mxu0 %v1861
  %2663 = vmatprep.subr.bf16.mxu0 %v1878
  %2664 = vmatpush1.bf16.msra.mxu0 %v1877
  %2665 = vmatprep.subr.bf16.mxu0 %v1894
  %2666 = vmatpush1.bf16.msra.mxu0 %v1893
  %2667 = vmatprep.subr.bf16.mxu0 %v1910
  %2668 = vmatpush1.bf16.msra.mxu0 %v1909
  %2669 = vmatprep.subr.bf16.mxu0 %v1926
  %2670 = vmatpush1.bf16.msra.mxu0 %v1925
  %2671 = vmatprep.subr.bf16.mxu0 %v1942
  %2672 = vmatpush1.bf16.msra.mxu0 %v1941
  %2673 = vmatprep.mubr.bf16.mxu0 %v40
  %2674 = vmatmul.mubr.bf16.gmra.mrb[0].mxu0 %v39
  %v2675 = vpop.f32.mrb[0].mxu0
  %v2676 = vadd.f32 %v454, %v2675
  %v2677 = vpop.f32.mrb[0].mxu0
  %v2678 = vadd.f32 %v458, %v2677
  %v2679 = vpop.f32.mrb[0].mxu0
  %v2680 = vadd.f32 %v454, %v2679
  %v2681 = vpop.f32.mrb[0].mxu0
  %v2682 = vadd.f32 %v458, %v2681
  %2683 = vmatprep.mubr.bf16.mxu0 %v44
  %2684 = vmatmul.mubr.bf16.gmra.mrb[0].mxu0 %v43
  %v2685 = vpop.f32.mrb[0].mxu0
  %v2686 = vadd.f32 %v454, %v2685
  %v2687 = vpop.f32.mrb[0].mxu0
  %v2688 = vadd.f32 %v458, %v2687
  %v2689 = vpop.f32.mrb[0].mxu0
  %v2690 = vpop.f32.mrb[0].mxu0
  %2691 = vdwg.mxu0
  %2692 = vmatprep.subr.bf16.mxu0 %v1958
  %2693 = vmatpush1.bf16.msra.mxu0 %v1957
  %2694 = vmatprep.subr.bf16.mxu0 %v1974
  %2695 = vmatpush1.bf16.msra.mxu0 %v1973
  %2696 = vmatprep.subr.bf16.mxu0 %v1990
  %2697 = vmatpush1.bf16.msra.mxu0 %v1989
  %2698 = vmatprep.subr.bf16.mxu0 %v2006
  %2699 = vmatpush1.bf16.msra.mxu0 %v2005
  %2700 = vmatprep.subr.bf16.mxu0 %v2022
  %2701 = vmatpush1.bf16.msra.mxu0 %v2021
  %2702 = vmatprep.subr.bf16.mxu0 %v2038
  %2703 = vmatpush1.bf16.msra.mxu0 %v2037
  %2704 = vmatprep.subr.bf16.mxu0 %v2054
  %2705 = vmatpush1.bf16.msra.mxu0 %v2053
  %2706 = vmatprep.subr.bf16.mxu0 %v2070
  %2707 = vmatpush1.bf16.msra.mxu0 %v2069
  %2708 = vmatprep.subr.bf16.mxu0 %v2501
  %2709 = vmatpush1.bf16.msra.mxu0 %v2498
  %2710 = vmatprep.subr.bf16.mxu0 0
  %2711 = vmatpush1.bf16.msra.mxu0 0
  %2712 = vmatprep.subr.bf16.mxu0 0
  %2713 = vmatpush1.bf16.msra.mxu0 0
  %2714 = vmatprep.subr.bf16.mxu0 0
  %2715 = vmatpush1.bf16.msra.mxu0 0
  %2716 = vmatprep.subr.bf16.mxu0 0
  %2717 = vmatpush1.bf16.msra.mxu0 0
  %2718 = vmatprep.subr.bf16.mxu0 0
  %2719 = vmatpush1.bf16.msra.mxu0 0
  %2720 = vmatprep.subr.bf16.mxu0 0
  %2721 = vmatpush1.bf16.msra.mxu0 0
  %2722 = vmatprep.subr.bf16.mxu0 0
  %2723 = vmatpush1.bf16.msra.mxu0 0
  %2724 = vmatprep.mubr.bf16.mxu0 %v2485
  %2725 = vmatmul.mubr.bf16.gmra.mrb[0].mxu0 %v41
  %v2726 = vpop.f32.mrb[0].mxu0
  %v2727 = vadd.f32 %v2676, %v2726
  %v2728 = vpop.f32.mrb[0].mxu0
  %v2729 = vadd.f32 %v2678, %v2728
  %v2730 = vpop.f32.mrb[0].mxu0
  %v2731 = vadd.f32 %v2680, %v2730
  %v2732 = vpop.f32.mrb[0].mxu0
  %v2733 = vadd.f32 %v2682, %v2732
  %2734 = vmatprep.mubr.bf16.mxu0 %v2488
  %2735 = vmatmul.mubr.bf16.gmra.mrb[0].mxu0 %v45
  %v2736 = vpop.f32.mrb[0].mxu0
  %v2737 = vadd.f32 %v2686, %v2736
  %v2738 = vpop.f32.mrb[0].mxu0
  %v2739 = vadd.f32 %v2688, %v2738
  %v2740 = vpop.f32.mrb[0].mxu0
  %v2741 = vpop.f32.mrb[0].mxu0
  %2742 = vdwg.mxu0
  %2743 = vmatprep.subr.bf16.mxu0 %v1704
  %2744 = vmatpush1.bf16.msra.mxu0 %v1703
  %2745 = vmatprep.subr.bf16.mxu0 %v1720
  %2746 = vmatpush1.bf16.msra.mxu0 %v1719
  %2747 = vmatprep.subr.bf16.mxu0 %v1736
  %2748 = vmatpush1.bf16.msra.mxu0 %v1735
  %2749 = vmatprep.subr.bf16.mxu0 %v1752
  %2750 = vmatpush1.bf16.msra.mxu0 %v1751
  %2751 = vmatprep.subr.bf16.mxu0 %v1768
  %2752 = vmatpush1.bf16.msra.mxu0 %v1767
  %2753 = vmatprep.subr.bf16.mxu0 %v1784
  %2754 = vmatpush1.bf16.msra.mxu0 %v1783
  %2755 = vmatprep.subr.bf16.mxu0 %v1800
  %2756 = vmatpush1.bf16.msra.mxu0 %v1799
  %2757 = vmatprep.subr.bf16.mxu0 %v1816
  %2758 = vmatpush1.bf16.msra.mxu0 %v1815
  %2759 = vmatprep.subr.bf16.mxu0 %v1832
  %2760 = vmatpush1.bf16.msra.mxu0 %v1831
  %2761 = vmatprep.subr.bf16.mxu0 %v1848
  %2762 = vmatpush1.bf16.msra.mxu0 %v1847
  %2763 = vmatprep.subr.bf16.mxu0 %v1864
  %2764 = vmatpush1.bf16.msra.mxu0 %v1863
  %2765 = vmatprep.subr.bf16.mxu0 %v1880
  %2766 = vmatpush1.bf16.msra.mxu0 %v1879
  %2767 = vmatprep.subr.bf16.mxu0 %v1896
  %2768 = vmatpush1.bf16.msra.mxu0 %v1895
  %2769 = vmatprep.subr.bf16.mxu0 %v1912
  %2770 = vmatpush1.bf16.msra.mxu0 %v1911
  %2771 = vmatprep.subr.bf16.mxu0 %v1928
  %2772 = vmatpush1.bf16.msra.mxu0 %v1927
  %2773 = vmatprep.subr.bf16.mxu0 %v1944
  %2774 = vmatpush1.bf16.msra.mxu0 %v1943
  %2775 = vmatprep.mubr.bf16.mxu0 %v40
  %2776 = vmatmul.mubr.bf16.gmra.mrb[0].mxu0 %v39
  %v2777 = vpop.f32.mrb[0].mxu0
  %v2778 = vadd.f32 %v462, %v2777
  %v2779 = vpop.f32.mrb[0].mxu0
  %v2780 = vadd.f32 %v466, %v2779
  %v2781 = vpop.f32.mrb[0].mxu0
  %v2782 = vadd.f32 %v462, %v2781
  %v2783 = vpop.f32.mrb[0].mxu0
  %v2784 = vadd.f32 %v466, %v2783
  %2785 = vmatprep.mubr.bf16.mxu0 %v44
  %2786 = vmatmul.mubr.bf16.gmra.mrb[0].mxu0 %v43
  %v2787 = vpop.f32.mrb[0].mxu0
  %v2788 = vadd.f32 %v462, %v2787
  %v2789 = vpop.f32.mrb[0].mxu0
  %v2790 = vadd.f32 %v466, %v2789
  %v2791 = vpop.f32.mrb[0].mxu0
  %v2792 = vpop.f32.mrb[0].mxu0
  %2793 = vdwg.mxu0
  %2794 = vmatprep.subr.bf16.mxu0 %v1960
  %2795 = vmatpush1.bf16.msra.mxu0 %v1959
  %2796 = vmatprep.subr.bf16.mxu0 %v1976
  %2797 = vmatpush1.bf16.msra.mxu0 %v1975
  %2798 = vmatprep.subr.bf16.mxu0 %v1992
  %2799 = vmatpush1.bf16.msra.mxu0 %v1991
  %2800 = vmatprep.subr.bf16.mxu0 %v2008
  %2801 = vmatpush1.bf16.msra.mxu0 %v2007
  %2802 = vmatprep.subr.bf16.mxu0 %v2024
  %2803 = vmatpush1.bf16.msra.mxu0 %v2023
  %2804 = vmatprep.subr.bf16.mxu0 %v2040
  %2805 = vmatpush1.bf16.msra.mxu0 %v2039
  %2806 = vmatprep.subr.bf16.mxu0 %v2056
  %2807 = vmatpush1.bf16.msra.mxu0 %v2055
  %2808 = vmatprep.subr.bf16.mxu0 %v2072
  %2809 = vmatpush1.bf16.msra.mxu0 %v2071
  %2810 = vmatprep.subr.bf16.mxu0 %v2507
  %2811 = vmatpush1.bf16.msra.mxu0 %v2504
  %2812 = vmatprep.subr.bf16.mxu0 0
  %2813 = vmatpush1.bf16.msra.mxu0 0
  %2814 = vmatprep.subr.bf16.mxu0 0
  %2815 = vmatpush1.bf16.msra.mxu0 0
  %2816 = vmatprep.subr.bf16.mxu0 0
  %2817 = vmatpush1.bf16.msra.mxu0 0
  %2818 = vmatprep.subr.bf16.mxu0 0
  %2819 = vmatpush1.bf16.msra.mxu0 0
  %2820 = vmatprep.subr.bf16.mxu0 0
  %2821 = vmatpush1.bf16.msra.mxu0 0
  %2822 = vmatprep.subr.bf16.mxu0 0
  %2823 = vmatpush1.bf16.msra.mxu0 0
  %2824 = vmatprep.subr.bf16.mxu0 0
  %2825 = vmatpush1.bf16.msra.mxu0 0
  %2826 = vmatprep.mubr.bf16.mxu0 %v2485
  %2827 = vmatmul.mubr.bf16.gmra.mrb[0].mxu0 %v41
  %v2828 = vpop.f32.mrb[0].mxu0
  %v2829 = vadd.f32 %v2778, %v2828
  %v2830 = vpop.f32.mrb[0].mxu0
  %v2831 = vadd.f32 %v2780, %v2830
  %v2832 = vpop.f32.mrb[0].mxu0
  %v2833 = vadd.f32 %v2782, %v2832
  %v2834 = vpop.f32.mrb[0].mxu0
  %v2835 = vadd.f32 %v2784, %v2834
  %2836 = vmatprep.mubr.bf16.mxu0 %v2488
  %2837 = vmatmul.mubr.bf16.gmra.mrb[0].mxu0 %v45
  %v2838 = vpop.f32.mrb[0].mxu0
  %v2839 = vadd.f32 %v2788, %v2838
  %v2840 = vpop.f32.mrb[0].mxu0
  %v2841 = vadd.f32 %v2790, %v2840
  %v2842 = vpop.f32.mrb[0].mxu0
  %v2843 = vpop.f32.mrb[0].mxu0
  %2844 = vdwg.mxu0
  %2845 = vmatprep.subr.bf16.mxu0 %v1706
  %2846 = vmatpush1.bf16.msra.mxu0 %v1705
  %2847 = vmatprep.subr.bf16.mxu0 %v1722
  %2848 = vmatpush1.bf16.msra.mxu0 %v1721
  %2849 = vmatprep.subr.bf16.mxu0 %v1738
  %2850 = vmatpush1.bf16.msra.mxu0 %v1737
  %2851 = vmatprep.subr.bf16.mxu0 %v1754
  %2852 = vmatpush1.bf16.msra.mxu0 %v1753
  %2853 = vmatprep.subr.bf16.mxu0 %v1770
  %2854 = vmatpush1.bf16.msra.mxu0 %v1769
  %2855 = vmatprep.subr.bf16.mxu0 %v1786
  %2856 = vmatpush1.bf16.msra.mxu0 %v1785
  %2857 = vmatprep.subr.bf16.mxu0 %v1802
  %2858 = vmatpush1.bf16.msra.mxu0 %v1801
  %2859 = vmatprep.subr.bf16.mxu0 %v1818
  %2860 = vmatpush1.bf16.msra.mxu0 %v1817
  %2861 = vmatprep.subr.bf16.mxu0 %v1834
  %2862 = vmatpush1.bf16.msra.mxu0 %v1833
  %2863 = vmatprep.subr.bf16.mxu0 %v1850
  %2864 = vmatpush1.bf16.msra.mxu0 %v1849
  %2865 = vmatprep.subr.bf16.mxu0 %v1866
  %2866 = vmatpush1.bf16.msra.mxu0 %v1865
  %2867 = vmatprep.subr.bf16.mxu0 %v1882
  %2868 = vmatpush1.bf16.msra.mxu0 %v1881
  %2869 = vmatprep.subr.bf16.mxu0 %v1898
  %2870 = vmatpush1.bf16.msra.mxu0 %v1897
  %2871 = vmatprep.subr.bf16.mxu0 %v1914
  %2872 = vmatpush1.bf16.msra.mxu0 %v1913
  %2873 = vmatprep.subr.bf16.mxu0 %v1930
  %2874 = vmatpush1.bf16.msra.mxu0 %v1929
  %2875 = vmatprep.subr.bf16.mxu0 %v1946
  %2876 = vmatpush1.bf16.msra.mxu0 %v1945
  %2877 = vmatprep.mubr.bf16.mxu0 %v40
  %2878 = vmatmul.mubr.bf16.gmra.mrb[0].mxu0 %v39
  %v2879 = vpop.f32.mrb[0].mxu0
  %v2880 = vadd.f32 %v470, %v2879
  %v2881 = vpop.f32.mrb[0].mxu0
  %v2882 = vadd.f32 %v474, %v2881
  %v2883 = vpop.f32.mrb[0].mxu0
  %v2884 = vadd.f32 %v470, %v2883
  %v2885 = vpop.f32.mrb[0].mxu0
  %v2886 = vadd.f32 %v474, %v2885
  %2887 = vmatprep.mubr.bf16.mxu0 %v44
  %2888 = vmatmul.mubr.bf16.gmra.mrb[0].mxu0 %v43
  %v2889 = vpop.f32.mrb[0].mxu0
  %v2890 = vadd.f32 %v470, %v2889
  %v2891 = vpop.f32.mrb[0].mxu0
  %v2892 = vadd.f32 %v474, %v2891
  %v2893 = vpop.f32.mrb[0].mxu0
  %v2894 = vpop.f32.mrb[0].mxu0
  %2895 = vdwg.mxu0
  %2896 = vmatprep.subr.bf16.mxu0 %v1962
  %2897 = vmatpush1.bf16.msra.mxu0 %v1961
  %2898 = vmatprep.subr.bf16.mxu0 %v1978
  %2899 = vmatpush1.bf16.msra.mxu0 %v1977
  %2900 = vmatprep.subr.bf16.mxu0 %v1994
  %2901 = vmatpush1.bf16.msra.mxu0 %v1993
  %2902 = vmatprep.subr.bf16.mxu0 %v2010
  %2903 = vmatpush1.bf16.msra.mxu0 %v2009
  %2904 = vmatprep.subr.bf16.mxu0 %v2026
  %2905 = vmatpush1.bf16.msra.mxu0 %v2025
  %2906 = vmatprep.subr.bf16.mxu0 %v2042
  %2907 = vmatpush1.bf16.msra.mxu0 %v2041
  %2908 = vmatprep.subr.bf16.mxu0 %v2058
  %2909 = vmatpush1.bf16.msra.mxu0 %v2057
  %2910 = vmatprep.subr.bf16.mxu0 %v2074
  %2911 = vmatpush1.bf16.msra.mxu0 %v2073
  %2912 = vmatprep.subr.bf16.mxu0 %v2513
  %2913 = vmatpush1.bf16.msra.mxu0 %v2510
  %2914 = vmatprep.subr.bf16.mxu0 0
  %2915 = vmatpush1.bf16.msra.mxu0 0
  %2916 = vmatprep.subr.bf16.mxu0 0
  %2917 = vmatpush1.bf16.msra.mxu0 0
  %2918 = vmatprep.subr.bf16.mxu0 0
  %2919 = vmatpush1.bf16.msra.mxu0 0
  %2920 = vmatprep.subr.bf16.mxu0 0
  %2921 = vmatpush1.bf16.msra.mxu0 0
  %2922 = vmatprep.subr.bf16.mxu0 0
  %2923 = vmatpush1.bf16.msra.mxu0 0
  %2924 = vmatprep.subr.bf16.mxu0 0
  %2925 = vmatpush1.bf16.msra.mxu0 0
  %2926 = vmatprep.subr.bf16.mxu0 0
  %2927 = vmatpush1.bf16.msra.mxu0 0
  %2928 = vmatprep.mubr.bf16.mxu0 %v2485
  %2929 = vmatmul.mubr.bf16.gmra.mrb[0].mxu0 %v41
  %v2930 = vpop.f32.mrb[0].mxu0
  %v2931 = vadd.f32 %v2880, %v2930
  %v2932 = vpop.f32.mrb[0].mxu0
  %v2933 = vadd.f32 %v2882, %v2932
  %v2934 = vpop.f32.mrb[0].mxu0
  %v2935 = vadd.f32 %v2884, %v2934
  %v2936 = vpop.f32.mrb[0].mxu0
  %v2937 = vadd.f32 %v2886, %v2936
  %2938 = vmatprep.mubr.bf16.mxu0 %v2488
  %2939 = vmatmul.mubr.bf16.gmra.mrb[0].mxu0 %v45
  %v2940 = vpop.f32.mrb[0].mxu0
  %v2941 = vadd.f32 %v2890, %v2940
  %v2942 = vpop.f32.mrb[0].mxu0
  %v2943 = vadd.f32 %v2892, %v2942
  %v2944 = vpop.f32.mrb[0].mxu0
  %v2945 = vpop.f32.mrb[0].mxu0
  %2946 = vdwg.mxu0
  %2947 = vmatprep.subr.bf16.mxu0 %v1708
  %2948 = vmatpush1.bf16.msra.mxu0 %v1707
  %2949 = vmatprep.subr.bf16.mxu0 %v1724
  %2950 = vmatpush1.bf16.msra.mxu0 %v1723
  %2951 = vmatprep.subr.bf16.mxu0 %v1740
  %2952 = vmatpush1.bf16.msra.mxu0 %v1739
  %2953 = vmatprep.subr.bf16.mxu0 %v1756
  %2954 = vmatpush1.bf16.msra.mxu0 %v1755
  %2955 = vmatprep.subr.bf16.mxu0 %v1772
  %2956 = vmatpush1.bf16.msra.mxu0 %v1771
  %2957 = vmatprep.subr.bf16.mxu0 %v1788
  %2958 = vmatpush1.bf16.msra.mxu0 %v1787
  %2959 = vmatprep.subr.bf16.mxu0 %v1804
  %2960 = vmatpush1.bf16.msra.mxu0 %v1803
  %2961 = vmatprep.subr.bf16.mxu0 %v1820
  %2962 = vmatpush1.bf16.msra.mxu0 %v1819
  %2963 = vmatprep.subr.bf16.mxu0 %v1836
  %2964 = vmatpush1.bf16.msra.mxu0 %v1835
  %2965 = vmatprep.subr.bf16.mxu0 %v1852
  %2966 = vmatpush1.bf16.msra.mxu0 %v1851
  %2967 = vmatprep.subr.bf16.mxu0 %v1868
  %2968 = vmatpush1.bf16.msra.mxu0 %v1867
  %2969 = vmatprep.subr.bf16.mxu0 %v1884
  %2970 = vmatpush1.bf16.msra.mxu0 %v1883
  %2971 = vmatprep.subr.bf16.mxu0 %v1900
  %2972 = vmatpush1.bf16.msra.mxu0 %v1899
  %2973 = vmatprep.subr.bf16.mxu0 %v1916
  %2974 = vmatpush1.bf16.msra.mxu0 %v1915
  %2975 = vmatprep.subr.bf16.mxu0 %v1932
  %2976 = vmatpush1.bf16.msra.mxu0 %v1931
  %2977 = vmatprep.subr.bf16.mxu0 %v1948
  %2978 = vmatpush1.bf16.msra.mxu0 %v1947
  %2979 = vmatprep.mubr.bf16.mxu0 %v40
  %2980 = vmatmul.mubr.bf16.gmra.mrb[0].mxu0 %v39
  %v2981 = vpop.f32.mrb[0].mxu0
  %v2982 = vadd.f32 %v478, %v2981
  %v2983 = vpop.f32.mrb[0].mxu0
  %v2984 = vadd.f32 %v482, %v2983
  %v2985 = vpop.f32.mrb[0].mxu0
  %v2986 = vadd.f32 %v478, %v2985
  %v2987 = vpop.f32.mrb[0].mxu0
  %v2988 = vadd.f32 %v482, %v2987
  %2989 = vmatprep.mubr.bf16.mxu0 %v44
  %2990 = vmatmul.mubr.bf16.gmra.mrb[0].mxu0 %v43
  %v2991 = vpop.f32.mrb[0].mxu0
  %v2992 = vadd.f32 %v478, %v2991
  %v2993 = vpop.f32.mrb[0].mxu0
  %v2994 = vadd.f32 %v482, %v2993
  %v2995 = vpop.f32.mrb[0].mxu0
  %v2996 = vpop.f32.mrb[0].mxu0
  %2997 = vdwg.mxu0
  %2998 = vmatprep.subr.bf16.mxu0 %v1964
  %2999 = vmatpush1.bf16.msra.mxu0 %v1963
  %3000 = vmatprep.subr.bf16.mxu0 %v1980
  %3001 = vmatpush1.bf16.msra.mxu0 %v1979
  %3002 = vmatprep.subr.bf16.mxu0 %v1996
  %3003 = vmatpush1.bf16.msra.mxu0 %v1995
  %3004 = vmatprep.subr.bf16.mxu0 %v2012
  %3005 = vmatpush1.bf16.msra.mxu0 %v2011
  %3006 = vmatprep.subr.bf16.mxu0 %v2028
  %3007 = vmatpush1.bf16.msra.mxu0 %v2027
  %3008 = vmatprep.subr.bf16.mxu0 %v2044
  %3009 = vmatpush1.bf16.msra.mxu0 %v2043
  %3010 = vmatprep.subr.bf16.mxu0 %v2060
  %3011 = vmatpush1.bf16.msra.mxu0 %v2059
  %3012 = vmatprep.subr.bf16.mxu0 %v2076
  %3013 = vmatpush1.bf16.msra.mxu0 %v2075
  %3014 = vmatprep.subr.bf16.mxu0 %v2519
  %3015 = vmatpush1.bf16.msra.mxu0 %v2516
  %3016 = vmatprep.subr.bf16.mxu0 0
  %3017 = vmatpush1.bf16.msra.mxu0 0
  %3018 = vmatprep.subr.bf16.mxu0 0
  %3019 = vmatpush1.bf16.msra.mxu0 0
  %3020 = vmatprep.subr.bf16.mxu0 0
  %3021 = vmatpush1.bf16.msra.mxu0 0
  %3022 = vmatprep.subr.bf16.mxu0 0
  %3023 = vmatpush1.bf16.msra.mxu0 0
  %3024 = vmatprep.subr.bf16.mxu0 0
  %3025 = vmatpush1.bf16.msra.mxu0 0
  %3026 = vmatprep.subr.bf16.mxu0 0
  %3027 = vmatpush1.bf16.msra.mxu0 0
  %3028 = vmatprep.subr.bf16.mxu0 0
  %3029 = vmatpush1.bf16.msra.mxu0 0
  %3030 = vmatprep.mubr.bf16.mxu0 %v2485
  %3031 = vmatmul.mubr.bf16.gmra.mrb[0].mxu0 %v41
  %v3032 = vpop.f32.mrb[0].mxu0
  %v3033 = vadd.f32 %v2982, %v3032
  %v3034 = vpop.f32.mrb[0].mxu0
  %v3035 = vadd.f32 %v2984, %v3034
  %v3036 = vpop.f32.mrb[0].mxu0
  %v3037 = vadd.f32 %v2986, %v3036
  %v3038 = vpop.f32.mrb[0].mxu0
  %v3039 = vadd.f32 %v2988, %v3038
  %3040 = vmatprep.mubr.bf16.mxu0 %v2488
  %3041 = vmatmul.mubr.bf16.gmra.mrb[0].mxu0 %v45
  %v3042 = vpop.f32.mrb[0].mxu0
  %v3043 = vadd.f32 %v2992, %v3042
  %v3044 = vpop.f32.mrb[0].mxu0
  %v3045 = vadd.f32 %v2994, %v3044
  %v3046 = vpop.f32.mrb[0].mxu0
  %v3047 = vpop.f32.mrb[0].mxu0
  %3048 = vdwg.mxu0
  %3049 = vmatprep.subr.bf16.mxu0 %v1710
  %3050 = vmatpush1.bf16.msra.mxu0 %v1709
  %3051 = vmatprep.subr.bf16.mxu0 %v1726
  %3052 = vmatpush1.bf16.msra.mxu0 %v1725
  %3053 = vmatprep.subr.bf16.mxu0 %v1742
  %3054 = vmatpush1.bf16.msra.mxu0 %v1741
  %3055 = vmatprep.subr.bf16.mxu0 %v1758
  %3056 = vmatpush1.bf16.msra.mxu0 %v1757
  %3057 = vmatprep.subr.bf16.mxu0 %v1774
  %3058 = vmatpush1.bf16.msra.mxu0 %v1773
  %3059 = vmatprep.subr.bf16.mxu0 %v1790
  %3060 = vmatpush1.bf16.msra.mxu0 %v1789
  %3061 = vmatprep.subr.bf16.mxu0 %v1806
  %3062 = vmatpush1.bf16.msra.mxu0 %v1805
  %3063 = vmatprep.subr.bf16.mxu0 %v1822
  %3064 = vmatpush1.bf16.msra.mxu0 %v1821
  %3065 = vmatprep.subr.bf16.mxu0 %v1838
  %3066 = vmatpush1.bf16.msra.mxu0 %v1837
  %3067 = vmatprep.subr.bf16.mxu0 %v1854
  %3068 = vmatpush1.bf16.msra.mxu0 %v1853
  %3069 = vmatprep.subr.bf16.mxu0 %v1870
  %3070 = vmatpush1.bf16.msra.mxu0 %v1869
  %3071 = vmatprep.subr.bf16.mxu0 %v1886
  %3072 = vmatpush1.bf16.msra.mxu0 %v1885
  %3073 = vmatprep.subr.bf16.mxu0 %v1902
  %3074 = vmatpush1.bf16.msra.mxu0 %v1901
  %3075 = vmatprep.subr.bf16.mxu0 %v1918
  %3076 = vmatpush1.bf16.msra.mxu0 %v1917
  %3077 = vmatprep.subr.bf16.mxu0 %v1934
  %3078 = vmatpush1.bf16.msra.mxu0 %v1933
  %3079 = vmatprep.subr.bf16.mxu0 %v1950
  %3080 = vmatpush1.bf16.msra.mxu0 %v1949
  %3081 = vmatprep.mubr.bf16.mxu0 %v40
  %3082 = vmatmul.mubr.bf16.gmra.mrb[0].mxu0 %v39
  %v3083 = vpop.f32.mrb[0].mxu0
  %v3084 = vadd.f32 %v486, %v3083
  %v3085 = vpop.f32.mrb[0].mxu0
  %v3086 = vadd.f32 %v490, %v3085
  %v3087 = vpop.f32.mrb[0].mxu0
  %v3088 = vadd.f32 %v486, %v3087
  %v3089 = vpop.f32.mrb[0].mxu0
  %v3090 = vadd.f32 %v490, %v3089
  %3091 = vmatprep.mubr.bf16.mxu0 %v44
  %3092 = vmatmul.mubr.bf16.gmra.mrb[0].mxu0 %v43
  %v3093 = vpop.f32.mrb[0].mxu0
  %v3094 = vadd.f32 %v486, %v3093
  %v3095 = vpop.f32.mrb[0].mxu0
  %v3096 = vadd.f32 %v490, %v3095
  %v3097 = vpop.f32.mrb[0].mxu0
  %v3098 = vpop.f32.mrb[0].mxu0
  %3099 = vdwg.mxu0
  %3100 = vmatprep.subr.bf16.mxu0 %v1966
  %3101 = vmatpush1.bf16.msra.mxu0 %v1965
  %3102 = vmatprep.subr.bf16.mxu0 %v1982
  %3103 = vmatpush1.bf16.msra.mxu0 %v1981
  %3104 = vmatprep.subr.bf16.mxu0 %v1998
  %3105 = vmatpush1.bf16.msra.mxu0 %v1997
  %3106 = vmatprep.subr.bf16.mxu0 %v2014
  %3107 = vmatpush1.bf16.msra.mxu0 %v2013
  %3108 = vmatprep.subr.bf16.mxu0 %v2030
  %3109 = vmatpush1.bf16.msra.mxu0 %v2029
  %3110 = vmatprep.subr.bf16.mxu0 %v2046
  %3111 = vmatpush1.bf16.msra.mxu0 %v2045
  %3112 = vmatprep.subr.bf16.mxu0 %v2062
  %3113 = vmatpush1.bf16.msra.mxu0 %v2061
  %3114 = vmatprep.subr.bf16.mxu0 %v2078
  %3115 = vmatpush1.bf16.msra.mxu0 %v2077
  %3116 = vmatprep.subr.bf16.mxu0 %v2525
  %3117 = vmatpush1.bf16.msra.mxu0 %v2522
  %3118 = vmatprep.subr.bf16.mxu0 0
  %3119 = vmatpush1.bf16.msra.mxu0 0
  %3120 = vmatprep.subr.bf16.mxu0 0
  %3121 = vmatpush1.bf16.msra.mxu0 0
  %3122 = vmatprep.subr.bf16.mxu0 0
  %3123 = vmatpush1.bf16.msra.mxu0 0
  %3124 = vmatprep.subr.bf16.mxu0 0
  %3125 = vmatpush1.bf16.msra.mxu0 0
  %3126 = vmatprep.subr.bf16.mxu0 0
  %3127 = vmatpush1.bf16.msra.mxu0 0
  %3128 = vmatprep.subr.bf16.mxu0 0
  %3129 = vmatpush1.bf16.msra.mxu0 0
  %3130 = vmatprep.subr.bf16.mxu0 0
  %3131 = vmatpush1.bf16.msra.mxu0 0
  %3132 = vmatprep.mubr.bf16.mxu0 %v2485
  %3133 = vmatmul.mubr.bf16.gmra.mrb[0].mxu0 %v41
  %v3134 = vpop.f32.mrb[0].mxu0
  %v3135 = vadd.f32 %v3084, %v3134
  %v3136 = vpop.f32.mrb[0].mxu0
  %v3137 = vadd.f32 %v3086, %v3136
  %v3138 = vpop.f32.mrb[0].mxu0
  %v3139 = vadd.f32 %v3088, %v3138
  %v3140 = vpop.f32.mrb[0].mxu0
  %v3141 = vadd.f32 %v3090, %v3140
  %3142 = vmatprep.mubr.bf16.mxu0 %v2488
  %3143 = vmatmul.mubr.bf16.gmra.mrb[0].mxu0 %v45
  %v3144 = vpop.f32.mrb[0].mxu0
  %v3145 = vadd.f32 %v3094, %v3144
  %v3146 = vpop.f32.mrb[0].mxu0
  %v3147 = vadd.f32 %v3096, %v3146
  %v3148 = vpop.f32.mrb[0].mxu0
  %v3149 = vpop.f32.mrb[0].mxu0
  %3150 = vdwg.mxu0
  %3151 = vmatprep.subr.bf16.mxu0 %v1712
  %3152 = vmatpush1.bf16.msra.mxu0 %v1711
  %3153 = vmatprep.subr.bf16.mxu0 %v1728
  %3154 = vmatpush1.bf16.msra.mxu0 %v1727
  %3155 = vmatprep.subr.bf16.mxu0 %v1744
  %3156 = vmatpush1.bf16.msra.mxu0 %v1743
  %3157 = vmatprep.subr.bf16.mxu0 %v1760
  %3158 = vmatpush1.bf16.msra.mxu0 %v1759
  %3159 = vmatprep.subr.bf16.mxu0 %v1776
  %3160 = vmatpush1.bf16.msra.mxu0 %v1775
  %3161 = vmatprep.subr.bf16.mxu0 %v1792
  %3162 = vmatpush1.bf16.msra.mxu0 %v1791
  %3163 = vmatprep.subr.bf16.mxu0 %v1808
  %3164 = vmatpush1.bf16.msra.mxu0 %v1807
  %3165 = vmatprep.subr.bf16.mxu0 %v1824
  %3166 = vmatpush1.bf16.msra.mxu0 %v1823
  %3167 = vmatprep.subr.bf16.mxu0 %v1840
  %3168 = vmatpush1.bf16.msra.mxu0 %v1839
  %3169 = vmatprep.subr.bf16.mxu0 %v1856
  %3170 = vmatpush1.bf16.msra.mxu0 %v1855
  %3171 = vmatprep.subr.bf16.mxu0 %v1872
  %3172 = vmatpush1.bf16.msra.mxu0 %v1871
  %3173 = vmatprep.subr.bf16.mxu0 %v1888
  %3174 = vmatpush1.bf16.msra.mxu0 %v1887
  %3175 = vmatprep.subr.bf16.mxu0 %v1904
  %3176 = vmatpush1.bf16.msra.mxu0 %v1903
  %3177 = vmatprep.subr.bf16.mxu0 %v1920
  %3178 = vmatpush1.bf16.msra.mxu0 %v1919
  %3179 = vmatprep.subr.bf16.mxu0 %v1936
  %3180 = vmatpush1.bf16.msra.mxu0 %v1935
  %3181 = vmatprep.subr.bf16.mxu0 %v1952
  %3182 = vmatpush1.bf16.msra.mxu0 %v1951
  %3183 = vmatprep.mubr.bf16.mxu0 %v40
  %3184 = vmatmul.mubr.bf16.gmra.mrb[0].mxu0 %v39
  %v3185 = vpop.f32.mrb[0].mxu0
  %v3186 = vadd.f32 %v494, %v3185
  %v3187 = vpop.f32.mrb[0].mxu0
  %v3188 = vadd.f32 %v498, %v3187
  %v3189 = vpop.f32.mrb[0].mxu0
  %v3190 = vadd.f32 %v494, %v3189
  %v3191 = vpop.f32.mrb[0].mxu0
  %v3192 = vadd.f32 %v498, %v3191
  %3193 = vmatprep.mubr.bf16.mxu0 %v44
  %3194 = vmatmul.mubr.bf16.gmra.mrb[0].mxu0 %v43
  %v3195 = vpop.f32.mrb[0].mxu0
  %v3196 = vadd.f32 %v494, %v3195
  %v3197 = vpop.f32.mrb[0].mxu0
  %v3198 = vadd.f32 %v498, %v3197
  %v3199 = vpop.f32.mrb[0].mxu0
  %v3200 = vpop.f32.mrb[0].mxu0
  %3201 = vdwg.mxu0
  %3202 = vmatprep.subr.bf16.mxu0 %v1968
  %3203 = vmatpush1.bf16.msra.mxu0 %v1967
  %3204 = vmatprep.subr.bf16.mxu0 %v1984
  %3205 = vmatpush1.bf16.msra.mxu0 %v1983
  %3206 = vmatprep.subr.bf16.mxu0 %v2000
  %3207 = vmatpush1.bf16.msra.mxu0 %v1999
  %3208 = vmatprep.subr.bf16.mxu0 %v2016
  %3209 = vmatpush1.bf16.msra.mxu0 %v2015
  %3210 = vmatprep.subr.bf16.mxu0 %v2032
  %3211 = vmatpush1.bf16.msra.mxu0 %v2031
  %3212 = vmatprep.subr.bf16.mxu0 %v2048
  %3213 = vmatpush1.bf16.msra.mxu0 %v2047
  %3214 = vmatprep.subr.bf16.mxu0 %v2064
  %3215 = vmatpush1.bf16.msra.mxu0 %v2063
  %3216 = vmatprep.subr.bf16.mxu0 %v2080
  %3217 = vmatpush1.bf16.msra.mxu0 %v2079
  %3218 = vmatprep.subr.bf16.mxu0 %v2531
  %3219 = vmatpush1.bf16.msra.mxu0 %v2528
  %3220 = vmatprep.subr.bf16.mxu0 0
  %3221 = vmatpush1.bf16.msra.mxu0 0
  %3222 = vmatprep.subr.bf16.mxu0 0
  %3223 = vmatpush1.bf16.msra.mxu0 0
  %3224 = vmatprep.subr.bf16.mxu0 0
  %3225 = vmatpush1.bf16.msra.mxu0 0
  %3226 = vmatprep.subr.bf16.mxu0 0
  %3227 = vmatpush1.bf16.msra.mxu0 0
  %3228 = vmatprep.subr.bf16.mxu0 0
  %3229 = vmatpush1.bf16.msra.mxu0 0
  %3230 = vmatprep.subr.bf16.mxu0 0
  %3231 = vmatpush1.bf16.msra.mxu0 0
  %3232 = vmatprep.subr.bf16.mxu0 0
  %3233 = vmatpush1.bf16.msra.mxu0 0
  %3234 = vmatprep.mubr.bf16.mxu0 %v2485
  %3235 = vmatmul.mubr.bf16.gmra.mrb[0].mxu0 %v41
  %v3236 = vpop.f32.mrb[0].mxu0
  %v3237 = vadd.f32 %v3186, %v3236
  %v3238 = vpop.f32.mrb[0].mxu0
  %v3239 = vadd.f32 %v3188, %v3238
  %v3240 = vpop.f32.mrb[0].mxu0
  %v3241 = vadd.f32 %v3190, %v3240
  %v3242 = vpop.f32.mrb[0].mxu0
  %v3243 = vadd.f32 %v3192, %v3242
  %3244 = vmatprep.mubr.bf16.mxu0 %v2488
  %3245 = vmatmul.mubr.bf16.gmra.mrb[0].mxu0 %v45
  %v3246 = vpop.f32.mrb[0].mxu0
  %v3247 = vadd.f32 %v3196, %v3246
  %v3248 = vpop.f32.mrb[0].mxu0
  %v3249 = vadd.f32 %v3198, %v3248
  %v3250 = vpop.f32.mrb[0].mxu0
  %v3251 = vpop.f32.mrb[0].mxu0
  %3252 = vdwg.mxu0
  %3253 = vmatprep.subr.bf16.mxu0 %v1714
  %3254 = vmatpush1.bf16.msra.mxu0 %v1713
  %3255 = vmatprep.subr.bf16.mxu0 %v1730
  %3256 = vmatpush1.bf16.msra.mxu0 %v1729
  %3257 = vmatprep.subr.bf16.mxu0 %v1746
  %3258 = vmatpush1.bf16.msra.mxu0 %v1745
  %3259 = vmatprep.subr.bf16.mxu0 %v1762
  %3260 = vmatpush1.bf16.msra.mxu0 %v1761
  %3261 = vmatprep.subr.bf16.mxu0 %v1778
  %3262 = vmatpush1.bf16.msra.mxu0 %v1777
  %3263 = vmatprep.subr.bf16.mxu0 %v1794
  %3264 = vmatpush1.bf16.msra.mxu0 %v1793
  %3265 = vmatprep.subr.bf16.mxu0 %v1810
  %3266 = vmatpush1.bf16.msra.mxu0 %v1809
  %3267 = vmatprep.subr.bf16.mxu0 %v1826
  %3268 = vmatpush1.bf16.msra.mxu0 %v1825
  %3269 = vmatprep.subr.bf16.mxu0 %v1842
  %3270 = vmatpush1.bf16.msra.mxu0 %v1841
  %3271 = vmatprep.subr.bf16.mxu0 %v1858
  %3272 = vmatpush1.bf16.msra.mxu0 %v1857
  %3273 = vmatprep.subr.bf16.mxu0 %v1874
  %3274 = vmatpush1.bf16.msra.mxu0 %v1873
  %3275 = vmatprep.subr.bf16.mxu0 %v1890
  %3276 = vmatpush1.bf16.msra.mxu0 %v1889
  %3277 = vmatprep.subr.bf16.mxu0 %v1906
  %3278 = vmatpush1.bf16.msra.mxu0 %v1905
  %3279 = vmatprep.subr.bf16.mxu0 %v1922
  %3280 = vmatpush1.bf16.msra.mxu0 %v1921
  %3281 = vmatprep.subr.bf16.mxu0 %v1938
  %3282 = vmatpush1.bf16.msra.mxu0 %v1937
  %3283 = vmatprep.subr.bf16.mxu0 %v1954
  %3284 = vmatpush1.bf16.msra.mxu0 %v1953
  %3285 = vmatprep.mubr.bf16.mxu0 %v40
  %3286 = vmatmul.mubr.bf16.gmra.mrb[0].mxu0 %v39
  %v3287 = vpop.f32.mrb[0].mxu0
  %v3288 = vadd.f32 %v502, %v3287
  %v3289 = vpop.f32.mrb[0].mxu0
  %v3290 = vadd.f32 %v506, %v3289
  %v3291 = vpop.f32.mrb[0].mxu0
  %v3292 = vadd.f32 %v502, %v3291
  %v3293 = vpop.f32.mrb[0].mxu0
  %v3294 = vadd.f32 %v506, %v3293
  %3295 = vmatprep.mubr.bf16.mxu0 %v44
  %3296 = vmatmul.mubr.bf16.gmra.mrb[0].mxu0 %v43
  %v3297 = vpop.f32.mrb[0].mxu0
  %v3298 = vadd.f32 %v502, %v3297
  %v3299 = vpop.f32.mrb[0].mxu0
  %v3300 = vadd.f32 %v506, %v3299
  %v3301 = vpop.f32.mrb[0].mxu0
  %v3302 = vpop.f32.mrb[0].mxu0
  %3303 = vdwg.mxu0
  %3304 = vmatprep.subr.bf16.mxu0 %v1970
  %3305 = vmatpush1.bf16.msra.mxu0 %v1969
  %3306 = vmatprep.subr.bf16.mxu0 %v1986
  %3307 = vmatpush1.bf16.msra.mxu0 %v1985
  %3308 = vmatprep.subr.bf16.mxu0 %v2002
  %3309 = vmatpush1.bf16.msra.mxu0 %v2001
  %3310 = vmatprep.subr.bf16.mxu0 %v2018
  %3311 = vmatpush1.bf16.msra.mxu0 %v2017
  %3312 = vmatprep.subr.bf16.mxu0 %v2034
  %3313 = vmatpush1.bf16.msra.mxu0 %v2033
  %3314 = vmatprep.subr.bf16.mxu0 %v2050
  %3315 = vmatpush1.bf16.msra.mxu0 %v2049
  %3316 = vmatprep.subr.bf16.mxu0 %v2066
  %3317 = vmatpush1.bf16.msra.mxu0 %v2065
  %3318 = vmatprep.subr.bf16.mxu0 %v2082
  %3319 = vmatpush1.bf16.msra.mxu0 %v2081
  %3320 = vmatprep.subr.bf16.mxu0 %v2537
  %3321 = vmatpush1.bf16.msra.mxu0 %v2534
  %3322 = vmatprep.subr.bf16.mxu0 0
  %3323 = vmatpush1.bf16.msra.mxu0 0
  %3324 = vmatprep.subr.bf16.mxu0 0
  %3325 = vmatpush1.bf16.msra.mxu0 0
  %3326 = vmatprep.subr.bf16.mxu0 0
  %3327 = vmatpush1.bf16.msra.mxu0 0
  %3328 = vmatprep.subr.bf16.mxu0 0
  %3329 = vmatpush1.bf16.msra.mxu0 0
  %3330 = vmatprep.subr.bf16.mxu0 0
  %3331 = vmatpush1.bf16.msra.mxu0 0
  %3332 = vmatprep.subr.bf16.mxu0 0
  %3333 = vmatpush1.bf16.msra.mxu0 0
  %3334 = vmatprep.subr.bf16.mxu0 0
  %3335 = vmatpush1.bf16.msra.mxu0 0
  %3336 = vmatprep.mubr.bf16.mxu0 %v2485
  %3337 = vmatmul.mubr.bf16.gmra.mrb[0].mxu0 %v41
  %v3338 = vpop.f32.mrb[0].mxu0
  %v3339 = vadd.f32 %v3288, %v3338
  %v3340 = vpop.f32.mrb[0].mxu0
  %v3341 = vadd.f32 %v3290, %v3340
  %v3342 = vpop.f32.mrb[0].mxu0
  %v3343 = vadd.f32 %v3292, %v3342
  %v3344 = vpop.f32.mrb[0].mxu0
  %v3345 = vadd.f32 %v3294, %v3344
  %3346 = vmatprep.mubr.bf16.mxu0 %v2488
  %3347 = vmatmul.mubr.bf16.gmra.mrb[0].mxu0 %v45
  %v3348 = vpop.f32.mrb[0].mxu0
  %v3349 = vadd.f32 %v3298, %v3348
  %v3350 = vpop.f32.mrb[0].mxu0
  %v3351 = vadd.f32 %v3300, %v3350
  %v3352 = vpop.f32.mrb[0].mxu0
  %v3353 = vpop.f32.mrb[0].mxu0
  %3354 = vdwg.mxu0
  %v3355 = vmax.f32 %v2625, 0.0
  %v3356 = vmax.f32 %v2627, 0.0
  %v3357 = vmax.f32 %v2727, 0.0
  %v3358 = vmax.f32 %v2729, 0.0
  %v3359 = vmax.f32 %v2829, 0.0
  %v3360 = vmax.f32 %v2831, 0.0
  %v3361 = vmax.f32 %v2931, 0.0
  %v3362 = vmax.f32 %v2933, 0.0
  %v3363 = vmax.f32 %v3033, 0.0
  %v3364 = vmax.f32 %v3035, 0.0
  %v3365 = vmax.f32 %v3135, 0.0
  %v3366 = vmax.f32 %v3137, 0.0
  %v3367 = vmax.f32 %v3237, 0.0
  %v3368 = vmax.f32 %v3239, 0.0
  %v3369 = vmax.f32 %v3339, 0.0
  %v3370 = vmax.f32 %v3341, 0.0
  %v3371 = vmax.f32 %v2629, 0.0
  %v3372 = vmax.f32 %v2631, 0.0
  %v3373 = vmax.f32 %v2731, 0.0
  %v3374 = vmax.f32 %v2733, 0.0
  %v3375 = vmax.f32 %v2833, 0.0
  %v3376 = vmax.f32 %v2835, 0.0
  %v3377 = vmax.f32 %v2935, 0.0
  %v3378 = vmax.f32 %v2937, 0.0
  %v3379 = vmax.f32 %v3037, 0.0
  %v3380 = vmax.f32 %v3039, 0.0
  %v3381 = vmax.f32 %v3139, 0.0
  %v3382 = vmax.f32 %v3141, 0.0
  %v3383 = vmax.f32 %v3241, 0.0
  %v3384 = vmax.f32 %v3243, 0.0
  %v3385 = vmax.f32 %v3343, 0.0
  %v3386 = vmax.f32 %v3345, 0.0
  %v3387 = vmax.f32 %v2635, 0.0
  %v3388 = vmax.f32 %v2637, 0.0
  %v3389 = vmax.f32 %v2737, 0.0
  %v3390 = vmax.f32 %v2739, 0.0
  %v3391 = vmax.f32 %v2839, 0.0
  %v3392 = vmax.f32 %v2841, 0.0
  %v3393 = vmax.f32 %v2941, 0.0
  %v3394 = vmax.f32 %v2943, 0.0
  %v3395 = vmax.f32 %v3043, 0.0
  %v3396 = vmax.f32 %v3045, 0.0
  %v3397 = vmax.f32 %v3145, 0.0
  %v3398 = vmax.f32 %v3147, 0.0
  %v3399 = vmax.f32 %v3247, 0.0
  %v3400 = vmax.f32 %v3249, 0.0
  %v3401 = vmax.f32 %v3349, 0.0
  %v3402 = vmax.f32 %v3351, 0.0
  %v3403 = vpack.c.bf16 %v3371, %v3355
  %v3404 = vpack.c.bf16 %v3372, %v3356
  %v3405 = vpack.c.bf16 %v3373, %v3357
  %v3406 = vpack.c.bf16 %v3374, %v3358
  %v3407 = vpack.c.bf16 %v3375, %v3359
  %v3408 = vpack.c.bf16 %v3376, %v3360
  %v3409 = vpack.c.bf16 %v3377, %v3361
  %v3410 = vpack.c.bf16 %v3378, %v3362
  %v3411 = vpack.c.bf16 %v3379, %v3363
  %v3412 = vpack.c.bf16 %v3380, %v3364
  %v3413 = vpack.c.bf16 %v3381, %v3365
  %v3414 = vpack.c.bf16 %v3382, %v3366
  %v3415 = vpack.c.bf16 %v3383, %v3367
  %v3416 = vpack.c.bf16 %v3384, %v3368
  %v3417 = vpack.c.bf16 %v3385, %v3369
  %v3418 = vpack.c.bf16 %v3386, %v3370
  %v3419 = vpack.c.bf16 %v3387, %v3387
  %v3420 = vpack.c.bf16 %v3388, %v3388
  %v3421 = vpack.c.bf16 %v3389, %v3389
  %v3422 = vpack.c.bf16 %v3390, %v3390
  %v3423 = vpack.c.bf16 %v3391, %v3391
  %v3424 = vpack.c.bf16 %v3392, %v3392
  %v3425 = vpack.c.bf16 %v3393, %v3393
  %v3426 = vpack.c.bf16 %v3394, %v3394
  %v3427 = vpack.c.bf16 %v3395, %v3395
  %v3428 = vpack.c.bf16 %v3396, %v3396
  %v3429 = vpack.c.bf16 %v3397, %v3397
  %v3430 = vpack.c.bf16 %v3398, %v3398
  %v3431 = vpack.c.bf16 %v3399, %v3399
  %v3432 = vpack.c.bf16 %v3400, %v3400
  %v3433 = vpack.c.bf16 %v3401, %v3401
  %v3434 = vpack.c.bf16 %v3402, %v3402
  %v3435 = vld [vmem:[%s3] sm:$0xff]
  %v3436 = vld [vmem:[%s3 + $0x8] sm:$0xff]
  %v3437 = vld [vmem:[%s3 + $0x10] sm:$0xff]
  %v3438 = vld [vmem:[%s3 + $0x18] sm:$0xff]
  %v3439 = vld [vmem:[%s3 + $0x20] sm:$0xff]
  %v3440 = vld [vmem:[%s3 + $0x28] sm:$0xff]
  %v3441 = vld [vmem:[%s3 + $0x30] sm:$0xff]
  %v3442 = vld [vmem:[%s3 + $0x38] sm:$0xff]
  %v3443 = vld [vmem:[%s3 + $0x40] sm:$0xff]
  %v3444 = vld [vmem:[%s3 + $0x48] sm:$0xff]
  %v3445 = vld [vmem:[%s3 + $0x50] sm:$0xff]
  %v3446 = vld [vmem:[%s3 + $0x58] sm:$0xff]
  %v3447 = vld [vmem:[%s3 + $0x60] sm:$0xff]
  %v3448 = vld [vmem:[%s3 + $0x68] sm:$0xff]
  %v3449 = vld [vmem:[%s3 + $0x70] sm:$0xff]
  %v3450 = vld [vmem:[%s3 + $0x78] sm:$0xff]
  %v3451 = vld [vmem:[%s3 + $0x80] sm:$0xff]
  %v3452 = vld [vmem:[%s3 + $0x88] sm:$0xff]
  %v3453 = vld [vmem:[%s3 + $0x90] sm:$0xff]
  %v3454 = vld [vmem:[%s3 + $0x98] sm:$0xff]
  %v3455 = vld [vmem:[%s3 + $0xa0] sm:$0xff]
  %v3456 = vld [vmem:[%s3 + $0xa8] sm:$0xff]
  %v3457 = vld [vmem:[%s3 + $0xb0] sm:$0xff]
  %v3458 = vld [vmem:[%s3 + $0xb8] sm:$0xff]
  %v3459 = vld [vmem:[%s3 + $0xc0] sm:$0xff]
  %v3460 = vld [vmem:[%s3 + $0xc8] sm:$0xff]
  %v3461 = vld [vmem:[%s3 + $0xd0] sm:$0xff]
  %v3462 = vld [vmem:[%s3 + $0xd8] sm:$0xff]
  %v3463 = vld [vmem:[%s3 + $0xe0] sm:$0xff]
  %v3464 = vld [vmem:[%s3 + $0xe8] sm:$0xff]
  %v3465 = vld [vmem:[%s3 + $0xf0] sm:$0xff]
  %v3466 = vld [vmem:[%s3 + $0xf8] sm:$0xff]
  %v3467 = vld [vmem:[%s3 + $0x100] sm:$0xff]
  %v3468 = vld [vmem:[%s3 + $0x108] sm:$0xff]
  %v3469 = vld [vmem:[%s3 + $0x110] sm:$0xff]
  %v3470 = vld [vmem:[%s3 + $0x118] sm:$0xff]
  %v3471 = vld [vmem:[%s3 + $0x120] sm:$0xff]
  %v3472 = vld [vmem:[%s3 + $0x128] sm:$0xff]
  %v3473 = vld [vmem:[%s3 + $0x130] sm:$0xff]
  %v3474 = vld [vmem:[%s3 + $0x138] sm:$0xff]
  %v3475 = vld [vmem:[%s3 + $0x140] sm:$0xff]
  %v3476 = vld [vmem:[%s3 + $0x148] sm:$0xff]
  %v3477 = vld [vmem:[%s3 + $0x150] sm:$0xff]
  %v3478 = vld [vmem:[%s3 + $0x158] sm:$0xff]
  %v3479 = vld [vmem:[%s3 + $0x160] sm:$0xff]
  %v3480 = vld [vmem:[%s3 + $0x168] sm:$0xff]
  %v3481 = vld [vmem:[%s3 + $0x170] sm:$0xff]
  %v3482 = vld [vmem:[%s3 + $0x178] sm:$0xff]
  %v3483 = vld [vmem:[%s3 + $0x180] sm:$0xff]
  %v3484 = vld [vmem:[%s3 + $0x188] sm:$0xff]
  %v3485 = vld [vmem:[%s3 + $0x190] sm:$0xff]
  %v3486 = vld [vmem:[%s3 + $0x198] sm:$0xff]
  %v3487 = vld [vmem:[%s3 + $0x1a0] sm:$0xff]
  %v3488 = vld [vmem:[%s3 + $0x1a8] sm:$0xff]
  %v3489 = vld [vmem:[%s3 + $0x1b0] sm:$0xff]
  %v3490 = vld [vmem:[%s3 + $0x1b8] sm:$0xff]
  %v3491 = vld [vmem:[%s3 + $0x1c0] sm:$0xff]
  %v3492 = vld [vmem:[%s3 + $0x1c8] sm:$0xff]
  %v3493 = vld [vmem:[%s3 + $0x1d0] sm:$0xff]
  %v3494 = vld [vmem:[%s3 + $0x1d8] sm:$0xff]
  %v3495 = vld [vmem:[%s3 + $0x1e0] sm:$0xff]
  %v3496 = vld [vmem:[%s3 + $0x1e8] sm:$0xff]
  %v3497 = vld [vmem:[%s3 + $0x1f0] sm:$0xff]
  %v3498 = vld [vmem:[%s3 + $0x1f8] sm:$0xff]
  %v3499 = vld [vmem:[%s3 + $0x200] sm:$0xff]
  %v3500 = vld [vmem:[%s3 + $0x208] sm:$0xff]
  %v3501 = vld [vmem:[%s3 + $0x210] sm:$0xff]
  %v3502 = vld [vmem:[%s3 + $0x218] sm:$0xff]
  %v3503 = vld [vmem:[%s3 + $0x220] sm:$0xff]
  %v3504 = vld [vmem:[%s3 + $0x228] sm:$0xff]
  %v3505 = vld [vmem:[%s3 + $0x230] sm:$0xff]
  %v3506 = vld [vmem:[%s3 + $0x238] sm:$0xff]
  %v3507 = vld [vmem:[%s3 + $0x240] sm:$0xff]
  %v3508 = vld [vmem:[%s3 + $0x248] sm:$0xff]
  %v3509 = vld [vmem:[%s3 + $0x250] sm:$0xff]
  %v3510 = vld [vmem:[%s3 + $0x258] sm:$0xff]
  %v3511 = vld [vmem:[%s3 + $0x260] sm:$0xff]
  %v3512 = vld [vmem:[%s3 + $0x268] sm:$0xff]
  %v3513 = vld [vmem:[%s3 + $0x270] sm:$0xff]
  %v3514 = vld [vmem:[%s3 + $0x278] sm:$0xff]
  %v3515 = vld [vmem:[%s3 + $0x280] sm:$0xff]
  %v3516 = vld [vmem:[%s3 + $0x288] sm:$0xff]
  %v3517 = vld [vmem:[%s3 + $0x290] sm:$0xff]
  %v3518 = vld [vmem:[%s3 + $0x298] sm:$0xff]
  %v3519 = vld [vmem:[%s3 + $0x2a0] sm:$0xff]
  %v3520 = vld [vmem:[%s3 + $0x2a8] sm:$0xff]
  %v3521 = vld [vmem:[%s3 + $0x2b0] sm:$0xff]
  %v3522 = vld [vmem:[%s3 + $0x2b8] sm:$0xff]
  %v3523 = vld [vmem:[%s3 + $0x2c0] sm:$0xff]
  %v3524 = vld [vmem:[%s3 + $0x2c8] sm:$0xff]
  %v3525 = vld [vmem:[%s3 + $0x2d0] sm:$0xff]
  %v3526 = vld [vmem:[%s3 + $0x2d8] sm:$0xff]
  %v3527 = vld [vmem:[%s3 + $0x2e0] sm:$0xff]
  %v3528 = vld [vmem:[%s3 + $0x2e8] sm:$0xff]
  %v3529 = vld [vmem:[%s3 + $0x2f0] sm:$0xff]
  %v3530 = vld [vmem:[%s3 + $0x2f8] sm:$0xff]
  %v3531 = vld [vmem:[%s3 + $0x300] sm:$0xff]
  %v3532 = vld [vmem:[%s3 + $0x308] sm:$0xff]
  %v3533 = vld [vmem:[%s3 + $0x310] sm:$0xff]
  %v3534 = vld [vmem:[%s3 + $0x318] sm:$0xff]
  %v3535 = vld [vmem:[%s3 + $0x320] sm:$0xff]
  %v3536 = vld [vmem:[%s3 + $0x328] sm:$0xff]
  %v3537 = vld [vmem:[%s3 + $0x330] sm:$0xff]
  %v3538 = vld [vmem:[%s3 + $0x338] sm:$0xff]
  %v3539 = vld [vmem:[%s3 + $0x340] sm:$0xff]
  %v3540 = vld [vmem:[%s3 + $0x348] sm:$0xff]
  %v3541 = vld [vmem:[%s3 + $0x350] sm:$0xff]
  %v3542 = vld [vmem:[%s3 + $0x358] sm:$0xff]
  %v3543 = vld [vmem:[%s3 + $0x360] sm:$0xff]
  %v3544 = vld [vmem:[%s3 + $0x368] sm:$0xff]
  %v3545 = vld [vmem:[%s3 + $0x370] sm:$0xff]
  %v3546 = vld [vmem:[%s3 + $0x378] sm:$0xff]
  %v3547 = vld [vmem:[%s3 + $0x380] sm:$0xff]
  %v3548 = vld [vmem:[%s3 + $0x388] sm:$0xff]
  %v3549 = vld [vmem:[%s3 + $0x390] sm:$0xff]
  %v3550 = vld [vmem:[%s3 + $0x398] sm:$0xff]
  %v3551 = vld [vmem:[%s3 + $0x3a0] sm:$0xff]
  %v3552 = vld [vmem:[%s3 + $0x3a8] sm:$0xff]
  %v3553 = vld [vmem:[%s3 + $0x3b0] sm:$0xff]
  %v3554 = vld [vmem:[%s3 + $0x3b8] sm:$0xff]
  %v3555 = vld [vmem:[%s3 + $0x3c0] sm:$0xff]
  %v3556 = vld [vmem:[%s3 + $0x3c8] sm:$0xff]
  %v3557 = vld [vmem:[%s3 + $0x3d0] sm:$0xff]
  %v3558 = vld [vmem:[%s3 + $0x3d8] sm:$0xff]
  %v3559 = vld [vmem:[%s3 + $0x3e0] sm:$0xff]
  %v3560 = vld [vmem:[%s3 + $0x3e8] sm:$0xff]
  %v3561 = vld [vmem:[%s3 + $0x3f0] sm:$0xff]
  %v3562 = vld [vmem:[%s3 + $0x3f8] sm:$0xff]
  %v3563 = vld [vmem:[%s3 + $0x400] sm:$0xff]
  %v3564 = vld [vmem:[%s3 + $0x408] sm:$0xff]
  %v3565 = vld [vmem:[%s3 + $0x410] sm:$0xff]
  %v3566 = vld [vmem:[%s3 + $0x418] sm:$0xff]
  %v3567 = vld [vmem:[%s3 + $0x420] sm:$0xff]
  %v3568 = vld [vmem:[%s3 + $0x428] sm:$0xff]
  %v3569 = vld [vmem:[%s3 + $0x430] sm:$0xff]
  %v3570 = vld [vmem:[%s3 + $0x438] sm:$0xff]
  %v3571 = vld [vmem:[%s3 + $0x440] sm:$0xff]
  %v3572 = vld [vmem:[%s3 + $0x448] sm:$0xff]
  %v3573 = vld [vmem:[%s3 + $0x450] sm:$0xff]
  %v3574 = vld [vmem:[%s3 + $0x458] sm:$0xff]
  %v3575 = vld [vmem:[%s3 + $0x460] sm:$0xff]
  %v3576 = vld [vmem:[%s3 + $0x468] sm:$0xff]
  %v3577 = vld [vmem:[%s3 + $0x470] sm:$0xff]
  %v3578 = vld [vmem:[%s3 + $0x478] sm:$0xff]
  %v3579 = vld [vmem:[%s3 + $0x480] sm:$0xff]
  %v3580 = vld [vmem:[%s3 + $0x488] sm:$0xff]
  %v3581 = vld [vmem:[%s3 + $0x490] sm:$0xff]
  %v3582 = vld [vmem:[%s3 + $0x498] sm:$0xff]
  %v3583 = vld [vmem:[%s3 + $0x4a0] sm:$0xff]
  %v3584 = vld [vmem:[%s3 + $0x4a8] sm:$0xff]
  %v3585 = vld [vmem:[%s3 + $0x4b0] sm:$0xff]
  %v3586 = vld [vmem:[%s3 + $0x4b8] sm:$0xff]
  %v3587 = vld [vmem:[%s3 + $0x4c0] sm:$0xff]
  %v3588 = vld [vmem:[%s3 + $0x4c8] sm:$0xff]
  %v3589 = vld [vmem:[%s3 + $0x4d0] sm:$0xff]
  %v3590 = vld [vmem:[%s3 + $0x4d8] sm:$0xff]
  %v3591 = vld [vmem:[%s3 + $0x4e0] sm:$0xff]
  %v3592 = vld [vmem:[%s3 + $0x4e8] sm:$0xff]
  %v3593 = vld [vmem:[%s3 + $0x4f0] sm:$0xff]
  %v3594 = vld [vmem:[%s3 + $0x4f8] sm:$0xff]
  %v3595 = vld [vmem:[%s3 + $0x500] sm:$0xff]
  %v3596 = vld [vmem:[%s3 + $0x508] sm:$0xff]
  %v3597 = vld [vmem:[%s3 + $0x510] sm:$0xff]
  %v3598 = vld [vmem:[%s3 + $0x518] sm:$0xff]
  %v3599 = vld [vmem:[%s3 + $0x520] sm:$0xff]
  %v3600 = vld [vmem:[%s3 + $0x528] sm:$0xff]
  %v3601 = vld [vmem:[%s3 + $0x530] sm:$0xff]
  %v3602 = vld [vmem:[%s3 + $0x538] sm:$0xff]
  %v3603 = vld [vmem:[%s3 + $0x540] sm:$0xff]
  %v3604 = vld [vmem:[%s3 + $0x548] sm:$0xff]
  %v3605 = vld [vmem:[%s3 + $0x550] sm:$0xff]
  %v3606 = vld [vmem:[%s3 + $0x558] sm:$0xff]
  %v3607 = vld [vmem:[%s3 + $0x560] sm:$0xff]
  %v3608 = vld [vmem:[%s3 + $0x568] sm:$0xff]
  %v3609 = vld [vmem:[%s3 + $0x570] sm:$0xff]
  %v3610 = vld [vmem:[%s3 + $0x578] sm:$0xff]
  %v3611 = vld [vmem:[%s3 + $0x580] sm:$0xff]
  %v3612 = vld [vmem:[%s3 + $0x588] sm:$0xff]
  %v3613 = vld [vmem:[%s3 + $0x590] sm:$0xff]
  %v3614 = vld [vmem:[%s3 + $0x598] sm:$0xff]
  %v3615 = vld [vmem:[%s3 + $0x5a0] sm:$0xff]
  %v3616 = vld [vmem:[%s3 + $0x5a8] sm:$0xff]
  %v3617 = vld [vmem:[%s3 + $0x5b0] sm:$0xff]
  %v3618 = vld [vmem:[%s3 + $0x5b8] sm:$0xff]
  %v3619 = vld [vmem:[%s3 + $0x5c0] sm:$0xff]
  %v3620 = vld [vmem:[%s3 + $0x5c8] sm:$0xff]
  %v3621 = vld [vmem:[%s3 + $0x5d0] sm:$0xff]
  %v3622 = vld [vmem:[%s3 + $0x5d8] sm:$0xff]
  %v3623 = vld [vmem:[%s3 + $0x5e0] sm:$0xff]
  %v3624 = vld [vmem:[%s3 + $0x5e8] sm:$0xff]
  %v3625 = vld [vmem:[%s3 + $0x5f0] sm:$0xff]
  %v3626 = vld [vmem:[%s3 + $0x5f8] sm:$0xff]
  %v3627 = vld [vmem:[%s3 + $0x600] sm:$0xff]
  %v3628 = vld [vmem:[%s3 + $0x608] sm:$0xff]
  %v3629 = vld [vmem:[%s3 + $0x610] sm:$0xff]
  %v3630 = vld [vmem:[%s3 + $0x618] sm:$0xff]
  %v3631 = vld [vmem:[%s3 + $0x620] sm:$0xff]
  %v3632 = vld [vmem:[%s3 + $0x628] sm:$0xff]
  %v3633 = vld [vmem:[%s3 + $0x630] sm:$0xff]
  %v3634 = vld [vmem:[%s3 + $0x638] sm:$0xff]
  %v3635 = vld [vmem:[%s3 + $0x640] sm:$0xff]
  %v3636 = vld [vmem:[%s3 + $0x648] sm:$0xff]
  %v3637 = vld [vmem:[%s3 + $0x650] sm:$0xff]
  %v3638 = vld [vmem:[%s3 + $0x658] sm:$0xff]
  %v3639 = vld [vmem:[%s3 + $0x660] sm:$0xff]
  %v3640 = vld [vmem:[%s3 + $0x668] sm:$0xff]
  %v3641 = vld [vmem:[%s3 + $0x670] sm:$0xff]
  %v3642 = vld [vmem:[%s3 + $0x678] sm:$0xff]
  %v3643 = vld [vmem:[%s3 + $0x680] sm:$0xff]
  %v3644 = vld [vmem:[%s3 + $0x688] sm:$0xff]
  %v3645 = vld [vmem:[%s3 + $0x690] sm:$0xff]
  %v3646 = vld [vmem:[%s3 + $0x698] sm:$0xff]
  %v3647 = vld [vmem:[%s3 + $0x6a0] sm:$0xff]
  %v3648 = vld [vmem:[%s3 + $0x6a8] sm:$0xff]
  %v3649 = vld [vmem:[%s3 + $0x6b0] sm:$0xff]
  %v3650 = vld [vmem:[%s3 + $0x6b8] sm:$0xff]
  %v3651 = vld [vmem:[%s3 + $0x6c0] sm:$0xff]
  %v3652 = vld [vmem:[%s3 + $0x6c8] sm:$0xff]
  %v3653 = vld [vmem:[%s3 + $0x6d0] sm:$0xff]
  %v3654 = vld [vmem:[%s3 + $0x6d8] sm:$0xff]
  %v3655 = vld [vmem:[%s3 + $0x6e0] sm:$0xff]
  %v3656 = vld [vmem:[%s3 + $0x6e8] sm:$0xff]
  %v3657 = vld [vmem:[%s3 + $0x6f0] sm:$0xff]
  %v3658 = vld [vmem:[%s3 + $0x6f8] sm:$0xff]
  %v3659 = vld [vmem:[%s3 + $0x700] sm:$0xff]
  %v3660 = vld [vmem:[%s3 + $0x708] sm:$0xff]
  %v3661 = vld [vmem:[%s3 + $0x710] sm:$0xff]
  %v3662 = vld [vmem:[%s3 + $0x718] sm:$0xff]
  %v3663 = vld [vmem:[%s3 + $0x720] sm:$0xff]
  %v3664 = vld [vmem:[%s3 + $0x728] sm:$0xff]
  %v3665 = vld [vmem:[%s3 + $0x730] sm:$0xff]
  %v3666 = vld [vmem:[%s3 + $0x738] sm:$0xff]
  %v3667 = vld [vmem:[%s3 + $0x740] sm:$0xff]
  %v3668 = vld [vmem:[%s3 + $0x748] sm:$0xff]
  %v3669 = vld [vmem:[%s3 + $0x750] sm:$0xff]
  %v3670 = vld [vmem:[%s3 + $0x758] sm:$0xff]
  %v3671 = vld [vmem:[%s3 + $0x760] sm:$0xff]
  %v3672 = vld [vmem:[%s3 + $0x768] sm:$0xff]
  %v3673 = vld [vmem:[%s3 + $0x770] sm:$0xff]
  %v3674 = vld [vmem:[%s3 + $0x778] sm:$0xff]
  %v3675 = vld [vmem:[%s3 + $0x780] sm:$0xff]
  %v3676 = vld [vmem:[%s3 + $0x788] sm:$0xff]
  %v3677 = vld [vmem:[%s3 + $0x790] sm:$0xff]
  %v3678 = vld [vmem:[%s3 + $0x798] sm:$0xff]
  %v3679 = vld [vmem:[%s3 + $0x7a0] sm:$0xff]
  %v3680 = vld [vmem:[%s3 + $0x7a8] sm:$0xff]
  %v3681 = vld [vmem:[%s3 + $0x7b0] sm:$0xff]
  %v3682 = vld [vmem:[%s3 + $0x7b8] sm:$0xff]
  %v3683 = vld [vmem:[%s3 + $0x7c0] sm:$0xff]
  %v3684 = vld [vmem:[%s3 + $0x7c8] sm:$0xff]
  %v3685 = vld [vmem:[%s3 + $0x7d0] sm:$0xff]
  %v3686 = vld [vmem:[%s3 + $0x7d8] sm:$0xff]
  %v3687 = vld [vmem:[%s3 + $0x7e0] sm:$0xff]
  %v3688 = vld [vmem:[%s3 + $0x7e8] sm:$0xff]
  %v3689 = vld [vmem:[%s3 + $0x7f0] sm:$0xff]
  %v3690 = vld [vmem:[%s3 + $0x7f8] sm:$0xff]
  %v3691 = vld [vmem:[%s3 + $0x800] sm:$0xff]
  %v3692 = vld [vmem:[%s3 + $0x808] sm:$0xff]
  %v3693 = vld [vmem:[%s3 + $0x810] sm:$0xff]
  %v3694 = vld [vmem:[%s3 + $0x818] sm:$0xff]
  %v3695 = vld [vmem:[%s3 + $0x820] sm:$0xff]
  %v3696 = vld [vmem:[%s3 + $0x828] sm:$0xff]
  %v3697 = vld [vmem:[%s3 + $0x830] sm:$0xff]
  %v3698 = vld [vmem:[%s3 + $0x838] sm:$0xff]
  %v3699 = vld [vmem:[%s3 + $0x840] sm:$0xff]
  %v3700 = vld [vmem:[%s3 + $0x848] sm:$0xff]
  %v3701 = vld [vmem:[%s3 + $0x850] sm:$0xff]
  %v3702 = vld [vmem:[%s3 + $0x858] sm:$0xff]
  %v3703 = vld [vmem:[%s3 + $0x860] sm:$0xff]
  %v3704 = vld [vmem:[%s3 + $0x868] sm:$0xff]
  %v3705 = vld [vmem:[%s3 + $0x870] sm:$0xff]
  %v3706 = vld [vmem:[%s3 + $0x878] sm:$0xff]
  %v3707 = vld [vmem:[%s3 + $0x880] sm:$0xff]
  %v3708 = vld [vmem:[%s3 + $0x888] sm:$0xff]
  %v3709 = vld [vmem:[%s3 + $0x890] sm:$0xff]
  %v3710 = vld [vmem:[%s3 + $0x898] sm:$0xff]
  %v3711 = vld [vmem:[%s3 + $0x8a0] sm:$0xff]
  %v3712 = vld [vmem:[%s3 + $0x8a8] sm:$0xff]
  %v3713 = vld [vmem:[%s3 + $0x8b0] sm:$0xff]
  %v3714 = vld [vmem:[%s3 + $0x8b8] sm:$0xff]
  %v3715 = vld [vmem:[%s3 + $0x8c0] sm:$0xff]
  %v3716 = vld [vmem:[%s3 + $0x8c8] sm:$0xff]
  %v3717 = vld [vmem:[%s3 + $0x8d0] sm:$0xff]
  %v3718 = vld [vmem:[%s3 + $0x8d8] sm:$0xff]
  %v3719 = vld [vmem:[%s3 + $0x8e0] sm:$0xff]
  %v3720 = vld [vmem:[%s3 + $0x8e8] sm:$0xff]
  %v3721 = vld [vmem:[%s3 + $0x8f0] sm:$0xff]
  %v3722 = vld [vmem:[%s3 + $0x8f8] sm:$0xff]
  %v3723 = vld [vmem:[%s3 + $0x900] sm:$0xff]
  %v3724 = vld [vmem:[%s3 + $0x908] sm:$0xff]
  %v3725 = vld [vmem:[%s3 + $0x910] sm:$0xff]
  %v3726 = vld [vmem:[%s3 + $0x918] sm:$0xff]
  %v3727 = vld [vmem:[%s3 + $0x920] sm:$0xff]
  %v3728 = vld [vmem:[%s3 + $0x928] sm:$0xff]
  %v3729 = vld [vmem:[%s3 + $0x930] sm:$0xff]
  %v3730 = vld [vmem:[%s3 + $0x938] sm:$0xff]
  %v3731 = vld [vmem:[%s3 + $0x940] sm:$0xff]
  %v3732 = vld [vmem:[%s3 + $0x948] sm:$0xff]
  %v3733 = vld [vmem:[%s3 + $0x950] sm:$0xff]
  %v3734 = vld [vmem:[%s3 + $0x958] sm:$0xff]
  %v3735 = vld [vmem:[%s3 + $0x960] sm:$0xff]
  %v3736 = vld [vmem:[%s3 + $0x968] sm:$0xff]
  %v3737 = vld [vmem:[%s3 + $0x970] sm:$0xff]
  %v3738 = vld [vmem:[%s3 + $0x978] sm:$0xff]
  %v3739 = vld [vmem:[%s3 + $0x980] sm:$0xff]
  %v3740 = vld [vmem:[%s3 + $0x988] sm:$0xff]
  %v3741 = vld [vmem:[%s3 + $0x990] sm:$0xff]
  %v3742 = vld [vmem:[%s3 + $0x998] sm:$0xff]
  %v3743 = vld [vmem:[%s3 + $0x9a0] sm:$0xff]
  %v3744 = vld [vmem:[%s3 + $0x9a8] sm:$0xff]
  %v3745 = vld [vmem:[%s3 + $0x9b0] sm:$0xff]
  %v3746 = vld [vmem:[%s3 + $0x9b8] sm:$0xff]
  %v3747 = vld [vmem:[%s3 + $0x9c0] sm:$0xff]
  %v3748 = vld [vmem:[%s3 + $0x9c8] sm:$0xff]
  %v3749 = vld [vmem:[%s3 + $0x9d0] sm:$0xff]
  %v3750 = vld [vmem:[%s3 + $0x9d8] sm:$0xff]
  %v3751 = vld [vmem:[%s3 + $0x9e0] sm:$0xff]
  %v3752 = vld [vmem:[%s3 + $0x9e8] sm:$0xff]
  %v3753 = vld [vmem:[%s3 + $0x9f0] sm:$0xff]
  %v3754 = vld [vmem:[%s3 + $0x9f8] sm:$0xff]
  %v3755 = vld [vmem:[%s3 + $0xa00] sm:$0xff]
  %v3756 = vld [vmem:[%s3 + $0xa08] sm:$0xff]
  %v3757 = vld [vmem:[%s3 + $0xa10] sm:$0xff]
  %v3758 = vld [vmem:[%s3 + $0xa18] sm:$0xff]
  %v3759 = vld [vmem:[%s3 + $0xa20] sm:$0xff]
  %v3760 = vld [vmem:[%s3 + $0xa28] sm:$0xff]
  %v3761 = vld [vmem:[%s3 + $0xa30] sm:$0xff]
  %v3762 = vld [vmem:[%s3 + $0xa38] sm:$0xff]
  %v3763 = vld [vmem:[%s3 + $0xa40] sm:$0xff]
  %v3764 = vld [vmem:[%s3 + $0xa48] sm:$0xff]
  %v3765 = vld [vmem:[%s3 + $0xa50] sm:$0xff]
  %v3766 = vld [vmem:[%s3 + $0xa58] sm:$0xff]
  %v3767 = vld [vmem:[%s3 + $0xa60] sm:$0xff]
  %v3768 = vld [vmem:[%s3 + $0xa68] sm:$0xff]
  %v3769 = vld [vmem:[%s3 + $0xa70] sm:$0xff]
  %v3770 = vld [vmem:[%s3 + $0xa78] sm:$0xff]
  %v3771 = vld [vmem:[%s3 + $0xa80] sm:$0xff]
  %v3772 = vld [vmem:[%s3 + $0xa88] sm:$0xff]
  %v3773 = vld [vmem:[%s3 + $0xa90] sm:$0xff]
  %v3774 = vld [vmem:[%s3 + $0xa98] sm:$0xff]
  %v3775 = vld [vmem:[%s3 + $0xaa0] sm:$0xff]
  %v3776 = vld [vmem:[%s3 + $0xaa8] sm:$0xff]
  %v3777 = vld [vmem:[%s3 + $0xab0] sm:$0xff]
  %v3778 = vld [vmem:[%s3 + $0xab8] sm:$0xff]
  %v3779 = vld [vmem:[%s3 + $0xac0] sm:$0xff]
  %v3780 = vld [vmem:[%s3 + $0xac8] sm:$0xff]
  %v3781 = vld [vmem:[%s3 + $0xad0] sm:$0xff]
  %v3782 = vld [vmem:[%s3 + $0xad8] sm:$0xff]
  %v3783 = vld [vmem:[%s3 + $0xae0] sm:$0xff]
  %v3784 = vld [vmem:[%s3 + $0xae8] sm:$0xff]
  %v3785 = vld [vmem:[%s3 + $0xaf0] sm:$0xff]
  %v3786 = vld [vmem:[%s3 + $0xaf8] sm:$0xff]
  %v3787 = vld [vmem:[%s3 + $0xb00] sm:$0xff]
  %v3788 = vld [vmem:[%s3 + $0xb08] sm:$0xff]
  %v3789 = vld [vmem:[%s3 + $0xb10] sm:$0xff]
  %v3790 = vld [vmem:[%s3 + $0xb18] sm:$0xff]
  %v3791 = vld [vmem:[%s3 + $0xb20] sm:$0xff]
  %v3792 = vld [vmem:[%s3 + $0xb28] sm:$0xff]
  %v3793 = vld [vmem:[%s3 + $0xb30] sm:$0xff]
  %v3794 = vld [vmem:[%s3 + $0xb38] sm:$0xff]
  %v3795 = vld [vmem:[%s3 + $0xb40] sm:$0xff]
  %v3796 = vld [vmem:[%s3 + $0xb48] sm:$0xff]
  %v3797 = vld [vmem:[%s3 + $0xb50] sm:$0xff]
  %v3798 = vld [vmem:[%s3 + $0xb58] sm:$0xff]
  %v3799 = vld [vmem:[%s3 + $0xb60] sm:$0xff]
  %v3800 = vld [vmem:[%s3 + $0xb68] sm:$0xff]
  %v3801 = vld [vmem:[%s3 + $0xb70] sm:$0xff]
  %v3802 = vld [vmem:[%s3 + $0xb78] sm:$0xff]
  %v3803 = vld [vmem:[%s3 + $0xb80] sm:$0xff]
  %v3804 = vld [vmem:[%s3 + $0xb88] sm:$0xff]
  %v3805 = vld [vmem:[%s3 + $0xb90] sm:$0xff]
  %v3806 = vld [vmem:[%s3 + $0xb98] sm:$0xff]
  %v3807 = vld [vmem:[%s3 + $0xba0] sm:$0xff]
  %v3808 = vld [vmem:[%s3 + $0xba8] sm:$0xff]
  %v3809 = vld [vmem:[%s3 + $0xbb0] sm:$0xff]
  %v3810 = vld [vmem:[%s3 + $0xbb8] sm:$0xff]
  %v3811 = vld [vmem:[%s3 + $0xbc0] sm:$0xff]
  %v3812 = vld [vmem:[%s3 + $0xbc8] sm:$0xff]
  %v3813 = vld [vmem:[%s3 + $0xbd0] sm:$0xff]
  %v3814 = vld [vmem:[%s3 + $0xbd8] sm:$0xff]
  %v3815 = vld [vmem:[%s3 + $0xbe0] sm:$0xff]
  %v3816 = vld [vmem:[%s3 + $0xbe8] sm:$0xff]
  %v3817 = vld [vmem:[%s3 + $0xbf0] sm:$0xff]
  %v3818 = vld [vmem:[%s3 + $0xbf8] sm:$0xff]
  %v3819 = vld [vmem:[%s3 + $0xc00] sm:$0xff]
  %v3820 = vld [vmem:[%s3 + $0xc08] sm:$0xff]
  %v3821 = vld [vmem:[%s3 + $0xc10] sm:$0xff]
  %v3822 = vld [vmem:[%s3 + $0xc18] sm:$0xff]
  %v3823 = vld [vmem:[%s3 + $0xc20] sm:$0xff]
  %v3824 = vld [vmem:[%s3 + $0xc28] sm:$0xff]
  %v3825 = vld [vmem:[%s3 + $0xc30] sm:$0xff]
  %v3826 = vld [vmem:[%s3 + $0xc38] sm:$0xff]
  %v3827 = vld [vmem:[%s3 + $0xc40] sm:$0xff]
  %v3828 = vld [vmem:[%s3 + $0xc48] sm:$0xff]
  %v3829 = vld [vmem:[%s3 + $0xc50] sm:$0xff]
  %v3830 = vld [vmem:[%s3 + $0xc58] sm:$0xff]
  %v3831 = vld [vmem:[%s3 + $0xc60] sm:$0xff]
  %v3832 = vld [vmem:[%s3 + $0xc68] sm:$0xff]
  %v3833 = vld [vmem:[%s3 + $0xc70] sm:$0xff]
  %v3834 = vld [vmem:[%s3 + $0xc78] sm:$0xff]
  %v3835 = vld [vmem:[%s3 + $0xc80] sm:$0xff]
  %v3836 = vld [vmem:[%s3 + $0xc88] sm:$0xff]
  %v3837 = vld [vmem:[%s3 + $0xc90] sm:$0xff]
  %v3838 = vld [vmem:[%s3 + $0xc98] sm:$0xff]
  %v3839 = vld [vmem:[%s3 + $0xca0] sm:$0xff]
  %v3840 = vld [vmem:[%s3 + $0xca8] sm:$0xff]
  %v3841 = vld [vmem:[%s3 + $0xcb0] sm:$0xff]
  %v3842 = vld [vmem:[%s3 + $0xcb8] sm:$0xff]
  %v3843 = vld [vmem:[%s3 + $0xcc0] sm:$0xff]
  %v3844 = vld [vmem:[%s3 + $0xcc8] sm:$0xff]
  %v3845 = vld [vmem:[%s3 + $0xcd0] sm:$0xff]
  %v3846 = vld [vmem:[%s3 + $0xcd8] sm:$0xff]
  %v3847 = vld [vmem:[%s3 + $0xce0] sm:$0xff]
  %v3848 = vld [vmem:[%s3 + $0xce8] sm:$0xff]
  %v3849 = vld [vmem:[%s3 + $0xcf0] sm:$0xff]
  %v3850 = vld [vmem:[%s3 + $0xcf8] sm:$0xff]
  %v3851 = vld [vmem:[%s3 + $0xd00] sm:$0xff]
  %v3852 = vld [vmem:[%s3 + $0xd08] sm:$0xff]
  %v3853 = vld [vmem:[%s3 + $0xd10] sm:$0xff]
  %v3854 = vld [vmem:[%s3 + $0xd18] sm:$0xff]
  %v3855 = vld [vmem:[%s3 + $0xd20] sm:$0xff]
  %v3856 = vld [vmem:[%s3 + $0xd28] sm:$0xff]
  %v3857 = vld [vmem:[%s3 + $0xd30] sm:$0xff]
  %v3858 = vld [vmem:[%s3 + $0xd38] sm:$0xff]
  %v3859 = vld [vmem:[%s3 + $0xd40] sm:$0xff]
  %v3860 = vld [vmem:[%s3 + $0xd48] sm:$0xff]
  %v3861 = vld [vmem:[%s3 + $0xd50] sm:$0xff]
  %v3862 = vld [vmem:[%s3 + $0xd58] sm:$0xff]
  %v3863 = vld [vmem:[%s3 + $0xd60] sm:$0xff]
  %v3864 = vld [vmem:[%s3 + $0xd68] sm:$0xff]
  %v3865 = vld [vmem:[%s3 + $0xd70] sm:$0xff]
  %v3866 = vld [vmem:[%s3 + $0xd78] sm:$0xff]
  %v3867 = vld [vmem:[%s3 + $0xd80] sm:$0xff]
  %v3868 = vld [vmem:[%s3 + $0xd88] sm:$0xff]
  %v3869 = vld [vmem:[%s3 + $0xd90] sm:$0xff]
  %v3870 = vld [vmem:[%s3 + $0xd98] sm:$0xff]
  %v3871 = vld [vmem:[%s3 + $0xda0] sm:$0xff]
  %v3872 = vld [vmem:[%s3 + $0xda8] sm:$0xff]
  %v3873 = vld [vmem:[%s3 + $0xdb0] sm:$0xff]
  %v3874 = vld [vmem:[%s3 + $0xdb8] sm:$0xff]
  %v3875 = vld [vmem:[%s3 + $0xdc0] sm:$0xff]
  %v3876 = vld [vmem:[%s3 + $0xdc8] sm:$0xff]
  %v3877 = vld [vmem:[%s3 + $0xdd0] sm:$0xff]
  %v3878 = vld [vmem:[%s3 + $0xdd8] sm:$0xff]
  %v3879 = vld [vmem:[%s3 + $0xde0] sm:$0xff]
  %v3880 = vld [vmem:[%s3 + $0xde8] sm:$0xff]
  %v3881 = vld [vmem:[%s3 + $0xdf0] sm:$0xff]
  %v3882 = vld [vmem:[%s3 + $0xdf8] sm:$0xff]
  %v3883 = vld [vmem:[%s3 + $0xe00] sm:$0xff]
  %v3884 = vld [vmem:[%s3 + $0xe08] sm:$0xff]
  %v3885 = vld [vmem:[%s3 + $0xe10] sm:$0xff]
  %v3886 = vld [vmem:[%s3 + $0xe18] sm:$0xff]
  %v3887 = vld [vmem:[%s3 + $0xe20] sm:$0xff]
  %v3888 = vld [vmem:[%s3 + $0xe28] sm:$0xff]
  %v3889 = vld [vmem:[%s3 + $0xe30] sm:$0xff]
  %v3890 = vld [vmem:[%s3 + $0xe38] sm:$0xff]
  %v3891 = vld [vmem:[%s3 + $0xe40] sm:$0xff]
  %v3892 = vld [vmem:[%s3 + $0xe48] sm:$0xff]
  %v3893 = vld [vmem:[%s3 + $0xe50] sm:$0xff]
  %v3894 = vld [vmem:[%s3 + $0xe58] sm:$0xff]
  %v3895 = vld [vmem:[%s3 + $0xe60] sm:$0xff]
  %v3896 = vld [vmem:[%s3 + $0xe68] sm:$0xff]
  %v3897 = vld [vmem:[%s3 + $0xe70] sm:$0xff]
  %v3898 = vld [vmem:[%s3 + $0xe78] sm:$0xff]
  %v3899 = vld [vmem:[%s3 + $0xe80] sm:$0xff]
  %v3900 = vld [vmem:[%s3 + $0xe88] sm:$0xff]
  %v3901 = vld [vmem:[%s3 + $0xe90] sm:$0xff]
  %v3902 = vld [vmem:[%s3 + $0xe98] sm:$0xff]
  %v3903 = vld [vmem:[%s3 + $0xea0] sm:$0xff]
  %v3904 = vld [vmem:[%s3 + $0xea8] sm:$0xff]
  %v3905 = vld [vmem:[%s3 + $0xeb0] sm:$0xff]
  %v3906 = vld [vmem:[%s3 + $0xeb8] sm:$0xff]
  %v3907 = vld [vmem:[%s3 + $0xec0] sm:$0xff]
  %v3908 = vld [vmem:[%s3 + $0xec8] sm:$0xff]
  %v3909 = vld [vmem:[%s3 + $0xed0] sm:$0xff]
  %v3910 = vld [vmem:[%s3 + $0xed8] sm:$0xff]
  %v3911 = vld [vmem:[%s3 + $0xee0] sm:$0xff]
  %v3912 = vld [vmem:[%s3 + $0xee8] sm:$0xff]
  %v3913 = vld [vmem:[%s3 + $0xef0] sm:$0xff]
  %v3914 = vld [vmem:[%s3 + $0xef8] sm:$0xff]
  %v3915 = vld [vmem:[%s3 + $0xf00] sm:$0xff]
  %v3916 = vld [vmem:[%s3 + $0xf08] sm:$0xff]
  %v3917 = vld [vmem:[%s3 + $0xf10] sm:$0xff]
  %v3918 = vld [vmem:[%s3 + $0xf18] sm:$0xff]
  %v3919 = vld [vmem:[%s3 + $0xf20] sm:$0xff]
  %v3920 = vld [vmem:[%s3 + $0xf28] sm:$0xff]
  %v3921 = vld [vmem:[%s3 + $0xf30] sm:$0xff]
  %v3922 = vld [vmem:[%s3 + $0xf38] sm:$0xff]
  %v3923 = vld [vmem:[%s3 + $0xf40] sm:$0xff]
  %v3924 = vld [vmem:[%s3 + $0xf48] sm:$0xff]
  %v3925 = vld [vmem:[%s3 + $0xf50] sm:$0xff]
  %v3926 = vld [vmem:[%s3 + $0xf58] sm:$0xff]
  %v3927 = vld [vmem:[%s3 + $0xf60] sm:$0xff]
  %v3928 = vld [vmem:[%s3 + $0xf68] sm:$0xff]
  %v3929 = vld [vmem:[%s3 + $0xf70] sm:$0xff]
  %v3930 = vld [vmem:[%s3 + $0xf78] sm:$0xff]
  %v3931 = vld [vmem:[%s3 + $0xf80] sm:$0xff]
  %v3932 = vld [vmem:[%s3 + $0xf88] sm:$0xff]
  %v3933 = vld [vmem:[%s3 + $0xf90] sm:$0xff]
  %v3934 = vld [vmem:[%s3 + $0xf98] sm:$0xff]
  %v3935 = vld [vmem:[%s3 + $0xfa0] sm:$0xff]
  %v3936 = vld [vmem:[%s3 + $0xfa8] sm:$0xff]
  %v3937 = vld [vmem:[%s3 + $0xfb0] sm:$0xff]
  %v3938 = vld [vmem:[%s3 + $0xfb8] sm:$0xff]
  %v3939 = vld [vmem:[%s3 + $0xfc0] sm:$0xff]
  %v3940 = vld [vmem:[%s3 + $0xfc8] sm:$0xff]
  %v3941 = vld [vmem:[%s3 + $0xfd0] sm:$0xff]
  %v3942 = vld [vmem:[%s3 + $0xfd8] sm:$0xff]
  %v3943 = vld [vmem:[%s3 + $0xfe0] sm:$0xff]
  %v3944 = vld [vmem:[%s3 + $0xfe8] sm:$0xff]
  %v3945 = vld [vmem:[%s3 + $0xff0] sm:$0xff]
  %v3946 = vld [vmem:[%s3 + $0xff8] sm:$0xff]
  %v3947 = vld [vmem:[%s4] sm:$0xf]
  %v3949 = vlaneseq
  %v3950 = vshrl.u32 %v3949, 7
  %v3951 = vsub.s32 0, %v3950
  %v3952 = vrot.slane %v3947, %v3951
  %v3953 = vlaneseq
  %v3954 = vshrl.u32 %v3953, 7
  %v3955 = vsub.s32 1, %v3954
  %v3956 = vrot.slane %v3947, %v3955
  %v3957 = vlaneseq
  %v3958 = vshrl.u32 %v3957, 7
  %v3959 = vsub.s32 2, %v3958
  %v3960 = vrot.slane %v3947, %v3959
  %v3961 = vlaneseq
  %v3962 = vshrl.u32 %v3961, 7
  %v3963 = vsub.s32 3, %v3962
  %v3964 = vrot.slane %v3947, %v3963
  %v4481 = vunpack.c.l.b16 %v3435
  %v4482 = vunpack.c.h.b16 %v3435
  %v4483 = vunpack.c.l.b16 %v3436
  %v4484 = vunpack.c.h.b16 %v3436
  %v4485 = vunpack.c.l.b16 %v3437
  %v4486 = vunpack.c.h.b16 %v3437
  %v4487 = vunpack.c.l.b16 %v3438
  %v4488 = vunpack.c.h.b16 %v3438
  %v4489 = vunpack.c.l.b16 %v3439
  %v4490 = vunpack.c.h.b16 %v3439
  %v4491 = vunpack.c.l.b16 %v3440
  %v4492 = vunpack.c.h.b16 %v3440
  %v4493 = vunpack.c.l.b16 %v3441
  %v4494 = vunpack.c.h.b16 %v3441
  %v4495 = vunpack.c.l.b16 %v3442
  %v4496 = vunpack.c.h.b16 %v3442
  %v4497 = vunpack.c.l.b16 %v3443
  %v4498 = vunpack.c.h.b16 %v3443
  %v4499 = vunpack.c.l.b16 %v3444
  %v4500 = vunpack.c.h.b16 %v3444
  %v4501 = vunpack.c.l.b16 %v3445
  %v4502 = vunpack.c.h.b16 %v3445
  %v4503 = vunpack.c.l.b16 %v3446
  %v4504 = vunpack.c.h.b16 %v3446
  %v4505 = vunpack.c.l.b16 %v3447
  %v4506 = vunpack.c.h.b16 %v3447
  %v4507 = vunpack.c.l.b16 %v3448
  %v4508 = vunpack.c.h.b16 %v3448
  %v4509 = vunpack.c.l.b16 %v3449
  %v4510 = vunpack.c.h.b16 %v3449
  %v4511 = vunpack.c.l.b16 %v3450
  %v4512 = vunpack.c.h.b16 %v3450
  %v4513 = vunpack.c.l.b16 %v3451
  %v4514 = vunpack.c.h.b16 %v3451
  %v4515 = vunpack.c.l.b16 %v3452
  %v4516 = vunpack.c.h.b16 %v3452
  %v4517 = vunpack.c.l.b16 %v3453
  %v4518 = vunpack.c.h.b16 %v3453
  %v4519 = vunpack.c.l.b16 %v3454
  %v4520 = vunpack.c.h.b16 %v3454
  %v4521 = vunpack.c.l.b16 %v3455
  %v4522 = vunpack.c.h.b16 %v3455
  %v4523 = vunpack.c.l.b16 %v3456
  %v4524 = vunpack.c.h.b16 %v3456
  %v4525 = vunpack.c.l.b16 %v3457
  %v4526 = vunpack.c.h.b16 %v3457
  %v4527 = vunpack.c.l.b16 %v3458
  %v4528 = vunpack.c.h.b16 %v3458
  %v4529 = vunpack.c.l.b16 %v3459
  %v4530 = vunpack.c.h.b16 %v3459
  %v4531 = vunpack.c.l.b16 %v3460
  %v4532 = vunpack.c.h.b16 %v3460
  %v4533 = vunpack.c.l.b16 %v3461
  %v4534 = vunpack.c.h.b16 %v3461
  %v4535 = vunpack.c.l.b16 %v3462
  %v4536 = vunpack.c.h.b16 %v3462
  %v4537 = vunpack.c.l.b16 %v3463
  %v4538 = vunpack.c.h.b16 %v3463
  %v4539 = vunpack.c.l.b16 %v3464
  %v4540 = vunpack.c.h.b16 %v3464
  %v4541 = vunpack.c.l.b16 %v3465
  %v4542 = vunpack.c.h.b16 %v3465
  %v4543 = vunpack.c.l.b16 %v3466
  %v4544 = vunpack.c.h.b16 %v3466
  %v4545 = vunpack.c.l.b16 %v3467
  %v4546 = vunpack.c.h.b16 %v3467
  %v4547 = vunpack.c.l.b16 %v3468
  %v4548 = vunpack.c.h.b16 %v3468
  %v4549 = vunpack.c.l.b16 %v3469
  %v4550 = vunpack.c.h.b16 %v3469
  %v4551 = vunpack.c.l.b16 %v3470
  %v4552 = vunpack.c.h.b16 %v3470
  %v4553 = vunpack.c.l.b16 %v3471
  %v4554 = vunpack.c.h.b16 %v3471
  %v4555 = vunpack.c.l.b16 %v3472
  %v4556 = vunpack.c.h.b16 %v3472
  %v4557 = vunpack.c.l.b16 %v3473
  %v4558 = vunpack.c.h.b16 %v3473
  %v4559 = vunpack.c.l.b16 %v3474
  %v4560 = vunpack.c.h.b16 %v3474
  %v4561 = vunpack.c.l.b16 %v3475
  %v4562 = vunpack.c.h.b16 %v3475
  %v4563 = vunpack.c.l.b16 %v3476
  %v4564 = vunpack.c.h.b16 %v3476
  %v4565 = vunpack.c.l.b16 %v3477
  %v4566 = vunpack.c.h.b16 %v3477
  %v4567 = vunpack.c.l.b16 %v3478
  %v4568 = vunpack.c.h.b16 %v3478
  %v4569 = vunpack.c.l.b16 %v3479
  %v4570 = vunpack.c.h.b16 %v3479
  %v4571 = vunpack.c.l.b16 %v3480
  %v4572 = vunpack.c.h.b16 %v3480
  %v4573 = vunpack.c.l.b16 %v3481
  %v4574 = vunpack.c.h.b16 %v3481
  %v4575 = vunpack.c.l.b16 %v3482
  %v4576 = vunpack.c.h.b16 %v3482
  %v4577 = vunpack.c.l.b16 %v3483
  %v4578 = vunpack.c.h.b16 %v3483
  %v4579 = vunpack.c.l.b16 %v3484
  %v4580 = vunpack.c.h.b16 %v3484
  %v4581 = vunpack.c.l.b16 %v3485
  %v4582 = vunpack.c.h.b16 %v3485
  %v4583 = vunpack.c.l.b16 %v3486
  %v4584 = vunpack.c.h.b16 %v3486
  %v4585 = vunpack.c.l.b16 %v3487
  %v4586 = vunpack.c.h.b16 %v3487
  %v4587 = vunpack.c.l.b16 %v3488
  %v4588 = vunpack.c.h.b16 %v3488
  %v4589 = vunpack.c.l.b16 %v3489
  %v4590 = vunpack.c.h.b16 %v3489
  %v4591 = vunpack.c.l.b16 %v3490
  %v4592 = vunpack.c.h.b16 %v3490
  %v4593 = vunpack.c.l.b16 %v3491
  %v4594 = vunpack.c.h.b16 %v3491
  %v4595 = vunpack.c.l.b16 %v3492
  %v4596 = vunpack.c.h.b16 %v3492
  %v4597 = vunpack.c.l.b16 %v3493
  %v4598 = vunpack.c.h.b16 %v3493
  %v4599 = vunpack.c.l.b16 %v3494
  %v4600 = vunpack.c.h.b16 %v3494
  %v4601 = vunpack.c.l.b16 %v3495
  %v4602 = vunpack.c.h.b16 %v3495
  %v4603 = vunpack.c.l.b16 %v3496
  %v4604 = vunpack.c.h.b16 %v3496
  %v4605 = vunpack.c.l.b16 %v3497
  %v4606 = vunpack.c.h.b16 %v3497
  %v4607 = vunpack.c.l.b16 %v3498
  %v4608 = vunpack.c.h.b16 %v3498
  %v4609 = vunpack.c.l.b16 %v3499
  %v4610 = vunpack.c.h.b16 %v3499
  %v4611 = vunpack.c.l.b16 %v3500
  %v4612 = vunpack.c.h.b16 %v3500
  %v4613 = vunpack.c.l.b16 %v3501
  %v4614 = vunpack.c.h.b16 %v3501
  %v4615 = vunpack.c.l.b16 %v3502
  %v4616 = vunpack.c.h.b16 %v3502
  %v4617 = vunpack.c.l.b16 %v3503
  %v4618 = vunpack.c.h.b16 %v3503
  %v4619 = vunpack.c.l.b16 %v3504
  %v4620 = vunpack.c.h.b16 %v3504
  %v4621 = vunpack.c.l.b16 %v3505
  %v4622 = vunpack.c.h.b16 %v3505
  %v4623 = vunpack.c.l.b16 %v3506
  %v4624 = vunpack.c.h.b16 %v3506
  %v4625 = vunpack.c.l.b16 %v3507
  %v4626 = vunpack.c.h.b16 %v3507
  %v4627 = vunpack.c.l.b16 %v3508
  %v4628 = vunpack.c.h.b16 %v3508
  %v4629 = vunpack.c.l.b16 %v3509
  %v4630 = vunpack.c.h.b16 %v3509
  %v4631 = vunpack.c.l.b16 %v3510
  %v4632 = vunpack.c.h.b16 %v3510
  %v4633 = vunpack.c.l.b16 %v3511
  %v4634 = vunpack.c.h.b16 %v3511
  %v4635 = vunpack.c.l.b16 %v3512
  %v4636 = vunpack.c.h.b16 %v3512
  %v4637 = vunpack.c.l.b16 %v3513
  %v4638 = vunpack.c.h.b16 %v3513
  %v4639 = vunpack.c.l.b16 %v3514
  %v4640 = vunpack.c.h.b16 %v3514
  %v4641 = vunpack.c.l.b16 %v3515
  %v4642 = vunpack.c.h.b16 %v3515
  %v4643 = vunpack.c.l.b16 %v3516
  %v4644 = vunpack.c.h.b16 %v3516
  %v4645 = vunpack.c.l.b16 %v3517
  %v4646 = vunpack.c.h.b16 %v3517
  %v4647 = vunpack.c.l.b16 %v3518
  %v4648 = vunpack.c.h.b16 %v3518
  %v4649 = vunpack.c.l.b16 %v3519
  %v4650 = vunpack.c.h.b16 %v3519
  %v4651 = vunpack.c.l.b16 %v3520
  %v4652 = vunpack.c.h.b16 %v3520
  %v4653 = vunpack.c.l.b16 %v3521
  %v4654 = vunpack.c.h.b16 %v3521
  %v4655 = vunpack.c.l.b16 %v3522
  %v4656 = vunpack.c.h.b16 %v3522
  %v4657 = vunpack.c.l.b16 %v3523
  %v4658 = vunpack.c.h.b16 %v3523
  %v4659 = vunpack.c.l.b16 %v3524
  %v4660 = vunpack.c.h.b16 %v3524
  %v4661 = vunpack.c.l.b16 %v3525
  %v4662 = vunpack.c.h.b16 %v3525
  %v4663 = vunpack.c.l.b16 %v3526
  %v4664 = vunpack.c.h.b16 %v3526
  %v4665 = vunpack.c.l.b16 %v3527
  %v4666 = vunpack.c.h.b16 %v3527
  %v4667 = vunpack.c.l.b16 %v3528
  %v4668 = vunpack.c.h.b16 %v3528
  %v4669 = vunpack.c.l.b16 %v3529
  %v4670 = vunpack.c.h.b16 %v3529
  %v4671 = vunpack.c.l.b16 %v3530
  %v4672 = vunpack.c.h.b16 %v3530
  %v4673 = vunpack.c.l.b16 %v3531
  %v4674 = vunpack.c.h.b16 %v3531
  %v4675 = vunpack.c.l.b16 %v3532
  %v4676 = vunpack.c.h.b16 %v3532
  %v4677 = vunpack.c.l.b16 %v3533
  %v4678 = vunpack.c.h.b16 %v3533
  %v4679 = vunpack.c.l.b16 %v3534
  %v4680 = vunpack.c.h.b16 %v3534
  %v4681 = vunpack.c.l.b16 %v3535
  %v4682 = vunpack.c.h.b16 %v3535
  %v4683 = vunpack.c.l.b16 %v3536
  %v4684 = vunpack.c.h.b16 %v3536
  %v4685 = vunpack.c.l.b16 %v3537
  %v4686 = vunpack.c.h.b16 %v3537
  %v4687 = vunpack.c.l.b16 %v3538
  %v4688 = vunpack.c.h.b16 %v3538
  %v4689 = vunpack.c.l.b16 %v3539
  %v4690 = vunpack.c.h.b16 %v3539
  %v4691 = vunpack.c.l.b16 %v3540
  %v4692 = vunpack.c.h.b16 %v3540
  %v4693 = vunpack.c.l.b16 %v3541
  %v4694 = vunpack.c.h.b16 %v3541
  %v4695 = vunpack.c.l.b16 %v3542
  %v4696 = vunpack.c.h.b16 %v3542
  %v4697 = vunpack.c.l.b16 %v3543
  %v4698 = vunpack.c.h.b16 %v3543
  %v4699 = vunpack.c.l.b16 %v3544
  %v4700 = vunpack.c.h.b16 %v3544
  %v4701 = vunpack.c.l.b16 %v3545
  %v4702 = vunpack.c.h.b16 %v3545
  %v4703 = vunpack.c.l.b16 %v3546
  %v4704 = vunpack.c.h.b16 %v3546
  %v4705 = vunpack.c.l.b16 %v3547
  %v4706 = vunpack.c.h.b16 %v3547
  %v4707 = vunpack.c.l.b16 %v3548
  %v4708 = vunpack.c.h.b16 %v3548
  %v4709 = vunpack.c.l.b16 %v3549
  %v4710 = vunpack.c.h.b16 %v3549
  %v4711 = vunpack.c.l.b16 %v3550
  %v4712 = vunpack.c.h.b16 %v3550
  %v4713 = vunpack.c.l.b16 %v3551
  %v4714 = vunpack.c.h.b16 %v3551
  %v4715 = vunpack.c.l.b16 %v3552
  %v4716 = vunpack.c.h.b16 %v3552
  %v4717 = vunpack.c.l.b16 %v3553
  %v4718 = vunpack.c.h.b16 %v3553
  %v4719 = vunpack.c.l.b16 %v3554
  %v4720 = vunpack.c.h.b16 %v3554
  %v4721 = vunpack.c.l.b16 %v3555
  %v4722 = vunpack.c.h.b16 %v3555
  %v4723 = vunpack.c.l.b16 %v3556
  %v4724 = vunpack.c.h.b16 %v3556
  %v4725 = vunpack.c.l.b16 %v3557
  %v4726 = vunpack.c.h.b16 %v3557
  %v4727 = vunpack.c.l.b16 %v3558
  %v4728 = vunpack.c.h.b16 %v3558
  %v4729 = vunpack.c.l.b16 %v3559
  %v4730 = vunpack.c.h.b16 %v3559
  %v4731 = vunpack.c.l.b16 %v3560
  %v4732 = vunpack.c.h.b16 %v3560
  %v4733 = vunpack.c.l.b16 %v3561
  %v4734 = vunpack.c.h.b16 %v3561
  %v4735 = vunpack.c.l.b16 %v3562
  %v4736 = vunpack.c.h.b16 %v3562
  %v4737 = vunpack.c.l.b16 %v3563
  %v4738 = vunpack.c.h.b16 %v3563
  %v4739 = vunpack.c.l.b16 %v3564
  %v4740 = vunpack.c.h.b16 %v3564
  %v4741 = vunpack.c.l.b16 %v3565
  %v4742 = vunpack.c.h.b16 %v3565
  %v4743 = vunpack.c.l.b16 %v3566
  %v4744 = vunpack.c.h.b16 %v3566
  %v4745 = vunpack.c.l.b16 %v3567
  %v4746 = vunpack.c.h.b16 %v3567
  %v4747 = vunpack.c.l.b16 %v3568
  %v4748 = vunpack.c.h.b16 %v3568
  %v4749 = vunpack.c.l.b16 %v3569
  %v4750 = vunpack.c.h.b16 %v3569
  %v4751 = vunpack.c.l.b16 %v3570
  %v4752 = vunpack.c.h.b16 %v3570
  %v4753 = vunpack.c.l.b16 %v3571
  %v4754 = vunpack.c.h.b16 %v3571
  %v4755 = vunpack.c.l.b16 %v3572
  %v4756 = vunpack.c.h.b16 %v3572
  %v4757 = vunpack.c.l.b16 %v3573
  %v4758 = vunpack.c.h.b16 %v3573
  %v4759 = vunpack.c.l.b16 %v3574
  %v4760 = vunpack.c.h.b16 %v3574
  %v4761 = vunpack.c.l.b16 %v3575
  %v4762 = vunpack.c.h.b16 %v3575
  %v4763 = vunpack.c.l.b16 %v3576
  %v4764 = vunpack.c.h.b16 %v3576
  %v4765 = vunpack.c.l.b16 %v3577
  %v4766 = vunpack.c.h.b16 %v3577
  %v4767 = vunpack.c.l.b16 %v3578
  %v4768 = vunpack.c.h.b16 %v3578
  %v4769 = vunpack.c.l.b16 %v3579
  %v4770 = vunpack.c.h.b16 %v3579
  %v4771 = vunpack.c.l.b16 %v3580
  %v4772 = vunpack.c.h.b16 %v3580
  %v4773 = vunpack.c.l.b16 %v3581
  %v4774 = vunpack.c.h.b16 %v3581
  %v4775 = vunpack.c.l.b16 %v3582
  %v4776 = vunpack.c.h.b16 %v3582
  %v4777 = vunpack.c.l.b16 %v3583
  %v4778 = vunpack.c.h.b16 %v3583
  %v4779 = vunpack.c.l.b16 %v3584
  %v4780 = vunpack.c.h.b16 %v3584
  %v4781 = vunpack.c.l.b16 %v3585
  %v4782 = vunpack.c.h.b16 %v3585
  %v4783 = vunpack.c.l.b16 %v3586
  %v4784 = vunpack.c.h.b16 %v3586
  %v4785 = vunpack.c.l.b16 %v3587
  %v4786 = vunpack.c.h.b16 %v3587
  %v4787 = vunpack.c.l.b16 %v3588
  %v4788 = vunpack.c.h.b16 %v3588
  %v4789 = vunpack.c.l.b16 %v3589
  %v4790 = vunpack.c.h.b16 %v3589
  %v4791 = vunpack.c.l.b16 %v3590
  %v4792 = vunpack.c.h.b16 %v3590
  %v4793 = vunpack.c.l.b16 %v3591
  %v4794 = vunpack.c.h.b16 %v3591
  %v4795 = vunpack.c.l.b16 %v3592
  %v4796 = vunpack.c.h.b16 %v3592
  %v4797 = vunpack.c.l.b16 %v3593
  %v4798 = vunpack.c.h.b16 %v3593
  %v4799 = vunpack.c.l.b16 %v3594
  %v4800 = vunpack.c.h.b16 %v3594
  %v4801 = vunpack.c.l.b16 %v3595
  %v4802 = vunpack.c.h.b16 %v3595
  %v4803 = vunpack.c.l.b16 %v3596
  %v4804 = vunpack.c.h.b16 %v3596
  %v4805 = vunpack.c.l.b16 %v3597
  %v4806 = vunpack.c.h.b16 %v3597
  %v4807 = vunpack.c.l.b16 %v3598
  %v4808 = vunpack.c.h.b16 %v3598
  %v4809 = vunpack.c.l.b16 %v3599
  %v4810 = vunpack.c.h.b16 %v3599
  %v4811 = vunpack.c.l.b16 %v3600
  %v4812 = vunpack.c.h.b16 %v3600
  %v4813 = vunpack.c.l.b16 %v3601
  %v4814 = vunpack.c.h.b16 %v3601
  %v4815 = vunpack.c.l.b16 %v3602
  %v4816 = vunpack.c.h.b16 %v3602
  %v4817 = vunpack.c.l.b16 %v3603
  %v4818 = vunpack.c.h.b16 %v3603
  %v4819 = vunpack.c.l.b16 %v3604
  %v4820 = vunpack.c.h.b16 %v3604
  %v4821 = vunpack.c.l.b16 %v3605
  %v4822 = vunpack.c.h.b16 %v3605
  %v4823 = vunpack.c.l.b16 %v3606
  %v4824 = vunpack.c.h.b16 %v3606
  %v4825 = vunpack.c.l.b16 %v3607
  %v4826 = vunpack.c.h.b16 %v3607
  %v4827 = vunpack.c.l.b16 %v3608
  %v4828 = vunpack.c.h.b16 %v3608
  %v4829 = vunpack.c.l.b16 %v3609
  %v4830 = vunpack.c.h.b16 %v3609
  %v4831 = vunpack.c.l.b16 %v3610
  %v4832 = vunpack.c.h.b16 %v3610
  %v4833 = vunpack.c.l.b16 %v3611
  %v4834 = vunpack.c.h.b16 %v3611
  %v4835 = vunpack.c.l.b16 %v3612
  %v4836 = vunpack.c.h.b16 %v3612
  %v4837 = vunpack.c.l.b16 %v3613
  %v4838 = vunpack.c.h.b16 %v3613
  %v4839 = vunpack.c.l.b16 %v3614
  %v4840 = vunpack.c.h.b16 %v3614
  %v4841 = vunpack.c.l.b16 %v3615
  %v4842 = vunpack.c.h.b16 %v3615
  %v4843 = vunpack.c.l.b16 %v3616
  %v4844 = vunpack.c.h.b16 %v3616
  %v4845 = vunpack.c.l.b16 %v3617
  %v4846 = vunpack.c.h.b16 %v3617
  %v4847 = vunpack.c.l.b16 %v3618
  %v4848 = vunpack.c.h.b16 %v3618
  %v4849 = vunpack.c.l.b16 %v3619
  %v4850 = vunpack.c.h.b16 %v3619
  %v4851 = vunpack.c.l.b16 %v3620
  %v4852 = vunpack.c.h.b16 %v3620
  %v4853 = vunpack.c.l.b16 %v3621
  %v4854 = vunpack.c.h.b16 %v3621
  %v4855 = vunpack.c.l.b16 %v3622
  %v4856 = vunpack.c.h.b16 %v3622
  %v4857 = vunpack.c.l.b16 %v3623
  %v4858 = vunpack.c.h.b16 %v3623
  %v4859 = vunpack.c.l.b16 %v3624
  %v4860 = vunpack.c.h.b16 %v3624
  %v4861 = vunpack.c.l.b16 %v3625
  %v4862 = vunpack.c.h.b16 %v3625
  %v4863 = vunpack.c.l.b16 %v3626
  %v4864 = vunpack.c.h.b16 %v3626
  %v4865 = vunpack.c.l.b16 %v3627
  %v4866 = vunpack.c.h.b16 %v3627
  %v4867 = vunpack.c.l.b16 %v3628
  %v4868 = vunpack.c.h.b16 %v3628
  %v4869 = vunpack.c.l.b16 %v3629
  %v4870 = vunpack.c.h.b16 %v3629
  %v4871 = vunpack.c.l.b16 %v3630
  %v4872 = vunpack.c.h.b16 %v3630
  %v4873 = vunpack.c.l.b16 %v3631
  %v4874 = vunpack.c.h.b16 %v3631
  %v4875 = vunpack.c.l.b16 %v3632
  %v4876 = vunpack.c.h.b16 %v3632
  %v4877 = vunpack.c.l.b16 %v3633
  %v4878 = vunpack.c.h.b16 %v3633
  %v4879 = vunpack.c.l.b16 %v3634
  %v4880 = vunpack.c.h.b16 %v3634
  %v4881 = vunpack.c.l.b16 %v3635
  %v4882 = vunpack.c.h.b16 %v3635
  %v4883 = vunpack.c.l.b16 %v3636
  %v4884 = vunpack.c.h.b16 %v3636
  %v4885 = vunpack.c.l.b16 %v3637
  %v4886 = vunpack.c.h.b16 %v3637
  %v4887 = vunpack.c.l.b16 %v3638
  %v4888 = vunpack.c.h.b16 %v3638
  %v4889 = vunpack.c.l.b16 %v3639
  %v4890 = vunpack.c.h.b16 %v3639
  %v4891 = vunpack.c.l.b16 %v3640
  %v4892 = vunpack.c.h.b16 %v3640
  %v4893 = vunpack.c.l.b16 %v3641
  %v4894 = vunpack.c.h.b16 %v3641
  %v4895 = vunpack.c.l.b16 %v3642
  %v4896 = vunpack.c.h.b16 %v3642
  %v4897 = vunpack.c.l.b16 %v3643
  %v4898 = vunpack.c.h.b16 %v3643
  %v4899 = vunpack.c.l.b16 %v3644
  %v4900 = vunpack.c.h.b16 %v3644
  %v4901 = vunpack.c.l.b16 %v3645
  %v4902 = vunpack.c.h.b16 %v3645
  %v4903 = vunpack.c.l.b16 %v3646
  %v4904 = vunpack.c.h.b16 %v3646
  %v4905 = vunpack.c.l.b16 %v3647
  %v4906 = vunpack.c.h.b16 %v3647
  %v4907 = vunpack.c.l.b16 %v3648
  %v4908 = vunpack.c.h.b16 %v3648
  %v4909 = vunpack.c.l.b16 %v3649
  %v4910 = vunpack.c.h.b16 %v3649
  %v4911 = vunpack.c.l.b16 %v3650
  %v4912 = vunpack.c.h.b16 %v3650
  %v4913 = vunpack.c.l.b16 %v3651
  %v4914 = vunpack.c.h.b16 %v3651
  %v4915 = vunpack.c.l.b16 %v3652
  %v4916 = vunpack.c.h.b16 %v3652
  %v4917 = vunpack.c.l.b16 %v3653
  %v4918 = vunpack.c.h.b16 %v3653
  %v4919 = vunpack.c.l.b16 %v3654
  %v4920 = vunpack.c.h.b16 %v3654
  %v4921 = vunpack.c.l.b16 %v3655
  %v4922 = vunpack.c.h.b16 %v3655
  %v4923 = vunpack.c.l.b16 %v3656
  %v4924 = vunpack.c.h.b16 %v3656
  %v4925 = vunpack.c.l.b16 %v3657
  %v4926 = vunpack.c.h.b16 %v3657
  %v4927 = vunpack.c.l.b16 %v3658
  %v4928 = vunpack.c.h.b16 %v3658
  %v4929 = vunpack.c.l.b16 %v3659
  %v4930 = vunpack.c.h.b16 %v3659
  %v4931 = vunpack.c.l.b16 %v3660
  %v4932 = vunpack.c.h.b16 %v3660
  %v4933 = vunpack.c.l.b16 %v3661
  %v4934 = vunpack.c.h.b16 %v3661
  %v4935 = vunpack.c.l.b16 %v3662
  %v4936 = vunpack.c.h.b16 %v3662
  %v4937 = vunpack.c.l.b16 %v3663
  %v4938 = vunpack.c.h.b16 %v3663
  %v4939 = vunpack.c.l.b16 %v3664
  %v4940 = vunpack.c.h.b16 %v3664
  %v4941 = vunpack.c.l.b16 %v3665
  %v4942 = vunpack.c.h.b16 %v3665
  %v4943 = vunpack.c.l.b16 %v3666
  %v4944 = vunpack.c.h.b16 %v3666
  %v4945 = vunpack.c.l.b16 %v3667
  %v4946 = vunpack.c.h.b16 %v3667
  %v4947 = vunpack.c.l.b16 %v3668
  %v4948 = vunpack.c.h.b16 %v3668
  %v4949 = vunpack.c.l.b16 %v3669
  %v4950 = vunpack.c.h.b16 %v3669
  %v4951 = vunpack.c.l.b16 %v3670
  %v4952 = vunpack.c.h.b16 %v3670
  %v4953 = vunpack.c.l.b16 %v3671
  %v4954 = vunpack.c.h.b16 %v3671
  %v4955 = vunpack.c.l.b16 %v3672
  %v4956 = vunpack.c.h.b16 %v3672
  %v4957 = vunpack.c.l.b16 %v3673
  %v4958 = vunpack.c.h.b16 %v3673
  %v4959 = vunpack.c.l.b16 %v3674
  %v4960 = vunpack.c.h.b16 %v3674
  %v4961 = vunpack.c.l.b16 %v3675
  %v4962 = vunpack.c.h.b16 %v3675
  %v4963 = vunpack.c.l.b16 %v3676
  %v4964 = vunpack.c.h.b16 %v3676
  %v4965 = vunpack.c.l.b16 %v3677
  %v4966 = vunpack.c.h.b16 %v3677
  %v4967 = vunpack.c.l.b16 %v3678
  %v4968 = vunpack.c.h.b16 %v3678
  %v4969 = vunpack.c.l.b16 %v3679
  %v4970 = vunpack.c.h.b16 %v3679
  %v4971 = vunpack.c.l.b16 %v3680
  %v4972 = vunpack.c.h.b16 %v3680
  %v4973 = vunpack.c.l.b16 %v3681
  %v4974 = vunpack.c.h.b16 %v3681
  %v4975 = vunpack.c.l.b16 %v3682
  %v4976 = vunpack.c.h.b16 %v3682
  %v4977 = vunpack.c.l.b16 %v3683
  %v4978 = vunpack.c.h.b16 %v3683
  %v4979 = vunpack.c.l.b16 %v3684
  %v4980 = vunpack.c.h.b16 %v3684
  %v4981 = vunpack.c.l.b16 %v3685
  %v4982 = vunpack.c.h.b16 %v3685
  %v4983 = vunpack.c.l.b16 %v3686
  %v4984 = vunpack.c.h.b16 %v3686
  %v4985 = vunpack.c.l.b16 %v3687
  %v4986 = vunpack.c.h.b16 %v3687
  %v4987 = vunpack.c.l.b16 %v3688
  %v4988 = vunpack.c.h.b16 %v3688
  %v4989 = vunpack.c.l.b16 %v3689
  %v4990 = vunpack.c.h.b16 %v3689
  %v4991 = vunpack.c.l.b16 %v3690
  %v4992 = vunpack.c.h.b16 %v3690
  %v4993 = vunpack.c.l.b16 %v3691
  %v4994 = vunpack.c.h.b16 %v3691
  %v4995 = vunpack.c.l.b16 %v3692
  %v4996 = vunpack.c.h.b16 %v3692
  %v4997 = vunpack.c.l.b16 %v3693
  %v4998 = vunpack.c.h.b16 %v3693
  %v4999 = vunpack.c.l.b16 %v3694
  %v5000 = vunpack.c.h.b16 %v3694
  %v5001 = vunpack.c.l.b16 %v3695
  %v5002 = vunpack.c.h.b16 %v3695
  %v5003 = vunpack.c.l.b16 %v3696
  %v5004 = vunpack.c.h.b16 %v3696
  %v5005 = vunpack.c.l.b16 %v3697
  %v5006 = vunpack.c.h.b16 %v3697
  %v5007 = vunpack.c.l.b16 %v3698
  %v5008 = vunpack.c.h.b16 %v3698
  %v5009 = vunpack.c.l.b16 %v3699
  %v5010 = vunpack.c.h.b16 %v3699
  %v5011 = vunpack.c.l.b16 %v3700
  %v5012 = vunpack.c.h.b16 %v3700
  %v5013 = vunpack.c.l.b16 %v3701
  %v5014 = vunpack.c.h.b16 %v3701
  %v5015 = vunpack.c.l.b16 %v3702
  %v5016 = vunpack.c.h.b16 %v3702
  %v5017 = vunpack.c.l.b16 %v3703
  %v5018 = vunpack.c.h.b16 %v3703
  %v5019 = vunpack.c.l.b16 %v3704
  %v5020 = vunpack.c.h.b16 %v3704
  %v5021 = vunpack.c.l.b16 %v3705
  %v5022 = vunpack.c.h.b16 %v3705
  %v5023 = vunpack.c.l.b16 %v3706
  %v5024 = vunpack.c.h.b16 %v3706
  %v5025 = vunpack.c.l.b16 %v3707
  %v5026 = vunpack.c.h.b16 %v3707
  %v5027 = vunpack.c.l.b16 %v3708
  %v5028 = vunpack.c.h.b16 %v3708
  %v5029 = vunpack.c.l.b16 %v3709
  %v5030 = vunpack.c.h.b16 %v3709
  %v5031 = vunpack.c.l.b16 %v3710
  %v5032 = vunpack.c.h.b16 %v3710
  %v5033 = vunpack.c.l.b16 %v3711
  %v5034 = vunpack.c.h.b16 %v3711
  %v5035 = vunpack.c.l.b16 %v3712
  %v5036 = vunpack.c.h.b16 %v3712
  %v5037 = vunpack.c.l.b16 %v3713
  %v5038 = vunpack.c.h.b16 %v3713
  %v5039 = vunpack.c.l.b16 %v3714
  %v5040 = vunpack.c.h.b16 %v3714
  %v5041 = vunpack.c.l.b16 %v3715
  %v5042 = vunpack.c.h.b16 %v3715
  %v5043 = vunpack.c.l.b16 %v3716
  %v5044 = vunpack.c.h.b16 %v3716
  %v5045 = vunpack.c.l.b16 %v3717
  %v5046 = vunpack.c.h.b16 %v3717
  %v5047 = vunpack.c.l.b16 %v3718
  %v5048 = vunpack.c.h.b16 %v3718
  %v5049 = vunpack.c.l.b16 %v3719
  %v5050 = vunpack.c.h.b16 %v3719
  %v5051 = vunpack.c.l.b16 %v3720
  %v5052 = vunpack.c.h.b16 %v3720
  %v5053 = vunpack.c.l.b16 %v3721
  %v5054 = vunpack.c.h.b16 %v3721
  %v5055 = vunpack.c.l.b16 %v3722
  %v5056 = vunpack.c.h.b16 %v3722
  %v5057 = vunpack.c.l.b16 %v3723
  %v5058 = vunpack.c.h.b16 %v3723
  %v5059 = vunpack.c.l.b16 %v3724
  %v5060 = vunpack.c.h.b16 %v3724
  %v5061 = vunpack.c.l.b16 %v3725
  %v5062 = vunpack.c.h.b16 %v3725
  %v5063 = vunpack.c.l.b16 %v3726
  %v5064 = vunpack.c.h.b16 %v3726
  %v5065 = vunpack.c.l.b16 %v3727
  %v5066 = vunpack.c.h.b16 %v3727
  %v5067 = vunpack.c.l.b16 %v3728
  %v5068 = vunpack.c.h.b16 %v3728
  %v5069 = vunpack.c.l.b16 %v3729
  %v5070 = vunpack.c.h.b16 %v3729
  %v5071 = vunpack.c.l.b16 %v3730
  %v5072 = vunpack.c.h.b16 %v3730
  %v5073 = vunpack.c.l.b16 %v3731
  %v5074 = vunpack.c.h.b16 %v3731
  %v5075 = vunpack.c.l.b16 %v3732
  %v5076 = vunpack.c.h.b16 %v3732
  %v5077 = vunpack.c.l.b16 %v3733
  %v5078 = vunpack.c.h.b16 %v3733
  %v5079 = vunpack.c.l.b16 %v3734
  %v5080 = vunpack.c.h.b16 %v3734
  %v5081 = vunpack.c.l.b16 %v3735
  %v5082 = vunpack.c.h.b16 %v3735
  %v5083 = vunpack.c.l.b16 %v3736
  %v5084 = vunpack.c.h.b16 %v3736
  %v5085 = vunpack.c.l.b16 %v3737
  %v5086 = vunpack.c.h.b16 %v3737
  %v5087 = vunpack.c.l.b16 %v3738
  %v5088 = vunpack.c.h.b16 %v3738
  %v5089 = vunpack.c.l.b16 %v3739
  %v5090 = vunpack.c.h.b16 %v3739
  %v5091 = vunpack.c.l.b16 %v3740
  %v5092 = vunpack.c.h.b16 %v3740
  %v5093 = vunpack.c.l.b16 %v3741
  %v5094 = vunpack.c.h.b16 %v3741
  %v5095 = vunpack.c.l.b16 %v3742
  %v5096 = vunpack.c.h.b16 %v3742
  %v5097 = vunpack.c.l.b16 %v3743
  %v5098 = vunpack.c.h.b16 %v3743
  %v5099 = vunpack.c.l.b16 %v3744
  %v5100 = vunpack.c.h.b16 %v3744
  %v5101 = vunpack.c.l.b16 %v3745
  %v5102 = vunpack.c.h.b16 %v3745
  %v5103 = vunpack.c.l.b16 %v3746
  %v5104 = vunpack.c.h.b16 %v3746
  %v5105 = vunpack.c.l.b16 %v3747
  %v5106 = vunpack.c.h.b16 %v3747
  %v5107 = vunpack.c.l.b16 %v3748
  %v5108 = vunpack.c.h.b16 %v3748
  %v5109 = vunpack.c.l.b16 %v3749
  %v5110 = vunpack.c.h.b16 %v3749
  %v5111 = vunpack.c.l.b16 %v3750
  %v5112 = vunpack.c.h.b16 %v3750
  %v5113 = vunpack.c.l.b16 %v3751
  %v5114 = vunpack.c.h.b16 %v3751
  %v5115 = vunpack.c.l.b16 %v3752
  %v5116 = vunpack.c.h.b16 %v3752
  %v5117 = vunpack.c.l.b16 %v3753
  %v5118 = vunpack.c.h.b16 %v3753
  %v5119 = vunpack.c.l.b16 %v3754
  %v5120 = vunpack.c.h.b16 %v3754
  %v5121 = vunpack.c.l.b16 %v3755
  %v5122 = vunpack.c.h.b16 %v3755
  %v5123 = vunpack.c.l.b16 %v3756
  %v5124 = vunpack.c.h.b16 %v3756
  %v5125 = vunpack.c.l.b16 %v3757
  %v5126 = vunpack.c.h.b16 %v3757
  %v5127 = vunpack.c.l.b16 %v3758
  %v5128 = vunpack.c.h.b16 %v3758
  %v5129 = vunpack.c.l.b16 %v3759
  %v5130 = vunpack.c.h.b16 %v3759
  %v5131 = vunpack.c.l.b16 %v3760
  %v5132 = vunpack.c.h.b16 %v3760
  %v5133 = vunpack.c.l.b16 %v3761
  %v5134 = vunpack.c.h.b16 %v3761
  %v5135 = vunpack.c.l.b16 %v3762
  %v5136 = vunpack.c.h.b16 %v3762
  %v5137 = vunpack.c.l.b16 %v3763
  %v5138 = vunpack.c.h.b16 %v3763
  %v5139 = vunpack.c.l.b16 %v3764
  %v5140 = vunpack.c.h.b16 %v3764
  %v5141 = vunpack.c.l.b16 %v3765
  %v5142 = vunpack.c.h.b16 %v3765
  %v5143 = vunpack.c.l.b16 %v3766
  %v5144 = vunpack.c.h.b16 %v3766
  %v5145 = vunpack.c.l.b16 %v3767
  %v5146 = vunpack.c.h.b16 %v3767
  %v5147 = vunpack.c.l.b16 %v3768
  %v5148 = vunpack.c.h.b16 %v3768
  %v5149 = vunpack.c.l.b16 %v3769
  %v5150 = vunpack.c.h.b16 %v3769
  %v5151 = vunpack.c.l.b16 %v3770
  %v5152 = vunpack.c.h.b16 %v3770
  %v5153 = vunpack.c.l.b16 %v3771
  %v5154 = vunpack.c.h.b16 %v3771
  %v5155 = vunpack.c.l.b16 %v3772
  %v5156 = vunpack.c.h.b16 %v3772
  %v5157 = vunpack.c.l.b16 %v3773
  %v5158 = vunpack.c.h.b16 %v3773
  %v5159 = vunpack.c.l.b16 %v3774
  %v5160 = vunpack.c.h.b16 %v3774
  %v5161 = vunpack.c.l.b16 %v3775
  %v5162 = vunpack.c.h.b16 %v3775
  %v5163 = vunpack.c.l.b16 %v3776
  %v5164 = vunpack.c.h.b16 %v3776
  %v5165 = vunpack.c.l.b16 %v3777
  %v5166 = vunpack.c.h.b16 %v3777
  %v5167 = vunpack.c.l.b16 %v3778
  %v5168 = vunpack.c.h.b16 %v3778
  %v5169 = vunpack.c.l.b16 %v3779
  %v5170 = vunpack.c.h.b16 %v3779
  %v5171 = vunpack.c.l.b16 %v3780
  %v5172 = vunpack.c.h.b16 %v3780
  %v5173 = vunpack.c.l.b16 %v3781
  %v5174 = vunpack.c.h.b16 %v3781
  %v5175 = vunpack.c.l.b16 %v3782
  %v5176 = vunpack.c.h.b16 %v3782
  %v5177 = vunpack.c.l.b16 %v3783
  %v5178 = vunpack.c.h.b16 %v3783
  %v5179 = vunpack.c.l.b16 %v3784
  %v5180 = vunpack.c.h.b16 %v3784
  %v5181 = vunpack.c.l.b16 %v3785
  %v5182 = vunpack.c.h.b16 %v3785
  %v5183 = vunpack.c.l.b16 %v3786
  %v5184 = vunpack.c.h.b16 %v3786
  %v5185 = vunpack.c.l.b16 %v3787
  %v5186 = vunpack.c.h.b16 %v3787
  %v5187 = vunpack.c.l.b16 %v3788
  %v5188 = vunpack.c.h.b16 %v3788
  %v5189 = vunpack.c.l.b16 %v3789
  %v5190 = vunpack.c.h.b16 %v3789
  %v5191 = vunpack.c.l.b16 %v3790
  %v5192 = vunpack.c.h.b16 %v3790
  %v5193 = vunpack.c.l.b16 %v3791
  %v5194 = vunpack.c.h.b16 %v3791
  %v5195 = vunpack.c.l.b16 %v3792
  %v5196 = vunpack.c.h.b16 %v3792
  %v5197 = vunpack.c.l.b16 %v3793
  %v5198 = vunpack.c.h.b16 %v3793
  %v5199 = vunpack.c.l.b16 %v3794
  %v5200 = vunpack.c.h.b16 %v3794
  %v5201 = vunpack.c.l.b16 %v3795
  %v5202 = vunpack.c.h.b16 %v3795
  %v5203 = vunpack.c.l.b16 %v3796
  %v5204 = vunpack.c.h.b16 %v3796
  %v5205 = vunpack.c.l.b16 %v3797
  %v5206 = vunpack.c.h.b16 %v3797
  %v5207 = vunpack.c.l.b16 %v3798
  %v5208 = vunpack.c.h.b16 %v3798
  %v5209 = vunpack.c.l.b16 %v3799
  %v5210 = vunpack.c.h.b16 %v3799
  %v5211 = vunpack.c.l.b16 %v3800
  %v5212 = vunpack.c.h.b16 %v3800
  %v5213 = vunpack.c.l.b16 %v3801
  %v5214 = vunpack.c.h.b16 %v3801
  %v5215 = vunpack.c.l.b16 %v3802
  %v5216 = vunpack.c.h.b16 %v3802
  %v5217 = vunpack.c.l.b16 %v3803
  %v5218 = vunpack.c.h.b16 %v3803
  %v5219 = vunpack.c.l.b16 %v3804
  %v5220 = vunpack.c.h.b16 %v3804
  %v5221 = vunpack.c.l.b16 %v3805
  %v5222 = vunpack.c.h.b16 %v3805
  %v5223 = vunpack.c.l.b16 %v3806
  %v5224 = vunpack.c.h.b16 %v3806
  %v5225 = vunpack.c.l.b16 %v3807
  %v5226 = vunpack.c.h.b16 %v3807
  %v5227 = vunpack.c.l.b16 %v3808
  %v5228 = vunpack.c.h.b16 %v3808
  %v5229 = vunpack.c.l.b16 %v3809
  %v5230 = vunpack.c.h.b16 %v3809
  %v5231 = vunpack.c.l.b16 %v3810
  %v5232 = vunpack.c.h.b16 %v3810
  %v5233 = vunpack.c.l.b16 %v3811
  %v5234 = vunpack.c.h.b16 %v3811
  %v5235 = vunpack.c.l.b16 %v3812
  %v5236 = vunpack.c.h.b16 %v3812
  %v5237 = vunpack.c.l.b16 %v3813
  %v5238 = vunpack.c.h.b16 %v3813
  %v5239 = vunpack.c.l.b16 %v3814
  %v5240 = vunpack.c.h.b16 %v3814
  %v5241 = vunpack.c.l.b16 %v3815
  %v5242 = vunpack.c.h.b16 %v3815
  %v5243 = vunpack.c.l.b16 %v3816
  %v5244 = vunpack.c.h.b16 %v3816
  %v5245 = vunpack.c.l.b16 %v3817
  %v5246 = vunpack.c.h.b16 %v3817
  %v5247 = vunpack.c.l.b16 %v3818
  %v5248 = vunpack.c.h.b16 %v3818
  %v5249 = vunpack.c.l.b16 %v3819
  %v5250 = vunpack.c.h.b16 %v3819
  %v5251 = vunpack.c.l.b16 %v3820
  %v5252 = vunpack.c.h.b16 %v3820
  %v5253 = vunpack.c.l.b16 %v3821
  %v5254 = vunpack.c.h.b16 %v3821
  %v5255 = vunpack.c.l.b16 %v3822
  %v5256 = vunpack.c.h.b16 %v3822
  %v5257 = vunpack.c.l.b16 %v3823
  %v5258 = vunpack.c.h.b16 %v3823
  %v5259 = vunpack.c.l.b16 %v3824
  %v5260 = vunpack.c.h.b16 %v3824
  %v5261 = vunpack.c.l.b16 %v3825
  %v5262 = vunpack.c.h.b16 %v3825
  %v5263 = vunpack.c.l.b16 %v3826
  %v5264 = vunpack.c.h.b16 %v3826
  %v5265 = vunpack.c.l.b16 %v3827
  %v5266 = vunpack.c.h.b16 %v3827
  %v5267 = vunpack.c.l.b16 %v3828
  %v5268 = vunpack.c.h.b16 %v3828
  %v5269 = vunpack.c.l.b16 %v3829
  %v5270 = vunpack.c.h.b16 %v3829
  %v5271 = vunpack.c.l.b16 %v3830
  %v5272 = vunpack.c.h.b16 %v3830
  %v5273 = vunpack.c.l.b16 %v3831
  %v5274 = vunpack.c.h.b16 %v3831
  %v5275 = vunpack.c.l.b16 %v3832
  %v5276 = vunpack.c.h.b16 %v3832
  %v5277 = vunpack.c.l.b16 %v3833
  %v5278 = vunpack.c.h.b16 %v3833
  %v5279 = vunpack.c.l.b16 %v3834
  %v5280 = vunpack.c.h.b16 %v3834
  %v5281 = vunpack.c.l.b16 %v3835
  %v5282 = vunpack.c.h.b16 %v3835
  %v5283 = vunpack.c.l.b16 %v3836
  %v5284 = vunpack.c.h.b16 %v3836
  %v5285 = vunpack.c.l.b16 %v3837
  %v5286 = vunpack.c.h.b16 %v3837
  %v5287 = vunpack.c.l.b16 %v3838
  %v5288 = vunpack.c.h.b16 %v3838
  %v5289 = vunpack.c.l.b16 %v3839
  %v5290 = vunpack.c.h.b16 %v3839
  %v5291 = vunpack.c.l.b16 %v3840
  %v5292 = vunpack.c.h.b16 %v3840
  %v5293 = vunpack.c.l.b16 %v3841
  %v5294 = vunpack.c.h.b16 %v3841
  %v5295 = vunpack.c.l.b16 %v3842
  %v5296 = vunpack.c.h.b16 %v3842
  %v5297 = vunpack.c.l.b16 %v3843
  %v5298 = vunpack.c.h.b16 %v3843
  %v5299 = vunpack.c.l.b16 %v3844
  %v5300 = vunpack.c.h.b16 %v3844
  %v5301 = vunpack.c.l.b16 %v3845
  %v5302 = vunpack.c.h.b16 %v3845
  %v5303 = vunpack.c.l.b16 %v3846
  %v5304 = vunpack.c.h.b16 %v3846
  %v5305 = vunpack.c.l.b16 %v3847
  %v5306 = vunpack.c.h.b16 %v3847
  %v5307 = vunpack.c.l.b16 %v3848
  %v5308 = vunpack.c.h.b16 %v3848
  %v5309 = vunpack.c.l.b16 %v3849
  %v5310 = vunpack.c.h.b16 %v3849
  %v5311 = vunpack.c.l.b16 %v3850
  %v5312 = vunpack.c.h.b16 %v3850
  %v5313 = vunpack.c.l.b16 %v3851
  %v5314 = vunpack.c.h.b16 %v3851
  %v5315 = vunpack.c.l.b16 %v3852
  %v5316 = vunpack.c.h.b16 %v3852
  %v5317 = vunpack.c.l.b16 %v3853
  %v5318 = vunpack.c.h.b16 %v3853
  %v5319 = vunpack.c.l.b16 %v3854
  %v5320 = vunpack.c.h.b16 %v3854
  %v5321 = vunpack.c.l.b16 %v3855
  %v5322 = vunpack.c.h.b16 %v3855
  %v5323 = vunpack.c.l.b16 %v3856
  %v5324 = vunpack.c.h.b16 %v3856
  %v5325 = vunpack.c.l.b16 %v3857
  %v5326 = vunpack.c.h.b16 %v3857
  %v5327 = vunpack.c.l.b16 %v3858
  %v5328 = vunpack.c.h.b16 %v3858
  %v5329 = vunpack.c.l.b16 %v3859
  %v5330 = vunpack.c.h.b16 %v3859
  %v5331 = vunpack.c.l.b16 %v3860
  %v5332 = vunpack.c.h.b16 %v3860
  %v5333 = vunpack.c.l.b16 %v3861
  %v5334 = vunpack.c.h.b16 %v3861
  %v5335 = vunpack.c.l.b16 %v3862
  %v5336 = vunpack.c.h.b16 %v3862
  %v5337 = vunpack.c.l.b16 %v3863
  %v5338 = vunpack.c.h.b16 %v3863
  %v5339 = vunpack.c.l.b16 %v3864
  %v5340 = vunpack.c.h.b16 %v3864
  %v5341 = vunpack.c.l.b16 %v3865
  %v5342 = vunpack.c.h.b16 %v3865
  %v5343 = vunpack.c.l.b16 %v3866
  %v5344 = vunpack.c.h.b16 %v3866
  %v5345 = vunpack.c.l.b16 %v3867
  %v5346 = vunpack.c.h.b16 %v3867
  %v5347 = vunpack.c.l.b16 %v3868
  %v5348 = vunpack.c.h.b16 %v3868
  %v5349 = vunpack.c.l.b16 %v3869
  %v5350 = vunpack.c.h.b16 %v3869
  %v5351 = vunpack.c.l.b16 %v3870
  %v5352 = vunpack.c.h.b16 %v3870
  %v5353 = vunpack.c.l.b16 %v3871
  %v5354 = vunpack.c.h.b16 %v3871
  %v5355 = vunpack.c.l.b16 %v3872
  %v5356 = vunpack.c.h.b16 %v3872
  %v5357 = vunpack.c.l.b16 %v3873
  %v5358 = vunpack.c.h.b16 %v3873
  %v5359 = vunpack.c.l.b16 %v3874
  %v5360 = vunpack.c.h.b16 %v3874
  %v5361 = vunpack.c.l.b16 %v3875
  %v5362 = vunpack.c.h.b16 %v3875
  %v5363 = vunpack.c.l.b16 %v3876
  %v5364 = vunpack.c.h.b16 %v3876
  %v5365 = vunpack.c.l.b16 %v3877
  %v5366 = vunpack.c.h.b16 %v3877
  %v5367 = vunpack.c.l.b16 %v3878
  %v5368 = vunpack.c.h.b16 %v3878
  %v5369 = vunpack.c.l.b16 %v3879
  %v5370 = vunpack.c.h.b16 %v3879
  %v5371 = vunpack.c.l.b16 %v3880
  %v5372 = vunpack.c.h.b16 %v3880
  %v5373 = vunpack.c.l.b16 %v3881
  %v5374 = vunpack.c.h.b16 %v3881
  %v5375 = vunpack.c.l.b16 %v3882
  %v5376 = vunpack.c.h.b16 %v3882
  %v5377 = vunpack.c.l.b16 %v3883
  %v5378 = vunpack.c.h.b16 %v3883
  %v5379 = vunpack.c.l.b16 %v3884
  %v5380 = vunpack.c.h.b16 %v3884
  %v5381 = vunpack.c.l.b16 %v3885
  %v5382 = vunpack.c.h.b16 %v3885
  %v5383 = vunpack.c.l.b16 %v3886
  %v5384 = vunpack.c.h.b16 %v3886
  %v5385 = vunpack.c.l.b16 %v3887
  %v5386 = vunpack.c.h.b16 %v3887
  %v5387 = vunpack.c.l.b16 %v3888
  %v5388 = vunpack.c.h.b16 %v3888
  %v5389 = vunpack.c.l.b16 %v3889
  %v5390 = vunpack.c.h.b16 %v3889
  %v5391 = vunpack.c.l.b16 %v3890
  %v5392 = vunpack.c.h.b16 %v3890
  %v5393 = vunpack.c.l.b16 %v3891
  %v5394 = vunpack.c.h.b16 %v3891
  %v5395 = vunpack.c.l.b16 %v3892
  %v5396 = vunpack.c.h.b16 %v3892
  %v5397 = vunpack.c.l.b16 %v3893
  %v5398 = vunpack.c.h.b16 %v3893
  %v5399 = vunpack.c.l.b16 %v3894
  %v5400 = vunpack.c.h.b16 %v3894
  %v5401 = vunpack.c.l.b16 %v3895
  %v5402 = vunpack.c.h.b16 %v3895
  %v5403 = vunpack.c.l.b16 %v3896
  %v5404 = vunpack.c.h.b16 %v3896
  %v5405 = vunpack.c.l.b16 %v3897
  %v5406 = vunpack.c.h.b16 %v3897
  %v5407 = vunpack.c.l.b16 %v3898
  %v5408 = vunpack.c.h.b16 %v3898
  %v5409 = vunpack.c.l.b16 %v3899
  %v5410 = vunpack.c.h.b16 %v3899
  %v5411 = vunpack.c.l.b16 %v3900
  %v5412 = vunpack.c.h.b16 %v3900
  %v5413 = vunpack.c.l.b16 %v3901
  %v5414 = vunpack.c.h.b16 %v3901
  %v5415 = vunpack.c.l.b16 %v3902
  %v5416 = vunpack.c.h.b16 %v3902
  %v5417 = vunpack.c.l.b16 %v3903
  %v5418 = vunpack.c.h.b16 %v3903
  %v5419 = vunpack.c.l.b16 %v3904
  %v5420 = vunpack.c.h.b16 %v3904
  %v5421 = vunpack.c.l.b16 %v3905
  %v5422 = vunpack.c.h.b16 %v3905
  %v5423 = vunpack.c.l.b16 %v3906
  %v5424 = vunpack.c.h.b16 %v3906
  %v5425 = vunpack.c.l.b16 %v3907
  %v5426 = vunpack.c.h.b16 %v3907
  %v5427 = vunpack.c.l.b16 %v3908
  %v5428 = vunpack.c.h.b16 %v3908
  %v5429 = vunpack.c.l.b16 %v3909
  %v5430 = vunpack.c.h.b16 %v3909
  %v5431 = vunpack.c.l.b16 %v3910
  %v5432 = vunpack.c.h.b16 %v3910
  %v5433 = vunpack.c.l.b16 %v3911
  %v5434 = vunpack.c.h.b16 %v3911
  %v5435 = vunpack.c.l.b16 %v3912
  %v5436 = vunpack.c.h.b16 %v3912
  %v5437 = vunpack.c.l.b16 %v3913
  %v5438 = vunpack.c.h.b16 %v3913
  %v5439 = vunpack.c.l.b16 %v3914
  %v5440 = vunpack.c.h.b16 %v3914
  %v5441 = vunpack.c.l.b16 %v3915
  %v5442 = vunpack.c.h.b16 %v3915
  %v5443 = vunpack.c.l.b16 %v3916
  %v5444 = vunpack.c.h.b16 %v3916
  %v5445 = vunpack.c.l.b16 %v3917
  %v5446 = vunpack.c.h.b16 %v3917
  %v5447 = vunpack.c.l.b16 %v3918
  %v5448 = vunpack.c.h.b16 %v3918
  %v5449 = vunpack.c.l.b16 %v3919
  %v5450 = vunpack.c.h.b16 %v3919
  %v5451 = vunpack.c.l.b16 %v3920
  %v5452 = vunpack.c.h.b16 %v3920
  %v5453 = vunpack.c.l.b16 %v3921
  %v5454 = vunpack.c.h.b16 %v3921
  %v5455 = vunpack.c.l.b16 %v3922
  %v5456 = vunpack.c.h.b16 %v3922
  %v5457 = vunpack.c.l.b16 %v3923
  %v5458 = vunpack.c.h.b16 %v3923
  %v5459 = vunpack.c.l.b16 %v3924
  %v5460 = vunpack.c.h.b16 %v3924
  %v5461 = vunpack.c.l.b16 %v3925
  %v5462 = vunpack.c.h.b16 %v3925
  %v5463 = vunpack.c.l.b16 %v3926
  %v5464 = vunpack.c.h.b16 %v3926
  %v5465 = vunpack.c.l.b16 %v3927
  %v5466 = vunpack.c.h.b16 %v3927
  %v5467 = vunpack.c.l.b16 %v3928
  %v5468 = vunpack.c.h.b16 %v3928
  %v5469 = vunpack.c.l.b16 %v3929
  %v5470 = vunpack.c.h.b16 %v3929
  %v5471 = vunpack.c.l.b16 %v3930
  %v5472 = vunpack.c.h.b16 %v3930
  %v5473 = vunpack.c.l.b16 %v3931
  %v5474 = vunpack.c.h.b16 %v3931
  %v5475 = vunpack.c.l.b16 %v3932
  %v5476 = vunpack.c.h.b16 %v3932
  %v5477 = vunpack.c.l.b16 %v3933
  %v5478 = vunpack.c.h.b16 %v3933
  %v5479 = vunpack.c.l.b16 %v3934
  %v5480 = vunpack.c.h.b16 %v3934
  %v5481 = vunpack.c.l.b16 %v3935
  %v5482 = vunpack.c.h.b16 %v3935
  %v5483 = vunpack.c.l.b16 %v3936
  %v5484 = vunpack.c.h.b16 %v3936
  %v5485 = vunpack.c.l.b16 %v3937
  %v5486 = vunpack.c.h.b16 %v3937
  %v5487 = vunpack.c.l.b16 %v3938
  %v5488 = vunpack.c.h.b16 %v3938
  %v5489 = vunpack.c.l.b16 %v3939
  %v5490 = vunpack.c.h.b16 %v3939
  %v5491 = vunpack.c.l.b16 %v3940
  %v5492 = vunpack.c.h.b16 %v3940
  %v5493 = vunpack.c.l.b16 %v3941
  %v5494 = vunpack.c.h.b16 %v3941
  %v5495 = vunpack.c.l.b16 %v3942
  %v5496 = vunpack.c.h.b16 %v3942
  %v5497 = vunpack.c.l.b16 %v3943
  %v5498 = vunpack.c.h.b16 %v3943
  %v5499 = vunpack.c.l.b16 %v3944
  %v5500 = vunpack.c.h.b16 %v3944
  %v5501 = vunpack.c.l.b16 %v3945
  %v5502 = vunpack.c.h.b16 %v3945
  %v5503 = vunpack.c.l.b16 %v3946
  %v5504 = vunpack.c.h.b16 %v3946
  %v5505 = vpack.c.b16 %v4485, %v4481
  %v5506 = vpack.c.b16 %v4486, %v4482
  %v5507 = vpack.c.b16 %v4487, %v4483
  %v5508 = vpack.c.b16 %v4488, %v4484
  %v5509 = vpack.c.b16 %v4493, %v4489
  %v5510 = vpack.c.b16 %v4494, %v4490
  %v5511 = vpack.c.b16 %v4495, %v4491
  %v5512 = vpack.c.b16 %v4496, %v4492
  %v5513 = vpack.c.b16 %v4501, %v4497
  %v5514 = vpack.c.b16 %v4502, %v4498
  %v5515 = vpack.c.b16 %v4503, %v4499
  %v5516 = vpack.c.b16 %v4504, %v4500
  %v5517 = vpack.c.b16 %v4509, %v4505
  %v5518 = vpack.c.b16 %v4510, %v4506
  %v5519 = vpack.c.b16 %v4511, %v4507
  %v5520 = vpack.c.b16 %v4512, %v4508
  %v5521 = vpack.c.b16 %v4517, %v4513
  %v5522 = vpack.c.b16 %v4518, %v4514
  %v5523 = vpack.c.b16 %v4519, %v4515
  %v5524 = vpack.c.b16 %v4520, %v4516
  %v5525 = vpack.c.b16 %v4525, %v4521
  %v5526 = vpack.c.b16 %v4526, %v4522
  %v5527 = vpack.c.b16 %v4527, %v4523
  %v5528 = vpack.c.b16 %v4528, %v4524
  %v5529 = vpack.c.b16 %v4533, %v4529
  %v5530 = vpack.c.b16 %v4534, %v4530
  %v5531 = vpack.c.b16 %v4535, %v4531
  %v5532 = vpack.c.b16 %v4536, %v4532
  %v5533 = vpack.c.b16 %v4541, %v4537
  %v5534 = vpack.c.b16 %v4542, %v4538
  %v5535 = vpack.c.b16 %v4543, %v4539
  %v5536 = vpack.c.b16 %v4544, %v4540
  %v5537 = vpack.c.b16 %v4549, %v4545
  %v5538 = vpack.c.b16 %v4550, %v4546
  %v5539 = vpack.c.b16 %v4551, %v4547
  %v5540 = vpack.c.b16 %v4552, %v4548
  %v5541 = vpack.c.b16 %v4557, %v4553
  %v5542 = vpack.c.b16 %v4558, %v4554
  %v5543 = vpack.c.b16 %v4559, %v4555
  %v5544 = vpack.c.b16 %v4560, %v4556
  %v5545 = vpack.c.b16 %v4565, %v4561
  %v5546 = vpack.c.b16 %v4566, %v4562
  %v5547 = vpack.c.b16 %v4567, %v4563
  %v5548 = vpack.c.b16 %v4568, %v4564
  %v5549 = vpack.c.b16 %v4573, %v4569
  %v5550 = vpack.c.b16 %v4574, %v4570
  %v5551 = vpack.c.b16 %v4575, %v4571
  %v5552 = vpack.c.b16 %v4576, %v4572
  %v5553 = vpack.c.b16 %v4581, %v4577
  %v5554 = vpack.c.b16 %v4582, %v4578
  %v5555 = vpack.c.b16 %v4583, %v4579
  %v5556 = vpack.c.b16 %v4584, %v4580
  %v5557 = vpack.c.b16 %v4589, %v4585
  %v5558 = vpack.c.b16 %v4590, %v4586
  %v5559 = vpack.c.b16 %v4591, %v4587
  %v5560 = vpack.c.b16 %v4592, %v4588
  %v5561 = vpack.c.b16 %v4597, %v4593
  %v5562 = vpack.c.b16 %v4598, %v4594
  %v5563 = vpack.c.b16 %v4599, %v4595
  %v5564 = vpack.c.b16 %v4600, %v4596
  %v5565 = vpack.c.b16 %v4605, %v4601
  %v5566 = vpack.c.b16 %v4606, %v4602
  %v5567 = vpack.c.b16 %v4607, %v4603
  %v5568 = vpack.c.b16 %v4608, %v4604
  %v5569 = vpack.c.b16 %v4613, %v4609
  %v5570 = vpack.c.b16 %v4614, %v4610
  %v5571 = vpack.c.b16 %v4615, %v4611
  %v5572 = vpack.c.b16 %v4616, %v4612
  %v5573 = vpack.c.b16 %v4621, %v4617
  %v5574 = vpack.c.b16 %v4622, %v4618
  %v5575 = vpack.c.b16 %v4623, %v4619
  %v5576 = vpack.c.b16 %v4624, %v4620
  %v5577 = vpack.c.b16 %v4629, %v4625
  %v5578 = vpack.c.b16 %v4630, %v4626
  %v5579 = vpack.c.b16 %v4631, %v4627
  %v5580 = vpack.c.b16 %v4632, %v4628
  %v5581 = vpack.c.b16 %v4637, %v4633
  %v5582 = vpack.c.b16 %v4638, %v4634
  %v5583 = vpack.c.b16 %v4639, %v4635
  %v5584 = vpack.c.b16 %v4640, %v4636
  %v5585 = vpack.c.b16 %v4645, %v4641
  %v5586 = vpack.c.b16 %v4646, %v4642
  %v5587 = vpack.c.b16 %v4647, %v4643
  %v5588 = vpack.c.b16 %v4648, %v4644
  %v5589 = vpack.c.b16 %v4653, %v4649
  %v5590 = vpack.c.b16 %v4654, %v4650
  %v5591 = vpack.c.b16 %v4655, %v4651
  %v5592 = vpack.c.b16 %v4656, %v4652
  %v5593 = vpack.c.b16 %v4661, %v4657
  %v5594 = vpack.c.b16 %v4662, %v4658
  %v5595 = vpack.c.b16 %v4663, %v4659
  %v5596 = vpack.c.b16 %v4664, %v4660
  %v5597 = vpack.c.b16 %v4669, %v4665
  %v5598 = vpack.c.b16 %v4670, %v4666
  %v5599 = vpack.c.b16 %v4671, %v4667
  %v5600 = vpack.c.b16 %v4672, %v4668
  %v5601 = vpack.c.b16 %v4677, %v4673
  %v5602 = vpack.c.b16 %v4678, %v4674
  %v5603 = vpack.c.b16 %v4679, %v4675
  %v5604 = vpack.c.b16 %v4680, %v4676
  %v5605 = vpack.c.b16 %v4685, %v4681
  %v5606 = vpack.c.b16 %v4686, %v4682
  %v5607 = vpack.c.b16 %v4687, %v4683
  %v5608 = vpack.c.b16 %v4688, %v4684
  %v5609 = vpack.c.b16 %v4693, %v4689
  %v5610 = vpack.c.b16 %v4694, %v4690
  %v5611 = vpack.c.b16 %v4695, %v4691
  %v5612 = vpack.c.b16 %v4696, %v4692
  %v5613 = vpack.c.b16 %v4701, %v4697
  %v5614 = vpack.c.b16 %v4702, %v4698
  %v5615 = vpack.c.b16 %v4703, %v4699
  %v5616 = vpack.c.b16 %v4704, %v4700
  %v5617 = vpack.c.b16 %v4709, %v4705
  %v5618 = vpack.c.b16 %v4710, %v4706
  %v5619 = vpack.c.b16 %v4711, %v4707
  %v5620 = vpack.c.b16 %v4712, %v4708
  %v5621 = vpack.c.b16 %v4717, %v4713
  %v5622 = vpack.c.b16 %v4718, %v4714
  %v5623 = vpack.c.b16 %v4719, %v4715
  %v5624 = vpack.c.b16 %v4720, %v4716
  %v5625 = vpack.c.b16 %v4725, %v4721
  %v5626 = vpack.c.b16 %v4726, %v4722
  %v5627 = vpack.c.b16 %v4727, %v4723
  %v5628 = vpack.c.b16 %v4728, %v4724
  %v5629 = vpack.c.b16 %v4733, %v4729
  %v5630 = vpack.c.b16 %v4734, %v4730
  %v5631 = vpack.c.b16 %v4735, %v4731
  %v5632 = vpack.c.b16 %v4736, %v4732
  %v5633 = vpack.c.b16 %v4741, %v4737
  %v5634 = vpack.c.b16 %v4742, %v4738
  %v5635 = vpack.c.b16 %v4743, %v4739
  %v5636 = vpack.c.b16 %v4744, %v4740
  %v5637 = vpack.c.b16 %v4749, %v4745
  %v5638 = vpack.c.b16 %v4750, %v4746
  %v5639 = vpack.c.b16 %v4751, %v4747
  %v5640 = vpack.c.b16 %v4752, %v4748
  %v5641 = vpack.c.b16 %v4757, %v4753
  %v5642 = vpack.c.b16 %v4758, %v4754
  %v5643 = vpack.c.b16 %v4759, %v4755
  %v5644 = vpack.c.b16 %v4760, %v4756
  %v5645 = vpack.c.b16 %v4765, %v4761
  %v5646 = vpack.c.b16 %v4766, %v4762
  %v5647 = vpack.c.b16 %v4767, %v4763
  %v5648 = vpack.c.b16 %v4768, %v4764
  %v5649 = vpack.c.b16 %v4773, %v4769
  %v5650 = vpack.c.b16 %v4774, %v4770
  %v5651 = vpack.c.b16 %v4775, %v4771
  %v5652 = vpack.c.b16 %v4776, %v4772
  %v5653 = vpack.c.b16 %v4781, %v4777
  %v5654 = vpack.c.b16 %v4782, %v4778
  %v5655 = vpack.c.b16 %v4783, %v4779
  %v5656 = vpack.c.b16 %v4784, %v4780
  %v5657 = vpack.c.b16 %v4789, %v4785
  %v5658 = vpack.c.b16 %v4790, %v4786
  %v5659 = vpack.c.b16 %v4791, %v4787
  %v5660 = vpack.c.b16 %v4792, %v4788
  %v5661 = vpack.c.b16 %v4797, %v4793
  %v5662 = vpack.c.b16 %v4798, %v4794
  %v5663 = vpack.c.b16 %v4799, %v4795
  %v5664 = vpack.c.b16 %v4800, %v4796
  %v5665 = vpack.c.b16 %v4805, %v4801
  %v5666 = vpack.c.b16 %v4806, %v4802
  %v5667 = vpack.c.b16 %v4807, %v4803
  %v5668 = vpack.c.b16 %v4808, %v4804
  %v5669 = vpack.c.b16 %v4813, %v4809
  %v5670 = vpack.c.b16 %v4814, %v4810
  %v5671 = vpack.c.b16 %v4815, %v4811
  %v5672 = vpack.c.b16 %v4816, %v4812
  %v5673 = vpack.c.b16 %v4821, %v4817
  %v5674 = vpack.c.b16 %v4822, %v4818
  %v5675 = vpack.c.b16 %v4823, %v4819
  %v5676 = vpack.c.b16 %v4824, %v4820
  %v5677 = vpack.c.b16 %v4829, %v4825
  %v5678 = vpack.c.b16 %v4830, %v4826
  %v5679 = vpack.c.b16 %v4831, %v4827
  %v5680 = vpack.c.b16 %v4832, %v4828
  %v5681 = vpack.c.b16 %v4837, %v4833
  %v5682 = vpack.c.b16 %v4838, %v4834
  %v5683 = vpack.c.b16 %v4839, %v4835
  %v5684 = vpack.c.b16 %v4840, %v4836
  %v5685 = vpack.c.b16 %v4845, %v4841
  %v5686 = vpack.c.b16 %v4846, %v4842
  %v5687 = vpack.c.b16 %v4847, %v4843
  %v5688 = vpack.c.b16 %v4848, %v4844
  %v5689 = vpack.c.b16 %v4853, %v4849
  %v5690 = vpack.c.b16 %v4854, %v4850
  %v5691 = vpack.c.b16 %v4855, %v4851
  %v5692 = vpack.c.b16 %v4856, %v4852
  %v5693 = vpack.c.b16 %v4861, %v4857
  %v5694 = vpack.c.b16 %v4862, %v4858
  %v5695 = vpack.c.b16 %v4863, %v4859
  %v5696 = vpack.c.b16 %v4864, %v4860
  %v5697 = vpack.c.b16 %v4869, %v4865
  %v5698 = vpack.c.b16 %v4870, %v4866
  %v5699 = vpack.c.b16 %v4871, %v4867
  %v5700 = vpack.c.b16 %v4872, %v4868
  %v5701 = vpack.c.b16 %v4877, %v4873
  %v5702 = vpack.c.b16 %v4878, %v4874
  %v5703 = vpack.c.b16 %v4879, %v4875
  %v5704 = vpack.c.b16 %v4880, %v4876
  %v5705 = vpack.c.b16 %v4885, %v4881
  %v5706 = vpack.c.b16 %v4886, %v4882
  %v5707 = vpack.c.b16 %v4887, %v4883
  %v5708 = vpack.c.b16 %v4888, %v4884
  %v5709 = vpack.c.b16 %v4893, %v4889
  %v5710 = vpack.c.b16 %v4894, %v4890
  %v5711 = vpack.c.b16 %v4895, %v4891
  %v5712 = vpack.c.b16 %v4896, %v4892
  %v5713 = vpack.c.b16 %v4901, %v4897
  %v5714 = vpack.c.b16 %v4902, %v4898
  %v5715 = vpack.c.b16 %v4903, %v4899
  %v5716 = vpack.c.b16 %v4904, %v4900
  %v5717 = vpack.c.b16 %v4909, %v4905
  %v5718 = vpack.c.b16 %v4910, %v4906
  %v5719 = vpack.c.b16 %v4911, %v4907
  %v5720 = vpack.c.b16 %v4912, %v4908
  %v5721 = vpack.c.b16 %v4917, %v4913
  %v5722 = vpack.c.b16 %v4918, %v4914
  %v5723 = vpack.c.b16 %v4919, %v4915
  %v5724 = vpack.c.b16 %v4920, %v4916
  %v5725 = vpack.c.b16 %v4925, %v4921
  %v5726 = vpack.c.b16 %v4926, %v4922
  %v5727 = vpack.c.b16 %v4927, %v4923
  %v5728 = vpack.c.b16 %v4928, %v4924
  %v5729 = vpack.c.b16 %v4933, %v4929
  %v5730 = vpack.c.b16 %v4934, %v4930
  %v5731 = vpack.c.b16 %v4935, %v4931
  %v5732 = vpack.c.b16 %v4936, %v4932
  %v5733 = vpack.c.b16 %v4941, %v4937
  %v5734 = vpack.c.b16 %v4942, %v4938
  %v5735 = vpack.c.b16 %v4943, %v4939
  %v5736 = vpack.c.b16 %v4944, %v4940
  %v5737 = vpack.c.b16 %v4949, %v4945
  %v5738 = vpack.c.b16 %v4950, %v4946
  %v5739 = vpack.c.b16 %v4951, %v4947
  %v5740 = vpack.c.b16 %v4952, %v4948
  %v5741 = vpack.c.b16 %v4957, %v4953
  %v5742 = vpack.c.b16 %v4958, %v4954
  %v5743 = vpack.c.b16 %v4959, %v4955
  %v5744 = vpack.c.b16 %v4960, %v4956
  %v5745 = vpack.c.b16 %v4965, %v4961
  %v5746 = vpack.c.b16 %v4966, %v4962
  %v5747 = vpack.c.b16 %v4967, %v4963
  %v5748 = vpack.c.b16 %v4968, %v4964
  %v5749 = vpack.c.b16 %v4973, %v4969
  %v5750 = vpack.c.b16 %v4974, %v4970
  %v5751 = vpack.c.b16 %v4975, %v4971
  %v5752 = vpack.c.b16 %v4976, %v4972
  %v5753 = vpack.c.b16 %v4981, %v4977
  %v5754 = vpack.c.b16 %v4982, %v4978
  %v5755 = vpack.c.b16 %v4983, %v4979
  %v5756 = vpack.c.b16 %v4984, %v4980
  %v5757 = vpack.c.b16 %v4989, %v4985
  %v5758 = vpack.c.b16 %v4990, %v4986
  %v5759 = vpack.c.b16 %v4991, %v4987
  %v5760 = vpack.c.b16 %v4992, %v4988
  %v5761 = vpack.c.b16 %v4997, %v4993
  %v5762 = vpack.c.b16 %v4998, %v4994
  %v5763 = vpack.c.b16 %v4999, %v4995
  %v5764 = vpack.c.b16 %v5000, %v4996
  %v5765 = vpack.c.b16 %v5005, %v5001
  %v5766 = vpack.c.b16 %v5006, %v5002
  %v5767 = vpack.c.b16 %v5007, %v5003
  %v5768 = vpack.c.b16 %v5008, %v5004
  %v5769 = vpack.c.b16 %v5013, %v5009
  %v5770 = vpack.c.b16 %v5014, %v5010
  %v5771 = vpack.c.b16 %v5015, %v5011
  %v5772 = vpack.c.b16 %v5016, %v5012
  %v5773 = vpack.c.b16 %v5021, %v5017
  %v5774 = vpack.c.b16 %v5022, %v5018
  %v5775 = vpack.c.b16 %v5023, %v5019
  %v5776 = vpack.c.b16 %v5024, %v5020
  %v5777 = vpack.c.b16 %v5029, %v5025
  %v5778 = vpack.c.b16 %v5030, %v5026
  %v5779 = vpack.c.b16 %v5031, %v5027
  %v5780 = vpack.c.b16 %v5032, %v5028
  %v5781 = vpack.c.b16 %v5037, %v5033
  %v5782 = vpack.c.b16 %v5038, %v5034
  %v5783 = vpack.c.b16 %v5039, %v5035
  %v5784 = vpack.c.b16 %v5040, %v5036
  %v5785 = vpack.c.b16 %v5045, %v5041
  %v5786 = vpack.c.b16 %v5046, %v5042
  %v5787 = vpack.c.b16 %v5047, %v5043
  %v5788 = vpack.c.b16 %v5048, %v5044
  %v5789 = vpack.c.b16 %v5053, %v5049
  %v5790 = vpack.c.b16 %v5054, %v5050
  %v5791 = vpack.c.b16 %v5055, %v5051
  %v5792 = vpack.c.b16 %v5056, %v5052
  %v5793 = vpack.c.b16 %v5061, %v5057
  %v5794 = vpack.c.b16 %v5062, %v5058
  %v5795 = vpack.c.b16 %v5063, %v5059
  %v5796 = vpack.c.b16 %v5064, %v5060
  %v5797 = vpack.c.b16 %v5069, %v5065
  %v5798 = vpack.c.b16 %v5070, %v5066
  %v5799 = vpack.c.b16 %v5071, %v5067
  %v5800 = vpack.c.b16 %v5072, %v5068
  %v5801 = vpack.c.b16 %v5077, %v5073
  %v5802 = vpack.c.b16 %v5078, %v5074
  %v5803 = vpack.c.b16 %v5079, %v5075
  %v5804 = vpack.c.b16 %v5080, %v5076
  %v5805 = vpack.c.b16 %v5085, %v5081
  %v5806 = vpack.c.b16 %v5086, %v5082
  %v5807 = vpack.c.b16 %v5087, %v5083
  %v5808 = vpack.c.b16 %v5088, %v5084
  %v5809 = vpack.c.b16 %v5093, %v5089
  %v5810 = vpack.c.b16 %v5094, %v5090
  %v5811 = vpack.c.b16 %v5095, %v5091
  %v5812 = vpack.c.b16 %v5096, %v5092
  %v5813 = vpack.c.b16 %v5101, %v5097
  %v5814 = vpack.c.b16 %v5102, %v5098
  %v5815 = vpack.c.b16 %v5103, %v5099
  %v5816 = vpack.c.b16 %v5104, %v5100
  %v5817 = vpack.c.b16 %v5109, %v5105
  %v5818 = vpack.c.b16 %v5110, %v5106
  %v5819 = vpack.c.b16 %v5111, %v5107
  %v5820 = vpack.c.b16 %v5112, %v5108
  %v5821 = vpack.c.b16 %v5117, %v5113
  %v5822 = vpack.c.b16 %v5118, %v5114
  %v5823 = vpack.c.b16 %v5119, %v5115
  %v5824 = vpack.c.b16 %v5120, %v5116
  %v5825 = vpack.c.b16 %v5125, %v5121
  %v5826 = vpack.c.b16 %v5126, %v5122
  %v5827 = vpack.c.b16 %v5127, %v5123
  %v5828 = vpack.c.b16 %v5128, %v5124
  %v5829 = vpack.c.b16 %v5133, %v5129
  %v5830 = vpack.c.b16 %v5134, %v5130
  %v5831 = vpack.c.b16 %v5135, %v5131
  %v5832 = vpack.c.b16 %v5136, %v5132
  %v5833 = vpack.c.b16 %v5141, %v5137
  %v5834 = vpack.c.b16 %v5142, %v5138
  %v5835 = vpack.c.b16 %v5143, %v5139
  %v5836 = vpack.c.b16 %v5144, %v5140
  %v5837 = vpack.c.b16 %v5149, %v5145
  %v5838 = vpack.c.b16 %v5150, %v5146
  %v5839 = vpack.c.b16 %v5151, %v5147
  %v5840 = vpack.c.b16 %v5152, %v5148
  %v5841 = vpack.c.b16 %v5157, %v5153
  %v5842 = vpack.c.b16 %v5158, %v5154
  %v5843 = vpack.c.b16 %v5159, %v5155
  %v5844 = vpack.c.b16 %v5160, %v5156
  %v5845 = vpack.c.b16 %v5165, %v5161
  %v5846 = vpack.c.b16 %v5166, %v5162
  %v5847 = vpack.c.b16 %v5167, %v5163
  %v5848 = vpack.c.b16 %v5168, %v5164
  %v5849 = vpack.c.b16 %v5173, %v5169
  %v5850 = vpack.c.b16 %v5174, %v5170
  %v5851 = vpack.c.b16 %v5175, %v5171
  %v5852 = vpack.c.b16 %v5176, %v5172
  %v5853 = vpack.c.b16 %v5181, %v5177
  %v5854 = vpack.c.b16 %v5182, %v5178
  %v5855 = vpack.c.b16 %v5183, %v5179
  %v5856 = vpack.c.b16 %v5184, %v5180
  %v5857 = vpack.c.b16 %v5189, %v5185
  %v5858 = vpack.c.b16 %v5190, %v5186
  %v5859 = vpack.c.b16 %v5191, %v5187
  %v5860 = vpack.c.b16 %v5192, %v5188
  %v5861 = vpack.c.b16 %v5197, %v5193
  %v5862 = vpack.c.b16 %v5198, %v5194
  %v5863 = vpack.c.b16 %v5199, %v5195
  %v5864 = vpack.c.b16 %v5200, %v5196
  %v5865 = vpack.c.b16 %v5205, %v5201
  %v5866 = vpack.c.b16 %v5206, %v5202
  %v5867 = vpack.c.b16 %v5207, %v5203
  %v5868 = vpack.c.b16 %v5208, %v5204
  %v5869 = vpack.c.b16 %v5213, %v5209
  %v5870 = vpack.c.b16 %v5214, %v5210
  %v5871 = vpack.c.b16 %v5215, %v5211
  %v5872 = vpack.c.b16 %v5216, %v5212
  %v5873 = vpack.c.b16 %v5221, %v5217
  %v5874 = vpack.c.b16 %v5222, %v5218
  %v5875 = vpack.c.b16 %v5223, %v5219
  %v5876 = vpack.c.b16 %v5224, %v5220
  %v5877 = vpack.c.b16 %v5229, %v5225
  %v5878 = vpack.c.b16 %v5230, %v5226
  %v5879 = vpack.c.b16 %v5231, %v5227
  %v5880 = vpack.c.b16 %v5232, %v5228
  %v5881 = vpack.c.b16 %v5237, %v5233
  %v5882 = vpack.c.b16 %v5238, %v5234
  %v5883 = vpack.c.b16 %v5239, %v5235
  %v5884 = vpack.c.b16 %v5240, %v5236
  %v5885 = vpack.c.b16 %v5245, %v5241
  %v5886 = vpack.c.b16 %v5246, %v5242
  %v5887 = vpack.c.b16 %v5247, %v5243
  %v5888 = vpack.c.b16 %v5248, %v5244
  %v5889 = vpack.c.b16 %v5253, %v5249
  %v5890 = vpack.c.b16 %v5254, %v5250
  %v5891 = vpack.c.b16 %v5255, %v5251
  %v5892 = vpack.c.b16 %v5256, %v5252
  %v5893 = vpack.c.b16 %v5261, %v5257
  %v5894 = vpack.c.b16 %v5262, %v5258
  %v5895 = vpack.c.b16 %v5263, %v5259
  %v5896 = vpack.c.b16 %v5264, %v5260
  %v5897 = vpack.c.b16 %v5269, %v5265
  %v5898 = vpack.c.b16 %v5270, %v5266
  %v5899 = vpack.c.b16 %v5271, %v5267
  %v5900 = vpack.c.b16 %v5272, %v5268
  %v5901 = vpack.c.b16 %v5277, %v5273
  %v5902 = vpack.c.b16 %v5278, %v5274
  %v5903 = vpack.c.b16 %v5279, %v5275
  %v5904 = vpack.c.b16 %v5280, %v5276
  %v5905 = vpack.c.b16 %v5285, %v5281
  %v5906 = vpack.c.b16 %v5286, %v5282
  %v5907 = vpack.c.b16 %v5287, %v5283
  %v5908 = vpack.c.b16 %v5288, %v5284
  %v5909 = vpack.c.b16 %v5293, %v5289
  %v5910 = vpack.c.b16 %v5294, %v5290
  %v5911 = vpack.c.b16 %v5295, %v5291
  %v5912 = vpack.c.b16 %v5296, %v5292
  %v5913 = vpack.c.b16 %v5301, %v5297
  %v5914 = vpack.c.b16 %v5302, %v5298
  %v5915 = vpack.c.b16 %v5303, %v5299
  %v5916 = vpack.c.b16 %v5304, %v5300
  %v5917 = vpack.c.b16 %v5309, %v5305
  %v5918 = vpack.c.b16 %v5310, %v5306
  %v5919 = vpack.c.b16 %v5311, %v5307
  %v5920 = vpack.c.b16 %v5312, %v5308
  %v5921 = vpack.c.b16 %v5317, %v5313
  %v5922 = vpack.c.b16 %v5318, %v5314
  %v5923 = vpack.c.b16 %v5319, %v5315
  %v5924 = vpack.c.b16 %v5320, %v5316
  %v5925 = vpack.c.b16 %v5325, %v5321
  %v5926 = vpack.c.b16 %v5326, %v5322
  %v5927 = vpack.c.b16 %v5327, %v5323
  %v5928 = vpack.c.b16 %v5328, %v5324
  %v5929 = vpack.c.b16 %v5333, %v5329
  %v5930 = vpack.c.b16 %v5334, %v5330
  %v5931 = vpack.c.b16 %v5335, %v5331
  %v5932 = vpack.c.b16 %v5336, %v5332
  %v5933 = vpack.c.b16 %v5341, %v5337
  %v5934 = vpack.c.b16 %v5342, %v5338
  %v5935 = vpack.c.b16 %v5343, %v5339
  %v5936 = vpack.c.b16 %v5344, %v5340
  %v5937 = vpack.c.b16 %v5349, %v5345
  %v5938 = vpack.c.b16 %v5350, %v5346
  %v5939 = vpack.c.b16 %v5351, %v5347
  %v5940 = vpack.c.b16 %v5352, %v5348
  %v5941 = vpack.c.b16 %v5357, %v5353
  %v5942 = vpack.c.b16 %v5358, %v5354
  %v5943 = vpack.c.b16 %v5359, %v5355
  %v5944 = vpack.c.b16 %v5360, %v5356
  %v5945 = vpack.c.b16 %v5365, %v5361
  %v5946 = vpack.c.b16 %v5366, %v5362
  %v5947 = vpack.c.b16 %v5367, %v5363
  %v5948 = vpack.c.b16 %v5368, %v5364
  %v5949 = vpack.c.b16 %v5373, %v5369
  %v5950 = vpack.c.b16 %v5374, %v5370
  %v5951 = vpack.c.b16 %v5375, %v5371
  %v5952 = vpack.c.b16 %v5376, %v5372
  %v5953 = vpack.c.b16 %v5381, %v5377
  %v5954 = vpack.c.b16 %v5382, %v5378
  %v5955 = vpack.c.b16 %v5383, %v5379
  %v5956 = vpack.c.b16 %v5384, %v5380
  %v5957 = vpack.c.b16 %v5389, %v5385
  %v5958 = vpack.c.b16 %v5390, %v5386
  %v5959 = vpack.c.b16 %v5391, %v5387
  %v5960 = vpack.c.b16 %v5392, %v5388
  %v5961 = vpack.c.b16 %v5397, %v5393
  %v5962 = vpack.c.b16 %v5398, %v5394
  %v5963 = vpack.c.b16 %v5399, %v5395
  %v5964 = vpack.c.b16 %v5400, %v5396
  %v5965 = vpack.c.b16 %v5405, %v5401
  %v5966 = vpack.c.b16 %v5406, %v5402
  %v5967 = vpack.c.b16 %v5407, %v5403
  %v5968 = vpack.c.b16 %v5408, %v5404
  %v5969 = vpack.c.b16 %v5413, %v5409
  %v5970 = vpack.c.b16 %v5414, %v5410
  %v5971 = vpack.c.b16 %v5415, %v5411
  %v5972 = vpack.c.b16 %v5416, %v5412
  %v5973 = vpack.c.b16 %v5421, %v5417
  %v5974 = vpack.c.b16 %v5422, %v5418
  %v5975 = vpack.c.b16 %v5423, %v5419
  %v5976 = vpack.c.b16 %v5424, %v5420
  %v5977 = vpack.c.b16 %v5429, %v5425
  %v5978 = vpack.c.b16 %v5430, %v5426
  %v5979 = vpack.c.b16 %v5431, %v5427
  %v5980 = vpack.c.b16 %v5432, %v5428
  %v5981 = vpack.c.b16 %v5437, %v5433
  %v5982 = vpack.c.b16 %v5438, %v5434
  %v5983 = vpack.c.b16 %v5439, %v5435
  %v5984 = vpack.c.b16 %v5440, %v5436
  %v5985 = vpack.c.b16 %v5445, %v5441
  %v5986 = vpack.c.b16 %v5446, %v5442
  %v5987 = vpack.c.b16 %v5447, %v5443
  %v5988 = vpack.c.b16 %v5448, %v5444
  %v5989 = vpack.c.b16 %v5453, %v5449
  %v5990 = vpack.c.b16 %v5454, %v5450
  %v5991 = vpack.c.b16 %v5455, %v5451
  %v5992 = vpack.c.b16 %v5456, %v5452
  %v5993 = vpack.c.b16 %v5461, %v5457
  %v5994 = vpack.c.b16 %v5462, %v5458
  %v5995 = vpack.c.b16 %v5463, %v5459
  %v5996 = vpack.c.b16 %v5464, %v5460
  %v5997 = vpack.c.b16 %v5469, %v5465
  %v5998 = vpack.c.b16 %v5470, %v5466
  %v5999 = vpack.c.b16 %v5471, %v5467
  %v6000 = vpack.c.b16 %v5472, %v5468
  %v6001 = vpack.c.b16 %v5477, %v5473
  %v6002 = vpack.c.b16 %v5478, %v5474
  %v6003 = vpack.c.b16 %v5479, %v5475
  %v6004 = vpack.c.b16 %v5480, %v5476
  %v6005 = vpack.c.b16 %v5485, %v5481
  %v6006 = vpack.c.b16 %v5486, %v5482
  %v6007 = vpack.c.b16 %v5487, %v5483
  %v6008 = vpack.c.b16 %v5488, %v5484
  %v6009 = vpack.c.b16 %v5493, %v5489
  %v6010 = vpack.c.b16 %v5494, %v5490
  %v6011 = vpack.c.b16 %v5495, %v5491
  %v6012 = vpack.c.b16 %v5496, %v5492
  %v6013 = vpack.c.b16 %v5501, %v5497
  %v6014 = vpack.c.b16 %v5502, %v5498
  %v6015 = vpack.c.b16 %v5503, %v5499
  %v6016 = vpack.c.b16 %v5504, %v5500
  %6529 = vmatprep.subr.bf16.mxu0 %v5506
  %6530 = vmatpush1.bf16.msra.mxu0 %v5505
  %6531 = vmatprep.subr.bf16.mxu0 %v5510
  %6532 = vmatpush1.bf16.msra.mxu0 %v5509
  %6533 = vmatprep.subr.bf16.mxu0 %v5514
  %6534 = vmatpush1.bf16.msra.mxu0 %v5513
  %6535 = vmatprep.subr.bf16.mxu0 %v5518
  %6536 = vmatpush1.bf16.msra.mxu0 %v5517
  %6537 = vmatprep.subr.bf16.mxu0 %v5522
  %6538 = vmatpush1.bf16.msra.mxu0 %v5521
  %6539 = vmatprep.subr.bf16.mxu0 %v5526
  %6540 = vmatpush1.bf16.msra.mxu0 %v5525
  %6541 = vmatprep.subr.bf16.mxu0 %v5530
  %6542 = vmatpush1.bf16.msra.mxu0 %v5529
  %6543 = vmatprep.subr.bf16.mxu0 %v5534
  %6544 = vmatpush1.bf16.msra.mxu0 %v5533
  %6545 = vmatprep.subr.bf16.mxu0 %v5538
  %6546 = vmatpush1.bf16.msra.mxu0 %v5537
  %6547 = vmatprep.subr.bf16.mxu0 %v5542
  %6548 = vmatpush1.bf16.msra.mxu0 %v5541
  %6549 = vmatprep.subr.bf16.mxu0 %v5546
  %6550 = vmatpush1.bf16.msra.mxu0 %v5545
  %6551 = vmatprep.subr.bf16.mxu0 %v5550
  %6552 = vmatpush1.bf16.msra.mxu0 %v5549
  %6553 = vmatprep.subr.bf16.mxu0 %v5554
  %6554 = vmatpush1.bf16.msra.mxu0 %v5553
  %6555 = vmatprep.subr.bf16.mxu0 %v5558
  %6556 = vmatpush1.bf16.msra.mxu0 %v5557
  %6557 = vmatprep.subr.bf16.mxu0 %v5562
  %6558 = vmatpush1.bf16.msra.mxu0 %v5561
  %6559 = vmatprep.subr.bf16.mxu0 %v5566
  %6560 = vmatpush1.bf16.msra.mxu0 %v5565
  %6561 = vmatprep.mubr.bf16.mxu0 %v3404
  %6562 = vmatmul.mubr.bf16.gmra.mrb[0].mxu0 %v3403
  %v6563 = vpop.f32.mrb[0].mxu0
  %v6564 = vadd.f32 %v3952, %v6563
  %v6565 = vpop.f32.mrb[0].mxu0
  %v6566 = vadd.f32 %v3956, %v6565
  %v6567 = vpop.f32.mrb[0].mxu0
  %v6568 = vadd.f32 %v3952, %v6567
  %v6569 = vpop.f32.mrb[0].mxu0
  %v6570 = vadd.f32 %v3956, %v6569
  %6571 = vmatprep.mubr.bf16.mxu0 %v3420
  %6572 = vmatmul.mubr.bf16.gmra.mrb[0].mxu0 %v3419
  %v6573 = vpop.f32.mrb[0].mxu0
  %v6574 = vadd.f32 %v3952, %v6573
  %v6575 = vpop.f32.mrb[0].mxu0
  %v6576 = vadd.f32 %v3956, %v6575
  %v6577 = vpop.f32.mrb[0].mxu0
  %v6578 = vpop.f32.mrb[0].mxu0
  %6579 = vdwg.mxu0
  %6580 = vmatprep.subr.bf16.mxu0 %v5570
  %6581 = vmatpush1.bf16.msra.mxu0 %v5569
  %6582 = vmatprep.subr.bf16.mxu0 %v5574
  %6583 = vmatpush1.bf16.msra.mxu0 %v5573
  %6584 = vmatprep.subr.bf16.mxu0 %v5578
  %6585 = vmatpush1.bf16.msra.mxu0 %v5577
  %6586 = vmatprep.subr.bf16.mxu0 %v5582
  %6587 = vmatpush1.bf16.msra.mxu0 %v5581
  %6588 = vmatprep.subr.bf16.mxu0 %v5586
  %6589 = vmatpush1.bf16.msra.mxu0 %v5585
  %6590 = vmatprep.subr.bf16.mxu0 %v5590
  %6591 = vmatpush1.bf16.msra.mxu0 %v5589
  %6592 = vmatprep.subr.bf16.mxu0 %v5594
  %6593 = vmatpush1.bf16.msra.mxu0 %v5593
  %6594 = vmatprep.subr.bf16.mxu0 %v5598
  %6595 = vmatpush1.bf16.msra.mxu0 %v5597
  %6596 = vmatprep.subr.bf16.mxu0 %v5602
  %6597 = vmatpush1.bf16.msra.mxu0 %v5601
  %6598 = vmatprep.subr.bf16.mxu0 %v5606
  %6599 = vmatpush1.bf16.msra.mxu0 %v5605
  %6600 = vmatprep.subr.bf16.mxu0 %v5610
  %6601 = vmatpush1.bf16.msra.mxu0 %v5609
  %6602 = vmatprep.subr.bf16.mxu0 %v5614
  %6603 = vmatpush1.bf16.msra.mxu0 %v5613
  %6604 = vmatprep.subr.bf16.mxu0 %v5618
  %6605 = vmatpush1.bf16.msra.mxu0 %v5617
  %6606 = vmatprep.subr.bf16.mxu0 %v5622
  %6607 = vmatpush1.bf16.msra.mxu0 %v5621
  %6608 = vmatprep.subr.bf16.mxu0 %v5626
  %6609 = vmatpush1.bf16.msra.mxu0 %v5625
  %6610 = vmatprep.subr.bf16.mxu0 %v5630
  %6611 = vmatpush1.bf16.msra.mxu0 %v5629
  %6612 = vmatprep.mubr.bf16.mxu0 %v3406
  %6613 = vmatmul.mubr.bf16.gmra.mrb[0].mxu0 %v3405
  %v6614 = vpop.f32.mrb[0].mxu0
  %v6615 = vadd.f32 %v6564, %v6614
  %v6616 = vpop.f32.mrb[0].mxu0
  %v6617 = vadd.f32 %v6566, %v6616
  %v6618 = vpop.f32.mrb[0].mxu0
  %v6619 = vadd.f32 %v6568, %v6618
  %v6620 = vpop.f32.mrb[0].mxu0
  %v6621 = vadd.f32 %v6570, %v6620
  %6622 = vmatprep.mubr.bf16.mxu0 %v3422
  %6623 = vmatmul.mubr.bf16.gmra.mrb[0].mxu0 %v3421
  %v6624 = vpop.f32.mrb[0].mxu0
  %v6625 = vadd.f32 %v6574, %v6624
  %v6626 = vpop.f32.mrb[0].mxu0
  %v6627 = vadd.f32 %v6576, %v6626
  %v6628 = vpop.f32.mrb[0].mxu0
  %v6629 = vpop.f32.mrb[0].mxu0
  %6630 = vdwg.mxu0
  %6631 = vmatprep.subr.bf16.mxu0 %v5634
  %6632 = vmatpush1.bf16.msra.mxu0 %v5633
  %6633 = vmatprep.subr.bf16.mxu0 %v5638
  %6634 = vmatpush1.bf16.msra.mxu0 %v5637
  %6635 = vmatprep.subr.bf16.mxu0 %v5642
  %6636 = vmatpush1.bf16.msra.mxu0 %v5641
  %6637 = vmatprep.subr.bf16.mxu0 %v5646
  %6638 = vmatpush1.bf16.msra.mxu0 %v5645
  %6639 = vmatprep.subr.bf16.mxu0 %v5650
  %6640 = vmatpush1.bf16.msra.mxu0 %v5649
  %6641 = vmatprep.subr.bf16.mxu0 %v5654
  %6642 = vmatpush1.bf16.msra.mxu0 %v5653
  %6643 = vmatprep.subr.bf16.mxu0 %v5658
  %6644 = vmatpush1.bf16.msra.mxu0 %v5657
  %6645 = vmatprep.subr.bf16.mxu0 %v5662
  %6646 = vmatpush1.bf16.msra.mxu0 %v5661
  %6647 = vmatprep.subr.bf16.mxu0 %v5666
  %6648 = vmatpush1.bf16.msra.mxu0 %v5665
  %6649 = vmatprep.subr.bf16.mxu0 %v5670
  %6650 = vmatpush1.bf16.msra.mxu0 %v5669
  %6651 = vmatprep.subr.bf16.mxu0 %v5674
  %6652 = vmatpush1.bf16.msra.mxu0 %v5673
  %6653 = vmatprep.subr.bf16.mxu0 %v5678
  %6654 = vmatpush1.bf16.msra.mxu0 %v5677
  %6655 = vmatprep.subr.bf16.mxu0 %v5682
  %6656 = vmatpush1.bf16.msra.mxu0 %v5681
  %6657 = vmatprep.subr.bf16.mxu0 %v5686
  %6658 = vmatpush1.bf16.msra.mxu0 %v5685
  %6659 = vmatprep.subr.bf16.mxu0 %v5690
  %6660 = vmatpush1.bf16.msra.mxu0 %v5689
  %6661 = vmatprep.subr.bf16.mxu0 %v5694
  %6662 = vmatpush1.bf16.msra.mxu0 %v5693
  %6663 = vmatprep.mubr.bf16.mxu0 %v3408
  %6664 = vmatmul.mubr.bf16.gmra.mrb[0].mxu0 %v3407
  %v6665 = vpop.f32.mrb[0].mxu0
  %v6666 = vadd.f32 %v6615, %v6665
  %v6667 = vpop.f32.mrb[0].mxu0
  %v6668 = vadd.f32 %v6617, %v6667
  %v6669 = vpop.f32.mrb[0].mxu0
  %v6670 = vadd.f32 %v6619, %v6669
  %v6671 = vpop.f32.mrb[0].mxu0
  %v6672 = vadd.f32 %v6621, %v6671
  %6673 = vmatprep.mubr.bf16.mxu0 %v3424
  %6674 = vmatmul.mubr.bf16.gmra.mrb[0].mxu0 %v3423
  %v6675 = vpop.f32.mrb[0].mxu0
  %v6676 = vadd.f32 %v6625, %v6675
  %v6677 = vpop.f32.mrb[0].mxu0
  %v6678 = vadd.f32 %v6627, %v6677
  %v6679 = vpop.f32.mrb[0].mxu0
  %v6680 = vpop.f32.mrb[0].mxu0
  %6681 = vdwg.mxu0
  %6682 = vmatprep.subr.bf16.mxu0 %v5698
  %6683 = vmatpush1.bf16.msra.mxu0 %v5697
  %6684 = vmatprep.subr.bf16.mxu0 %v5702
  %6685 = vmatpush1.bf16.msra.mxu0 %v5701
  %6686 = vmatprep.subr.bf16.mxu0 %v5706
  %6687 = vmatpush1.bf16.msra.mxu0 %v5705
  %6688 = vmatprep.subr.bf16.mxu0 %v5710
  %6689 = vmatpush1.bf16.msra.mxu0 %v5709
  %6690 = vmatprep.subr.bf16.mxu0 %v5714
  %6691 = vmatpush1.bf16.msra.mxu0 %v5713
  %6692 = vmatprep.subr.bf16.mxu0 %v5718
  %6693 = vmatpush1.bf16.msra.mxu0 %v5717
  %6694 = vmatprep.subr.bf16.mxu0 %v5722
  %6695 = vmatpush1.bf16.msra.mxu0 %v5721
  %6696 = vmatprep.subr.bf16.mxu0 %v5726
  %6697 = vmatpush1.bf16.msra.mxu0 %v5725
  %6698 = vmatprep.subr.bf16.mxu0 %v5730
  %6699 = vmatpush1.bf16.msra.mxu0 %v5729
  %6700 = vmatprep.subr.bf16.mxu0 %v5734
  %6701 = vmatpush1.bf16.msra.mxu0 %v5733
  %6702 = vmatprep.subr.bf16.mxu0 %v5738
  %6703 = vmatpush1.bf16.msra.mxu0 %v5737
  %6704 = vmatprep.subr.bf16.mxu0 %v5742
  %6705 = vmatpush1.bf16.msra.mxu0 %v5741
  %6706 = vmatprep.subr.bf16.mxu0 %v5746
  %6707 = vmatpush1.bf16.msra.mxu0 %v5745
  %6708 = vmatprep.subr.bf16.mxu0 %v5750
  %6709 = vmatpush1.bf16.msra.mxu0 %v5749
  %6710 = vmatprep.subr.bf16.mxu0 %v5754
  %6711 = vmatpush1.bf16.msra.mxu0 %v5753
  %6712 = vmatprep.subr.bf16.mxu0 %v5758
  %6713 = vmatpush1.bf16.msra.mxu0 %v5757
  %6714 = vmatprep.mubr.bf16.mxu0 %v3410
  %6715 = vmatmul.mubr.bf16.gmra.mrb[0].mxu0 %v3409
  %v6716 = vpop.f32.mrb[0].mxu0
  %v6717 = vadd.f32 %v6666, %v6716
  %v6718 = vpop.f32.mrb[0].mxu0
  %v6719 = vadd.f32 %v6668, %v6718
  %v6720 = vpop.f32.mrb[0].mxu0
  %v6721 = vadd.f32 %v6670, %v6720
  %v6722 = vpop.f32.mrb[0].mxu0
  %v6723 = vadd.f32 %v6672, %v6722
  %6724 = vmatprep.mubr.bf16.mxu0 %v3426
  %6725 = vmatmul.mubr.bf16.gmra.mrb[0].mxu0 %v3425
  %v6726 = vpop.f32.mrb[0].mxu0
  %v6727 = vadd.f32 %v6676, %v6726
  %v6728 = vpop.f32.mrb[0].mxu0
  %v6729 = vadd.f32 %v6678, %v6728
  %v6730 = vpop.f32.mrb[0].mxu0
  %v6731 = vpop.f32.mrb[0].mxu0
  %6732 = vdwg.mxu0
  %6733 = vmatprep.subr.bf16.mxu0 %v5762
  %6734 = vmatpush1.bf16.msra.mxu0 %v5761
  %6735 = vmatprep.subr.bf16.mxu0 %v5766
  %6736 = vmatpush1.bf16.msra.mxu0 %v5765
  %6737 = vmatprep.subr.bf16.mxu0 %v5770
  %6738 = vmatpush1.bf16.msra.mxu0 %v5769
  %6739 = vmatprep.subr.bf16.mxu0 %v5774
  %6740 = vmatpush1.bf16.msra.mxu0 %v5773
  %6741 = vmatprep.subr.bf16.mxu0 %v5778
  %6742 = vmatpush1.bf16.msra.mxu0 %v5777
  %6743 = vmatprep.subr.bf16.mxu0 %v5782
  %6744 = vmatpush1.bf16.msra.mxu0 %v5781
  %6745 = vmatprep.subr.bf16.mxu0 %v5786
  %6746 = vmatpush1.bf16.msra.mxu0 %v5785
  %6747 = vmatprep.subr.bf16.mxu0 %v5790
  %6748 = vmatpush1.bf16.msra.mxu0 %v5789
  %6749 = vmatprep.subr.bf16.mxu0 %v5794
  %6750 = vmatpush1.bf16.msra.mxu0 %v5793
  %6751 = vmatprep.subr.bf16.mxu0 %v5798
  %6752 = vmatpush1.bf16.msra.mxu0 %v5797
  %6753 = vmatprep.subr.bf16.mxu0 %v5802
  %6754 = vmatpush1.bf16.msra.mxu0 %v5801
  %6755 = vmatprep.subr.bf16.mxu0 %v5806
  %6756 = vmatpush1.bf16.msra.mxu0 %v5805
  %6757 = vmatprep.subr.bf16.mxu0 %v5810
  %6758 = vmatpush1.bf16.msra.mxu0 %v5809
  %6759 = vmatprep.subr.bf16.mxu0 %v5814
  %6760 = vmatpush1.bf16.msra.mxu0 %v5813
  %6761 = vmatprep.subr.bf16.mxu0 %v5818
  %6762 = vmatpush1.bf16.msra.mxu0 %v5817
  %6763 = vmatprep.subr.bf16.mxu0 %v5822
  %6764 = vmatpush1.bf16.msra.mxu0 %v5821
  %6765 = vmatprep.mubr.bf16.mxu0 %v3412
  %6766 = vmatmul.mubr.bf16.gmra.mrb[0].mxu0 %v3411
  %v6767 = vpop.f32.mrb[0].mxu0
  %v6768 = vadd.f32 %v6717, %v6767
  %v6769 = vpop.f32.mrb[0].mxu0
  %v6770 = vadd.f32 %v6719, %v6769
  %v6771 = vpop.f32.mrb[0].mxu0
  %v6772 = vadd.f32 %v6721, %v6771
  %v6773 = vpop.f32.mrb[0].mxu0
  %v6774 = vadd.f32 %v6723, %v6773
  %6775 = vmatprep.mubr.bf16.mxu0 %v3428
  %6776 = vmatmul.mubr.bf16.gmra.mrb[0].mxu0 %v3427
  %v6777 = vpop.f32.mrb[0].mxu0
  %v6778 = vadd.f32 %v6727, %v6777
  %v6779 = vpop.f32.mrb[0].mxu0
  %v6780 = vadd.f32 %v6729, %v6779
  %v6781 = vpop.f32.mrb[0].mxu0
  %v6782 = vpop.f32.mrb[0].mxu0
  %6783 = vdwg.mxu0
  %6784 = vmatprep.subr.bf16.mxu0 %v5826
  %6785 = vmatpush1.bf16.msra.mxu0 %v5825
  %6786 = vmatprep.subr.bf16.mxu0 %v5830
  %6787 = vmatpush1.bf16.msra.mxu0 %v5829
  %6788 = vmatprep.subr.bf16.mxu0 %v5834
  %6789 = vmatpush1.bf16.msra.mxu0 %v5833
  %6790 = vmatprep.subr.bf16.mxu0 %v5838
  %6791 = vmatpush1.bf16.msra.mxu0 %v5837
  %6792 = vmatprep.subr.bf16.mxu0 %v5842
  %6793 = vmatpush1.bf16.msra.mxu0 %v5841
  %6794 = vmatprep.subr.bf16.mxu0 %v5846
  %6795 = vmatpush1.bf16.msra.mxu0 %v5845
  %6796 = vmatprep.subr.bf16.mxu0 %v5850
  %6797 = vmatpush1.bf16.msra.mxu0 %v5849
  %6798 = vmatprep.subr.bf16.mxu0 %v5854
  %6799 = vmatpush1.bf16.msra.mxu0 %v5853
  %6800 = vmatprep.subr.bf16.mxu0 %v5858
  %6801 = vmatpush1.bf16.msra.mxu0 %v5857
  %6802 = vmatprep.subr.bf16.mxu0 %v5862
  %6803 = vmatpush1.bf16.msra.mxu0 %v5861
  %6804 = vmatprep.subr.bf16.mxu0 %v5866
  %6805 = vmatpush1.bf16.msra.mxu0 %v5865
  %6806 = vmatprep.subr.bf16.mxu0 %v5870
  %6807 = vmatpush1.bf16.msra.mxu0 %v5869
  %6808 = vmatprep.subr.bf16.mxu0 %v5874
  %6809 = vmatpush1.bf16.msra.mxu0 %v5873
  %6810 = vmatprep.subr.bf16.mxu0 %v5878
  %6811 = vmatpush1.bf16.msra.mxu0 %v5877
  %6812 = vmatprep.subr.bf16.mxu0 %v5882
  %6813 = vmatpush1.bf16.msra.mxu0 %v5881
  %6814 = vmatprep.subr.bf16.mxu0 %v5886
  %6815 = vmatpush1.bf16.msra.mxu0 %v5885
  %6816 = vmatprep.mubr.bf16.mxu0 %v3414
  %6817 = vmatmul.mubr.bf16.gmra.mrb[0].mxu0 %v3413
  %v6818 = vpop.f32.mrb[0].mxu0
  %v6819 = vadd.f32 %v6768, %v6818
  %v6820 = vpop.f32.mrb[0].mxu0
  %v6821 = vadd.f32 %v6770, %v6820
  %v6822 = vpop.f32.mrb[0].mxu0
  %v6823 = vadd.f32 %v6772, %v6822
  %v6824 = vpop.f32.mrb[0].mxu0
  %v6825 = vadd.f32 %v6774, %v6824
  %6826 = vmatprep.mubr.bf16.mxu0 %v3430
  %6827 = vmatmul.mubr.bf16.gmra.mrb[0].mxu0 %v3429
  %v6828 = vpop.f32.mrb[0].mxu0
  %v6829 = vadd.f32 %v6778, %v6828
  %v6830 = vpop.f32.mrb[0].mxu0
  %v6831 = vadd.f32 %v6780, %v6830
  %v6832 = vpop.f32.mrb[0].mxu0
  %v6833 = vpop.f32.mrb[0].mxu0
  %6834 = vdwg.mxu0
  %6835 = vmatprep.subr.bf16.mxu0 %v5890
  %6836 = vmatpush1.bf16.msra.mxu0 %v5889
  %6837 = vmatprep.subr.bf16.mxu0 %v5894
  %6838 = vmatpush1.bf16.msra.mxu0 %v5893
  %6839 = vmatprep.subr.bf16.mxu0 %v5898
  %6840 = vmatpush1.bf16.msra.mxu0 %v5897
  %6841 = vmatprep.subr.bf16.mxu0 %v5902
  %6842 = vmatpush1.bf16.msra.mxu0 %v5901
  %6843 = vmatprep.subr.bf16.mxu0 %v5906
  %6844 = vmatpush1.bf16.msra.mxu0 %v5905
  %6845 = vmatprep.subr.bf16.mxu0 %v5910
  %6846 = vmatpush1.bf16.msra.mxu0 %v5909
  %6847 = vmatprep.subr.bf16.mxu0 %v5914
  %6848 = vmatpush1.bf16.msra.mxu0 %v5913
  %6849 = vmatprep.subr.bf16.mxu0 %v5918
  %6850 = vmatpush1.bf16.msra.mxu0 %v5917
  %6851 = vmatprep.subr.bf16.mxu0 %v5922
  %6852 = vmatpush1.bf16.msra.mxu0 %v5921
  %6853 = vmatprep.subr.bf16.mxu0 %v5926
  %6854 = vmatpush1.bf16.msra.mxu0 %v5925
  %6855 = vmatprep.subr.bf16.mxu0 %v5930
  %6856 = vmatpush1.bf16.msra.mxu0 %v5929
  %6857 = vmatprep.subr.bf16.mxu0 %v5934
  %6858 = vmatpush1.bf16.msra.mxu0 %v5933
  %6859 = vmatprep.subr.bf16.mxu0 %v5938
  %6860 = vmatpush1.bf16.msra.mxu0 %v5937
  %6861 = vmatprep.subr.bf16.mxu0 %v5942
  %6862 = vmatpush1.bf16.msra.mxu0 %v5941
  %6863 = vmatprep.subr.bf16.mxu0 %v5946
  %6864 = vmatpush1.bf16.msra.mxu0 %v5945
  %6865 = vmatprep.subr.bf16.mxu0 %v5950
  %6866 = vmatpush1.bf16.msra.mxu0 %v5949
  %6867 = vmatprep.mubr.bf16.mxu0 %v3416
  %6868 = vmatmul.mubr.bf16.gmra.mrb[0].mxu0 %v3415
  %v6869 = vpop.f32.mrb[0].mxu0
  %v6870 = vadd.f32 %v6819, %v6869
  %v6871 = vpop.f32.mrb[0].mxu0
  %v6872 = vadd.f32 %v6821, %v6871
  %v6873 = vpop.f32.mrb[0].mxu0
  %v6874 = vadd.f32 %v6823, %v6873
  %v6875 = vpop.f32.mrb[0].mxu0
  %v6876 = vadd.f32 %v6825, %v6875
  %6877 = vmatprep.mubr.bf16.mxu0 %v3432
  %6878 = vmatmul.mubr.bf16.gmra.mrb[0].mxu0 %v3431
  %v6879 = vpop.f32.mrb[0].mxu0
  %v6880 = vadd.f32 %v6829, %v6879
  %v6881 = vpop.f32.mrb[0].mxu0
  %v6882 = vadd.f32 %v6831, %v6881
  %v6883 = vpop.f32.mrb[0].mxu0
  %v6884 = vpop.f32.mrb[0].mxu0
  %6885 = vdwg.mxu0
  %6886 = vmatprep.subr.bf16.mxu0 %v5954
  %6887 = vmatpush1.bf16.msra.mxu0 %v5953
  %6888 = vmatprep.subr.bf16.mxu0 %v5958
  %6889 = vmatpush1.bf16.msra.mxu0 %v5957
  %6890 = vmatprep.subr.bf16.mxu0 %v5962
  %6891 = vmatpush1.bf16.msra.mxu0 %v5961
  %6892 = vmatprep.subr.bf16.mxu0 %v5966
  %6893 = vmatpush1.bf16.msra.mxu0 %v5965
  %6894 = vmatprep.subr.bf16.mxu0 %v5970
  %6895 = vmatpush1.bf16.msra.mxu0 %v5969
  %6896 = vmatprep.subr.bf16.mxu0 %v5974
  %6897 = vmatpush1.bf16.msra.mxu0 %v5973
  %6898 = vmatprep.subr.bf16.mxu0 %v5978
  %6899 = vmatpush1.bf16.msra.mxu0 %v5977
  %6900 = vmatprep.subr.bf16.mxu0 %v5982
  %6901 = vmatpush1.bf16.msra.mxu0 %v5981
  %6902 = vmatprep.subr.bf16.mxu0 %v5986
  %6903 = vmatpush1.bf16.msra.mxu0 %v5985
  %6904 = vmatprep.subr.bf16.mxu0 %v5990
  %6905 = vmatpush1.bf16.msra.mxu0 %v5989
  %6906 = vmatprep.subr.bf16.mxu0 %v5994
  %6907 = vmatpush1.bf16.msra.mxu0 %v5993
  %6908 = vmatprep.subr.bf16.mxu0 %v5998
  %6909 = vmatpush1.bf16.msra.mxu0 %v5997
  %6910 = vmatprep.subr.bf16.mxu0 %v6002
  %6911 = vmatpush1.bf16.msra.mxu0 %v6001
  %6912 = vmatprep.subr.bf16.mxu0 %v6006
  %6913 = vmatpush1.bf16.msra.mxu0 %v6005
  %6914 = vmatprep.subr.bf16.mxu0 %v6010
  %6915 = vmatpush1.bf16.msra.mxu0 %v6009
  %6916 = vmatprep.subr.bf16.mxu0 %v6014
  %6917 = vmatpush1.bf16.msra.mxu0 %v6013
  %6918 = vmatprep.mubr.bf16.mxu0 %v3418
  %6919 = vmatmul.mubr.bf16.gmra.mrb[0].mxu0 %v3417
  %v6920 = vpop.f32.mrb[0].mxu0
  %v6921 = vadd.f32 %v6870, %v6920
  %v6922 = vpop.f32.mrb[0].mxu0
  %v6923 = vadd.f32 %v6872, %v6922
  %v6924 = vpop.f32.mrb[0].mxu0
  %v6925 = vadd.f32 %v6874, %v6924
  %v6926 = vpop.f32.mrb[0].mxu0
  %v6927 = vadd.f32 %v6876, %v6926
  %6928 = vmatprep.mubr.bf16.mxu0 %v3434
  %6929 = vmatmul.mubr.bf16.gmra.mrb[0].mxu0 %v3433
  %v6930 = vpop.f32.mrb[0].mxu0
  %v6931 = vadd.f32 %v6880, %v6930
  %v6932 = vpop.f32.mrb[0].mxu0
  %v6933 = vadd.f32 %v6882, %v6932
  %v6934 = vpop.f32.mrb[0].mxu0
  %v6935 = vpop.f32.mrb[0].mxu0
  %6936 = vdwg.mxu0
  %6937 = vmatprep.subr.bf16.mxu0 %v5508
  %6938 = vmatpush1.bf16.msra.mxu0 %v5507
  %6939 = vmatprep.subr.bf16.mxu0 %v5512
  %6940 = vmatpush1.bf16.msra.mxu0 %v5511
  %6941 = vmatprep.subr.bf16.mxu0 %v5516
  %6942 = vmatpush1.bf16.msra.mxu0 %v5515
  %6943 = vmatprep.subr.bf16.mxu0 %v5520
  %6944 = vmatpush1.bf16.msra.mxu0 %v5519
  %6945 = vmatprep.subr.bf16.mxu0 %v5524
  %6946 = vmatpush1.bf16.msra.mxu0 %v5523
  %6947 = vmatprep.subr.bf16.mxu0 %v5528
  %6948 = vmatpush1.bf16.msra.mxu0 %v5527
  %6949 = vmatprep.subr.bf16.mxu0 %v5532
  %6950 = vmatpush1.bf16.msra.mxu0 %v5531
  %6951 = vmatprep.subr.bf16.mxu0 %v5536
  %6952 = vmatpush1.bf16.msra.mxu0 %v5535
  %6953 = vmatprep.subr.bf16.mxu0 %v5540
  %6954 = vmatpush1.bf16.msra.mxu0 %v5539
  %6955 = vmatprep.subr.bf16.mxu0 %v5544
  %6956 = vmatpush1.bf16.msra.mxu0 %v5543
  %6957 = vmatprep.subr.bf16.mxu0 %v5548
  %6958 = vmatpush1.bf16.msra.mxu0 %v5547
  %6959 = vmatprep.subr.bf16.mxu0 %v5552
  %6960 = vmatpush1.bf16.msra.mxu0 %v5551
  %6961 = vmatprep.subr.bf16.mxu0 %v5556
  %6962 = vmatpush1.bf16.msra.mxu0 %v5555
  %6963 = vmatprep.subr.bf16.mxu0 %v5560
  %6964 = vmatpush1.bf16.msra.mxu0 %v5559
  %6965 = vmatprep.subr.bf16.mxu0 %v5564
  %6966 = vmatpush1.bf16.msra.mxu0 %v5563
  %6967 = vmatprep.subr.bf16.mxu0 %v5568
  %6968 = vmatpush1.bf16.msra.mxu0 %v5567
  %6969 = vmatprep.mubr.bf16.mxu0 %v3404
  %6970 = vmatmul.mubr.bf16.gmra.mrb[0].mxu0 %v3403
  %v6971 = vpop.f32.mrb[0].mxu0
  %v6972 = vadd.f32 %v3960, %v6971
  %v6973 = vpop.f32.mrb[0].mxu0
  %v6974 = vadd.f32 %v3964, %v6973
  %v6975 = vpop.f32.mrb[0].mxu0
  %v6976 = vadd.f32 %v3960, %v6975
  %v6977 = vpop.f32.mrb[0].mxu0
  %v6978 = vadd.f32 %v3964, %v6977
  %6979 = vmatprep.mubr.bf16.mxu0 %v3420
  %6980 = vmatmul.mubr.bf16.gmra.mrb[0].mxu0 %v3419
  %v6981 = vpop.f32.mrb[0].mxu0
  %v6982 = vadd.f32 %v3960, %v6981
  %v6983 = vpop.f32.mrb[0].mxu0
  %v6984 = vadd.f32 %v3964, %v6983
  %v6985 = vpop.f32.mrb[0].mxu0
  %v6986 = vpop.f32.mrb[0].mxu0
  %6987 = vdwg.mxu0
  %6988 = vmatprep.subr.bf16.mxu0 %v5572
  %6989 = vmatpush1.bf16.msra.mxu0 %v5571
  %6990 = vmatprep.subr.bf16.mxu0 %v5576
  %6991 = vmatpush1.bf16.msra.mxu0 %v5575
  %6992 = vmatprep.subr.bf16.mxu0 %v5580
  %6993 = vmatpush1.bf16.msra.mxu0 %v5579
  %6994 = vmatprep.subr.bf16.mxu0 %v5584
  %6995 = vmatpush1.bf16.msra.mxu0 %v5583
  %6996 = vmatprep.subr.bf16.mxu0 %v5588
  %6997 = vmatpush1.bf16.msra.mxu0 %v5587
  %6998 = vmatprep.subr.bf16.mxu0 %v5592
  %6999 = vmatpush1.bf16.msra.mxu0 %v5591
  %7000 = vmatprep.subr.bf16.mxu0 %v5596
  %7001 = vmatpush1.bf16.msra.mxu0 %v5595
  %7002 = vmatprep.subr.bf16.mxu0 %v5600
  %7003 = vmatpush1.bf16.msra.mxu0 %v5599
  %7004 = vmatprep.subr.bf16.mxu0 %v5604
  %7005 = vmatpush1.bf16.msra.mxu0 %v5603
  %7006 = vmatprep.subr.bf16.mxu0 %v5608
  %7007 = vmatpush1.bf16.msra.mxu0 %v5607
  %7008 = vmatprep.subr.bf16.mxu0 %v5612
  %7009 = vmatpush1.bf16.msra.mxu0 %v5611
  %7010 = vmatprep.subr.bf16.mxu0 %v5616
  %7011 = vmatpush1.bf16.msra.mxu0 %v5615
  %7012 = vmatprep.subr.bf16.mxu0 %v5620
  %7013 = vmatpush1.bf16.msra.mxu0 %v5619
  %7014 = vmatprep.subr.bf16.mxu0 %v5624
  %7015 = vmatpush1.bf16.msra.mxu0 %v5623
  %7016 = vmatprep.subr.bf16.mxu0 %v5628
  %7017 = vmatpush1.bf16.msra.mxu0 %v5627
  %7018 = vmatprep.subr.bf16.mxu0 %v5632
  %7019 = vmatpush1.bf16.msra.mxu0 %v5631
  %7020 = vmatprep.mubr.bf16.mxu0 %v3406
  %7021 = vmatmul.mubr.bf16.gmra.mrb[0].mxu0 %v3405
  %v7022 = vpop.f32.mrb[0].mxu0
  %v7023 = vadd.f32 %v6972, %v7022
  %v7024 = vpop.f32.mrb[0].mxu0
  %v7025 = vadd.f32 %v6974, %v7024
  %v7026 = vpop.f32.mrb[0].mxu0
  %v7027 = vadd.f32 %v6976, %v7026
  %v7028 = vpop.f32.mrb[0].mxu0
  %v7029 = vadd.f32 %v6978, %v7028
  %7030 = vmatprep.mubr.bf16.mxu0 %v3422
  %7031 = vmatmul.mubr.bf16.gmra.mrb[0].mxu0 %v3421
  %v7032 = vpop.f32.mrb[0].mxu0
  %v7033 = vadd.f32 %v6982, %v7032
  %v7034 = vpop.f32.mrb[0].mxu0
  %v7035 = vadd.f32 %v6984, %v7034
  %v7036 = vpop.f32.mrb[0].mxu0
  %v7037 = vpop.f32.mrb[0].mxu0
  %7038 = vdwg.mxu0
  %7039 = vmatprep.subr.bf16.mxu0 %v5636
  %7040 = vmatpush1.bf16.msra.mxu0 %v5635
  %7041 = vmatprep.subr.bf16.mxu0 %v5640
  %7042 = vmatpush1.bf16.msra.mxu0 %v5639
  %7043 = vmatprep.subr.bf16.mxu0 %v5644
  %7044 = vmatpush1.bf16.msra.mxu0 %v5643
  %7045 = vmatprep.subr.bf16.mxu0 %v5648
  %7046 = vmatpush1.bf16.msra.mxu0 %v5647
  %7047 = vmatprep.subr.bf16.mxu0 %v5652
  %7048 = vmatpush1.bf16.msra.mxu0 %v5651
  %7049 = vmatprep.subr.bf16.mxu0 %v5656
  %7050 = vmatpush1.bf16.msra.mxu0 %v5655
  %7051 = vmatprep.subr.bf16.mxu0 %v5660
  %7052 = vmatpush1.bf16.msra.mxu0 %v5659
  %7053 = vmatprep.subr.bf16.mxu0 %v5664
  %7054 = vmatpush1.bf16.msra.mxu0 %v5663
  %7055 = vmatprep.subr.bf16.mxu0 %v5668
  %7056 = vmatpush1.bf16.msra.mxu0 %v5667
  %7057 = vmatprep.subr.bf16.mxu0 %v5672
  %7058 = vmatpush1.bf16.msra.mxu0 %v5671
  %7059 = vmatprep.subr.bf16.mxu0 %v5676
  %7060 = vmatpush1.bf16.msra.mxu0 %v5675
  %7061 = vmatprep.subr.bf16.mxu0 %v5680
  %7062 = vmatpush1.bf16.msra.mxu0 %v5679
  %7063 = vmatprep.subr.bf16.mxu0 %v5684
  %7064 = vmatpush1.bf16.msra.mxu0 %v5683
  %7065 = vmatprep.subr.bf16.mxu0 %v5688
  %7066 = vmatpush1.bf16.msra.mxu0 %v5687
  %7067 = vmatprep.subr.bf16.mxu0 %v5692
  %7068 = vmatpush1.bf16.msra.mxu0 %v5691
  %7069 = vmatprep.subr.bf16.mxu0 %v5696
  %7070 = vmatpush1.bf16.msra.mxu0 %v5695
  %7071 = vmatprep.mubr.bf16.mxu0 %v3408
  %7072 = vmatmul.mubr.bf16.gmra.mrb[0].mxu0 %v3407
  %v7073 = vpop.f32.mrb[0].mxu0
  %v7074 = vadd.f32 %v7023, %v7073
  %v7075 = vpop.f32.mrb[0].mxu0
  %v7076 = vadd.f32 %v7025, %v7075
  %v7077 = vpop.f32.mrb[0].mxu0
  %v7078 = vadd.f32 %v7027, %v7077
  %v7079 = vpop.f32.mrb[0].mxu0
  %v7080 = vadd.f32 %v7029, %v7079
  %7081 = vmatprep.mubr.bf16.mxu0 %v3424
  %7082 = vmatmul.mubr.bf16.gmra.mrb[0].mxu0 %v3423
  %v7083 = vpop.f32.mrb[0].mxu0
  %v7084 = vadd.f32 %v7033, %v7083
  %v7085 = vpop.f32.mrb[0].mxu0
  %v7086 = vadd.f32 %v7035, %v7085
  %v7087 = vpop.f32.mrb[0].mxu0
  %v7088 = vpop.f32.mrb[0].mxu0
  %7089 = vdwg.mxu0
  %7090 = vmatprep.subr.bf16.mxu0 %v5700
  %7091 = vmatpush1.bf16.msra.mxu0 %v5699
  %7092 = vmatprep.subr.bf16.mxu0 %v5704
  %7093 = vmatpush1.bf16.msra.mxu0 %v5703
  %7094 = vmatprep.subr.bf16.mxu0 %v5708
  %7095 = vmatpush1.bf16.msra.mxu0 %v5707
  %7096 = vmatprep.subr.bf16.mxu0 %v5712
  %7097 = vmatpush1.bf16.msra.mxu0 %v5711
  %7098 = vmatprep.subr.bf16.mxu0 %v5716
  %7099 = vmatpush1.bf16.msra.mxu0 %v5715
  %7100 = vmatprep.subr.bf16.mxu0 %v5720
  %7101 = vmatpush1.bf16.msra.mxu0 %v5719
  %7102 = vmatprep.subr.bf16.mxu0 %v5724
  %7103 = vmatpush1.bf16.msra.mxu0 %v5723
  %7104 = vmatprep.subr.bf16.mxu0 %v5728
  %7105 = vmatpush1.bf16.msra.mxu0 %v5727
  %7106 = vmatprep.subr.bf16.mxu0 %v5732
  %7107 = vmatpush1.bf16.msra.mxu0 %v5731
  %7108 = vmatprep.subr.bf16.mxu0 %v5736
  %7109 = vmatpush1.bf16.msra.mxu0 %v5735
  %7110 = vmatprep.subr.bf16.mxu0 %v5740
  %7111 = vmatpush1.bf16.msra.mxu0 %v5739
  %7112 = vmatprep.subr.bf16.mxu0 %v5744
  %7113 = vmatpush1.bf16.msra.mxu0 %v5743
  %7114 = vmatprep.subr.bf16.mxu0 %v5748
  %7115 = vmatpush1.bf16.msra.mxu0 %v5747
  %7116 = vmatprep.subr.bf16.mxu0 %v5752
  %7117 = vmatpush1.bf16.msra.mxu0 %v5751
  %7118 = vmatprep.subr.bf16.mxu0 %v5756
  %7119 = vmatpush1.bf16.msra.mxu0 %v5755
  %7120 = vmatprep.subr.bf16.mxu0 %v5760
  %7121 = vmatpush1.bf16.msra.mxu0 %v5759
  %7122 = vmatprep.mubr.bf16.mxu0 %v3410
  %7123 = vmatmul.mubr.bf16.gmra.mrb[0].mxu0 %v3409
  %v7124 = vpop.f32.mrb[0].mxu0
  %v7125 = vadd.f32 %v7074, %v7124
  %v7126 = vpop.f32.mrb[0].mxu0
  %v7127 = vadd.f32 %v7076, %v7126
  %v7128 = vpop.f32.mrb[0].mxu0
  %v7129 = vadd.f32 %v7078, %v7128
  %v7130 = vpop.f32.mrb[0].mxu0
  %v7131 = vadd.f32 %v7080, %v7130
  %7132 = vmatprep.mubr.bf16.mxu0 %v3426
  %7133 = vmatmul.mubr.bf16.gmra.mrb[0].mxu0 %v3425
  %v7134 = vpop.f32.mrb[0].mxu0
  %v7135 = vadd.f32 %v7084, %v7134
  %v7136 = vpop.f32.mrb[0].mxu0
  %v7137 = vadd.f32 %v7086, %v7136
  %v7138 = vpop.f32.mrb[0].mxu0
  %v7139 = vpop.f32.mrb[0].mxu0
  %7140 = vdwg.mxu0
  %7141 = vmatprep.subr.bf16.mxu0 %v5764
  %7142 = vmatpush1.bf16.msra.mxu0 %v5763
  %7143 = vmatprep.subr.bf16.mxu0 %v5768
  %7144 = vmatpush1.bf16.msra.mxu0 %v5767
  %7145 = vmatprep.subr.bf16.mxu0 %v5772
  %7146 = vmatpush1.bf16.msra.mxu0 %v5771
  %7147 = vmatprep.subr.bf16.mxu0 %v5776
  %7148 = vmatpush1.bf16.msra.mxu0 %v5775
  %7149 = vmatprep.subr.bf16.mxu0 %v5780
  %7150 = vmatpush1.bf16.msra.mxu0 %v5779
  %7151 = vmatprep.subr.bf16.mxu0 %v5784
  %7152 = vmatpush1.bf16.msra.mxu0 %v5783
  %7153 = vmatprep.subr.bf16.mxu0 %v5788
  %7154 = vmatpush1.bf16.msra.mxu0 %v5787
  %7155 = vmatprep.subr.bf16.mxu0 %v5792
  %7156 = vmatpush1.bf16.msra.mxu0 %v5791
  %7157 = vmatprep.subr.bf16.mxu0 %v5796
  %7158 = vmatpush1.bf16.msra.mxu0 %v5795
  %7159 = vmatprep.subr.bf16.mxu0 %v5800
  %7160 = vmatpush1.bf16.msra.mxu0 %v5799
  %7161 = vmatprep.subr.bf16.mxu0 %v5804
  %7162 = vmatpush1.bf16.msra.mxu0 %v5803
  %7163 = vmatprep.subr.bf16.mxu0 %v5808
  %7164 = vmatpush1.bf16.msra.mxu0 %v5807
  %7165 = vmatprep.subr.bf16.mxu0 %v5812
  %7166 = vmatpush1.bf16.msra.mxu0 %v5811
  %7167 = vmatprep.subr.bf16.mxu0 %v5816
  %7168 = vmatpush1.bf16.msra.mxu0 %v5815
  %7169 = vmatprep.subr.bf16.mxu0 %v5820
  %7170 = vmatpush1.bf16.msra.mxu0 %v5819
  %7171 = vmatprep.subr.bf16.mxu0 %v5824
  %7172 = vmatpush1.bf16.msra.mxu0 %v5823
  %7173 = vmatprep.mubr.bf16.mxu0 %v3412
  %7174 = vmatmul.mubr.bf16.gmra.mrb[0].mxu0 %v3411
  %v7175 = vpop.f32.mrb[0].mxu0
  %v7176 = vadd.f32 %v7125, %v7175
  %v7177 = vpop.f32.mrb[0].mxu0
  %v7178 = vadd.f32 %v7127, %v7177
  %v7179 = vpop.f32.mrb[0].mxu0
  %v7180 = vadd.f32 %v7129, %v7179
  %v7181 = vpop.f32.mrb[0].mxu0
  %v7182 = vadd.f32 %v7131, %v7181
  %7183 = vmatprep.mubr.bf16.mxu0 %v3428
  %7184 = vmatmul.mubr.bf16.gmra.mrb[0].mxu0 %v3427
  %v7185 = vpop.f32.mrb[0].mxu0
  %v7186 = vadd.f32 %v7135, %v7185
  %v7187 = vpop.f32.mrb[0].mxu0
  %v7188 = vadd.f32 %v7137, %v7187
  %v7189 = vpop.f32.mrb[0].mxu0
  %v7190 = vpop.f32.mrb[0].mxu0
  %7191 = vdwg.mxu0
  %7192 = vmatprep.subr.bf16.mxu0 %v5828
  %7193 = vmatpush1.bf16.msra.mxu0 %v5827
  %7194 = vmatprep.subr.bf16.mxu0 %v5832
  %7195 = vmatpush1.bf16.msra.mxu0 %v5831
  %7196 = vmatprep.subr.bf16.mxu0 %v5836
  %7197 = vmatpush1.bf16.msra.mxu0 %v5835
  %7198 = vmatprep.subr.bf16.mxu0 %v5840
  %7199 = vmatpush1.bf16.msra.mxu0 %v5839
  %7200 = vmatprep.subr.bf16.mxu0 %v5844
  %7201 = vmatpush1.bf16.msra.mxu0 %v5843
  %7202 = vmatprep.subr.bf16.mxu0 %v5848
  %7203 = vmatpush1.bf16.msra.mxu0 %v5847
  %7204 = vmatprep.subr.bf16.mxu0 %v5852
  %7205 = vmatpush1.bf16.msra.mxu0 %v5851
  %7206 = vmatprep.subr.bf16.mxu0 %v5856
  %7207 = vmatpush1.bf16.msra.mxu0 %v5855
  %7208 = vmatprep.subr.bf16.mxu0 %v5860
  %7209 = vmatpush1.bf16.msra.mxu0 %v5859
  %7210 = vmatprep.subr.bf16.mxu0 %v5864
  %7211 = vmatpush1.bf16.msra.mxu0 %v5863
  %7212 = vmatprep.subr.bf16.mxu0 %v5868
  %7213 = vmatpush1.bf16.msra.mxu0 %v5867
  %7214 = vmatprep.subr.bf16.mxu0 %v5872
  %7215 = vmatpush1.bf16.msra.mxu0 %v5871
  %7216 = vmatprep.subr.bf16.mxu0 %v5876
  %7217 = vmatpush1.bf16.msra.mxu0 %v5875
  %7218 = vmatprep.subr.bf16.mxu0 %v5880
  %7219 = vmatpush1.bf16.msra.mxu0 %v5879
  %7220 = vmatprep.subr.bf16.mxu0 %v5884
  %7221 = vmatpush1.bf16.msra.mxu0 %v5883
  %7222 = vmatprep.subr.bf16.mxu0 %v5888
  %7223 = vmatpush1.bf16.msra.mxu0 %v5887
  %7224 = vmatprep.mubr.bf16.mxu0 %v3414
  %7225 = vmatmul.mubr.bf16.gmra.mrb[0].mxu0 %v3413
  %v7226 = vpop.f32.mrb[0].mxu0
  %v7227 = vadd.f32 %v7176, %v7226
  %v7228 = vpop.f32.mrb[0].mxu0
  %v7229 = vadd.f32 %v7178, %v7228
  %v7230 = vpop.f32.mrb[0].mxu0
  %v7231 = vadd.f32 %v7180, %v7230
  %v7232 = vpop.f32.mrb[0].mxu0
  %v7233 = vadd.f32 %v7182, %v7232
  %7234 = vmatprep.mubr.bf16.mxu0 %v3430
  %7235 = vmatmul.mubr.bf16.gmra.mrb[0].mxu0 %v3429
  %v7236 = vpop.f32.mrb[0].mxu0
  %v7237 = vadd.f32 %v7186, %v7236
  %v7238 = vpop.f32.mrb[0].mxu0
  %v7239 = vadd.f32 %v7188, %v7238
  %v7240 = vpop.f32.mrb[0].mxu0
  %v7241 = vpop.f32.mrb[0].mxu0
  %7242 = vdwg.mxu0
  %7243 = vmatprep.subr.bf16.mxu0 %v5892
  %7244 = vmatpush1.bf16.msra.mxu0 %v5891
  %7245 = vmatprep.subr.bf16.mxu0 %v5896
  %7246 = vmatpush1.bf16.msra.mxu0 %v5895
  %7247 = vmatprep.subr.bf16.mxu0 %v5900
  %7248 = vmatpush1.bf16.msra.mxu0 %v5899
  %7249 = vmatprep.subr.bf16.mxu0 %v5904
  %7250 = vmatpush1.bf16.msra.mxu0 %v5903
  %7251 = vmatprep.subr.bf16.mxu0 %v5908
  %7252 = vmatpush1.bf16.msra.mxu0 %v5907
  %7253 = vmatprep.subr.bf16.mxu0 %v5912
  %7254 = vmatpush1.bf16.msra.mxu0 %v5911
  %7255 = vmatprep.subr.bf16.mxu0 %v5916
  %7256 = vmatpush1.bf16.msra.mxu0 %v5915
  %7257 = vmatprep.subr.bf16.mxu0 %v5920
  %7258 = vmatpush1.bf16.msra.mxu0 %v5919
  %7259 = vmatprep.subr.bf16.mxu0 %v5924
  %7260 = vmatpush1.bf16.msra.mxu0 %v5923
  %7261 = vmatprep.subr.bf16.mxu0 %v5928
  %7262 = vmatpush1.bf16.msra.mxu0 %v5927
  %7263 = vmatprep.subr.bf16.mxu0 %v5932
  %7264 = vmatpush1.bf16.msra.mxu0 %v5931
  %7265 = vmatprep.subr.bf16.mxu0 %v5936
  %7266 = vmatpush1.bf16.msra.mxu0 %v5935
  %7267 = vmatprep.subr.bf16.mxu0 %v5940
  %7268 = vmatpush1.bf16.msra.mxu0 %v5939
  %7269 = vmatprep.subr.bf16.mxu0 %v5944
  %7270 = vmatpush1.bf16.msra.mxu0 %v5943
  %7271 = vmatprep.subr.bf16.mxu0 %v5948
  %7272 = vmatpush1.bf16.msra.mxu0 %v5947
  %7273 = vmatprep.subr.bf16.mxu0 %v5952
  %7274 = vmatpush1.bf16.msra.mxu0 %v5951
  %7275 = vmatprep.mubr.bf16.mxu0 %v3416
  %7276 = vmatmul.mubr.bf16.gmra.mrb[0].mxu0 %v3415
  %v7277 = vpop.f32.mrb[0].mxu0
  %v7278 = vadd.f32 %v7227, %v7277
  %v7279 = vpop.f32.mrb[0].mxu0
  %v7280 = vadd.f32 %v7229, %v7279
  %v7281 = vpop.f32.mrb[0].mxu0
  %v7282 = vadd.f32 %v7231, %v7281
  %v7283 = vpop.f32.mrb[0].mxu0
  %v7284 = vadd.f32 %v7233, %v7283
  %7285 = vmatprep.mubr.bf16.mxu0 %v3432
  %7286 = vmatmul.mubr.bf16.gmra.mrb[0].mxu0 %v3431
  %v7287 = vpop.f32.mrb[0].mxu0
  %v7288 = vadd.f32 %v7237, %v7287
  %v7289 = vpop.f32.mrb[0].mxu0
  %v7290 = vadd.f32 %v7239, %v7289
  %v7291 = vpop.f32.mrb[0].mxu0
  %v7292 = vpop.f32.mrb[0].mxu0
  %7293 = vdwg.mxu0
  %7294 = vmatprep.subr.bf16.mxu0 %v5956
  %7295 = vmatpush1.bf16.msra.mxu0 %v5955
  %7296 = vmatprep.subr.bf16.mxu0 %v5960
  %7297 = vmatpush1.bf16.msra.mxu0 %v5959
  %7298 = vmatprep.subr.bf16.mxu0 %v5964
  %7299 = vmatpush1.bf16.msra.mxu0 %v5963
  %7300 = vmatprep.subr.bf16.mxu0 %v5968
  %7301 = vmatpush1.bf16.msra.mxu0 %v5967
  %7302 = vmatprep.subr.bf16.mxu0 %v5972
  %7303 = vmatpush1.bf16.msra.mxu0 %v5971
  %7304 = vmatprep.subr.bf16.mxu0 %v5976
  %7305 = vmatpush1.bf16.msra.mxu0 %v5975
  %7306 = vmatprep.subr.bf16.mxu0 %v5980
  %7307 = vmatpush1.bf16.msra.mxu0 %v5979
  %7308 = vmatprep.subr.bf16.mxu0 %v5984
  %7309 = vmatpush1.bf16.msra.mxu0 %v5983
  %7310 = vmatprep.subr.bf16.mxu0 %v5988
  %7311 = vmatpush1.bf16.msra.mxu0 %v5987
  %7312 = vmatprep.subr.bf16.mxu0 %v5992
  %7313 = vmatpush1.bf16.msra.mxu0 %v5991
  %7314 = vmatprep.subr.bf16.mxu0 %v5996
  %7315 = vmatpush1.bf16.msra.mxu0 %v5995
  %7316 = vmatprep.subr.bf16.mxu0 %v6000
  %7317 = vmatpush1.bf16.msra.mxu0 %v5999
  %7318 = vmatprep.subr.bf16.mxu0 %v6004
  %7319 = vmatpush1.bf16.msra.mxu0 %v6003
  %7320 = vmatprep.subr.bf16.mxu0 %v6008
  %7321 = vmatpush1.bf16.msra.mxu0 %v6007
  %7322 = vmatprep.subr.bf16.mxu0 %v6012
  %7323 = vmatpush1.bf16.msra.mxu0 %v6011
  %7324 = vmatprep.subr.bf16.mxu0 %v6016
  %7325 = vmatpush1.bf16.msra.mxu0 %v6015
  %7326 = vmatprep.mubr.bf16.mxu0 %v3418
  %7327 = vmatmul.mubr.bf16.gmra.mrb[0].mxu0 %v3417
  %v7328 = vpop.f32.mrb[0].mxu0
  %v7329 = vadd.f32 %v7278, %v7328
  %v7330 = vpop.f32.mrb[0].mxu0
  %v7331 = vadd.f32 %v7280, %v7330
  %v7332 = vpop.f32.mrb[0].mxu0
  %v7333 = vadd.f32 %v7282, %v7332
  %v7334 = vpop.f32.mrb[0].mxu0
  %v7335 = vadd.f32 %v7284, %v7334
  %7336 = vmatprep.mubr.bf16.mxu0 %v3434
  %7337 = vmatmul.mubr.bf16.gmra.mrb[0].mxu0 %v3433
  %v7338 = vpop.f32.mrb[0].mxu0
  %v7339 = vadd.f32 %v7288, %v7338
  %v7340 = vpop.f32.mrb[0].mxu0
  %v7341 = vadd.f32 %v7290, %v7340
  %v7342 = vpop.f32.mrb[0].mxu0
  %v7343 = vpop.f32.mrb[0].mxu0
  %7344 = vdwg.mxu0
  %v7345 = vmax.f32 %v6921, 0.0
  %v7346 = vmax.f32 %v6923, 0.0
  %v7347 = vmax.f32 %v7329, 0.0
  %v7348 = vmax.f32 %v7331, 0.0
  %v7349 = vmax.f32 %v6925, 0.0
  %v7350 = vmax.f32 %v6927, 0.0
  %v7351 = vmax.f32 %v7333, 0.0
  %v7352 = vmax.f32 %v7335, 0.0
  %v7353 = vmax.f32 %v6931, 0.0
  %v7354 = vmax.f32 %v6933, 0.0
  %v7355 = vmax.f32 %v7339, 0.0
  %v7356 = vmax.f32 %v7341, 0.0
  %v7357 = vpack.c.bf16 %v7349, %v7345
  %v7358 = vpack.c.bf16 %v7350, %v7346
  %v7359 = vpack.c.bf16 %v7351, %v7347
  %v7360 = vpack.c.bf16 %v7352, %v7348
  %v7361 = vpack.c.bf16 %v7353, %v7353
  %v7362 = vpack.c.bf16 %v7354, %v7354
  %v7363 = vpack.c.bf16 %v7355, %v7355
  %v7364 = vpack.c.bf16 %v7356, %v7356
  %v7365 = vld [vmem:[%s5] sm:$0xf]
  %v7366 = vld [vmem:[%s5 + $0x4] sm:$0xf]
  %v7367 = vld [vmem:[%s5 + $0x8] sm:$0xf]
  %v7368 = vld [vmem:[%s5 + $0xc] sm:$0xf]
  %v7369 = vld [vmem:[%s5 + $0x10] sm:$0xf]
  %v7370 = vld [vmem:[%s5 + $0x14] sm:$0xf]
  %v7371 = vld [vmem:[%s5 + $0x18] sm:$0xf]
  %v7372 = vld [vmem:[%s5 + $0x1c] sm:$0xf]
  %v7373 = vld [vmem:[%s5 + $0x20] sm:$0xf]
  %v7374 = vld [vmem:[%s5 + $0x24] sm:$0xf]
  %v7375 = vld [vmem:[%s5 + $0x28] sm:$0xf]
  %v7376 = vld [vmem:[%s5 + $0x2c] sm:$0xf]
  %v7377 = vld [vmem:[%s5 + $0x30] sm:$0xf]
  %v7378 = vld [vmem:[%s5 + $0x34] sm:$0xf]
  %v7379 = vld [vmem:[%s5 + $0x38] sm:$0xf]
  %v7380 = vld [vmem:[%s5 + $0x3c] sm:$0xf]
  %v7381 = vld [vmem:[%s5 + $0x40] sm:$0xf]
  %v7382 = vld [vmem:[%s5 + $0x44] sm:$0xf]
  %v7383 = vld [vmem:[%s5 + $0x48] sm:$0xf]
  %v7384 = vld [vmem:[%s5 + $0x4c] sm:$0xf]
  %v7385 = vld [vmem:[%s5 + $0x50] sm:$0xf]
  %v7386 = vld [vmem:[%s5 + $0x54] sm:$0xf]
  %v7387 = vld [vmem:[%s5 + $0x58] sm:$0xf]
  %v7388 = vld [vmem:[%s5 + $0x5c] sm:$0xf]
  %v7389 = vld [vmem:[%s5 + $0x60] sm:$0xf]
  %v7390 = vld [vmem:[%s5 + $0x64] sm:$0xf]
  %v7391 = vld [vmem:[%s5 + $0x68] sm:$0xf]
  %v7392 = vld [vmem:[%s5 + $0x6c] sm:$0xf]
  %v7393 = vld [vmem:[%s5 + $0x70] sm:$0xf]
  %v7394 = vld [vmem:[%s5 + $0x74] sm:$0xf]
  %v7395 = vld [vmem:[%s5 + $0x78] sm:$0xf]
  %v7396 = vld [vmem:[%s5 + $0x7c] sm:$0xf]
  %v7397 = vld [vmem:[%s5 + $0x80] sm:$0xf]
  %v7398 = vld [vmem:[%s5 + $0x84] sm:$0xf]
  %v7399 = vld [vmem:[%s5 + $0x88] sm:$0xf]
  %v7400 = vld [vmem:[%s5 + $0x8c] sm:$0xf]
  %v7401 = vld [vmem:[%s5 + $0x90] sm:$0xf]
  %v7402 = vld [vmem:[%s5 + $0x94] sm:$0xf]
  %v7403 = vld [vmem:[%s5 + $0x98] sm:$0xf]
  %v7404 = vld [vmem:[%s5 + $0x9c] sm:$0xf]
  %v7405 = vld [vmem:[%s5 + $0xa0] sm:$0xf]
  %v7406 = vld [vmem:[%s5 + $0xa4] sm:$0xf]
  %v7407 = vld [vmem:[%s5 + $0xa8] sm:$0xf]
  %v7408 = vld [vmem:[%s5 + $0xac] sm:$0xf]
  %v7409 = vld [vmem:[%s5 + $0xb0] sm:$0xf]
  %v7410 = vld [vmem:[%s5 + $0xb4] sm:$0xf]
  %v7411 = vld [vmem:[%s5 + $0xb8] sm:$0xf]
  %v7412 = vld [vmem:[%s5 + $0xbc] sm:$0xf]
  %v7413 = vld [vmem:[%s5 + $0xc0] sm:$0xf]
  %v7414 = vld [vmem:[%s5 + $0xc4] sm:$0xf]
  %v7415 = vld [vmem:[%s5 + $0xc8] sm:$0xf]
  %v7416 = vld [vmem:[%s5 + $0xcc] sm:$0xf]
  %v7417 = vld [vmem:[%s5 + $0xd0] sm:$0xf]
  %v7418 = vld [vmem:[%s5 + $0xd4] sm:$0xf]
  %v7419 = vld [vmem:[%s5 + $0xd8] sm:$0xf]
  %v7420 = vld [vmem:[%s5 + $0xdc] sm:$0xf]
  %v7421 = vld [vmem:[%s5 + $0xe0] sm:$0xf]
  %v7422 = vld [vmem:[%s5 + $0xe4] sm:$0xf]
  %v7423 = vld [vmem:[%s5 + $0xe8] sm:$0xf]
  %v7424 = vld [vmem:[%s5 + $0xec] sm:$0xf]
  %v7425 = vld [vmem:[%s5 + $0xf0] sm:$0xf]
  %v7426 = vld [vmem:[%s5 + $0xf4] sm:$0xf]
  %v7427 = vld [vmem:[%s5 + $0xf8] sm:$0xf]
  %v7428 = vld [vmem:[%s5 + $0xfc] sm:$0xf]
  %v7429 = vld [vmem:[%s6] sm:$0x1]
  %v7431 = vlaneseq
  %v7432 = vshrl.u32 %v7431, 7
  %v7433 = vsub.s32 0, %v7432
  %v7434 = vrot.slane %v7429, %v7433
  %v7500 = vunpack.c.l.b16 %v7365
  %v7501 = vunpack.c.l.b16 %v7366
  %v7502 = vunpack.c.l.b16 %v7367
  %v7503 = vunpack.c.l.b16 %v7368
  %v7504 = vunpack.c.l.b16 %v7369
  %v7505 = vunpack.c.l.b16 %v7370
  %v7506 = vunpack.c.l.b16 %v7371
  %v7507 = vunpack.c.l.b16 %v7372
  %v7508 = vunpack.c.l.b16 %v7373
  %v7509 = vunpack.c.l.b16 %v7374
  %v7510 = vunpack.c.l.b16 %v7375
  %v7511 = vunpack.c.l.b16 %v7376
  %v7512 = vunpack.c.l.b16 %v7377
  %v7513 = vunpack.c.l.b16 %v7378
  %v7514 = vunpack.c.l.b16 %v7379
  %v7515 = vunpack.c.l.b16 %v7380
  %v7516 = vunpack.c.l.b16 %v7381
  %v7517 = vunpack.c.l.b16 %v7382
  %v7518 = vunpack.c.l.b16 %v7383
  %v7519 = vunpack.c.l.b16 %v7384
  %v7520 = vunpack.c.l.b16 %v7385
  %v7521 = vunpack.c.l.b16 %v7386
  %v7522 = vunpack.c.l.b16 %v7387
  %v7523 = vunpack.c.l.b16 %v7388
  %v7524 = vunpack.c.l.b16 %v7389
  %v7525 = vunpack.c.l.b16 %v7390
  %v7526 = vunpack.c.l.b16 %v7391
  %v7527 = vunpack.c.l.b16 %v7392
  %v7528 = vunpack.c.l.b16 %v7393
  %v7529 = vunpack.c.l.b16 %v7394
  %v7530 = vunpack.c.l.b16 %v7395
  %v7531 = vunpack.c.l.b16 %v7396
  %v7532 = vunpack.c.l.b16 %v7397
  %v7533 = vunpack.c.l.b16 %v7398
  %v7534 = vunpack.c.l.b16 %v7399
  %v7535 = vunpack.c.l.b16 %v7400
  %v7536 = vunpack.c.l.b16 %v7401
  %v7537 = vunpack.c.l.b16 %v7402
  %v7538 = vunpack.c.l.b16 %v7403
  %v7539 = vunpack.c.l.b16 %v7404
  %v7540 = vunpack.c.l.b16 %v7405
  %v7541 = vunpack.c.l.b16 %v7406
  %v7542 = vunpack.c.l.b16 %v7407
  %v7543 = vunpack.c.l.b16 %v7408
  %v7544 = vunpack.c.l.b16 %v7409
  %v7545 = vunpack.c.l.b16 %v7410
  %v7546 = vunpack.c.l.b16 %v7411
  %v7547 = vunpack.c.l.b16 %v7412
  %v7548 = vunpack.c.l.b16 %v7413
  %v7549 = vunpack.c.l.b16 %v7414
  %v7550 = vunpack.c.l.b16 %v7415
  %v7551 = vunpack.c.l.b16 %v7416
  %v7552 = vunpack.c.l.b16 %v7417
  %v7553 = vunpack.c.l.b16 %v7418
  %v7554 = vunpack.c.l.b16 %v7419
  %v7555 = vunpack.c.l.b16 %v7420
  %v7556 = vunpack.c.l.b16 %v7421
  %v7557 = vunpack.c.l.b16 %v7422
  %v7558 = vunpack.c.l.b16 %v7423
  %v7559 = vunpack.c.l.b16 %v7424
  %v7560 = vunpack.c.l.b16 %v7425
  %v7561 = vunpack.c.l.b16 %v7426
  %v7562 = vunpack.c.l.b16 %v7427
  %v7563 = vunpack.c.l.b16 %v7428
  %v7564 = vpack.c.b16 %v7501, %v7500
  %v7565 = vpack.c.b16 %v7503, %v7502
  %v7566 = vpack.c.b16 %v7505, %v7504
  %v7567 = vpack.c.b16 %v7507, %v7506
  %v7568 = vpack.c.b16 %v7509, %v7508
  %v7569 = vpack.c.b16 %v7511, %v7510
  %v7570 = vpack.c.b16 %v7513, %v7512
  %v7571 = vpack.c.b16 %v7515, %v7514
  %v7572 = vpack.c.b16 %v7517, %v7516
  %v7573 = vpack.c.b16 %v7519, %v7518
  %v7574 = vpack.c.b16 %v7521, %v7520
  %v7575 = vpack.c.b16 %v7523, %v7522
  %v7576 = vpack.c.b16 %v7525, %v7524
  %v7577 = vpack.c.b16 %v7527, %v7526
  %v7578 = vpack.c.b16 %v7529, %v7528
  %v7579 = vpack.c.b16 %v7531, %v7530
  %v7580 = vpack.c.b16 %v7533, %v7532
  %v7581 = vpack.c.b16 %v7535, %v7534
  %v7582 = vpack.c.b16 %v7537, %v7536
  %v7583 = vpack.c.b16 %v7539, %v7538
  %v7584 = vpack.c.b16 %v7541, %v7540
  %v7585 = vpack.c.b16 %v7543, %v7542
  %v7586 = vpack.c.b16 %v7545, %v7544
  %v7587 = vpack.c.b16 %v7547, %v7546
  %v7588 = vpack.c.b16 %v7549, %v7548
  %v7589 = vpack.c.b16 %v7551, %v7550
  %v7590 = vpack.c.b16 %v7553, %v7552
  %v7591 = vpack.c.b16 %v7555, %v7554
  %v7592 = vpack.c.b16 %v7557, %v7556
  %v7593 = vpack.c.b16 %v7559, %v7558
  %v7594 = vpack.c.b16 %v7561, %v7560
  %v7595 = vpack.c.b16 %v7563, %v7562
  %7628 = vmatprep.subr.bf16.mxu0 0
  %7629 = vmatpush1.bf16.msra.mxu0 %v7564
  %7630 = vmatprep.subr.bf16.mxu0 0
  %7631 = vmatpush1.bf16.msra.mxu0 %v7565
  %7632 = vmatprep.subr.bf16.mxu0 0
  %7633 = vmatpush1.bf16.msra.mxu0 %v7566
  %7634 = vmatprep.subr.bf16.mxu0 0
  %7635 = vmatpush1.bf16.msra.mxu0 %v7567
  %7636 = vmatprep.subr.bf16.mxu0 0
  %7637 = vmatpush1.bf16.msra.mxu0 %v7568
  %7638 = vmatprep.subr.bf16.mxu0 0
  %7639 = vmatpush1.bf16.msra.mxu0 %v7569
  %7640 = vmatprep.subr.bf16.mxu0 0
  %7641 = vmatpush1.bf16.msra.mxu0 %v7570
  %7642 = vmatprep.subr.bf16.mxu0 0
  %7643 = vmatpush1.bf16.msra.mxu0 %v7571
  %7644 = vmatprep.subr.bf16.mxu0 0
  %7645 = vmatpush1.bf16.msra.mxu0 %v7572
  %7646 = vmatprep.subr.bf16.mxu0 0
  %7647 = vmatpush1.bf16.msra.mxu0 %v7573
  %7648 = vmatprep.subr.bf16.mxu0 0
  %7649 = vmatpush1.bf16.msra.mxu0 %v7574
  %7650 = vmatprep.subr.bf16.mxu0 0
  %7651 = vmatpush1.bf16.msra.mxu0 %v7575
  %7652 = vmatprep.subr.bf16.mxu0 0
  %7653 = vmatpush1.bf16.msra.mxu0 %v7576
  %7654 = vmatprep.subr.bf16.mxu0 0
  %7655 = vmatpush1.bf16.msra.mxu0 %v7577
  %7656 = vmatprep.subr.bf16.mxu0 0
  %7657 = vmatpush1.bf16.msra.mxu0 %v7578
  %7658 = vmatprep.subr.bf16.mxu0 0
  %7659 = vmatpush1.bf16.msra.mxu0 %v7579
  %7660 = vmatprep.mubr.bf16.mxu0 %v7358
  %7661 = vmatmul.mubr.bf16.gmra.mrb[0].mxu0 %v7357
  %v7662 = vpop.f32.mrb[0].mxu0
  %v7663 = vadd.f32 %v7434, %v7662
  %v7664 = vpop.f32.mrb[0].mxu0
  %v7665 = vpop.f32.mrb[0].mxu0
  %v7666 = vadd.f32 %v7434, %v7665
  %v7667 = vpop.f32.mrb[0].mxu0
  %7668 = vmatprep.mubr.bf16.mxu0 %v7362
  %7669 = vmatmul.mubr.bf16.gmra.mrb[0].mxu0 %v7361
  %v7670 = vpop.f32.mrb[0].mxu0
  %v7671 = vadd.f32 %v7434, %v7670
  %v7672 = vpop.f32.mrb[0].mxu0
  %v7673 = vpop.f32.mrb[0].mxu0
  %v7674 = vpop.f32.mrb[0].mxu0
  %7675 = vdwg.mxu0
  %7676 = vmatprep.subr.bf16.mxu0 0
  %7677 = vmatpush1.bf16.msra.mxu0 %v7580
  %7678 = vmatprep.subr.bf16.mxu0 0
  %7679 = vmatpush1.bf16.msra.mxu0 %v7581
  %7680 = vmatprep.subr.bf16.mxu0 0
  %7681 = vmatpush1.bf16.msra.mxu0 %v7582
  %7682 = vmatprep.subr.bf16.mxu0 0
  %7683 = vmatpush1.bf16.msra.mxu0 %v7583
  %7684 = vmatprep.subr.bf16.mxu0 0
  %7685 = vmatpush1.bf16.msra.mxu0 %v7584
  %7686 = vmatprep.subr.bf16.mxu0 0
  %7687 = vmatpush1.bf16.msra.mxu0 %v7585
  %7688 = vmatprep.subr.bf16.mxu0 0
  %7689 = vmatpush1.bf16.msra.mxu0 %v7586
  %7690 = vmatprep.subr.bf16.mxu0 0
  %7691 = vmatpush1.bf16.msra.mxu0 %v7587
  %7692 = vmatprep.subr.bf16.mxu0 0
  %7693 = vmatpush1.bf16.msra.mxu0 %v7588
  %7694 = vmatprep.subr.bf16.mxu0 0
  %7695 = vmatpush1.bf16.msra.mxu0 %v7589
  %7696 = vmatprep.subr.bf16.mxu0 0
  %7697 = vmatpush1.bf16.msra.mxu0 %v7590
  %7698 = vmatprep.subr.bf16.mxu0 0
  %7699 = vmatpush1.bf16.msra.mxu0 %v7591
  %7700 = vmatprep.subr.bf16.mxu0 0
  %7701 = vmatpush1.bf16.msra.mxu0 %v7592
  %7702 = vmatprep.subr.bf16.mxu0 0
  %7703 = vmatpush1.bf16.msra.mxu0 %v7593
  %7704 = vmatprep.subr.bf16.mxu0 0
  %7705 = vmatpush1.bf16.msra.mxu0 %v7594
  %7706 = vmatprep.subr.bf16.mxu0 0
  %7707 = vmatpush1.bf16.msra.mxu0 %v7595
  %7708 = vmatprep.mubr.bf16.mxu0 %v7360
  %7709 = vmatmul.mubr.bf16.gmra.mrb[0].mxu0 %v7359
  %v7710 = vpop.f32.mrb[0].mxu0
  %v7711 = vadd.f32 %v7663, %v7710
  %v7712 = vpop.f32.mrb[0].mxu0
  %v7713 = vpop.f32.mrb[0].mxu0
  %v7714 = vadd.f32 %v7666, %v7713
  %v7715 = vpop.f32.mrb[0].mxu0
  %7716 = vmatprep.mubr.bf16.mxu0 %v7364
  %7717 = vmatmul.mubr.bf16.gmra.mrb[0].mxu0 %v7363
  %v7718 = vpop.f32.mrb[0].mxu0
  %v7719 = vadd.f32 %v7671, %v7718
  %v7720 = vpop.f32.mrb[0].mxu0
  %v7721 = vpop.f32.mrb[0].mxu0
  %v7722 = vpop.f32.mrb[0].mxu0
  %7723 = vdwg.mxu0
  %7724 = vst [vmem:[%s7] sm:$0xff] %v7711
  %7725 = vst [vmem:[%s7 + $0x8] sm:$0xff] %v7714
  %7726 = vst [vmem:[%s7 + $0x10] sm:$0xff] %v7719
  // Predicated region
  $region30: #{regression_layer_forward.5} parent=0 // pred_check
    _
  $region31: #{regression_layer_forward.5} parent=0 // pred_check_branch
    %7728 = sbr.rel (0) target = $region33
  $region32: #{regression_layer_forward.5} parent=0 // pred_region
    _
  $region33: #{regression_layer_forward.5} parent=0 // pred_fallthru
    _
  // Predicated region
  $region34: #{regression_layer_forward.5} parent=0 // pred_check
    _
  $region35: #{regression_layer_forward.5} parent=0 // pred_check_branch
    %7730 = sbr.rel (0) target = $region37
  $region36: #{regression_layer_forward.5} parent=0 // pred_region
    _
  $region37: #{regression_layer_forward.5} parent=0 // pred_fallthru
    _

</llo_original>
